<compile_context>
chip_gen: v7x
topology: tpu7x:2x2x1
jax: 0.10.0
libtpu: 0.0.40
codegen_flags: <defaults>
</compile_context>

<pallas_src>
import functools
import numpy as np

import jax
import jax.numpy as jnp
from jax.experimental import pallas as pl
from jax.experimental.pallas import tpu as pltpu

# MXU operand dtype.  float32 keeps the <1e-3 parity check against the XLA reference;
# bf16 is the production choice (accumulation stays f32 via preferred_element_type).
MXU_DTYPE = jnp.float32


def _pad_ch(c):
    """Pad a channel count to a multiple of 8 (>=8) so W*C is 128-lane dense at W=16/8."""
    return max(8, -(-c // 8) * 8)


# ----------------------------------------------------------------------------
# Per-layer precompute (runs once, outside the jitted forward)
# ----------------------------------------------------------------------------
def _band_weights(w, W, d):
    """(3,3,Cin,Cout) dilated-3x3 weights -> (3, W*Cin, W*Cout) banded matrices so the
    W-direction conv (incl. zero padding along W) becomes a lane-axis matmul."""
    _, _, cin, cout = w.shape
    shifts = np.stack([np.eye(W, k=(1 - kx) * d, dtype=np.float32)
                       for kx in range(3)])                   # (kx, wi, wo)
    wb = np.einsum('xio,yxck->yicok', shifts, w.astype(np.float32))
    return wb.reshape(3, W * cin, W * cout)


def _interp_matrix(out_size, in_size):
    """Bilinear (align_corners=False) interpolation matrix, (out_size, in_size)."""
    m = np.zeros((out_size, in_size), np.float32)
    for o in range(out_size):
        src = max((o + 0.5) * (in_size / out_size) - 0.5, 0.0)
        lo = min(int(np.floor(src)), in_size - 1)
        hi = min(lo + 1, in_size - 1)
        f = src - lo
        m[o, lo] += 1.0 - f
        m[o, hi] += f
    return m


def _prepare_layer(lp, *, H, W, d, ops, coutp):
    """Precompute the stacked banded weights (with the W-upsample folded in for decoder
    operands), the W-tiled folded-BN affine and the per-operand row-gather matrices."""
    w = np.asarray(lp['w'], np.float32)
    scale = np.asarray(lp['scale'], np.float32)
    bias = np.asarray(lp['bias'], np.float32)
    cout = w.shape[-1]

    wk_blocks, rows_mats, ups_flags, c0 = [], [], [], 0
    for op in ops:
        cin, cinp = op['cin'], op['cinp']
        # Zero-pad this operand's weight slice to the padded channel counts.
        wp = np.zeros((3, 3, cinp, coutp), np.float32)
        wp[:, :, :cin, :cout] = w[:, :, c0:c0 + cin, :]
        c0 += cin
        band = _band_weights(wp, W, d)                         # (3, W*cinp, W*coutp)
        if op['up']:
            # Fold the W-direction bilinear upsample into the banded weights.
            uw = _interp_matrix(W, op['win'])                  # (W, win)
            uwc = np.kron(uw.T, np.eye(cinp, dtype=np.float32))
            band = np.einsum('ij,yjk->yik', uwc, band)         # (3, win*cinp, W*coutp)
            uh = _interp_matrix(H, op['hin'])                  # (H, hin)
        else:
            uh = np.eye(H, dtype=np.float32)
        # Row-gather matrices: ky-th slab of the zero-haloed (and H-upsampled) image
        # is  rows[ky] @ x  with rows[ky] = Shift_{(ky-1)d} @ Uh  (zero rows = halo).
        rows = np.stack([np.eye(H, k=(ky - 1) * d, dtype=np.float32) @ uh
                         for ky in range(3)])                  # (3, H, hin_or_H)
        wk_blocks.append(band.reshape(-1, W * coutp))
        rows_mats.append(jnp.asarray(rows))
        ups_flags.append(bool(op['up']))

    wk = np.concatenate(wk_blocks, axis=0)                     # (Ktot, W*coutp)
    scp = np.zeros((coutp,), np.float32); scp[:cout] = scale
    bip = np.zeros((coutp,), np.float32); bip[:cout] = bias
    affine = np.stack([np.tile(scp, W), np.tile(bip, W)])      # (2, W*coutp)

    return {'wk': jnp.asarray(wk).astype(MXU_DTYPE),
            'affine': jnp.asarray(affine),
            'rows': tuple(rows_mats),
            'ups': tuple(ups_flags),
            'H': H, 'W': W, 'coutp': coutp}


def prepare_rsu6(params, H, W, in_ch=3, mid_ch=12, out_ch=3):
    """Build all per-layer kernel constants once for a given input spatial size."""
    inp, midp, outp = _pad_ch(in_ch), _pad_ch(mid_ch), _pad_ch(out_ch)
    hs, ws = [H], [W]
    for _ in range(4):                                  # encoder ceil-mode 2x2 pools
        hs.append(-(-hs[-1] // 2)); ws.append(-(-ws[-1] // 2))

    def op(cin, cinp, hin=None, win=None, up=False):
        return {'cin': cin, 'cinp': cinp, 'hin': hin, 'win': win, 'up': up}

    P = {}
    P['in'] = _prepare_layer(params['in'], H=hs[0], W=ws[0], d=1,
                             ops=[op(in_ch, inp)], coutp=outp)
    P['1'] = _prepare_layer(params['1'], H=hs[0], W=ws[0], d=1,
                            ops=[op(out_ch, outp)], coutp=midp)
    for lvl in (2, 3, 4, 5):
        P[str(lvl)] = _prepare_layer(params[str(lvl)], H=hs[lvl - 1], W=ws[lvl - 1],
                                     d=1, ops=[op(mid_ch, midp)], coutp=midp)
    P['6'] = _prepare_layer(params['6'], H=hs[4], W=ws[4], d=2,
                            ops=[op(mid_ch, midp)], coutp=midp)
    P['5d'] = _prepare_layer(params['5d'], H=hs[4], W=ws[4], d=1,
                             ops=[op(mid_ch, midp), op(mid_ch, midp)], coutp=midp)
    for lvl, name in ((3, '4d'), (2, '3d'), (1, '2d')):
        P[name] = _prepare_layer(
            params[name], H=hs[lvl], W=ws[lvl], d=1,
            ops=[op(mid_ch, midp, hin=hs[lvl + 1], win=ws[lvl + 1], up=True),
                 op(mid_ch, midp)], coutp=midp)
    P['1d'] = _prepare_layer(
        params['1d'], H=hs[0], W=ws[0], d=1,
        ops=[op(mid_ch, midp, hin=hs[1], win=ws[1], up=True),
             op(mid_ch, midp)], coutp=outp)
    P['meta'] = {'in_ch': in_ch, 'out_ch': out_ch, 'inp': inp}
    return P


# ----------------------------------------------------------------------------
# Pallas kernel: fused (upsample) + dilated 3x3 conv + BN + ReLU (+res) (+pool)
# ----------------------------------------------------------------------------
def _make_conv_kernel(H, W, Coutp, op_info, with_residual, with_pool):
    """op_info: tuple of (WCin, upsampled) per operand."""
    P = len(op_info)
    Ho, Wo = -(-H // 2), -(-W // 2)

    def kernel(*refs):
        i = 0
        x_refs = refs[i:i + P]; i += P                  # (1, Hin, WCin) each
        row_refs = refs[i:i + P]; i += P                # (3, H, Hin) each
        w_ref = refs[i]; i += 1                         # (Ktot, W*Coutp)
        aff_ref = refs[i]; i += 1                       # (2, W*Coutp)
        res_ref = None
        if with_residual:
            res_ref = refs[i]; i += 1                   # (1, H, W*Coutp)
        out_ref = refs[i]; i += 1                       # (1, H, W*Coutp)
        pool_ref = refs[i] if with_pool else None       # (1, Ho, Wo*Coutp)

        # Build the single big-K LHS: per operand, the 3 row-shifted / zero-haloed
        # (and bilinearly H-upsampled, for decoder operands) slabs, concatenated
        # along lanes.  All row movement is done by tiny MXU matmuls, so there is
        # no scratch, no zero-fill and no sublane-misaligned relayout.
        chunks = []
        for p, (WCin, ups) in enumerate(op_info):
            x = x_refs[p][0].astype(MXU_DTYPE)                       # (Hin, WCin)
            for ky in range(3):
                if ky == 1 and not ups:
                    chunks.append(x.astype(jnp.float32))             # identity slab
                else:
                    chunks.append(jnp.dot(row_refs[p][ky].astype(MXU_DTYPE), x,
                                          preferred_element_type=jnp.float32))
        lhs = jnp.concatenate(chunks, axis=1)                        # (H, Ktot)

        # One MXU contraction per REBNCONV (W-conv, W-padding and W-upsample are
        # folded into the precomputed banded weights).
        acc = jnp.dot(lhs.astype(MXU_DTYPE), w_ref[...],
                      preferred_element_type=jnp.float32)            # (H, W*Coutp)

        # Folded BatchNorm affine (tiled over W) + ReLU (+ fused residual add).
        y = jnp.maximum(acc * aff_ref[0:1, :] + aff_ref[1:2, :], 0.0)
        if with_residual:
            y = y + res_ref[0]
        out_ref[0] = y

        if with_pool:
            # Fused 2x2 max-pool (ceil_mode): VPU max in VMEM before the store, so
            # the next encoder level never re-reads the full-res map through HBM.
            rows = []
            for ho in range(Ho):
                r = y[2 * ho:2 * ho + 1, :]
                if 2 * ho + 1 < H:
                    r = jnp.maximum(r, y[2 * ho + 1:2 * ho + 2, :])
                rows.append(r)
            yh = rows[0] if len(rows) == 1 else jnp.concatenate(rows, axis=0)
            cols = []
            for wo in range(Wo):
                c0 = 2 * wo * Coutp
                blk = yh[:, c0:c0 + Coutp]
                if 2 * wo + 1 < W:
                    blk = jnp.maximum(blk, yh[:, c0 + Coutp:c0 + 2 * Coutp])
                cols.append(blk)
            pool_ref[0] = cols[0] if len(cols) == 1 else jnp.concatenate(cols, axis=1)

    return kernel


def conv_layer(xs, plan, *, residual=None, pool=False):
    """One fused REBNCONV: (optional bilinear upsample of decoder operands) +
    dilated 3x3 conv over the virtual channel concat + folded BN + ReLU
    (+ fused residual add) (+ fused 2x2 ceil-mode max-pool second output)."""
    if not isinstance(xs, (list, tuple)):
        xs = [xs]
    H, W, Coutp = plan['H'], plan['W'], plan['coutp']
    WCout = W * Coutp
    N = xs[0].shape[0]

    op_info, args, in_specs = [], [], []
    for x, ups in zip(xs, plan['ups']):
        _, h, w, c = x.shape
        op_info.append((w * c, ups))
        args.append(x.astype(jnp.float32).reshape(N, h, w * c))
        in_specs.append(pl.BlockSpec((1, h, w * c), lambda n: (n, 0, 0)))
    for rows in plan['rows']:
        args.append(rows)
        in_specs.append(pl.BlockSpec(rows.shape, lambda n: (0, 0, 0)))
    args.append(plan['wk'])
    in_specs.append(pl.BlockSpec(plan['wk'].shape, lambda n: (0, 0)))
    args.append(plan['affine'])
    in_specs.append(pl.BlockSpec(plan['affine'].shape, lambda n: (0, 0)))
    if residual is not None:
        args.append(residual.astype(jnp.float32).reshape(N, H, WCout))
        in_specs.append(pl.BlockSpec((1, H, WCout), lambda n: (n, 0, 0)))

    Ho, Wo = -(-H // 2), -(-W // 2)
    out_shape = [jax.ShapeDtypeStruct((N, H, WCout), jnp.float32)]
    out_specs = [pl.BlockSpec((1, H, WCout), lambda n: (n, 0, 0))]
    if pool:
        out_shape.append(jax.ShapeDtypeStruct((N, Ho, Wo * Coutp), jnp.float32))
        out_specs.append(pl.BlockSpec((1, Ho, Wo * Coutp), lambda n: (n, 0, 0)))

    outs = pl.pallas_call(
        _make_conv_kernel(H, W, Coutp, tuple(op_info), residual is not None, pool),
        out_shape=tuple(out_shape),
        grid=(N,),                       # >=2 parallel steps keeps both v7x TCs busy
        in_specs=in_specs,
        out_specs=tuple(out_specs),
        compiler_params=pltpu.CompilerParams(
            dimension_semantics=("parallel",),
            vmem_limit_bytes=32 * 1024 * 1024),
    )(*args)

    y = outs[0].reshape(N, H, W, Coutp)
    if pool:
        return y, outs[1].reshape(N, Ho, Wo, Coutp)
    return y


# ----------------------------------------------------------------------------
# RSU6 forward (NHWC, Pallas)
# ----------------------------------------------------------------------------
def rsu6_forward(x, plans):
    meta = plans['meta']
    N, H, W, C = x.shape
    xp = jnp.pad(x.astype(jnp.float32),
                 ((0, 0), (0, 0), (0, 0), (0, meta['inp'] - C)))

    hxin = conv_layer([xp], plans['in'])
    hx1, hx1p = conv_layer([hxin], plans['1'], pool=True)
    hx2, hx2p = conv_layer([hx1p], plans['2'], pool=True)
    hx3, hx3p = conv_layer([hx2p], plans['3'], pool=True)
    hx4, hx4p = conv_layer([hx3p], plans['4'], pool=True)
    hx5 = conv_layer([hx4p], plans['5'])
    hx6 = conv_layer([hx5], plans['6'])

    # Decoder: the torch.cat is virtual (weight split along K in the precompute)
    # and the bilinear upsample of the first operand is fused into the kernel.
    hx5d = conv_layer([hx6, hx5], plans['5d'])
    hx4d = conv_layer([hx5d, hx4], plans['4d'])
    hx3d = conv_layer([hx4d, hx3], plans['3d'])
    hx2d = conv_layer([hx3d, hx2], plans['2d'])
    hx1d = conv_layer([hx2d, hx1], plans['1d'], residual=hxin)   # fused hx1d + hxin
    return hx1d[..., :meta['out_ch']]


# ----------------------------------------------------------------------------
# Glue ops for the pure-XLA reference only
# ----------------------------------------------------------------------------
def maxpool2x2_ceil(x):
    N, H, W, C = x.shape
    Ho, Wo = -(-H // 2), -(-W // 2)
    ph, pw = Ho * 2 - H, Wo * 2 - W
    xp = jnp.pad(x, ((0, 0), (0, ph), (0, pw), (0, 0)), constant_values=-jnp.inf)
    return xp.reshape(N, Ho, 2, Wo, 2, C).max(axis=(2, 4))


def upsample_bilinear(x, out_h, out_w):
    """Matches F.interpolate(mode='bilinear', align_corners=False)."""
    N, H, W, C = x.shape

    def idx_w(out_size, in_size):
        o = jnp.arange(out_size, dtype=jnp.float32)
        src = jnp.maximum((o + 0.5) * (in_size / out_size) - 0.5, 0.0)
        lo = jnp.minimum(jnp.floor(src).astype(jnp.int32), in_size - 1)
        hi = jnp.minimum(lo + 1, in_size - 1)
        return lo, hi, src - lo.astype(jnp.float32)

    hl, hh, hf = idx_w(out_h, H)
    wl, wh, wf = idx_w(out_w, W)
    top = (x[:, hl, :, :] * (1.0 - hf)[None, :, None, None]
           + x[:, hh, :, :] * hf[None, :, None, None])
    return (top[:, :, wl, :] * (1.0 - wf)[None, None, :, None]
            + top[:, :, wh, :] * wf[None, None, :, None])


# ----------------------------------------------------------------------------
# Deterministic parameter init (conv + folded BatchNorm, inference semantics)
# ----------------------------------------------------------------------------
def init_rebnconv(key, cin, cout):
    k1, k2, k3, k4, k5, k6 = jax.random.split(key, 6)
    w = 0.1 * jax.random.normal(k1, (3, 3, cin, cout), jnp.float32)
    b = 0.1 * jax.random.normal(k2, (cout,), jnp.float32)
    gamma = 1.0 + 0.1 * jax.random.normal(k3, (cout,), jnp.float32)
    beta = 0.1 * jax.random.normal(k4, (cout,), jnp.float32)
    mean = 0.1 * jax.random.normal(k5, (cout,), jnp.float32)
    var = 1.0 + 0.1 * jnp.abs(jax.random.normal(k6, (cout,), jnp.float32))
    eps = 1e-5
    scale = gamma / jnp.sqrt(var + eps)
    bias = (b - mean) * scale + beta
    return {"w": w, "scale": scale, "bias": bias}


def init_rsu6_params(key, in_ch=3, mid_ch=12, out_ch=3):
    names_shapes = [
        ("in", in_ch, out_ch), ("1", out_ch, mid_ch), ("2", mid_ch, mid_ch),
        ("3", mid_ch, mid_ch), ("4", mid_ch, mid_ch), ("5", mid_ch, mid_ch),
        ("6", mid_ch, mid_ch), ("5d", 2 * mid_ch, mid_ch),
        ("4d", 2 * mid_ch, mid_ch), ("3d", 2 * mid_ch, mid_ch),
        ("2d", 2 * mid_ch, mid_ch), ("1d", 2 * mid_ch, out_ch),
    ]
    keys = jax.random.split(key, len(names_shapes))
    return {name: init_rebnconv(k, ci, co)
            for k, (name, ci, co) in zip(keys, names_shapes)}


# ----------------------------------------------------------------------------
# Pure-XLA reference (same folded-BN params / glue) for the numerical check
# ----------------------------------------------------------------------------
@jax.jit
def rsu6_reference(x, params):
    p = params

    def conv(x, w, scale, bias, dirate=1, residual=None):
        d = int(dirate)
        y = jax.lax.conv_general_dilated(
            x, w, (1, 1), ((d, d), (d, d)), rhs_dilation=(d, d),
            dimension_numbers=("NHWC", "HWIO", "NHWC"),
            precision=jax.lax.Precision.HIGHEST)
        y = jnp.maximum(y * scale + bias, 0.0)
        return y if residual is None else y + residual

    hxin = conv(x, **p["in"])
    hx1 = conv(hxin, **p["1"])
    hx2 = conv(maxpool2x2_ceil(hx1), **p["2"])
    hx3 = conv(maxpool2x2_ceil(hx2), **p["3"])
    hx4 = conv(maxpool2x2_ceil(hx3), **p["4"])
    hx5 = conv(maxpool2x2_ceil(hx4), **p["5"])
    hx6 = conv(hx5, **p["6"], dirate=2)
    hx5d = conv(jnp.concatenate([hx6, hx5], -1), **p["5d"])
    hx4d = conv(jnp.concatenate(
        [upsample_bilinear(hx5d, hx4.shape[1], hx4.shape[2]), hx4], -1), **p["4d"])
    hx3d = conv(jnp.concatenate(
        [upsample_bilinear(hx4d, hx3.shape[1], hx3.shape[2]), hx3], -1), **p["3d"])
    hx2d = conv(jnp.concatenate(
        [upsample_bilinear(hx3d, hx2.shape[1], hx2.shape[2]), hx2], -1), **p["2d"])
    hx1d = conv(jnp.concatenate(
        [upsample_bilinear(hx2d, hx1.shape[1], hx1.shape[2]), hx1], -1), **p["1d"],
        residual=hxin)
    return hx1d


if __name__ == "__main__":
    key = jax.random.PRNGKey(0)
    kx, kp = jax.random.split(key)

    # Small shapes consistent with RSU6 defaults: in_ch=3, mid_ch=12, out_ch=3.
    N, C, H, W = 2, 3, 16, 16
    x_nchw = jax.random.normal(kx, (N, C, H, W), jnp.float32)   # PyTorch NCHW
    x = jnp.transpose(x_nchw, (0, 2, 3, 1))                     # -> NHWC

    params = init_rsu6_params(kp, in_ch=3, mid_ch=12, out_ch=3)
    plans = prepare_rsu6(params, H, W, in_ch=3, mid_ch=12, out_ch=3)  # once, outside jit

    fwd = jax.jit(functools.partial(rsu6_forward, plans=plans))
    out = jax.block_until_ready(fwd(x))
    assert out.shape == (N, H, W, 3), out.shape
    assert bool(jnp.all(jnp.isfinite(out)))

    ref = jax.block_until_ready(rsu6_reference(x, params))
    tol = 1e-3 if MXU_DTYPE == jnp.float32 else 5e-2
    max_err = float(jnp.max(jnp.abs(out - ref)))
    assert max_err < tol, f"max abs err vs XLA reference: {max_err}"

    print("KERNEL_OK")
</pallas_src>

<mosaic_0001>
module attributes {stable_mosaic.version = 11 : i64} {
  func.func @kernel(%arg0: i32, %arg1: memref<1x16x128xf32, #tpu.memory_space<vmem>>, %arg2: memref<3x16x16xf32, #tpu.memory_space<vmem>>, %arg3: memref<384x128xf32, #tpu.memory_space<vmem>>, %arg4: memref<2x128xf32, #tpu.memory_space<vmem>>, %arg5: memref<1x16x128xf32, #tpu.memory_space<vmem>>) attributes {dimension_semantics = [#tpu.dimension_semantics<parallel>], iteration_bounds = array<i64: 2>, scalar_prefetch = 0 : i64, scratch_operands = 0 : i64, tpu.core_type = #tpu.core_type<tc>, window_params = [{transform_indices = @transform_0, window_bounds = array<i64: 1, 16, 128>}, {pipeline_mode = #tpu.pipeline_mode<synchronous>, transform_indices = @transform_1, window_bounds = array<i64: 3, 16, 16>}, {pipeline_mode = #tpu.pipeline_mode<synchronous>, transform_indices = @transform_2, window_bounds = array<i64: 384, 128>}, {pipeline_mode = #tpu.pipeline_mode<synchronous>, transform_indices = @transform_3, window_bounds = array<i64: 2, 128>}, {transform_indices = @transform_4, window_bounds = array<i64: 1, 16, 128>}]} {
    %c0 = arith.constant 0 : index
    %c0_0 = arith.constant 0 : index
    %c0_1 = arith.constant 0 : index
    %0 = vector.load %arg1[%c0, %c0_0, %c0_1] : memref<1x16x128xf32, #tpu.memory_space<vmem>>, vector<1x16x128xf32>
    %1 = vector.shape_cast %0 : vector<1x16x128xf32> to vector<16x128xf32>
    %c0_2 = arith.constant 0 : index
    %c0_3 = arith.constant 0 : index
    %c0_4 = arith.constant 0 : index
    %2 = vector.load %arg2[%c0_2, %c0_3, %c0_4] : memref<3x16x16xf32, #tpu.memory_space<vmem>>, vector<1x16x16xf32>
    %3 = vector.shape_cast %2 : vector<1x16x16xf32> to vector<16x16xf32>
    %cst = arith.constant dense<0.000000e+00> : vector<16x128xf32>
    %4 = tpu.matmul %3, %1, %cst {dimension_numbers = #tpu.dot_dimension_numbers<[1], [0], [0], [1], [0, 0, 1, 1], [], []>} : vector<16x16xf32>, vector<16x128xf32>, vector<16x128xf32> -> vector<16x128xf32>
    %c2 = arith.constant 2 : index
    %c0_5 = arith.constant 0 : index
    %c0_6 = arith.constant 0 : index
    %5 = vector.load %arg2[%c2, %c0_5, %c0_6] : memref<3x16x16xf32, #tpu.memory_space<vmem>>, vector<1x16x16xf32>
    %6 = vector.shape_cast %5 : vector<1x16x16xf32> to vector<16x16xf32>
    %cst_7 = arith.constant dense<0.000000e+00> : vector<16x128xf32>
    %7 = tpu.matmul %6, %1, %cst_7 {dimension_numbers = #tpu.dot_dimension_numbers<[1], [0], [0], [1], [0, 0, 1, 1], [], []>} : vector<16x16xf32>, vector<16x128xf32>, vector<16x128xf32> -> vector<16x128xf32>
    %8 = tpu.concatenate %4, %1, %7 in 1 : vector<16x128xf32>, vector<16x128xf32>, vector<16x128xf32> -> vector<16x384xf32>
    %c0_8 = arith.constant 0 : index
    %c0_9 = arith.constant 0 : index
    %9 = vector.load %arg3[%c0_8, %c0_9] : memref<384x128xf32, #tpu.memory_space<vmem>>, vector<384x128xf32>
    %cst_10 = arith.constant dense<0.000000e+00> : vector<16x128xf32>
    %10 = tpu.matmul %8, %9, %cst_10 {dimension_numbers = #tpu.dot_dimension_numbers<[1], [0], [0], [1], [0, 0, 1, 1], [], []>} : vector<16x384xf32>, vector<384x128xf32>, vector<16x128xf32> -> vector<16x128xf32>
    %c0_11 = arith.constant 0 : index
    %c0_12 = arith.constant 0 : index
    %11 = vector.load %arg4[%c0_11, %c0_12] : memref<2x128xf32, #tpu.memory_space<vmem>>, vector<1x128xf32>
    %12 = vector.broadcast %11 : vector<1x128xf32> to vector<16x128xf32>
    %13 = arith.mulf %10, %12 : vector<16x128xf32>
    %c1 = arith.constant 1 : index
    %c0_13 = arith.constant 0 : index
    %14 = vector.load %arg4[%c1, %c0_13] : memref<2x128xf32, #tpu.memory_space<vmem>>, vector<1x128xf32>
    %15 = vector.broadcast %14 : vector<1x128xf32> to vector<16x128xf32>
    %16 = arith.addf %13, %15 : vector<16x128xf32>
    %cst_14 = arith.constant 0.000000e+00 : f32
    %17 = vector.broadcast %cst_14 : f32 to vector<16x128xf32>
    %18 = arith.maximumf %16, %17 : vector<16x128xf32>
    %c0_15 = arith.constant 0 : index
    %c0_16 = arith.constant 0 : index
    %c0_17 = arith.constant 0 : index
    %19 = vector.load %arg5[%c0_15, %c0_16, %c0_17] : memref<1x16x128xf32, #tpu.memory_space<vmem>>, vector<1x16x128xf32>
    %20 = vector.shape_cast %19 : vector<1x16x128xf32> to vector<16x128xf32>
    %21 = vector.shape_cast %18 : vector<16x128xf32> to vector<1x16x128xf32>
    tpu.vector_store %arg5[%c0_15, %c0_16, %c0_17], %21 {strides = array<i32>} : memref<1x16x128xf32, #tpu.memory_space<vmem>>, vector<1x16x128xf32>,
    return
  }
  func.func @transform_0(%arg0: i32) -> (i32, i32, i32) {
    %c0_i32 = arith.constant 0 : i32
    %c0_i32_0 = arith.constant 0 : i32
    %c0_i32_1 = arith.constant 0 : i32
    return %arg0, %c0_i32, %c0_i32_0 : i32, i32, i32
  }
  func.func @transform_1(%arg0: i32) -> (i32, i32, i32) {
    %c0_i32 = arith.constant 0 : i32
    %c0_i32_0 = arith.constant 0 : i32
    %c0_i32_1 = arith.constant 0 : i32
    %c0_i32_2 = arith.constant 0 : i32
    return %c0_i32, %c0_i32_0, %c0_i32_1 : i32, i32, i32
  }
  func.func @transform_2(%arg0: i32) -> (i32, i32) {
    %c0_i32 = arith.constant 0 : i32
    %c0_i32_0 = arith.constant 0 : i32
    %c0_i32_1 = arith.constant 0 : i32
    return %c0_i32, %c0_i32_0 : i32, i32
  }
  func.func @transform_3(%arg0: i32) -> (i32, i32) {
    %c0_i32 = arith.constant 0 : i32
    %c0_i32_0 = arith.constant 0 : i32
    %c0_i32_1 = arith.constant 0 : i32
    return %c0_i32, %c0_i32_0 : i32, i32
  }
  func.func @transform_4(%arg0: i32) -> (i32, i32, i32) {
    %c0_i32 = arith.constant 0 : i32
    %c0_i32_0 = arith.constant 0 : i32
    %c0_i32_1 = arith.constant 0 : i32
    return %arg0, %c0_i32, %c0_i32_0 : i32, i32, i32
  }
}

module attributes {stable_mosaic.version = 11 : i64} {
  func.func @kernel(%arg0: i32, %arg1: memref<1x8x128xf32, #tpu.memory_space<vmem>>, %arg2: memref<3x8x8xf32, #tpu.memory_space<vmem>>, %arg3: memref<384x128xf32, #tpu.memory_space<vmem>>, %arg4: memref<2x128xf32, #tpu.memory_space<vmem>>, %arg5: memref<1x8x128xf32, #tpu.memory_space<vmem>>, %arg6: memref<1x4x64xf32, #tpu.memory_space<vmem>>) attributes {dimension_semantics = [#tpu.dimension_semantics<parallel>], iteration_bounds = array<i64: 2>, scalar_prefetch = 0 : i64, scratch_operands = 0 : i64, tpu.core_type = #tpu.core_type<tc>, window_params = [{transform_indices = @transform_0, window_bounds = array<i64: 1, 8, 128>}, {pipeline_mode = #tpu.pipeline_mode<synchronous>, transform_indices = @transform_1, window_bounds = array<i64: 3, 8, 8>}, {pipeline_mode = #tpu.pipeline_mode<synchronous>, transform_indices = @transform_2, window_bounds = array<i64: 384, 128>}, {pipeline_mode = #tpu.pipeline_mode<synchronous>, transform_indices = @transform_3, window_bounds = array<i64: 2, 128>}, {transform_indices = @transform_4, window_bounds = array<i64: 1, 8, 128>}, {transform_indices = @transform_5, window_bounds = array<i64: 1, 4, 64>}]} {
    %c0 = arith.constant 0 : index
    %c0_0 = arith.constant 0 : index
    %c0_1 = arith.constant 0 : index
    %0 = vector.load %arg1[%c0, %c0_0, %c0_1] : memref<1x8x128xf32, #tpu.memory_space<vmem>>, vector<1x8x128xf32>
    %1 = vector.shape_cast %0 : vector<1x8x128xf32> to vector<8x128xf32>
    %c0_2 = arith.constant 0 : index
    %c0_3 = arith.constant 0 : index
    %c0_4 = arith.constant 0 : index
    %2 = vector.load %arg2[%c0_2, %c0_3, %c0_4] : memref<3x8x8xf32, #tpu.memory_space<vmem>>, vector<1x8x8xf32>
    %3 = vector.shape_cast %2 : vector<1x8x8xf32> to vector<8x8xf32>
    %cst = arith.constant dense<0.000000e+00> : vector<8x128xf32>
    %4 = tpu.matmul %3, %1, %cst {dimension_numbers = #tpu.dot_dimension_numbers<[1], [0], [0], [1], [0, 0, 1, 1], [], []>} : vector<8x8xf32>, vector<8x128xf32>, vector<8x128xf32> -> vector<8x128xf32>
    %c2 = arith.constant 2 : index
    %c0_5 = arith.constant 0 : index
    %c0_6 = arith.constant 0 : index
    %5 = vector.load %arg2[%c2, %c0_5, %c0_6] : memref<3x8x8xf32, #tpu.memory_space<vmem>>, vector<1x8x8xf32>
    %6 = vector.shape_cast %5 : vector<1x8x8xf32> to vector<8x8xf32>
    %cst_7 = arith.constant dense<0.000000e+00> : vector<8x128xf32>
    %7 = tpu.matmul %6, %1, %cst_7 {dimension_numbers = #tpu.dot_dimension_numbers<[1], [0], [0], [1], [0, 0, 1, 1], [], []>} : vector<8x8xf32>, vector<8x128xf32>, vector<8x128xf32> -> vector<8x128xf32>
    %8 = tpu.concatenate %4, %1, %7 in 1 : vector<8x128xf32>, vector<8x128xf32>, vector<8x128xf32> -> vector<8x384xf32>
    %c0_8 = arith.constant 0 : index
    %c0_9 = arith.constant 0 : index
    %9 = vector.load %arg3[%c0_8, %c0_9] : memref<384x128xf32, #tpu.memory_space<vmem>>, vector<384x128xf32>
    %cst_10 = arith.constant dense<0.000000e+00> : vector<8x128xf32>
    %10 = tpu.matmul %8, %9, %cst_10 {dimension_numbers = #tpu.dot_dimension_numbers<[1], [0], [0], [1], [0, 0, 1, 1], [], []>} : vector<8x384xf32>, vector<384x128xf32>, vector<8x128xf32> -> vector<8x128xf32>
    %c0_11 = arith.constant 0 : index
    %c0_12 = arith.constant 0 : index
    %11 = vector.load %arg4[%c0_11, %c0_12] : memref<2x128xf32, #tpu.memory_space<vmem>>, vector<1x128xf32>
    %12 = vector.broadcast %11 : vector<1x128xf32> to vector<8x128xf32>
    %13 = arith.mulf %10, %12 : vector<8x128xf32>
    %c1 = arith.constant 1 : index
    %c0_13 = arith.constant 0 : index
    %14 = vector.load %arg4[%c1, %c0_13] : memref<2x128xf32, #tpu.memory_space<vmem>>, vector<1x128xf32>
    %15 = vector.broadcast %14 : vector<1x128xf32> to vector<8x128xf32>
    %16 = arith.addf %13, %15 : vector<8x128xf32>
    %cst_14 = arith.constant 0.000000e+00 : f32
    %17 = vector.broadcast %cst_14 : f32 to vector<8x128xf32>
    %18 = arith.maximumf %16, %17 : vector<8x128xf32>
    %c0_15 = arith.constant 0 : index
    %c0_16 = arith.constant 0 : index
    %c0_17 = arith.constant 0 : index
    %19 = vector.load %arg5[%c0_15, %c0_16, %c0_17] : memref<1x8x128xf32, #tpu.memory_space<vmem>>, vector<1x8x128xf32>
    %20 = vector.shape_cast %19 : vector<1x8x128xf32> to vector<8x128xf32>
    %21 = vector.shape_cast %18 : vector<8x128xf32> to vector<1x8x128xf32>
    tpu.vector_store %arg5[%c0_15, %c0_16, %c0_17], %21 {strides = array<i32>} : memref<1x8x128xf32, #tpu.memory_space<vmem>>, vector<1x8x128xf32>,
    %22 = vector.extract_strided_slice %18 {offsets = [0, 0], sizes = [1, 128], strides = [1, 1]} : vector<8x128xf32> to vector<1x128xf32>
    %23 = vector.extract_strided_slice %18 {offsets = [1, 0], sizes = [1, 128], strides = [1, 1]} : vector<8x128xf32> to vector<1x128xf32>
    %24 = arith.maximumf %22, %23 : vector<1x128xf32>
    %25 = vector.extract_strided_slice %18 {offsets = [2, 0], sizes = [1, 128], strides = [1, 1]} : vector<8x128xf32> to vector<1x128xf32>
    %26 = vector.extract_strided_slice %18 {offsets = [3, 0], sizes = [1, 128], strides = [1, 1]} : vector<8x128xf32> to vector<1x128xf32>
    %27 = arith.maximumf %25, %26 : vector<1x128xf32>
    %28 = vector.extract_strided_slice %18 {offsets = [4, 0], sizes = [1, 128], strides = [1, 1]} : vector<8x128xf32> to vector<1x128xf32>
    %29 = vector.extract_strided_slice %18 {offsets = [5, 0], sizes = [1, 128], strides = [1, 1]} : vector<8x128xf32> to vector<1x128xf32>
    %30 = arith.maximumf %28, %29 : vector<1x128xf32>
    %31 = vector.extract_strided_slice %18 {offsets = [6, 0], sizes = [1, 128], strides = [1, 1]} : vector<8x128xf32> to vector<1x128xf32>
    %32 = vector.extract_strided_slice %18 {offsets = [7, 0], sizes = [1, 128], strides = [1, 1]} : vector<8x128xf32> to vector<1x128xf32>
    %33 = arith.maximumf %31, %32 : vector<1x128xf32>
    %34 = tpu.concatenate %24, %27, %30, %33 in 0 : vector<1x128xf32>, vector<1x128xf32>, vector<1x128xf32>, vector<1x128xf32> -> vector<4x128xf32>
    %35 = vector.extract_strided_slice %34 {offsets = [0, 0], sizes = [4, 16], strides = [1, 1]} : vector<4x128xf32> to vector<4x16xf32>
    %36 = vector.extract_strided_slice %34 {offsets = [0, 16], sizes = [4, 16], strides = [1, 1]} : vector<4x128xf32> to vector<4x16xf32>
    %37 = arith.maximumf %35, %36 : vector<4x16xf32>
    %38 = vector.extract_strided_slice %34 {offsets = [0, 32], sizes = [4, 16], strides = [1, 1]} : vector<4x128xf32> to vector<4x16xf32>
    %39 = vector.extract_strided_slice %34 {offsets = [0, 48], sizes = [4, 16], strides = [1, 1]} : vector<4x128xf32> to vector<4x16xf32>
    %40 = arith.maximumf %38, %39 : vector<4x16xf32>
    %41 = vector.extract_strided_slice %34 {offsets = [0, 64], sizes = [4, 16], strides = [1, 1]} : vector<4x128xf32> to vector<4x16xf32>
    %42 = vector.extract_strided_slice %34 {offsets = [0, 80], sizes = [4, 16], strides = [1, 1]} : vector<4x128xf32> to vector<4x16xf32>
    %43 = arith.maximumf %41, %42 : vector<4x16xf32>
    %44 = vector.extract_strided_slice %34 {offsets = [0, 96], sizes = [4, 16], strides = [1, 1]} : vector<4x128xf32> to vector<4x16xf32>
    %45 = vector.extract_strided_slice %34 {offsets = [0, 112], sizes = [4, 16], strides = [1, 1]} : vector<4x128xf32> to vector<4x16xf32>
    %46 = arith.maximumf %44, %45 : vector<4x16xf32>
    %47 = tpu.concatenate %37, %40, %43, %46 in 1 : vector<4x16xf32>, vector<4x16xf32>, vector<4x16xf32>, vector<4x16xf32> -> vector<4x64xf32>
    %c0_18 = arith.constant 0 : index
    %c0_19 = arith.constant 0 : index
    %c0_20 = arith.constant 0 : index
    %48 = vector.load %arg6[%c0_18, %c0_19, %c0_20] : memref<1x4x64xf32, #tpu.memory_space<vmem>>, vector<1x4x64xf32>
    %49 = vector.shape_cast %48 : vector<1x4x64xf32> to vector<4x64xf32>
    %50 = vector.shape_cast %47 : vector<4x64xf32> to vector<1x4x64xf32>
    tpu.vector_store %arg6[%c0_18, %c0_19, %c0_20], %50 {strides = array<i32>} : memref<1x4x64xf32, #tpu.memory_space<vmem>>, vector<1x4x64xf32>,
    return
  }
  func.func @transform_0(%arg0: i32) -> (i32, i32, i32) {
    %c0_i32 = arith.constant 0 : i32
    %c0_i32_0 = arith.constant 0 : i32
    %c0_i32_1 = arith.constant 0 : i32
    return %arg0, %c0_i32, %c0_i32_0 : i32, i32, i32
  }
  func.func @transform_1(%arg0: i32) -> (i32, i32, i32) {
    %c0_i32 = arith.constant 0 : i32
    %c0_i32_0 = arith.constant 0 : i32
    %c0_i32_1 = arith.constant 0 : i32
    %c0_i32_2 = arith.constant 0 : i32
    return %c0_i32, %c0_i32_0, %c0_i32_1 : i32, i32, i32
  }
  func.func @transform_2(%arg0: i32) -> (i32, i32) {
    %c0_i32 = arith.constant 0 : i32
    %c0_i32_0 = arith.constant 0 : i32
    %c0_i32_1 = arith.constant 0 : i32
    return %c0_i32, %c0_i32_0 : i32, i32
  }
  func.func @transform_3(%arg0: i32) -> (i32, i32) {
    %c0_i32 = arith.constant 0 : i32
    %c0_i32_0 = arith.constant 0 : i32
    %c0_i32_1 = arith.constant 0 : i32
    return %c0_i32, %c0_i32_0 : i32, i32
  }
  func.func @transform_4(%arg0: i32) -> (i32, i32, i32) {
    %c0_i32 = arith.constant 0 : i32
    %c0_i32_0 = arith.constant 0 : i32
    %c0_i32_1 = arith.constant 0 : i32
    return %arg0, %c0_i32, %c0_i32_0 : i32, i32, i32
  }
  func.func @transform_5(%arg0: i32) -> (i32, i32, i32) {
    %c0_i32 = arith.constant 0 : i32
    %c0_i32_0 = arith.constant 0 : i32
    %c0_i32_1 = arith.constant 0 : i32
    return %arg0, %c0_i32, %c0_i32_0 : i32, i32, i32
  }
}

module attributes {stable_mosaic.version = 11 : i64} {
  func.func @kernel(%arg0: i32, %arg1: memref<1x16x128xf32, #tpu.memory_space<vmem>>, %arg2: memref<3x16x16xf32, #tpu.memory_space<vmem>>, %arg3: memref<384x256xf32, #tpu.memory_space<vmem>>, %arg4: memref<2x256xf32, #tpu.memory_space<vmem>>, %arg5: memref<1x16x256xf32, #tpu.memory_space<vmem>>, %arg6: memref<1x8x128xf32, #tpu.memory_space<vmem>>) attributes {dimension_semantics = [#tpu.dimension_semantics<parallel>], iteration_bounds = array<i64: 2>, scalar_prefetch = 0 : i64, scratch_operands = 0 : i64, tpu.core_type = #tpu.core_type<tc>, window_params = [{transform_indices = @transform_0, window_bounds = array<i64: 1, 16, 128>}, {pipeline_mode = #tpu.pipeline_mode<synchronous>, transform_indices = @transform_1, window_bounds = array<i64: 3, 16, 16>}, {pipeline_mode = #tpu.pipeline_mode<synchronous>, transform_indices = @transform_2, window_bounds = array<i64: 384, 256>}, {pipeline_mode = #tpu.pipeline_mode<synchronous>, transform_indices = @transform_3, window_bounds = array<i64: 2, 256>}, {transform_indices = @transform_4, window_bounds = array<i64: 1, 16, 256>}, {transform_indices = @transform_5, window_bounds = array<i64: 1, 8, 128>}]} {
    %c0 = arith.constant 0 : index
    %c0_0 = arith.constant 0 : index
    %c0_1 = arith.constant 0 : index
    %0 = vector.load %arg1[%c0, %c0_0, %c0_1] : memref<1x16x128xf32, #tpu.memory_space<vmem>>, vector<1x16x128xf32>
    %1 = vector.shape_cast %0 : vector<1x16x128xf32> to vector<16x128xf32>
    %c0_2 = arith.constant 0 : index
    %c0_3 = arith.constant 0 : index
    %c0_4 = arith.constant 0 : index
    %2 = vector.load %arg2[%c0_2, %c0_3, %c0_4] : memref<3x16x16xf32, #tpu.memory_space<vmem>>, vector<1x16x16xf32>
    %3 = vector.shape_cast %2 : vector<1x16x16xf32> to vector<16x16xf32>
    %cst = arith.constant dense<0.000000e+00> : vector<16x128xf32>
    %4 = tpu.matmul %3, %1, %cst {dimension_numbers = #tpu.dot_dimension_numbers<[1], [0], [0], [1], [0, 0, 1, 1], [], []>} : vector<16x16xf32>, vector<16x128xf32>, vector<16x128xf32> -> vector<16x128xf32>
    %c2 = arith.constant 2 : index
    %c0_5 = arith.constant 0 : index
    %c0_6 = arith.constant 0 : index
    %5 = vector.load %arg2[%c2, %c0_5, %c0_6] : memref<3x16x16xf32, #tpu.memory_space<vmem>>, vector<1x16x16xf32>
    %6 = vector.shape_cast %5 : vector<1x16x16xf32> to vector<16x16xf32>
    %cst_7 = arith.constant dense<0.000000e+00> : vector<16x128xf32>
    %7 = tpu.matmul %6, %1, %cst_7 {dimension_numbers = #tpu.dot_dimension_numbers<[1], [0], [0], [1], [0, 0, 1, 1], [], []>} : vector<16x16xf32>, vector<16x128xf32>, vector<16x128xf32> -> vector<16x128xf32>
    %8 = tpu.concatenate %4, %1, %7 in 1 : vector<16x128xf32>, vector<16x128xf32>, vector<16x128xf32> -> vector<16x384xf32>
    %c0_8 = arith.constant 0 : index
    %c0_9 = arith.constant 0 : index
    %9 = vector.load %arg3[%c0_8, %c0_9] : memref<384x256xf32, #tpu.memory_space<vmem>>, vector<384x256xf32>
    %cst_10 = arith.constant dense<0.000000e+00> : vector<16x256xf32>
    %10 = tpu.matmul %8, %9, %cst_10 {dimension_numbers = #tpu.dot_dimension_numbers<[1], [0], [0], [1], [0, 0, 1, 1], [], []>} : vector<16x384xf32>, vector<384x256xf32>, vector<16x256xf32> -> vector<16x256xf32>
    %c0_11 = arith.constant 0 : index
    %c0_12 = arith.constant 0 : index
    %11 = vector.load %arg4[%c0_11, %c0_12] : memref<2x256xf32, #tpu.memory_space<vmem>>, vector<1x256xf32>
    %12 = vector.broadcast %11 : vector<1x256xf32> to vector<16x256xf32>
    %13 = arith.mulf %10, %12 : vector<16x256xf32>
    %c1 = arith.constant 1 : index
    %c0_13 = arith.constant 0 : index
    %14 = vector.load %arg4[%c1, %c0_13] : memref<2x256xf32, #tpu.memory_space<vmem>>, vector<1x256xf32>
    %15 = vector.broadcast %14 : vector<1x256xf32> to vector<16x256xf32>
    %16 = arith.addf %13, %15 : vector<16x256xf32>
    %cst_14 = arith.constant 0.000000e+00 : f32
    %17 = vector.broadcast %cst_14 : f32 to vector<16x256xf32>
    %18 = arith.maximumf %16, %17 : vector<16x256xf32>
    %c0_15 = arith.constant 0 : index
    %c0_16 = arith.constant 0 : index
    %c0_17 = arith.constant 0 : index
    %19 = vector.load %arg5[%c0_15, %c0_16, %c0_17] : memref<1x16x256xf32, #tpu.memory_space<vmem>>, vector<1x16x256xf32>
    %20 = vector.shape_cast %19 : vector<1x16x256xf32> to vector<16x256xf32>
    %21 = vector.shape_cast %18 : vector<16x256xf32> to vector<1x16x256xf32>
    tpu.vector_store %arg5[%c0_15, %c0_16, %c0_17], %21 {strides = array<i32>} : memref<1x16x256xf32, #tpu.memory_space<vmem>>, vector<1x16x256xf32>,
    %22 = vector.extract_strided_slice %18 {offsets = [0, 0], sizes = [1, 256], strides = [1, 1]} : vector<16x256xf32> to vector<1x256xf32>
    %23 = vector.extract_strided_slice %18 {offsets = [1, 0], sizes = [1, 256], strides = [1, 1]} : vector<16x256xf32> to vector<1x256xf32>
    %24 = arith.maximumf %22, %23 : vector<1x256xf32>
    %25 = vector.extract_strided_slice %18 {offsets = [2, 0], sizes = [1, 256], strides = [1, 1]} : vector<16x256xf32> to vector<1x256xf32>
    %26 = vector.extract_strided_slice %18 {offsets = [3, 0], sizes = [1, 256], strides = [1, 1]} : vector<16x256xf32> to vector<1x256xf32>
    %27 = arith.maximumf %25, %26 : vector<1x256xf32>
    %28 = vector.extract_strided_slice %18 {offsets = [4, 0], sizes = [1, 256], strides = [1, 1]} : vector<16x256xf32> to vector<1x256xf32>
    %29 = vector.extract_strided_slice %18 {offsets = [5, 0], sizes = [1, 256], strides = [1, 1]} : vector<16x256xf32> to vector<1x256xf32>
    %30 = arith.maximumf %28, %29 : vector<1x256xf32>
    %31 = vector.extract_strided_slice %18 {offsets = [6, 0], sizes = [1, 256], strides = [1, 1]} : vector<16x256xf32> to vector<1x256xf32>
    %32 = vector.extract_strided_slice %18 {offsets = [7, 0], sizes = [1, 256], strides = [1, 1]} : vector<16x256xf32> to vector<1x256xf32>
    %33 = arith.maximumf %31, %32 : vector<1x256xf32>
    %34 = vector.extract_strided_slice %18 {offsets = [8, 0], sizes = [1, 256], strides = [1, 1]} : vector<16x256xf32> to vector<1x256xf32>
    %35 = vector.extract_strided_slice %18 {offsets = [9, 0], sizes = [1, 256], strides = [1, 1]} : vector<16x256xf32> to vector<1x256xf32>
    %36 = arith.maximumf %34, %35 : vector<1x256xf32>
    %37 = vector.extract_strided_slice %18 {offsets = [10, 0], sizes = [1, 256], strides = [1, 1]} : vector<16x256xf32> to vector<1x256xf32>
    %38 = vector.extract_strided_slice %18 {offsets = [11, 0], sizes = [1, 256], strides = [1, 1]} : vector<16x256xf32> to vector<1x256xf32>
    %39 = arith.maximumf %37, %38 : vector<1x256xf32>
    %40 = vector.extract_strided_slice %18 {offsets = [12, 0], sizes = [1, 256], strides = [1, 1]} : vector<16x256xf32> to vector<1x256xf32>
    %41 = vector.extract_strided_slice %18 {offsets = [13, 0], sizes = [1, 256], strides = [1, 1]} : vector<16x256xf32> to vector<1x256xf32>
    %42 = arith.maximumf %40, %41 : vector<1x256xf32>
    %43 = vector.extract_strided_slice %18 {offsets = [14, 0], sizes = [1, 256], strides = [1, 1]} : vector<16x256xf32> to vector<1x256xf32>
    %44 = vector.extract_strided_slice %18 {offsets = [15, 0], sizes = [1, 256], strides = [1, 1]} : vector<16x256xf32> to vector<1x256xf32>
    %45 = arith.maximumf %43, %44 : vector<1x256xf32>
    %46 = tpu.concatenate %24, %27, %30, %33, %36, %39, %42, %45 in 0 : vector<1x256xf32>, vector<1x256xf32>, vector<1x256xf32>, vector<1x256xf32>, vector<1x256xf32>, vector<1x256xf32>, vector<1x256xf32>, vector<1x256xf32> -> vector<8x256xf32>
    %47 = vector.extract_strided_slice %46 {offsets = [0, 0], sizes = [8, 16], strides = [1, 1]} : vector<8x256xf32> to vector<8x16xf32>
    %48 = vector.extract_strided_slice %46 {offsets = [0, 16], sizes = [8, 16], strides = [1, 1]} : vector<8x256xf32> to vector<8x16xf32>
    %49 = arith.maximumf %47, %48 : vector<8x16xf32>
    %50 = vector.extract_strided_slice %46 {offsets = [0, 32], sizes = [8, 16], strides = [1, 1]} : vector<8x256xf32> to vector<8x16xf32>
    %51 = vector.extract_strided_slice %46 {offsets = [0, 48], sizes = [8, 16], strides = [1, 1]} : vector<8x256xf32> to vector<8x16xf32>
    %52 = arith.maximumf %50, %51 : vector<8x16xf32>
    %53 = vector.extract_strided_slice %46 {offsets = [0, 64], sizes = [8, 16], strides = [1, 1]} : vector<8x256xf32> to vector<8x16xf32>
    %54 = vector.extract_strided_slice %46 {offsets = [0, 80], sizes = [8, 16], strides = [1, 1]} : vector<8x256xf32> to vector<8x16xf32>
    %55 = arith.maximumf %53, %54 : vector<8x16xf32>
    %56 = vector.extract_strided_slice %46 {offsets = [0, 96], sizes = [8, 16], strides = [1, 1]} : vector<8x256xf32> to vector<8x16xf32>
    %57 = vector.extract_strided_slice %46 {offsets = [0, 112], sizes = [8, 16], strides = [1, 1]} : vector<8x256xf32> to vector<8x16xf32>
    %58 = arith.maximumf %56, %57 : vector<8x16xf32>
    %59 = vector.extract_strided_slice %46 {offsets = [0, 128], sizes = [8, 16], strides = [1, 1]} : vector<8x256xf32> to vector<8x16xf32>
    %60 = vector.extract_strided_slice %46 {offsets = [0, 144], sizes = [8, 16], strides = [1, 1]} : vector<8x256xf32> to vector<8x16xf32>
    %61 = arith.maximumf %59, %60 : vector<8x16xf32>
    %62 = vector.extract_strided_slice %46 {offsets = [0, 160], sizes = [8, 16], strides = [1, 1]} : vector<8x256xf32> to vector<8x16xf32>
    %63 = vector.extract_strided_slice %46 {offsets = [0, 176], sizes = [8, 16], strides = [1, 1]} : vector<8x256xf32> to vector<8x16xf32>
    %64 = arith.maximumf %62, %63 : vector<8x16xf32>
    %65 = vector.extract_strided_slice %46 {offsets = [0, 192], sizes = [8, 16], strides = [1, 1]} : vector<8x256xf32> to vector<8x16xf32>
    %66 = vector.extract_strided_slice %46 {offsets = [0, 208], sizes = [8, 16], strides = [1, 1]} : vector<8x256xf32> to vector<8x16xf32>
    %67 = arith.maximumf %65, %66 : vector<8x16xf32>
    %68 = vector.extract_strided_slice %46 {offsets = [0, 224], sizes = [8, 16], strides = [1, 1]} : vector<8x256xf32> to vector<8x16xf32>
    %69 = vector.extract_strided_slice %46 {offsets = [0, 240], sizes = [8, 16], strides = [1, 1]} : vector<8x256xf32> to vector<8x16xf32>
    %70 = arith.maximumf %68, %69 : vector<8x16xf32>
    %71 = tpu.concatenate %49, %52, %55, %58, %61, %64, %67, %70 in 1 : vector<8x16xf32>, vector<8x16xf32>, vector<8x16xf32>, vector<8x16xf32>, vector<8x16xf32>, vector<8x16xf32>, vector<8x16xf32>, vector<8x16xf32> -> vector<8x128xf32>
    %c0_18 = arith.constant 0 : index
    %c0_19 = arith.constant 0 : index
    %c0_20 = arith.constant 0 : index
    %72 = vector.load %arg6[%c0_18, %c0_19, %c0_20] : memref<1x8x128xf32, #tpu.memory_space<vmem>>, vector<1x8x128xf32>
    %73 = vector.shape_cast %72 : vector<1x8x128xf32> to vector<8x128xf32>
    %74 = vector.shape_cast %71 : vector<8x128xf32> to vector<1x8x128xf32>
    tpu.vector_store %arg6[%c0_18, %c0_19, %c0_20], %74 {strides = array<i32>} : memref<1x8x128xf32, #tpu.memory_space<vmem>>, vector<1x8x128xf32>,
    return
  }
  func.func @transform_0(%arg0: i32) -> (i32, i32, i32) {
    %c0_i32 = arith.constant 0 : i32
    %c0_i32_0 = arith.constant 0 : i32
    %c0_i32_1 = arith.constant 0 : i32
    return %arg0, %c0_i32, %c0_i32_0 : i32, i32, i32
  }
  func.func @transform_1(%arg0: i32) -> (i32, i32, i32) {
    %c0_i32 = arith.constant 0 : i32
    %c0_i32_0 = arith.constant 0 : i32
    %c0_i32_1 = arith.constant 0 : i32
    %c0_i32_2 = arith.constant 0 : i32
    return %c0_i32, %c0_i32_0, %c0_i32_1 : i32, i32, i32
  }
  func.func @transform_2(%arg0: i32) -> (i32, i32) {
    %c0_i32 = arith.constant 0 : i32
    %c0_i32_0 = arith.constant 0 : i32
    %c0_i32_1 = arith.constant 0 : i32
    return %c0_i32, %c0_i32_0 : i32, i32
  }
  func.func @transform_3(%arg0: i32) -> (i32, i32) {
    %c0_i32 = arith.constant 0 : i32
    %c0_i32_0 = arith.constant 0 : i32
    %c0_i32_1 = arith.constant 0 : i32
    return %c0_i32, %c0_i32_0 : i32, i32
  }
  func.func @transform_4(%arg0: i32) -> (i32, i32, i32) {
    %c0_i32 = arith.constant 0 : i32
    %c0_i32_0 = arith.constant 0 : i32
    %c0_i32_1 = arith.constant 0 : i32
    return %arg0, %c0_i32, %c0_i32_0 : i32, i32, i32
  }
  func.func @transform_5(%arg0: i32) -> (i32, i32, i32) {
    %c0_i32 = arith.constant 0 : i32
    %c0_i32_0 = arith.constant 0 : i32
    %c0_i32_1 = arith.constant 0 : i32
    return %arg0, %c0_i32, %c0_i32_0 : i32, i32, i32
  }
}

module attributes {stable_mosaic.version = 11 : i64} {
  func.func @kernel(%arg0: i32, %arg1: memref<1x4x64xf32, #tpu.memory_space<vmem>>, %arg2: memref<3x4x4xf32, #tpu.memory_space<vmem>>, %arg3: memref<192x64xf32, #tpu.memory_space<vmem>>, %arg4: memref<2x64xf32, #tpu.memory_space<vmem>>, %arg5: memref<1x4x64xf32, #tpu.memory_space<vmem>>, %arg6: memref<1x2x32xf32, #tpu.memory_space<vmem>>) attributes {dimension_semantics = [#tpu.dimension_semantics<parallel>], iteration_bounds = array<i64: 2>, scalar_prefetch = 0 : i64, scratch_operands = 0 : i64, tpu.core_type = #tpu.core_type<tc>, window_params = [{transform_indices = @transform_0, window_bounds = array<i64: 1, 4, 64>}, {pipeline_mode = #tpu.pipeline_mode<synchronous>, transform_indices = @transform_1, window_bounds = array<i64: 3, 4, 4>}, {pipeline_mode = #tpu.pipeline_mode<synchronous>, transform_indices = @transform_2, window_bounds = array<i64: 192, 64>}, {pipeline_mode = #tpu.pipeline_mode<synchronous>, transform_indices = @transform_3, window_bounds = array<i64: 2, 64>}, {transform_indices = @transform_4, window_bounds = array<i64: 1, 4, 64>}, {transform_indices = @transform_5, window_bounds = array<i64: 1, 2, 32>}]} {
    %c0 = arith.constant 0 : index
    %c0_0 = arith.constant 0 : index
    %c0_1 = arith.constant 0 : index
    %0 = vector.load %arg1[%c0, %c0_0, %c0_1] : memref<1x4x64xf32, #tpu.memory_space<vmem>>, vector<1x4x64xf32>
    %1 = vector.shape_cast %0 : vector<1x4x64xf32> to vector<4x64xf32>
    %c0_2 = arith.constant 0 : index
    %c0_3 = arith.constant 0 : index
    %c0_4 = arith.constant 0 : index
    %2 = vector.load %arg2[%c0_2, %c0_3, %c0_4] : memref<3x4x4xf32, #tpu.memory_space<vmem>>, vector<1x4x4xf32>
    %3 = vector.shape_cast %2 : vector<1x4x4xf32> to vector<4x4xf32>
    %cst = arith.constant dense<0.000000e+00> : vector<4x64xf32>
    %4 = tpu.matmul %3, %1, %cst {dimension_numbers = #tpu.dot_dimension_numbers<[1], [0], [0], [1], [0, 0, 1, 1], [], []>} : vector<4x4xf32>, vector<4x64xf32>, vector<4x64xf32> -> vector<4x64xf32>
    %c2 = arith.constant 2 : index
    %c0_5 = arith.constant 0 : index
    %c0_6 = arith.constant 0 : index
    %5 = vector.load %arg2[%c2, %c0_5, %c0_6] : memref<3x4x4xf32, #tpu.memory_space<vmem>>, vector<1x4x4xf32>
    %6 = vector.shape_cast %5 : vector<1x4x4xf32> to vector<4x4xf32>
    %cst_7 = arith.constant dense<0.000000e+00> : vector<4x64xf32>
    %7 = tpu.matmul %6, %1, %cst_7 {dimension_numbers = #tpu.dot_dimension_numbers<[1], [0], [0], [1], [0, 0, 1, 1], [], []>} : vector<4x4xf32>, vector<4x64xf32>, vector<4x64xf32> -> vector<4x64xf32>
    %8 = tpu.concatenate %4, %1, %7 in 1 : vector<4x64xf32>, vector<4x64xf32>, vector<4x64xf32> -> vector<4x192xf32>
    %c0_8 = arith.constant 0 : index
    %c0_9 = arith.constant 0 : index
    %9 = vector.load %arg3[%c0_8, %c0_9] : memref<192x64xf32, #tpu.memory_space<vmem>>, vector<192x64xf32>
    %cst_10 = arith.constant dense<0.000000e+00> : vector<4x64xf32>
    %10 = tpu.matmul %8, %9, %cst_10 {dimension_numbers = #tpu.dot_dimension_numbers<[1], [0], [0], [1], [0, 0, 1, 1], [], []>} : vector<4x192xf32>, vector<192x64xf32>, vector<4x64xf32> -> vector<4x64xf32>
    %c0_11 = arith.constant 0 : index
    %c0_12 = arith.constant 0 : index
    %11 = vector.load %arg4[%c0_11, %c0_12] : memref<2x64xf32, #tpu.memory_space<vmem>>, vector<1x64xf32>
    %12 = vector.broadcast %11 : vector<1x64xf32> to vector<4x64xf32>
    %13 = arith.mulf %10, %12 : vector<4x64xf32>
    %c1 = arith.constant 1 : index
    %c0_13 = arith.constant 0 : index
    %14 = vector.load %arg4[%c1, %c0_13] : memref<2x64xf32, #tpu.memory_space<vmem>>, vector<1x64xf32>
    %15 = vector.broadcast %14 : vector<1x64xf32> to vector<4x64xf32>
    %16 = arith.addf %13, %15 : vector<4x64xf32>
    %cst_14 = arith.constant 0.000000e+00 : f32
    %17 = vector.broadcast %cst_14 : f32 to vector<4x64xf32>
    %18 = arith.maximumf %16, %17 : vector<4x64xf32>
    %c0_15 = arith.constant 0 : index
    %c0_16 = arith.constant 0 : index
    %c0_17 = arith.constant 0 : index
    %19 = vector.load %arg5[%c0_15, %c0_16, %c0_17] : memref<1x4x64xf32, #tpu.memory_space<vmem>>, vector<1x4x64xf32>
    %20 = vector.shape_cast %19 : vector<1x4x64xf32> to vector<4x64xf32>
    %21 = vector.shape_cast %18 : vector<4x64xf32> to vector<1x4x64xf32>
    tpu.vector_store %arg5[%c0_15, %c0_16, %c0_17], %21 {strides = array<i32>} : memref<1x4x64xf32, #tpu.memory_space<vmem>>, vector<1x4x64xf32>,
    %22 = vector.extract_strided_slice %18 {offsets = [0, 0], sizes = [1, 64], strides = [1, 1]} : vector<4x64xf32> to vector<1x64xf32>
    %23 = vector.extract_strided_slice %18 {offsets = [1, 0], sizes = [1, 64], strides = [1, 1]} : vector<4x64xf32> to vector<1x64xf32>
    %24 = arith.maximumf %22, %23 : vector<1x64xf32>
    %25 = vector.extract_strided_slice %18 {offsets = [2, 0], sizes = [1, 64], strides = [1, 1]} : vector<4x64xf32> to vector<1x64xf32>
    %26 = vector.extract_strided_slice %18 {offsets = [3, 0], sizes = [1, 64], strides = [1, 1]} : vector<4x64xf32> to vector<1x64xf32>
    %27 = arith.maximumf %25, %26 : vector<1x64xf32>
    %28 = tpu.concatenate %24, %27 in 0 : vector<1x64xf32>, vector<1x64xf32> -> vector<2x64xf32>
    %29 = vector.extract_strided_slice %28 {offsets = [0, 0], sizes = [2, 16], strides = [1, 1]} : vector<2x64xf32> to vector<2x16xf32>
    %30 = vector.extract_strided_slice %28 {offsets = [0, 16], sizes = [2, 16], strides = [1, 1]} : vector<2x64xf32> to vector<2x16xf32>
    %31 = arith.maximumf %29, %30 : vector<2x16xf32>
    %32 = vector.extract_strided_slice %28 {offsets = [0, 32], sizes = [2, 16], strides = [1, 1]} : vector<2x64xf32> to vector<2x16xf32>
    %33 = vector.extract_strided_slice %28 {offsets = [0, 48], sizes = [2, 16], strides = [1, 1]} : vector<2x64xf32> to vector<2x16xf32>
    %34 = arith.maximumf %32, %33 : vector<2x16xf32>
    %35 = tpu.concatenate %31, %34 in 1 : vector<2x16xf32>, vector<2x16xf32> -> vector<2x32xf32>
    %c0_18 = arith.constant 0 : index
    %c0_19 = arith.constant 0 : index
    %c0_20 = arith.constant 0 : index
    %36 = vector.load %arg6[%c0_18, %c0_19, %c0_20] : memref<1x2x32xf32, #tpu.memory_space<vmem>>, vector<1x2x32xf32>
    %37 = vector.shape_cast %36 : vector<1x2x32xf32> to vector<2x32xf32>
    %38 = vector.shape_cast %35 : vector<2x32xf32> to vector<1x2x32xf32>
    tpu.vector_store %arg6[%c0_18, %c0_19, %c0_20], %38 {strides = array<i32>} : memref<1x2x32xf32, #tpu.memory_space<vmem>>, vector<1x2x32xf32>,
    return
  }
  func.func @transform_0(%arg0: i32) -> (i32, i32, i32) {
    %c0_i32 = arith.constant 0 : i32
    %c0_i32_0 = arith.constant 0 : i32
    %c0_i32_1 = arith.constant 0 : i32
    return %arg0, %c0_i32, %c0_i32_0 : i32, i32, i32
  }
  func.func @transform_1(%arg0: i32) -> (i32, i32, i32) {
    %c0_i32 = arith.constant 0 : i32
    %c0_i32_0 = arith.constant 0 : i32
    %c0_i32_1 = arith.constant 0 : i32
    %c0_i32_2 = arith.constant 0 : i32
    return %c0_i32, %c0_i32_0, %c0_i32_1 : i32, i32, i32
  }
  func.func @transform_2(%arg0: i32) -> (i32, i32) {
    %c0_i32 = arith.constant 0 : i32
    %c0_i32_0 = arith.constant 0 : i32
    %c0_i32_1 = arith.constant 0 : i32
    return %c0_i32, %c0_i32_0 : i32, i32
  }
  func.func @transform_3(%arg0: i32) -> (i32, i32) {
    %c0_i32 = arith.constant 0 : i32
    %c0_i32_0 = arith.constant 0 : i32
    %c0_i32_1 = arith.constant 0 : i32
    return %c0_i32, %c0_i32_0 : i32, i32
  }
  func.func @transform_4(%arg0: i32) -> (i32, i32, i32) {
    %c0_i32 = arith.constant 0 : i32
    %c0_i32_0 = arith.constant 0 : i32
    %c0_i32_1 = arith.constant 0 : i32
    return %arg0, %c0_i32, %c0_i32_0 : i32, i32, i32
  }
  func.func @transform_5(%arg0: i32) -> (i32, i32, i32) {
    %c0_i32 = arith.constant 0 : i32
    %c0_i32_0 = arith.constant 0 : i32
    %c0_i32_1 = arith.constant 0 : i32
    return %arg0, %c0_i32, %c0_i32_0 : i32, i32, i32
  }
}

module attributes {stable_mosaic.version = 11 : i64} {
  func.func @kernel(%arg0: i32, %arg1: memref<1x2x32xf32, #tpu.memory_space<vmem>>, %arg2: memref<3x2x2xf32, #tpu.memory_space<vmem>>, %arg3: memref<96x32xf32, #tpu.memory_space<vmem>>, %arg4: memref<2x32xf32, #tpu.memory_space<vmem>>, %arg5: memref<1x2x32xf32, #tpu.memory_space<vmem>>, %arg6: memref<1x1x16xf32, #tpu.memory_space<vmem>>) attributes {dimension_semantics = [#tpu.dimension_semantics<parallel>], iteration_bounds = array<i64: 2>, scalar_prefetch = 0 : i64, scratch_operands = 0 : i64, tpu.core_type = #tpu.core_type<tc>, window_params = [{transform_indices = @transform_0, window_bounds = array<i64: 1, 2, 32>}, {pipeline_mode = #tpu.pipeline_mode<synchronous>, transform_indices = @transform_1, window_bounds = array<i64: 3, 2, 2>}, {pipeline_mode = #tpu.pipeline_mode<synchronous>, transform_indices = @transform_2, window_bounds = array<i64: 96, 32>}, {pipeline_mode = #tpu.pipeline_mode<synchronous>, transform_indices = @transform_3, window_bounds = array<i64: 2, 32>}, {transform_indices = @transform_4, window_bounds = array<i64: 1, 2, 32>}, {transform_indices = @transform_5, window_bounds = array<i64: 1, 1, 16>}]} {
    %c0 = arith.constant 0 : index
    %c0_0 = arith.constant 0 : index
    %c0_1 = arith.constant 0 : index
    %0 = vector.load %arg1[%c0, %c0_0, %c0_1] : memref<1x2x32xf32, #tpu.memory_space<vmem>>, vector<1x2x32xf32>
    %1 = vector.shape_cast %0 : vector<1x2x32xf32> to vector<2x32xf32>
    %c0_2 = arith.constant 0 : index
    %c0_3 = arith.constant 0 : index
    %c0_4 = arith.constant 0 : index
    %2 = vector.load %arg2[%c0_2, %c0_3, %c0_4] : memref<3x2x2xf32, #tpu.memory_space<vmem>>, vector<1x2x2xf32>
    %3 = vector.shape_cast %2 : vector<1x2x2xf32> to vector<2x2xf32>
    %cst = arith.constant dense<0.000000e+00> : vector<2x32xf32>
    %4 = tpu.matmul %3, %1, %cst {dimension_numbers = #tpu.dot_dimension_numbers<[1], [0], [0], [1], [0, 0, 1, 1], [], []>} : vector<2x2xf32>, vector<2x32xf32>, vector<2x32xf32> -> vector<2x32xf32>
    %c2 = arith.constant 2 : index
    %c0_5 = arith.constant 0 : index
    %c0_6 = arith.constant 0 : index
    %5 = vector.load %arg2[%c2, %c0_5, %c0_6] : memref<3x2x2xf32, #tpu.memory_space<vmem>>, vector<1x2x2xf32>
    %6 = vector.shape_cast %5 : vector<1x2x2xf32> to vector<2x2xf32>
    %cst_7 = arith.constant dense<0.000000e+00> : vector<2x32xf32>
    %7 = tpu.matmul %6, %1, %cst_7 {dimension_numbers = #tpu.dot_dimension_numbers<[1], [0], [0], [1], [0, 0, 1, 1], [], []>} : vector<2x2xf32>, vector<2x32xf32>, vector<2x32xf32> -> vector<2x32xf32>
    %8 = tpu.concatenate %4, %1, %7 in 1 : vector<2x32xf32>, vector<2x32xf32>, vector<2x32xf32> -> vector<2x96xf32>
    %c0_8 = arith.constant 0 : index
    %c0_9 = arith.constant 0 : index
    %9 = vector.load %arg3[%c0_8, %c0_9] : memref<96x32xf32, #tpu.memory_space<vmem>>, vector<96x32xf32>
    %cst_10 = arith.constant dense<0.000000e+00> : vector<2x32xf32>
    %10 = tpu.matmul %8, %9, %cst_10 {dimension_numbers = #tpu.dot_dimension_numbers<[1], [0], [0], [1], [0, 0, 1, 1], [], []>} : vector<2x96xf32>, vector<96x32xf32>, vector<2x32xf32> -> vector<2x32xf32>
    %c0_11 = arith.constant 0 : index
    %c0_12 = arith.constant 0 : index
    %11 = vector.load %arg4[%c0_11, %c0_12] : memref<2x32xf32, #tpu.memory_space<vmem>>, vector<1x32xf32>
    %12 = vector.broadcast %11 : vector<1x32xf32> to vector<2x32xf32>
    %13 = arith.mulf %10, %12 : vector<2x32xf32>
    %c1 = arith.constant 1 : index
    %c0_13 = arith.constant 0 : index
    %14 = vector.load %arg4[%c1, %c0_13] : memref<2x32xf32, #tpu.memory_space<vmem>>, vector<1x32xf32>
    %15 = vector.broadcast %14 : vector<1x32xf32> to vector<2x32xf32>
    %16 = arith.addf %13, %15 : vector<2x32xf32>
    %cst_14 = arith.constant 0.000000e+00 : f32
    %17 = vector.broadcast %cst_14 : f32 to vector<2x32xf32>
    %18 = arith.maximumf %16, %17 : vector<2x32xf32>
    %c0_15 = arith.constant 0 : index
    %c0_16 = arith.constant 0 : index
    %c0_17 = arith.constant 0 : index
    %19 = vector.load %arg5[%c0_15, %c0_16, %c0_17] : memref<1x2x32xf32, #tpu.memory_space<vmem>>, vector<1x2x32xf32>
    %20 = vector.shape_cast %19 : vector<1x2x32xf32> to vector<2x32xf32>
    %21 = vector.shape_cast %18 : vector<2x32xf32> to vector<1x2x32xf32>
    tpu.vector_store %arg5[%c0_15, %c0_16, %c0_17], %21 {strides = array<i32>} : memref<1x2x32xf32, #tpu.memory_space<vmem>>, vector<1x2x32xf32>,
    %22 = vector.extract_strided_slice %18 {offsets = [0, 0], sizes = [1, 32], strides = [1, 1]} : vector<2x32xf32> to vector<1x32xf32>
    %23 = vector.extract_strided_slice %18 {offsets = [1, 0], sizes = [1, 32], strides = [1, 1]} : vector<2x32xf32> to vector<1x32xf32>
    %24 = arith.maximumf %22, %23 : vector<1x32xf32>
    %25 = vector.extract_strided_slice %24 {offsets = [0, 0], sizes = [1, 16], strides = [1, 1]} : vector<1x32xf32> to vector<1x16xf32>
    %26 = vector.extract_strided_slice %24 {offsets = [0, 16], sizes = [1, 16], strides = [1, 1]} : vector<1x32xf32> to vector<1x16xf32>
    %27 = arith.maximumf %25, %26 : vector<1x16xf32>
    %c0_18 = arith.constant 0 : index
    %c0_19 = arith.constant 0 : index
    %c0_20 = arith.constant 0 : index
    %28 = vector.load %arg6[%c0_18, %c0_19, %c0_20] : memref<1x1x16xf32, #tpu.memory_space<vmem>>, vector<1x1x16xf32>
    %29 = vector.shape_cast %28 : vector<1x1x16xf32> to vector<1x16xf32>
    %30 = vector.shape_cast %27 : vector<1x16xf32> to vector<1x1x16xf32>
    tpu.vector_store %arg6[%c0_18, %c0_19, %c0_20], %30 {strides = array<i32>} : memref<1x1x16xf32, #tpu.memory_space<vmem>>, vector<1x1x16xf32>,
    return
  }
  func.func @transform_0(%arg0: i32) -> (i32, i32, i32) {
    %c0_i32 = arith.constant 0 : i32
    %c0_i32_0 = arith.constant 0 : i32
    %c0_i32_1 = arith.constant 0 : i32
    return %arg0, %c0_i32, %c0_i32_0 : i32, i32, i32
  }
  func.func @transform_1(%arg0: i32) -> (i32, i32, i32) {
    %c0_i32 = arith.constant 0 : i32
    %c0_i32_0 = arith.constant 0 : i32
    %c0_i32_1 = arith.constant 0 : i32
    %c0_i32_2 = arith.constant 0 : i32
    return %c0_i32, %c0_i32_0, %c0_i32_1 : i32, i32, i32
  }
  func.func @transform_2(%arg0: i32) -> (i32, i32) {
    %c0_i32 = arith.constant 0 : i32
    %c0_i32_0 = arith.constant 0 : i32
    %c0_i32_1 = arith.constant 0 : i32
    return %c0_i32, %c0_i32_0 : i32, i32
  }
  func.func @transform_3(%arg0: i32) -> (i32, i32) {
    %c0_i32 = arith.constant 0 : i32
    %c0_i32_0 = arith.constant 0 : i32
    %c0_i32_1 = arith.constant 0 : i32
    return %c0_i32, %c0_i32_0 : i32, i32
  }
  func.func @transform_4(%arg0: i32) -> (i32, i32, i32) {
    %c0_i32 = arith.constant 0 : i32
    %c0_i32_0 = arith.constant 0 : i32
    %c0_i32_1 = arith.constant 0 : i32
    return %arg0, %c0_i32, %c0_i32_0 : i32, i32, i32
  }
  func.func @transform_5(%arg0: i32) -> (i32, i32, i32) {
    %c0_i32 = arith.constant 0 : i32
    %c0_i32_0 = arith.constant 0 : i32
    %c0_i32_1 = arith.constant 0 : i32
    return %arg0, %c0_i32, %c0_i32_0 : i32, i32, i32
  }
}

module attributes {stable_mosaic.version = 11 : i64} {
  func.func @kernel(%arg0: i32, %arg1: memref<1x1x16xf32, #tpu.memory_space<vmem>>, %arg2: memref<1x1x16xf32, #tpu.memory_space<vmem>>, %arg3: memref<3x1x1xf32, #tpu.memory_space<vmem>>, %arg4: memref<3x1x1xf32, #tpu.memory_space<vmem>>, %arg5: memref<96x16xf32, #tpu.memory_space<vmem>>, %arg6: memref<2x16xf32, #tpu.memory_space<vmem>>, %arg7: memref<1x1x16xf32, #tpu.memory_space<vmem>>) attributes {dimension_semantics = [#tpu.dimension_semantics<parallel>], iteration_bounds = array<i64: 2>, scalar_prefetch = 0 : i64, scratch_operands = 0 : i64, tpu.core_type = #tpu.core_type<tc>, window_params = [{transform_indices = @transform_0, window_bounds = array<i64: 1, 1, 16>}, {transform_indices = @transform_1, window_bounds = array<i64: 1, 1, 16>}, {pipeline_mode = #tpu.pipeline_mode<synchronous>, transform_indices = @transform_2, window_bounds = array<i64: 3, 1, 1>}, {pipeline_mode = #tpu.pipeline_mode<synchronous>, transform_indices = @transform_3, window_bounds = array<i64: 3, 1, 1>}, {pipeline_mode = #tpu.pipeline_mode<synchronous>, transform_indices = @transform_4, window_bounds = array<i64: 96, 16>}, {pipeline_mode = #tpu.pipeline_mode<synchronous>, transform_indices = @transform_5, window_bounds = array<i64: 2, 16>}, {transform_indices = @transform_6, window_bounds = array<i64: 1, 1, 16>}]} {
    %c0 = arith.constant 0 : index
    %c0_0 = arith.constant 0 : index
    %c0_1 = arith.constant 0 : index
    %0 = vector.load %arg1[%c0, %c0_0, %c0_1] : memref<1x1x16xf32, #tpu.memory_space<vmem>>, vector<1x1x16xf32>
    %1 = vector.shape_cast %0 : vector<1x1x16xf32> to vector<1x16xf32>
    %c0_2 = arith.constant 0 : index
    %c0_3 = arith.constant 0 : index
    %c0_4 = arith.constant 0 : index
    %2 = vector.load %arg3[%c0_2, %c0_3, %c0_4] : memref<3x1x1xf32, #tpu.memory_space<vmem>>, vector<1x1x1xf32>
    %3 = vector.shape_cast %2 : vector<1x1x1xf32> to vector<1x1xf32>
    %cst = arith.constant dense<0.000000e+00> : vector<1x16xf32>
    %4 = tpu.matmul %3, %1, %cst {dimension_numbers = #tpu.dot_dimension_numbers<[1], [0], [0], [1], [0, 0, 1, 1], [], []>} : vector<1x1xf32>, vector<1x16xf32>, vector<1x16xf32> -> vector<1x16xf32>
    %c2 = arith.constant 2 : index
    %c0_5 = arith.constant 0 : index
    %c0_6 = arith.constant 0 : index
    %5 = vector.load %arg3[%c2, %c0_5, %c0_6] : memref<3x1x1xf32, #tpu.memory_space<vmem>>, vector<1x1x1xf32>
    %6 = vector.shape_cast %5 : vector<1x1x1xf32> to vector<1x1xf32>
    %cst_7 = arith.constant dense<0.000000e+00> : vector<1x16xf32>
    %7 = tpu.matmul %6, %1, %cst_7 {dimension_numbers = #tpu.dot_dimension_numbers<[1], [0], [0], [1], [0, 0, 1, 1], [], []>} : vector<1x1xf32>, vector<1x16xf32>, vector<1x16xf32> -> vector<1x16xf32>
    %c0_8 = arith.constant 0 : index
    %c0_9 = arith.constant 0 : index
    %c0_10 = arith.constant 0 : index
    %8 = vector.load %arg2[%c0_8, %c0_9, %c0_10] : memref<1x1x16xf32, #tpu.memory_space<vmem>>, vector<1x1x16xf32>
    %9 = vector.shape_cast %8 : vector<1x1x16xf32> to vector<1x16xf32>
    %c0_11 = arith.constant 0 : index
    %c0_12 = arith.constant 0 : index
    %c0_13 = arith.constant 0 : index
    %10 = vector.load %arg4[%c0_11, %c0_12, %c0_13] : memref<3x1x1xf32, #tpu.memory_space<vmem>>, vector<1x1x1xf32>
    %11 = vector.shape_cast %10 : vector<1x1x1xf32> to vector<1x1xf32>
    %cst_14 = arith.constant dense<0.000000e+00> : vector<1x16xf32>
    %12 = tpu.matmul %11, %9, %cst_14 {dimension_numbers = #tpu.dot_dimension_numbers<[1], [0], [0], [1], [0, 0, 1, 1], [], []>} : vector<1x1xf32>, vector<1x16xf32>, vector<1x16xf32> -> vector<1x16xf32>
    %c2_15 = arith.constant 2 : index
    %c0_16 = arith.constant 0 : index
    %c0_17 = arith.constant 0 : index
    %13 = vector.load %arg4[%c2_15, %c0_16, %c0_17] : memref<3x1x1xf32, #tpu.memory_space<vmem>>, vector<1x1x1xf32>
    %14 = vector.shape_cast %13 : vector<1x1x1xf32> to vector<1x1xf32>
    %cst_18 = arith.constant dense<0.000000e+00> : vector<1x16xf32>
    %15 = tpu.matmul %14, %9, %cst_18 {dimension_numbers = #tpu.dot_dimension_numbers<[1], [0], [0], [1], [0, 0, 1, 1], [], []>} : vector<1x1xf32>, vector<1x16xf32>, vector<1x16xf32> -> vector<1x16xf32>
    %16 = tpu.concatenate %4, %1, %7, %12, %9, %15 in 1 : vector<1x16xf32>, vector<1x16xf32>, vector<1x16xf32>, vector<1x16xf32>, vector<1x16xf32>, vector<1x16xf32> -> vector<1x96xf32>
    %c0_19 = arith.constant 0 : index
    %c0_20 = arith.constant 0 : index
    %17 = vector.load %arg5[%c0_19, %c0_20] : memref<96x16xf32, #tpu.memory_space<vmem>>, vector<96x16xf32>
    %cst_21 = arith.constant dense<0.000000e+00> : vector<1x16xf32>
    %18 = tpu.matmul %16, %17, %cst_21 {dimension_numbers = #tpu.dot_dimension_numbers<[1], [0], [0], [1], [0, 0, 1, 1], [], []>} : vector<1x96xf32>, vector<96x16xf32>, vector<1x16xf32> -> vector<1x16xf32>
    %c0_22 = arith.constant 0 : index
    %c0_23 = arith.constant 0 : index
    %19 = vector.load %arg6[%c0_22, %c0_23] : memref<2x16xf32, #tpu.memory_space<vmem>>, vector<1x16xf32>
    %20 = arith.mulf %18, %19 : vector<1x16xf32>
    %c1 = arith.constant 1 : index
    %c0_24 = arith.constant 0 : index
    %21 = vector.load %arg6[%c1, %c0_24] : memref<2x16xf32, #tpu.memory_space<vmem>>, vector<1x16xf32>
    %22 = arith.addf %20, %21 : vector<1x16xf32>
    %cst_25 = arith.constant 0.000000e+00 : f32
    %23 = vector.broadcast %cst_25 : f32 to vector<1x16xf32>
    %24 = arith.maximumf %22, %23 : vector<1x16xf32>
    %c0_26 = arith.constant 0 : index
    %c0_27 = arith.constant 0 : index
    %c0_28 = arith.constant 0 : index
    %25 = vector.load %arg7[%c0_26, %c0_27, %c0_28] : memref<1x1x16xf32, #tpu.memory_space<vmem>>, vector<1x1x16xf32>
    %26 = vector.shape_cast %25 : vector<1x1x16xf32> to vector<1x16xf32>
    %27 = vector.shape_cast %24 : vector<1x16xf32> to vector<1x1x16xf32>
    tpu.vector_store %arg7[%c0_26, %c0_27, %c0_28], %27 {strides = array<i32>} : memref<1x1x16xf32, #tpu.memory_space<vmem>>, vector<1x1x16xf32>,
    return
  }
  func.func @transform_0(%arg0: i32) -> (i32, i32, i32) {
    %c0_i32 = arith.constant 0 : i32
    %c0_i32_0 = arith.constant 0 : i32
    %c0_i32_1 = arith.constant 0 : i32
    return %arg0, %c0_i32, %c0_i32_0 : i32, i32, i32
  }
  func.func @transform_1(%arg0: i32) -> (i32, i32, i32) {
    %c0_i32 = arith.constant 0 : i32
    %c0_i32_0 = arith.constant 0 : i32
    %c0_i32_1 = arith.constant 0 : i32
    return %arg0, %c0_i32, %c0_i32_0 : i32, i32, i32
  }
  func.func @transform_2(%arg0: i32) -> (i32, i32, i32) {
    %c0_i32 = arith.constant 0 : i32
    %c0_i32_0 = arith.constant 0 : i32
    %c0_i32_1 = arith.constant 0 : i32
    %c0_i32_2 = arith.constant 0 : i32
    return %c0_i32, %c0_i32_0, %c0_i32_1 : i32, i32, i32
  }
  func.func @transform_3(%arg0: i32) -> (i32, i32, i32) {
    %c0_i32 = arith.constant 0 : i32
    %c0_i32_0 = arith.constant 0 : i32
    %c0_i32_1 = arith.constant 0 : i32
    %c0_i32_2 = arith.constant 0 : i32
    return %c0_i32, %c0_i32_0, %c0_i32_1 : i32, i32, i32
  }
  func.func @transform_4(%arg0: i32) -> (i32, i32) {
    %c0_i32 = arith.constant 0 : i32
    %c0_i32_0 = arith.constant 0 : i32
    %c0_i32_1 = arith.constant 0 : i32
    return %c0_i32, %c0_i32_0 : i32, i32
  }
  func.func @transform_5(%arg0: i32) -> (i32, i32) {
    %c0_i32 = arith.constant 0 : i32
    %c0_i32_0 = arith.constant 0 : i32
    %c0_i32_1 = arith.constant 0 : i32
    return %c0_i32, %c0_i32_0 : i32, i32
  }
  func.func @transform_6(%arg0: i32) -> (i32, i32, i32) {
    %c0_i32 = arith.constant 0 : i32
    %c0_i32_0 = arith.constant 0 : i32
    %c0_i32_1 = arith.constant 0 : i32
    return %arg0, %c0_i32, %c0_i32_0 : i32, i32, i32
  }
}

module attributes {stable_mosaic.version = 11 : i64} {
  func.func @kernel(%arg0: i32, %arg1: memref<1x1x16xf32, #tpu.memory_space<vmem>>, %arg2: memref<3x1x1xf32, #tpu.memory_space<vmem>>, %arg3: memref<48x16xf32, #tpu.memory_space<vmem>>, %arg4: memref<2x16xf32, #tpu.memory_space<vmem>>, %arg5: memref<1x1x16xf32, #tpu.memory_space<vmem>>) attributes {dimension_semantics = [#tpu.dimension_semantics<parallel>], iteration_bounds = array<i64: 2>, scalar_prefetch = 0 : i64, scratch_operands = 0 : i64, tpu.core_type = #tpu.core_type<tc>, window_params = [{transform_indices = @transform_0, window_bounds = array<i64: 1, 1, 16>}, {pipeline_mode = #tpu.pipeline_mode<synchronous>, transform_indices = @transform_1, window_bounds = array<i64: 3, 1, 1>}, {pipeline_mode = #tpu.pipeline_mode<synchronous>, transform_indices = @transform_2, window_bounds = array<i64: 48, 16>}, {pipeline_mode = #tpu.pipeline_mode<synchronous>, transform_indices = @transform_3, window_bounds = array<i64: 2, 16>}, {transform_indices = @transform_4, window_bounds = array<i64: 1, 1, 16>}]} {
    %c0 = arith.constant 0 : index
    %c0_0 = arith.constant 0 : index
    %c0_1 = arith.constant 0 : index
    %0 = vector.load %arg1[%c0, %c0_0, %c0_1] : memref<1x1x16xf32, #tpu.memory_space<vmem>>, vector<1x1x16xf32>
    %1 = vector.shape_cast %0 : vector<1x1x16xf32> to vector<1x16xf32>
    %c0_2 = arith.constant 0 : index
    %c0_3 = arith.constant 0 : index
    %c0_4 = arith.constant 0 : index
    %2 = vector.load %arg2[%c0_2, %c0_3, %c0_4] : memref<3x1x1xf32, #tpu.memory_space<vmem>>, vector<1x1x1xf32>
    %3 = vector.shape_cast %2 : vector<1x1x1xf32> to vector<1x1xf32>
    %cst = arith.constant dense<0.000000e+00> : vector<1x16xf32>
    %4 = tpu.matmul %3, %1, %cst {dimension_numbers = #tpu.dot_dimension_numbers<[1], [0], [0], [1], [0, 0, 1, 1], [], []>} : vector<1x1xf32>, vector<1x16xf32>, vector<1x16xf32> -> vector<1x16xf32>
    %c2 = arith.constant 2 : index
    %c0_5 = arith.constant 0 : index
    %c0_6 = arith.constant 0 : index
    %5 = vector.load %arg2[%c2, %c0_5, %c0_6] : memref<3x1x1xf32, #tpu.memory_space<vmem>>, vector<1x1x1xf32>
    %6 = vector.shape_cast %5 : vector<1x1x1xf32> to vector<1x1xf32>
    %cst_7 = arith.constant dense<0.000000e+00> : vector<1x16xf32>
    %7 = tpu.matmul %6, %1, %cst_7 {dimension_numbers = #tpu.dot_dimension_numbers<[1], [0], [0], [1], [0, 0, 1, 1], [], []>} : vector<1x1xf32>, vector<1x16xf32>, vector<1x16xf32> -> vector<1x16xf32>
    %8 = tpu.concatenate %4, %1, %7 in 1 : vector<1x16xf32>, vector<1x16xf32>, vector<1x16xf32> -> vector<1x48xf32>
    %c0_8 = arith.constant 0 : index
    %c0_9 = arith.constant 0 : index
    %9 = vector.load %arg3[%c0_8, %c0_9] : memref<48x16xf32, #tpu.memory_space<vmem>>, vector<48x16xf32>
    %cst_10 = arith.constant dense<0.000000e+00> : vector<1x16xf32>
    %10 = tpu.matmul %8, %9, %cst_10 {dimension_numbers = #tpu.dot_dimension_numbers<[1], [0], [0], [1], [0, 0, 1, 1], [], []>} : vector<1x48xf32>, vector<48x16xf32>, vector<1x16xf32> -> vector<1x16xf32>
    %c0_11 = arith.constant 0 : index
    %c0_12 = arith.constant 0 : index
    %11 = vector.load %arg4[%c0_11, %c0_12] : memref<2x16xf32, #tpu.memory_space<vmem>>, vector<1x16xf32>
    %12 = arith.mulf %10, %11 : vector<1x16xf32>
    %c1 = arith.constant 1 : index
    %c0_13 = arith.constant 0 : index
    %13 = vector.load %arg4[%c1, %c0_13] : memref<2x16xf32, #tpu.memory_space<vmem>>, vector<1x16xf32>
    %14 = arith.addf %12, %13 : vector<1x16xf32>
    %cst_14 = arith.constant 0.000000e+00 : f32
    %15 = vector.broadcast %cst_14 : f32 to vector<1x16xf32>
    %16 = arith.maximumf %14, %15 : vector<1x16xf32>
    %c0_15 = arith.constant 0 : index
    %c0_16 = arith.constant 0 : index
    %c0_17 = arith.constant 0 : index
    %17 = vector.load %arg5[%c0_15, %c0_16, %c0_17] : memref<1x1x16xf32, #tpu.memory_space<vmem>>, vector<1x1x16xf32>
    %18 = vector.shape_cast %17 : vector<1x1x16xf32> to vector<1x16xf32>
    %19 = vector.shape_cast %16 : vector<1x16xf32> to vector<1x1x16xf32>
    tpu.vector_store %arg5[%c0_15, %c0_16, %c0_17], %19 {strides = array<i32>} : memref<1x1x16xf32, #tpu.memory_space<vmem>>, vector<1x1x16xf32>,
    return
  }
  func.func @transform_0(%arg0: i32) -> (i32, i32, i32) {
    %c0_i32 = arith.constant 0 : i32
    %c0_i32_0 = arith.constant 0 : i32
    %c0_i32_1 = arith.constant 0 : i32
    return %arg0, %c0_i32, %c0_i32_0 : i32, i32, i32
  }
  func.func @transform_1(%arg0: i32) -> (i32, i32, i32) {
    %c0_i32 = arith.constant 0 : i32
    %c0_i32_0 = arith.constant 0 : i32
    %c0_i32_1 = arith.constant 0 : i32
    %c0_i32_2 = arith.constant 0 : i32
    return %c0_i32, %c0_i32_0, %c0_i32_1 : i32, i32, i32
  }
  func.func @transform_2(%arg0: i32) -> (i32, i32) {
    %c0_i32 = arith.constant 0 : i32
    %c0_i32_0 = arith.constant 0 : i32
    %c0_i32_1 = arith.constant 0 : i32
    return %c0_i32, %c0_i32_0 : i32, i32
  }
  func.func @transform_3(%arg0: i32) -> (i32, i32) {
    %c0_i32 = arith.constant 0 : i32
    %c0_i32_0 = arith.constant 0 : i32
    %c0_i32_1 = arith.constant 0 : i32
    return %c0_i32, %c0_i32_0 : i32, i32
  }
  func.func @transform_4(%arg0: i32) -> (i32, i32, i32) {
    %c0_i32 = arith.constant 0 : i32
    %c0_i32_0 = arith.constant 0 : i32
    %c0_i32_1 = arith.constant 0 : i32
    return %arg0, %c0_i32, %c0_i32_0 : i32, i32, i32
  }
}

module attributes {stable_mosaic.version = 11 : i64} {
  func.func @kernel(%arg0: i32, %arg1: memref<1x1x16xf32, #tpu.memory_space<vmem>>, %arg2: memref<1x2x32xf32, #tpu.memory_space<vmem>>, %arg3: memref<3x2x1xf32, #tpu.memory_space<vmem>>, %arg4: memref<3x2x2xf32, #tpu.memory_space<vmem>>, %arg5: memref<144x32xf32, #tpu.memory_space<vmem>>, %arg6: memref<2x32xf32, #tpu.memory_space<vmem>>, %arg7: memref<1x2x32xf32, #tpu.memory_space<vmem>>) attributes {dimension_semantics = [#tpu.dimension_semantics<parallel>], iteration_bounds = array<i64: 2>, scalar_prefetch = 0 : i64, scratch_operands = 0 : i64, tpu.core_type = #tpu.core_type<tc>, window_params = [{transform_indices = @transform_0, window_bounds = array<i64: 1, 1, 16>}, {transform_indices = @transform_1, window_bounds = array<i64: 1, 2, 32>}, {pipeline_mode = #tpu.pipeline_mode<synchronous>, transform_indices = @transform_2, window_bounds = array<i64: 3, 2, 1>}, {pipeline_mode = #tpu.pipeline_mode<synchronous>, transform_indices = @transform_3, window_bounds = array<i64: 3, 2, 2>}, {pipeline_mode = #tpu.pipeline_mode<synchronous>, transform_indices = @transform_4, window_bounds = array<i64: 144, 32>}, {pipeline_mode = #tpu.pipeline_mode<synchronous>, transform_indices = @transform_5, window_bounds = array<i64: 2, 32>}, {transform_indices = @transform_6, window_bounds = array<i64: 1, 2, 32>}]} {
    %c0 = arith.constant 0 : index
    %c0_0 = arith.constant 0 : index
    %c0_1 = arith.constant 0 : index
    %0 = vector.load %arg1[%c0, %c0_0, %c0_1] : memref<1x1x16xf32, #tpu.memory_space<vmem>>, vector<1x1x16xf32>
    %1 = vector.shape_cast %0 : vector<1x1x16xf32> to vector<1x16xf32>
    %c0_2 = arith.constant 0 : index
    %c0_3 = arith.constant 0 : index
    %c0_4 = arith.constant 0 : index
    %2 = vector.load %arg3[%c0_2, %c0_3, %c0_4] : memref<3x2x1xf32, #tpu.memory_space<vmem>>, vector<1x2x1xf32>
    %3 = vector.shape_cast %2 : vector<1x2x1xf32> to vector<2x1xf32>
    %cst = arith.constant dense<0.000000e+00> : vector<2x16xf32>
    %4 = tpu.matmul %3, %1, %cst {dimension_numbers = #tpu.dot_dimension_numbers<[1], [0], [0], [1], [0, 0, 1, 1], [], []>} : vector<2x1xf32>, vector<1x16xf32>, vector<2x16xf32> -> vector<2x16xf32>
    %c1 = arith.constant 1 : index
    %c0_5 = arith.constant 0 : index
    %c0_6 = arith.constant 0 : index
    %5 = vector.load %arg3[%c1, %c0_5, %c0_6] : memref<3x2x1xf32, #tpu.memory_space<vmem>>, vector<1x2x1xf32>
    %6 = vector.shape_cast %5 : vector<1x2x1xf32> to vector<2x1xf32>
    %cst_7 = arith.constant dense<0.000000e+00> : vector<2x16xf32>
    %7 = tpu.matmul %6, %1, %cst_7 {dimension_numbers = #tpu.dot_dimension_numbers<[1], [0], [0], [1], [0, 0, 1, 1], [], []>} : vector<2x1xf32>, vector<1x16xf32>, vector<2x16xf32> -> vector<2x16xf32>
    %c2 = arith.constant 2 : index
    %c0_8 = arith.constant 0 : index
    %c0_9 = arith.constant 0 : index
    %8 = vector.load %arg3[%c2, %c0_8, %c0_9] : memref<3x2x1xf32, #tpu.memory_space<vmem>>, vector<1x2x1xf32>
    %9 = vector.shape_cast %8 : vector<1x2x1xf32> to vector<2x1xf32>
    %cst_10 = arith.constant dense<0.000000e+00> : vector<2x16xf32>
    %10 = tpu.matmul %9, %1, %cst_10 {dimension_numbers = #tpu.dot_dimension_numbers<[1], [0], [0], [1], [0, 0, 1, 1], [], []>} : vector<2x1xf32>, vector<1x16xf32>, vector<2x16xf32> -> vector<2x16xf32>
    %c0_11 = arith.constant 0 : index
    %c0_12 = arith.constant 0 : index
    %c0_13 = arith.constant 0 : index
    %11 = vector.load %arg2[%c0_11, %c0_12, %c0_13] : memref<1x2x32xf32, #tpu.memory_space<vmem>>, vector<1x2x32xf32>
    %12 = vector.shape_cast %11 : vector<1x2x32xf32> to vector<2x32xf32>
    %c0_14 = arith.constant 0 : index
    %c0_15 = arith.constant 0 : index
    %c0_16 = arith.constant 0 : index
    %13 = vector.load %arg4[%c0_14, %c0_15, %c0_16] : memref<3x2x2xf32, #tpu.memory_space<vmem>>, vector<1x2x2xf32>
    %14 = vector.shape_cast %13 : vector<1x2x2xf32> to vector<2x2xf32>
    %cst_17 = arith.constant dense<0.000000e+00> : vector<2x32xf32>
    %15 = tpu.matmul %14, %12, %cst_17 {dimension_numbers = #tpu.dot_dimension_numbers<[1], [0], [0], [1], [0, 0, 1, 1], [], []>} : vector<2x2xf32>, vector<2x32xf32>, vector<2x32xf32> -> vector<2x32xf32>
    %c2_18 = arith.constant 2 : index
    %c0_19 = arith.constant 0 : index
    %c0_20 = arith.constant 0 : index
    %16 = vector.load %arg4[%c2_18, %c0_19, %c0_20] : memref<3x2x2xf32, #tpu.memory_space<vmem>>, vector<1x2x2xf32>
    %17 = vector.shape_cast %16 : vector<1x2x2xf32> to vector<2x2xf32>
    %cst_21 = arith.constant dense<0.000000e+00> : vector<2x32xf32>
    %18 = tpu.matmul %17, %12, %cst_21 {dimension_numbers = #tpu.dot_dimension_numbers<[1], [0], [0], [1], [0, 0, 1, 1], [], []>} : vector<2x2xf32>, vector<2x32xf32>, vector<2x32xf32> -> vector<2x32xf32>
    %19 = tpu.concatenate %4, %7, %10, %15, %12, %18 in 1 : vector<2x16xf32>, vector<2x16xf32>, vector<2x16xf32>, vector<2x32xf32>, vector<2x32xf32>, vector<2x32xf32> -> vector<2x144xf32>
    %c0_22 = arith.constant 0 : index
    %c0_23 = arith.constant 0 : index
    %20 = vector.load %arg5[%c0_22, %c0_23] : memref<144x32xf32, #tpu.memory_space<vmem>>, vector<144x32xf32>
    %cst_24 = arith.constant dense<0.000000e+00> : vector<2x32xf32>
    %21 = tpu.matmul %19, %20, %cst_24 {dimension_numbers = #tpu.dot_dimension_numbers<[1], [0], [0], [1], [0, 0, 1, 1], [], []>} : vector<2x144xf32>, vector<144x32xf32>, vector<2x32xf32> -> vector<2x32xf32>
    %c0_25 = arith.constant 0 : index
    %c0_26 = arith.constant 0 : index
    %22 = vector.load %arg6[%c0_25, %c0_26] : memref<2x32xf32, #tpu.memory_space<vmem>>, vector<1x32xf32>
    %23 = vector.broadcast %22 : vector<1x32xf32> to vector<2x32xf32>
    %24 = arith.mulf %21, %23 : vector<2x32xf32>
    %c1_27 = arith.constant 1 : index
    %c0_28 = arith.constant 0 : index
    %25 = vector.load %arg6[%c1_27, %c0_28] : memref<2x32xf32, #tpu.memory_space<vmem>>, vector<1x32xf32>
    %26 = vector.broadcast %25 : vector<1x32xf32> to vector<2x32xf32>
    %27 = arith.addf %24, %26 : vector<2x32xf32>
    %cst_29 = arith.constant 0.000000e+00 : f32
    %28 = vector.broadcast %cst_29 : f32 to vector<2x32xf32>
    %29 = arith.maximumf %27, %28 : vector<2x32xf32>
    %c0_30 = arith.constant 0 : index
    %c0_31 = arith.constant 0 : index
    %c0_32 = arith.constant 0 : index
    %30 = vector.load %arg7[%c0_30, %c0_31, %c0_32] : memref<1x2x32xf32, #tpu.memory_space<vmem>>, vector<1x2x32xf32>
    %31 = vector.shape_cast %30 : vector<1x2x32xf32> to vector<2x32xf32>
    %32 = vector.shape_cast %29 : vector<2x32xf32> to vector<1x2x32xf32>
    tpu.vector_store %arg7[%c0_30, %c0_31, %c0_32], %32 {strides = array<i32>} : memref<1x2x32xf32, #tpu.memory_space<vmem>>, vector<1x2x32xf32>,
    return
  }
  func.func @transform_0(%arg0: i32) -> (i32, i32, i32) {
    %c0_i32 = arith.constant 0 : i32
    %c0_i32_0 = arith.constant 0 : i32
    %c0_i32_1 = arith.constant 0 : i32
    return %arg0, %c0_i32, %c0_i32_0 : i32, i32, i32
  }
  func.func @transform_1(%arg0: i32) -> (i32, i32, i32) {
    %c0_i32 = arith.constant 0 : i32
    %c0_i32_0 = arith.constant 0 : i32
    %c0_i32_1 = arith.constant 0 : i32
    return %arg0, %c0_i32, %c0_i32_0 : i32, i32, i32
  }
  func.func @transform_2(%arg0: i32) -> (i32, i32, i32) {
    %c0_i32 = arith.constant 0 : i32
    %c0_i32_0 = arith.constant 0 : i32
    %c0_i32_1 = arith.constant 0 : i32
    %c0_i32_2 = arith.constant 0 : i32
    return %c0_i32, %c0_i32_0, %c0_i32_1 : i32, i32, i32
  }
  func.func @transform_3(%arg0: i32) -> (i32, i32, i32) {
    %c0_i32 = arith.constant 0 : i32
    %c0_i32_0 = arith.constant 0 : i32
    %c0_i32_1 = arith.constant 0 : i32
    %c0_i32_2 = arith.constant 0 : i32
    return %c0_i32, %c0_i32_0, %c0_i32_1 : i32, i32, i32
  }
  func.func @transform_4(%arg0: i32) -> (i32, i32) {
    %c0_i32 = arith.constant 0 : i32
    %c0_i32_0 = arith.constant 0 : i32
    %c0_i32_1 = arith.constant 0 : i32
    return %c0_i32, %c0_i32_0 : i32, i32
  }
  func.func @transform_5(%arg0: i32) -> (i32, i32) {
    %c0_i32 = arith.constant 0 : i32
    %c0_i32_0 = arith.constant 0 : i32
    %c0_i32_1 = arith.constant 0 : i32
    return %c0_i32, %c0_i32_0 : i32, i32
  }
  func.func @transform_6(%arg0: i32) -> (i32, i32, i32) {
    %c0_i32 = arith.constant 0 : i32
    %c0_i32_0 = arith.constant 0 : i32
    %c0_i32_1 = arith.constant 0 : i32
    return %arg0, %c0_i32, %c0_i32_0 : i32, i32, i32
  }
}

module attributes {stable_mosaic.version = 11 : i64} {
  func.func @kernel(%arg0: i32, %arg1: memref<1x2x32xf32, #tpu.memory_space<vmem>>, %arg2: memref<1x4x64xf32, #tpu.memory_space<vmem>>, %arg3: memref<3x4x2xf32, #tpu.memory_space<vmem>>, %arg4: memref<3x4x4xf32, #tpu.memory_space<vmem>>, %arg5: memref<288x64xf32, #tpu.memory_space<vmem>>, %arg6: memref<2x64xf32, #tpu.memory_space<vmem>>, %arg7: memref<1x4x64xf32, #tpu.memory_space<vmem>>) attributes {dimension_semantics = [#tpu.dimension_semantics<parallel>], iteration_bounds = array<i64: 2>, scalar_prefetch = 0 : i64, scratch_operands = 0 : i64, tpu.core_type = #tpu.core_type<tc>, window_params = [{transform_indices = @transform_0, window_bounds = array<i64: 1, 2, 32>}, {transform_indices = @transform_1, window_bounds = array<i64: 1, 4, 64>}, {pipeline_mode = #tpu.pipeline_mode<synchronous>, transform_indices = @transform_2, window_bounds = array<i64: 3, 4, 2>}, {pipeline_mode = #tpu.pipeline_mode<synchronous>, transform_indices = @transform_3, window_bounds = array<i64: 3, 4, 4>}, {pipeline_mode = #tpu.pipeline_mode<synchronous>, transform_indices = @transform_4, window_bounds = array<i64: 288, 64>}, {pipeline_mode = #tpu.pipeline_mode<synchronous>, transform_indices = @transform_5, window_bounds = array<i64: 2, 64>}, {transform_indices = @transform_6, window_bounds = array<i64: 1, 4, 64>}]} {
    %c0 = arith.constant 0 : index
    %c0_0 = arith.constant 0 : index
    %c0_1 = arith.constant 0 : index
    %0 = vector.load %arg1[%c0, %c0_0, %c0_1] : memref<1x2x32xf32, #tpu.memory_space<vmem>>, vector<1x2x32xf32>
    %1 = vector.shape_cast %0 : vector<1x2x32xf32> to vector<2x32xf32>
    %c0_2 = arith.constant 0 : index
    %c0_3 = arith.constant 0 : index
    %c0_4 = arith.constant 0 : index
    %2 = vector.load %arg3[%c0_2, %c0_3, %c0_4] : memref<3x4x2xf32, #tpu.memory_space<vmem>>, vector<1x4x2xf32>
    %3 = vector.shape_cast %2 : vector<1x4x2xf32> to vector<4x2xf32>
    %cst = arith.constant dense<0.000000e+00> : vector<4x32xf32>
    %4 = tpu.matmul %3, %1, %cst {dimension_numbers = #tpu.dot_dimension_numbers<[1], [0], [0], [1], [0, 0, 1, 1], [], []>} : vector<4x2xf32>, vector<2x32xf32>, vector<4x32xf32> -> vector<4x32xf32>
    %c1 = arith.constant 1 : index
    %c0_5 = arith.constant 0 : index
    %c0_6 = arith.constant 0 : index
    %5 = vector.load %arg3[%c1, %c0_5, %c0_6] : memref<3x4x2xf32, #tpu.memory_space<vmem>>, vector<1x4x2xf32>
    %6 = vector.shape_cast %5 : vector<1x4x2xf32> to vector<4x2xf32>
    %cst_7 = arith.constant dense<0.000000e+00> : vector<4x32xf32>
    %7 = tpu.matmul %6, %1, %cst_7 {dimension_numbers = #tpu.dot_dimension_numbers<[1], [0], [0], [1], [0, 0, 1, 1], [], []>} : vector<4x2xf32>, vector<2x32xf32>, vector<4x32xf32> -> vector<4x32xf32>
    %c2 = arith.constant 2 : index
    %c0_8 = arith.constant 0 : index
    %c0_9 = arith.constant 0 : index
    %8 = vector.load %arg3[%c2, %c0_8, %c0_9] : memref<3x4x2xf32, #tpu.memory_space<vmem>>, vector<1x4x2xf32>
    %9 = vector.shape_cast %8 : vector<1x4x2xf32> to vector<4x2xf32>
    %cst_10 = arith.constant dense<0.000000e+00> : vector<4x32xf32>
    %10 = tpu.matmul %9, %1, %cst_10 {dimension_numbers = #tpu.dot_dimension_numbers<[1], [0], [0], [1], [0, 0, 1, 1], [], []>} : vector<4x2xf32>, vector<2x32xf32>, vector<4x32xf32> -> vector<4x32xf32>
    %c0_11 = arith.constant 0 : index
    %c0_12 = arith.constant 0 : index
    %c0_13 = arith.constant 0 : index
    %11 = vector.load %arg2[%c0_11, %c0_12, %c0_13] : memref<1x4x64xf32, #tpu.memory_space<vmem>>, vector<1x4x64xf32>
    %12 = vector.shape_cast %11 : vector<1x4x64xf32> to vector<4x64xf32>
    %c0_14 = arith.constant 0 : index
    %c0_15 = arith.constant 0 : index
    %c0_16 = arith.constant 0 : index
    %13 = vector.load %arg4[%c0_14, %c0_15, %c0_16] : memref<3x4x4xf32, #tpu.memory_space<vmem>>, vector<1x4x4xf32>
    %14 = vector.shape_cast %13 : vector<1x4x4xf32> to vector<4x4xf32>
    %cst_17 = arith.constant dense<0.000000e+00> : vector<4x64xf32>
    %15 = tpu.matmul %14, %12, %cst_17 {dimension_numbers = #tpu.dot_dimension_numbers<[1], [0], [0], [1], [0, 0, 1, 1], [], []>} : vector<4x4xf32>, vector<4x64xf32>, vector<4x64xf32> -> vector<4x64xf32>
    %c2_18 = arith.constant 2 : index
    %c0_19 = arith.constant 0 : index
    %c0_20 = arith.constant 0 : index
    %16 = vector.load %arg4[%c2_18, %c0_19, %c0_20] : memref<3x4x4xf32, #tpu.memory_space<vmem>>, vector<1x4x4xf32>
    %17 = vector.shape_cast %16 : vector<1x4x4xf32> to vector<4x4xf32>
    %cst_21 = arith.constant dense<0.000000e+00> : vector<4x64xf32>
    %18 = tpu.matmul %17, %12, %cst_21 {dimension_numbers = #tpu.dot_dimension_numbers<[1], [0], [0], [1], [0, 0, 1, 1], [], []>} : vector<4x4xf32>, vector<4x64xf32>, vector<4x64xf32> -> vector<4x64xf32>
    %19 = tpu.concatenate %4, %7, %10, %15, %12, %18 in 1 : vector<4x32xf32>, vector<4x32xf32>, vector<4x32xf32>, vector<4x64xf32>, vector<4x64xf32>, vector<4x64xf32> -> vector<4x288xf32>
    %c0_22 = arith.constant 0 : index
    %c0_23 = arith.constant 0 : index
    %20 = vector.load %arg5[%c0_22, %c0_23] : memref<288x64xf32, #tpu.memory_space<vmem>>, vector<288x64xf32>
    %cst_24 = arith.constant dense<0.000000e+00> : vector<4x64xf32>
    %21 = tpu.matmul %19, %20, %cst_24 {dimension_numbers = #tpu.dot_dimension_numbers<[1], [0], [0], [1], [0, 0, 1, 1], [], []>} : vector<4x288xf32>, vector<288x64xf32>, vector<4x64xf32> -> vector<4x64xf32>
    %c0_25 = arith.constant 0 : index
    %c0_26 = arith.constant 0 : index
    %22 = vector.load %arg6[%c0_25, %c0_26] : memref<2x64xf32, #tpu.memory_space<vmem>>, vector<1x64xf32>
    %23 = vector.broadcast %22 : vector<1x64xf32> to vector<4x64xf32>
    %24 = arith.mulf %21, %23 : vector<4x64xf32>
    %c1_27 = arith.constant 1 : index
    %c0_28 = arith.constant 0 : index
    %25 = vector.load %arg6[%c1_27, %c0_28] : memref<2x64xf32, #tpu.memory_space<vmem>>, vector<1x64xf32>
    %26 = vector.broadcast %25 : vector<1x64xf32> to vector<4x64xf32>
    %27 = arith.addf %24, %26 : vector<4x64xf32>
    %cst_29 = arith.constant 0.000000e+00 : f32
    %28 = vector.broadcast %cst_29 : f32 to vector<4x64xf32>
    %29 = arith.maximumf %27, %28 : vector<4x64xf32>
    %c0_30 = arith.constant 0 : index
    %c0_31 = arith.constant 0 : index
    %c0_32 = arith.constant 0 : index
    %30 = vector.load %arg7[%c0_30, %c0_31, %c0_32] : memref<1x4x64xf32, #tpu.memory_space<vmem>>, vector<1x4x64xf32>
    %31 = vector.shape_cast %30 : vector<1x4x64xf32> to vector<4x64xf32>
    %32 = vector.shape_cast %29 : vector<4x64xf32> to vector<1x4x64xf32>
    tpu.vector_store %arg7[%c0_30, %c0_31, %c0_32], %32 {strides = array<i32>} : memref<1x4x64xf32, #tpu.memory_space<vmem>>, vector<1x4x64xf32>,
    return
  }
  func.func @transform_0(%arg0: i32) -> (i32, i32, i32) {
    %c0_i32 = arith.constant 0 : i32
    %c0_i32_0 = arith.constant 0 : i32
    %c0_i32_1 = arith.constant 0 : i32
    return %arg0, %c0_i32, %c0_i32_0 : i32, i32, i32
  }
  func.func @transform_1(%arg0: i32) -> (i32, i32, i32) {
    %c0_i32 = arith.constant 0 : i32
    %c0_i32_0 = arith.constant 0 : i32
    %c0_i32_1 = arith.constant 0 : i32
    return %arg0, %c0_i32, %c0_i32_0 : i32, i32, i32
  }
  func.func @transform_2(%arg0: i32) -> (i32, i32, i32) {
    %c0_i32 = arith.constant 0 : i32
    %c0_i32_0 = arith.constant 0 : i32
    %c0_i32_1 = arith.constant 0 : i32
    %c0_i32_2 = arith.constant 0 : i32
    return %c0_i32, %c0_i32_0, %c0_i32_1 : i32, i32, i32
  }
  func.func @transform_3(%arg0: i32) -> (i32, i32, i32) {
    %c0_i32 = arith.constant 0 : i32
    %c0_i32_0 = arith.constant 0 : i32
    %c0_i32_1 = arith.constant 0 : i32
    %c0_i32_2 = arith.constant 0 : i32
    return %c0_i32, %c0_i32_0, %c0_i32_1 : i32, i32, i32
  }
  func.func @transform_4(%arg0: i32) -> (i32, i32) {
    %c0_i32 = arith.constant 0 : i32
    %c0_i32_0 = arith.constant 0 : i32
    %c0_i32_1 = arith.constant 0 : i32
    return %c0_i32, %c0_i32_0 : i32, i32
  }
  func.func @transform_5(%arg0: i32) -> (i32, i32) {
    %c0_i32 = arith.constant 0 : i32
    %c0_i32_0 = arith.constant 0 : i32
    %c0_i32_1 = arith.constant 0 : i32
    return %c0_i32, %c0_i32_0 : i32, i32
  }
  func.func @transform_6(%arg0: i32) -> (i32, i32, i32) {
    %c0_i32 = arith.constant 0 : i32
    %c0_i32_0 = arith.constant 0 : i32
    %c0_i32_1 = arith.constant 0 : i32
    return %arg0, %c0_i32, %c0_i32_0 : i32, i32, i32
  }
}

module attributes {stable_mosaic.version = 11 : i64} {
  func.func @kernel(%arg0: i32, %arg1: memref<1x4x64xf32, #tpu.memory_space<vmem>>, %arg2: memref<1x8x128xf32, #tpu.memory_space<vmem>>, %arg3: memref<3x8x4xf32, #tpu.memory_space<vmem>>, %arg4: memref<3x8x8xf32, #tpu.memory_space<vmem>>, %arg5: memref<576x128xf32, #tpu.memory_space<vmem>>, %arg6: memref<2x128xf32, #tpu.memory_space<vmem>>, %arg7: memref<1x8x128xf32, #tpu.memory_space<vmem>>) attributes {dimension_semantics = [#tpu.dimension_semantics<parallel>], iteration_bounds = array<i64: 2>, scalar_prefetch = 0 : i64, scratch_operands = 0 : i64, tpu.core_type = #tpu.core_type<tc>, window_params = [{transform_indices = @transform_0, window_bounds = array<i64: 1, 4, 64>}, {transform_indices = @transform_1, window_bounds = array<i64: 1, 8, 128>}, {pipeline_mode = #tpu.pipeline_mode<synchronous>, transform_indices = @transform_2, window_bounds = array<i64: 3, 8, 4>}, {pipeline_mode = #tpu.pipeline_mode<synchronous>, transform_indices = @transform_3, window_bounds = array<i64: 3, 8, 8>}, {pipeline_mode = #tpu.pipeline_mode<synchronous>, transform_indices = @transform_4, window_bounds = array<i64: 576, 128>}, {pipeline_mode = #tpu.pipeline_mode<synchronous>, transform_indices = @transform_5, window_bounds = array<i64: 2, 128>}, {transform_indices = @transform_6, window_bounds = array<i64: 1, 8, 128>}]} {
    %c0 = arith.constant 0 : index
    %c0_0 = arith.constant 0 : index
    %c0_1 = arith.constant 0 : index
    %0 = vector.load %arg1[%c0, %c0_0, %c0_1] : memref<1x4x64xf32, #tpu.memory_space<vmem>>, vector<1x4x64xf32>
    %1 = vector.shape_cast %0 : vector<1x4x64xf32> to vector<4x64xf32>
    %c0_2 = arith.constant 0 : index
    %c0_3 = arith.constant 0 : index
    %c0_4 = arith.constant 0 : index
    %2 = vector.load %arg3[%c0_2, %c0_3, %c0_4] : memref<3x8x4xf32, #tpu.memory_space<vmem>>, vector<1x8x4xf32>
    %3 = vector.shape_cast %2 : vector<1x8x4xf32> to vector<8x4xf32>
    %cst = arith.constant dense<0.000000e+00> : vector<8x64xf32>
    %4 = tpu.matmul %3, %1, %cst {dimension_numbers = #tpu.dot_dimension_numbers<[1], [0], [0], [1], [0, 0, 1, 1], [], []>} : vector<8x4xf32>, vector<4x64xf32>, vector<8x64xf32> -> vector<8x64xf32>
    %c1 = arith.constant 1 : index
    %c0_5 = arith.constant 0 : index
    %c0_6 = arith.constant 0 : index
    %5 = vector.load %arg3[%c1, %c0_5, %c0_6] : memref<3x8x4xf32, #tpu.memory_space<vmem>>, vector<1x8x4xf32>
    %6 = vector.shape_cast %5 : vector<1x8x4xf32> to vector<8x4xf32>
    %cst_7 = arith.constant dense<0.000000e+00> : vector<8x64xf32>
    %7 = tpu.matmul %6, %1, %cst_7 {dimension_numbers = #tpu.dot_dimension_numbers<[1], [0], [0], [1], [0, 0, 1, 1], [], []>} : vector<8x4xf32>, vector<4x64xf32>, vector<8x64xf32> -> vector<8x64xf32>
    %c2 = arith.constant 2 : index
    %c0_8 = arith.constant 0 : index
    %c0_9 = arith.constant 0 : index
    %8 = vector.load %arg3[%c2, %c0_8, %c0_9] : memref<3x8x4xf32, #tpu.memory_space<vmem>>, vector<1x8x4xf32>
    %9 = vector.shape_cast %8 : vector<1x8x4xf32> to vector<8x4xf32>
    %cst_10 = arith.constant dense<0.000000e+00> : vector<8x64xf32>
    %10 = tpu.matmul %9, %1, %cst_10 {dimension_numbers = #tpu.dot_dimension_numbers<[1], [0], [0], [1], [0, 0, 1, 1], [], []>} : vector<8x4xf32>, vector<4x64xf32>, vector<8x64xf32> -> vector<8x64xf32>
    %c0_11 = arith.constant 0 : index
    %c0_12 = arith.constant 0 : index
    %c0_13 = arith.constant 0 : index
    %11 = vector.load %arg2[%c0_11, %c0_12, %c0_13] : memref<1x8x128xf32, #tpu.memory_space<vmem>>, vector<1x8x128xf32>
    %12 = vector.shape_cast %11 : vector<1x8x128xf32> to vector<8x128xf32>
    %c0_14 = arith.constant 0 : index
    %c0_15 = arith.constant 0 : index
    %c0_16 = arith.constant 0 : index
    %13 = vector.load %arg4[%c0_14, %c0_15, %c0_16] : memref<3x8x8xf32, #tpu.memory_space<vmem>>, vector<1x8x8xf32>
    %14 = vector.shape_cast %13 : vector<1x8x8xf32> to vector<8x8xf32>
    %cst_17 = arith.constant dense<0.000000e+00> : vector<8x128xf32>
    %15 = tpu.matmul %14, %12, %cst_17 {dimension_numbers = #tpu.dot_dimension_numbers<[1], [0], [0], [1], [0, 0, 1, 1], [], []>} : vector<8x8xf32>, vector<8x128xf32>, vector<8x128xf32> -> vector<8x128xf32>
    %c2_18 = arith.constant 2 : index
    %c0_19 = arith.constant 0 : index
    %c0_20 = arith.constant 0 : index
    %16 = vector.load %arg4[%c2_18, %c0_19, %c0_20] : memref<3x8x8xf32, #tpu.memory_space<vmem>>, vector<1x8x8xf32>
    %17 = vector.shape_cast %16 : vector<1x8x8xf32> to vector<8x8xf32>
    %cst_21 = arith.constant dense<0.000000e+00> : vector<8x128xf32>
    %18 = tpu.matmul %17, %12, %cst_21 {dimension_numbers = #tpu.dot_dimension_numbers<[1], [0], [0], [1], [0, 0, 1, 1], [], []>} : vector<8x8xf32>, vector<8x128xf32>, vector<8x128xf32> -> vector<8x128xf32>
    %19 = tpu.concatenate %4, %7, %10, %15, %12, %18 in 1 : vector<8x64xf32>, vector<8x64xf32>, vector<8x64xf32>, vector<8x128xf32>, vector<8x128xf32>, vector<8x128xf32> -> vector<8x576xf32>
    %c0_22 = arith.constant 0 : index
    %c0_23 = arith.constant 0 : index
    %20 = vector.load %arg5[%c0_22, %c0_23] : memref<576x128xf32, #tpu.memory_space<vmem>>, vector<576x128xf32>
    %cst_24 = arith.constant dense<0.000000e+00> : vector<8x128xf32>
    %21 = tpu.matmul %19, %20, %cst_24 {dimension_numbers = #tpu.dot_dimension_numbers<[1], [0], [0], [1], [0, 0, 1, 1], [], []>} : vector<8x576xf32>, vector<576x128xf32>, vector<8x128xf32> -> vector<8x128xf32>
    %c0_25 = arith.constant 0 : index
    %c0_26 = arith.constant 0 : index
    %22 = vector.load %arg6[%c0_25, %c0_26] : memref<2x128xf32, #tpu.memory_space<vmem>>, vector<1x128xf32>
    %23 = vector.broadcast %22 : vector<1x128xf32> to vector<8x128xf32>
    %24 = arith.mulf %21, %23 : vector<8x128xf32>
    %c1_27 = arith.constant 1 : index
    %c0_28 = arith.constant 0 : index
    %25 = vector.load %arg6[%c1_27, %c0_28] : memref<2x128xf32, #tpu.memory_space<vmem>>, vector<1x128xf32>
    %26 = vector.broadcast %25 : vector<1x128xf32> to vector<8x128xf32>
    %27 = arith.addf %24, %26 : vector<8x128xf32>
    %cst_29 = arith.constant 0.000000e+00 : f32
    %28 = vector.broadcast %cst_29 : f32 to vector<8x128xf32>
    %29 = arith.maximumf %27, %28 : vector<8x128xf32>
    %c0_30 = arith.constant 0 : index
    %c0_31 = arith.constant 0 : index
    %c0_32 = arith.constant 0 : index
    %30 = vector.load %arg7[%c0_30, %c0_31, %c0_32] : memref<1x8x128xf32, #tpu.memory_space<vmem>>, vector<1x8x128xf32>
    %31 = vector.shape_cast %30 : vector<1x8x128xf32> to vector<8x128xf32>
    %32 = vector.shape_cast %29 : vector<8x128xf32> to vector<1x8x128xf32>
    tpu.vector_store %arg7[%c0_30, %c0_31, %c0_32], %32 {strides = array<i32>} : memref<1x8x128xf32, #tpu.memory_space<vmem>>, vector<1x8x128xf32>,
    return
  }
  func.func @transform_0(%arg0: i32) -> (i32, i32, i32) {
    %c0_i32 = arith.constant 0 : i32
    %c0_i32_0 = arith.constant 0 : i32
    %c0_i32_1 = arith.constant 0 : i32
    return %arg0, %c0_i32, %c0_i32_0 : i32, i32, i32
  }
  func.func @transform_1(%arg0: i32) -> (i32, i32, i32) {
    %c0_i32 = arith.constant 0 : i32
    %c0_i32_0 = arith.constant 0 : i32
    %c0_i32_1 = arith.constant 0 : i32
    return %arg0, %c0_i32, %c0_i32_0 : i32, i32, i32
  }
  func.func @transform_2(%arg0: i32) -> (i32, i32, i32) {
    %c0_i32 = arith.constant 0 : i32
    %c0_i32_0 = arith.constant 0 : i32
    %c0_i32_1 = arith.constant 0 : i32
    %c0_i32_2 = arith.constant 0 : i32
    return %c0_i32, %c0_i32_0, %c0_i32_1 : i32, i32, i32
  }
  func.func @transform_3(%arg0: i32) -> (i32, i32, i32) {
    %c0_i32 = arith.constant 0 : i32
    %c0_i32_0 = arith.constant 0 : i32
    %c0_i32_1 = arith.constant 0 : i32
    %c0_i32_2 = arith.constant 0 : i32
    return %c0_i32, %c0_i32_0, %c0_i32_1 : i32, i32, i32
  }
  func.func @transform_4(%arg0: i32) -> (i32, i32) {
    %c0_i32 = arith.constant 0 : i32
    %c0_i32_0 = arith.constant 0 : i32
    %c0_i32_1 = arith.constant 0 : i32
    return %c0_i32, %c0_i32_0 : i32, i32
  }
  func.func @transform_5(%arg0: i32) -> (i32, i32) {
    %c0_i32 = arith.constant 0 : i32
    %c0_i32_0 = arith.constant 0 : i32
    %c0_i32_1 = arith.constant 0 : i32
    return %c0_i32, %c0_i32_0 : i32, i32
  }
  func.func @transform_6(%arg0: i32) -> (i32, i32, i32) {
    %c0_i32 = arith.constant 0 : i32
    %c0_i32_0 = arith.constant 0 : i32
    %c0_i32_1 = arith.constant 0 : i32
    return %arg0, %c0_i32, %c0_i32_0 : i32, i32, i32
  }
}

module attributes {stable_mosaic.version = 11 : i64} {
  func.func @kernel(%arg0: i32, %arg1: memref<1x8x128xf32, #tpu.memory_space<vmem>>, %arg2: memref<1x16x256xf32, #tpu.memory_space<vmem>>, %arg3: memref<3x16x8xf32, #tpu.memory_space<vmem>>, %arg4: memref<3x16x16xf32, #tpu.memory_space<vmem>>, %arg5: memref<1152x128xf32, #tpu.memory_space<vmem>>, %arg6: memref<2x128xf32, #tpu.memory_space<vmem>>, %arg7: memref<1x16x128xf32, #tpu.memory_space<vmem>>, %arg8: memref<1x16x128xf32, #tpu.memory_space<vmem>>) attributes {dimension_semantics = [#tpu.dimension_semantics<parallel>], iteration_bounds = array<i64: 2>, scalar_prefetch = 0 : i64, scratch_operands = 0 : i64, tpu.core_type = #tpu.core_type<tc>, window_params = [{transform_indices = @transform_0, window_bounds = array<i64: 1, 8, 128>}, {transform_indices = @transform_1, window_bounds = array<i64: 1, 16, 256>}, {pipeline_mode = #tpu.pipeline_mode<synchronous>, transform_indices = @transform_2, window_bounds = array<i64: 3, 16, 8>}, {pipeline_mode = #tpu.pipeline_mode<synchronous>, transform_indices = @transform_3, window_bounds = array<i64: 3, 16, 16>}, {pipeline_mode = #tpu.pipeline_mode<synchronous>, transform_indices = @transform_4, window_bounds = array<i64: 1152, 128>}, {pipeline_mode = #tpu.pipeline_mode<synchronous>, transform_indices = @transform_5, window_bounds = array<i64: 2, 128>}, {transform_indices = @transform_6, window_bounds = array<i64: 1, 16, 128>}, {transform_indices = @transform_7, window_bounds = array<i64: 1, 16, 128>}]} {
    %c0 = arith.constant 0 : index
    %c0_0 = arith.constant 0 : index
    %c0_1 = arith.constant 0 : index
    %0 = vector.load %arg1[%c0, %c0_0, %c0_1] : memref<1x8x128xf32, #tpu.memory_space<vmem>>, vector<1x8x128xf32>
    %1 = vector.shape_cast %0 : vector<1x8x128xf32> to vector<8x128xf32>
    %c0_2 = arith.constant 0 : index
    %c0_3 = arith.constant 0 : index
    %c0_4 = arith.constant 0 : index
    %2 = vector.load %arg3[%c0_2, %c0_3, %c0_4] : memref<3x16x8xf32, #tpu.memory_space<vmem>>, vector<1x16x8xf32>
    %3 = vector.shape_cast %2 : vector<1x16x8xf32> to vector<16x8xf32>
    %cst = arith.constant dense<0.000000e+00> : vector<16x128xf32>
    %4 = tpu.matmul %3, %1, %cst {dimension_numbers = #tpu.dot_dimension_numbers<[1], [0], [0], [1], [0, 0, 1, 1], [], []>} : vector<16x8xf32>, vector<8x128xf32>, vector<16x128xf32> -> vector<16x128xf32>
    %c1 = arith.constant 1 : index
    %c0_5 = arith.constant 0 : index
    %c0_6 = arith.constant 0 : index
    %5 = vector.load %arg3[%c1, %c0_5, %c0_6] : memref<3x16x8xf32, #tpu.memory_space<vmem>>, vector<1x16x8xf32>
    %6 = vector.shape_cast %5 : vector<1x16x8xf32> to vector<16x8xf32>
    %cst_7 = arith.constant dense<0.000000e+00> : vector<16x128xf32>
    %7 = tpu.matmul %6, %1, %cst_7 {dimension_numbers = #tpu.dot_dimension_numbers<[1], [0], [0], [1], [0, 0, 1, 1], [], []>} : vector<16x8xf32>, vector<8x128xf32>, vector<16x128xf32> -> vector<16x128xf32>
    %c2 = arith.constant 2 : index
    %c0_8 = arith.constant 0 : index
    %c0_9 = arith.constant 0 : index
    %8 = vector.load %arg3[%c2, %c0_8, %c0_9] : memref<3x16x8xf32, #tpu.memory_space<vmem>>, vector<1x16x8xf32>
    %9 = vector.shape_cast %8 : vector<1x16x8xf32> to vector<16x8xf32>
    %cst_10 = arith.constant dense<0.000000e+00> : vector<16x128xf32>
    %10 = tpu.matmul %9, %1, %cst_10 {dimension_numbers = #tpu.dot_dimension_numbers<[1], [0], [0], [1], [0, 0, 1, 1], [], []>} : vector<16x8xf32>, vector<8x128xf32>, vector<16x128xf32> -> vector<16x128xf32>
    %c0_11 = arith.constant 0 : index
    %c0_12 = arith.constant 0 : index
    %c0_13 = arith.constant 0 : index
    %11 = vector.load %arg2[%c0_11, %c0_12, %c0_13] : memref<1x16x256xf32, #tpu.memory_space<vmem>>, vector<1x16x256xf32>
    %12 = vector.shape_cast %11 : vector<1x16x256xf32> to vector<16x256xf32>
    %c0_14 = arith.constant 0 : index
    %c0_15 = arith.constant 0 : index
    %c0_16 = arith.constant 0 : index
    %13 = vector.load %arg4[%c0_14, %c0_15, %c0_16] : memref<3x16x16xf32, #tpu.memory_space<vmem>>, vector<1x16x16xf32>
    %14 = vector.shape_cast %13 : vector<1x16x16xf32> to vector<16x16xf32>
    %cst_17 = arith.constant dense<0.000000e+00> : vector<16x256xf32>
    %15 = tpu.matmul %14, %12, %cst_17 {dimension_numbers = #tpu.dot_dimension_numbers<[1], [0], [0], [1], [0, 0, 1, 1], [], []>} : vector<16x16xf32>, vector<16x256xf32>, vector<16x256xf32> -> vector<16x256xf32>
    %c2_18 = arith.constant 2 : index
    %c0_19 = arith.constant 0 : index
    %c0_20 = arith.constant 0 : index
    %16 = vector.load %arg4[%c2_18, %c0_19, %c0_20] : memref<3x16x16xf32, #tpu.memory_space<vmem>>, vector<1x16x16xf32>
    %17 = vector.shape_cast %16 : vector<1x16x16xf32> to vector<16x16xf32>
    %cst_21 = arith.constant dense<0.000000e+00> : vector<16x256xf32>
    %18 = tpu.matmul %17, %12, %cst_21 {dimension_numbers = #tpu.dot_dimension_numbers<[1], [0], [0], [1], [0, 0, 1, 1], [], []>} : vector<16x16xf32>, vector<16x256xf32>, vector<16x256xf32> -> vector<16x256xf32>
    %19 = tpu.concatenate %4, %7, %10, %15, %12, %18 in 1 : vector<16x128xf32>, vector<16x128xf32>, vector<16x128xf32>, vector<16x256xf32>, vector<16x256xf32>, vector<16x256xf32> -> vector<16x1152xf32>
    %c0_22 = arith.constant 0 : index
    %c0_23 = arith.constant 0 : index
    %20 = vector.load %arg5[%c0_22, %c0_23] : memref<1152x128xf32, #tpu.memory_space<vmem>>, vector<1152x128xf32>
    %cst_24 = arith.constant dense<0.000000e+00> : vector<16x128xf32>
    %21 = tpu.matmul %19, %20, %cst_24 {dimension_numbers = #tpu.dot_dimension_numbers<[1], [0], [0], [1], [0, 0, 1, 1], [], []>} : vector<16x1152xf32>, vector<1152x128xf32>, vector<16x128xf32> -> vector<16x128xf32>
    %c0_25 = arith.constant 0 : index
    %c0_26 = arith.constant 0 : index
    %22 = vector.load %arg6[%c0_25, %c0_26] : memref<2x128xf32, #tpu.memory_space<vmem>>, vector<1x128xf32>
    %23 = vector.broadcast %22 : vector<1x128xf32> to vector<16x128xf32>
    %24 = arith.mulf %21, %23 : vector<16x128xf32>
    %c1_27 = arith.constant 1 : index
    %c0_28 = arith.constant 0 : index
    %25 = vector.load %arg6[%c1_27, %c0_28] : memref<2x128xf32, #tpu.memory_space<vmem>>, vector<1x128xf32>
    %26 = vector.broadcast %25 : vector<1x128xf32> to vector<16x128xf32>
    %27 = arith.addf %24, %26 : vector<16x128xf32>
    %cst_29 = arith.constant 0.000000e+00 : f32
    %28 = vector.broadcast %cst_29 : f32 to vector<16x128xf32>
    %29 = arith.maximumf %27, %28 : vector<16x128xf32>
    %c0_30 = arith.constant 0 : index
    %c0_31 = arith.constant 0 : index
    %c0_32 = arith.constant 0 : index
    %30 = vector.load %arg7[%c0_30, %c0_31, %c0_32] : memref<1x16x128xf32, #tpu.memory_space<vmem>>, vector<1x16x128xf32>
    %31 = vector.shape_cast %30 : vector<1x16x128xf32> to vector<16x128xf32>
    %32 = arith.addf %29, %31 : vector<16x128xf32>
    %c0_33 = arith.constant 0 : index
    %c0_34 = arith.constant 0 : index
    %c0_35 = arith.constant 0 : index
    %33 = vector.load %arg8[%c0_33, %c0_34, %c0_35] : memref<1x16x128xf32, #tpu.memory_space<vmem>>, vector<1x16x128xf32>
    %34 = vector.shape_cast %33 : vector<1x16x128xf32> to vector<16x128xf32>
    %35 = vector.shape_cast %32 : vector<16x128xf32> to vector<1x16x128xf32>
    tpu.vector_store %arg8[%c0_33, %c0_34, %c0_35], %35 {strides = array<i32>} : memref<1x16x128xf32, #tpu.memory_space<vmem>>, vector<1x16x128xf32>,
    return
  }
  func.func @transform_0(%arg0: i32) -> (i32, i32, i32) {
    %c0_i32 = arith.constant 0 : i32
    %c0_i32_0 = arith.constant 0 : i32
    %c0_i32_1 = arith.constant 0 : i32
    return %arg0, %c0_i32, %c0_i32_0 : i32, i32, i32
  }
  func.func @transform_1(%arg0: i32) -> (i32, i32, i32) {
    %c0_i32 = arith.constant 0 : i32
    %c0_i32_0 = arith.constant 0 : i32
    %c0_i32_1 = arith.constant 0 : i32
    return %arg0, %c0_i32, %c0_i32_0 : i32, i32, i32
  }
  func.func @transform_2(%arg0: i32) -> (i32, i32, i32) {
    %c0_i32 = arith.constant 0 : i32
    %c0_i32_0 = arith.constant 0 : i32
    %c0_i32_1 = arith.constant 0 : i32
    %c0_i32_2 = arith.constant 0 : i32
    return %c0_i32, %c0_i32_0, %c0_i32_1 : i32, i32, i32
  }
  func.func @transform_3(%arg0: i32) -> (i32, i32, i32) {
    %c0_i32 = arith.constant 0 : i32
    %c0_i32_0 = arith.constant 0 : i32
    %c0_i32_1 = arith.constant 0 : i32
    %c0_i32_2 = arith.constant 0 : i32
    return %c0_i32, %c0_i32_0, %c0_i32_1 : i32, i32, i32
  }
  func.func @transform_4(%arg0: i32) -> (i32, i32) {
    %c0_i32 = arith.constant 0 : i32
    %c0_i32_0 = arith.constant 0 : i32
    %c0_i32_1 = arith.constant 0 : i32
    return %c0_i32, %c0_i32_0 : i32, i32
  }
  func.func @transform_5(%arg0: i32) -> (i32, i32) {
    %c0_i32 = arith.constant 0 : i32
    %c0_i32_0 = arith.constant 0 : i32
    %c0_i32_1 = arith.constant 0 : i32
    return %c0_i32, %c0_i32_0 : i32, i32
  }
  func.func @transform_6(%arg0: i32) -> (i32, i32, i32) {
    %c0_i32 = arith.constant 0 : i32
    %c0_i32_0 = arith.constant 0 : i32
    %c0_i32_1 = arith.constant 0 : i32
    return %arg0, %c0_i32, %c0_i32_0 : i32, i32, i32
  }
  func.func @transform_7(%arg0: i32) -> (i32, i32, i32) {
    %c0_i32 = arith.constant 0 : i32
    %c0_i32_0 = arith.constant 0 : i32
    %c0_i32_1 = arith.constant 0 : i32
    return %arg0, %c0_i32, %c0_i32_0 : i32, i32, i32
  }
}

</mosaic_0001>

<llo_original>
// kernel: rsu6_forward.12
$region0: #{rsu6_forward.12}
  #allocation0 [shape = 'u32[]', space=smem, size = 0x4, offset = 0x4, fixed_abs, tag = 'smem constant byte address 0x4 - core index']
  #allocation1 [shape = 'u32[144,128]{1,0:T(1,128)}', space=vmem, size = 0x12000, scoped, tag = 'internal scratch']
  %s0 = inlined_call_operand.vmem [shape: f32[2,16,128], index: 0, kind: input, shape index: {}]
  %s1 = inlined_call_operand.vmem [shape: f32[3,16,16], index: 1, kind: input, shape index: {}]
  %s2 = inlined_call_operand.hbm [shape: f32[384,128], index: 2, kind: input, shape index: {}]
  %s3 = inlined_call_operand.vmem [shape: f32[2,128], index: 3, kind: input, shape index: {}]
  %s4 = inlined_call_operand.vmem [shape: f32[2,16,128], index: 4, kind: output, shape index: {}]
  %s5 = sld [smem:[#allocation0]]
  $region53: #{rsu6_forward.12} parent=0
    _
  %s7 = ssub.s32 1, %s5
  %s8 = scalar_select 0, %s7, %s5
  $region1: #{rsu6_forward.12} parent=0
    #allocation2 [shape = 'u8[196608]{0}', space=vmem, size = 0x30000, scoped, tag = 'input window, operand 2, single buffered']
    #allocation3 [shape = 's32[2]{0}', space=sflag, size = 0x8, scoped, tag = 'scoped memory for rsu6_forward.12']
    %9 = vsyncpa [#allocation3], 0
    loop: start=0, step=1, limit=4
    $region2: #{rsu6_forward.12} parent=1 // loop_pre_header
      _
    $region3: #{rsu6_forward.12} parent=1 // loop_header
      %s11 = sphi 0, %s15
      %p12 = scmp.ge.s32.totalorder %s11, 4
      %s21 = sphi 0, %s23
      %s24 = sphi 0, %s21
      %s25 = sphi 0, %s24
      %s41 = sphi 0, %s25
      %s45 = sphi 0, %s45
      %s47 = sphi 0, %s45
      %s48 = sphi 0, %s47
      %s62 = sphi 0, %s48
      %s66 = sphi 0, %s66
      %s68 = sphi 0, %s66
      %s69 = sphi 0, %s68
      %s83 = sphi 0, %s69
      %s87 = sphi 0, %s87
      %s89 = sphi 0, %s87
      %s90 = sphi 0, %s89
      %s104 = sphi 0, %s90
      %s110 = sphi 0, %s112
      %s113 = sphi 0, %s110
      %s114 = sphi 0, %s113
      %s130 = sphi 0, %s114
    $region4: #{rsu6_forward.12} parent=1 // loop_header_branch
      %14 = sbr.rel (%p12) target = $region8
    $region5: #{rsu6_forward.12} parent=1 // loop_body
      %s16 = ssub.s32 %s11, 1
      %s17 = ssub.s32 %s11, 2
      %s18 = sadd.s32 %s11, 1
      %s19 = ssub.s32 %s11, %s18
      %p20 = scmp.eq.s32.totalorder %s19, 0
      %s22 = sadd.s32 %s21, 1
      %s23 = scalar_select %p20, %s21, %s22
      %p26 = pneg %p20
      %p27 = scmp.eq.s32.totalorder %s11, 1
      %p28 = por %p26, %p27
      %p29 = scmp.ne.s32.totalorder %s21, %s24
      %p30 = scmp.eq.s32.totalorder %s11, 0
      %p31 = por %p29, %p30
      %p32 = scmp.ne.s32.totalorder %s21, %s24
      %p33 = scmp.eq.s32.totalorder %s16, 1
      %p34 = por %p32, %p33
      %p35 = scmp.ne.s32.totalorder %s24, %s25
      %p36 = scmp.eq.s32.totalorder %s16, 0
      %p37 = por %p35, %p36
      %p38 = scmp.ne.s32.totalorder %s24, %s25
      %p39 = scmp.eq.s32.totalorder %s17, 1
      %p40 = por %p38, %p39
      %p42 = scmp.ne.s32.totalorder %s25, %s41
      %p43 = scmp.eq.s32.totalorder %s17, 0
      %p44 = por %p42, %p43
      %s46 = sadd.s32 %s45, 1
      %p49 = scmp.eq.s32.totalorder %s11, 1
      %p50 = scmp.ne.s32.totalorder %s45, %s47
      %p51 = scmp.eq.s32.totalorder %s11, 0
      %p52 = por %p50, %p51
      %p53 = scmp.ne.s32.totalorder %s45, %s47
      %p54 = scmp.eq.s32.totalorder %s16, 1
      %p55 = por %p53, %p54
      %p56 = scmp.ne.s32.totalorder %s47, %s48
      %p57 = scmp.eq.s32.totalorder %s16, 0
      %p58 = por %p56, %p57
      %p59 = scmp.ne.s32.totalorder %s47, %s48
      %p60 = scmp.eq.s32.totalorder %s17, 1
      %p61 = por %p59, %p60
      %p63 = scmp.ne.s32.totalorder %s48, %s62
      %p64 = scmp.eq.s32.totalorder %s17, 0
      %p65 = por %p63, %p64
      %s67 = sadd.s32 %s66, 1
      %p70 = scmp.eq.s32.totalorder %s11, 1
      %p71 = scmp.ne.s32.totalorder %s66, %s68
      %p72 = scmp.eq.s32.totalorder %s11, 0
      %p73 = por %p71, %p72
      %p74 = scmp.ne.s32.totalorder %s66, %s68
      %p75 = scmp.eq.s32.totalorder %s16, 1
      %p76 = por %p74, %p75
      %p77 = scmp.ne.s32.totalorder %s68, %s69
      %p78 = scmp.eq.s32.totalorder %s16, 0
      %p79 = por %p77, %p78
      %p80 = scmp.ne.s32.totalorder %s68, %s69
      %p81 = scmp.eq.s32.totalorder %s17, 1
      %p82 = por %p80, %p81
      %p84 = scmp.ne.s32.totalorder %s69, %s83
      %p85 = scmp.eq.s32.totalorder %s17, 0
      %p86 = por %p84, %p85
      %s88 = sadd.s32 %s87, 1
      %p91 = scmp.eq.s32.totalorder %s11, 1
      %p92 = scmp.ne.s32.totalorder %s87, %s89
      %p93 = scmp.eq.s32.totalorder %s11, 0
      %p94 = por %p92, %p93
      %p95 = scmp.ne.s32.totalorder %s87, %s89
      %p96 = scmp.eq.s32.totalorder %s16, 1
      %p97 = por %p95, %p96
      %p98 = scmp.ne.s32.totalorder %s89, %s90
      %p99 = scmp.eq.s32.totalorder %s16, 0
      %p100 = por %p98, %p99
      %p101 = scmp.ne.s32.totalorder %s89, %s90
      %p102 = scmp.eq.s32.totalorder %s17, 1
      %p103 = por %p101, %p102
      %p105 = scmp.ne.s32.totalorder %s90, %s104
      %p106 = scmp.eq.s32.totalorder %s17, 0
      %p107 = por %p105, %p106
      %s108 = ssub.s32 %s11, %s18
      %p109 = scmp.eq.s32.totalorder %s108, 0
      %s111 = sadd.s32 %s110, 1
      %s112 = scalar_select %p109, %s110, %s111
      %p115 = pneg %p109
      %p116 = scmp.eq.s32.totalorder %s11, 1
      %p117 = por %p115, %p116
      %p118 = scmp.ne.s32.totalorder %s110, %s113
      %p119 = scmp.eq.s32.totalorder %s11, 0
      %p120 = por %p118, %p119
      %p121 = scmp.ne.s32.totalorder %s110, %s113
      %p122 = scmp.eq.s32.totalorder %s16, 1
      %p123 = por %p121, %p122
      %p124 = scmp.ne.s32.totalorder %s113, %s114
      %p125 = scmp.eq.s32.totalorder %s16, 0
      %p126 = por %p124, %p125
      %p127 = scmp.ne.s32.totalorder %s113, %s114
      %p128 = scmp.eq.s32.totalorder %s17, 1
      %p129 = por %p127, %p128
      %p131 = scmp.ne.s32.totalorder %s114, %s130
      %p132 = scmp.eq.s32.totalorder %s17, 0
      %p133 = por %p131, %p132
      %p134 = scmp.le.s32.totalorder 1, %s11
      %p135 = scmp.lt.s32.totalorder %s11, 3
      %p136 = pnand %p134, %p135
      %p137 = pneg %p136
      // Predicated region
      $region9: #{rsu6_forward.12} parent=5 // pred_check
        _
      $region10: #{rsu6_forward.12} parent=5 // pred_check_branch
        %139 = sbr.rel (%p136) target = $region12
      $region11: #{rsu6_forward.12} parent=5 // pred_region
        %s140 = ssub.s32 %s11, 1
        // Predicated region
        $region13: #{rsu6_forward.12} parent=11 // pred_check
          %p141 = pneg %p58
        $region14: #{rsu6_forward.12} parent=11 // pred_check_branch
          %143 = sbr.rel (%p141) target = $region16
        $region15: #{rsu6_forward.12} parent=11 // pred_region
          _
        $region16: #{rsu6_forward.12} parent=11 // pred_fallthru
          _
        // Predicated region
        $region17: #{rsu6_forward.12} parent=11 // pred_check
          %p144 = pneg %p79
        $region18: #{rsu6_forward.12} parent=11 // pred_check_branch
          %146 = sbr.rel (%p144) target = $region20
        $region19: #{rsu6_forward.12} parent=11 // pred_region
          %s148 = ssub.s32 6144, 6144
          %149 = vsyncadd [#allocation3], %s148
          %s150 = sshll.u32 [#allocation2], 4
          %s151 = int_to_ptr.vmem [resolvable:$true] %s150
          %156 = dma.hbm_to_vmem [thread:$0]  %s2, 6144, %s151, [#allocation3], 128, 128, 8
        $region20: #{rsu6_forward.12} parent=11 // pred_fallthru
          _
        // Predicated region
        $region21: #{rsu6_forward.12} parent=11 // pred_check
          %p157 = pneg %p100
        $region22: #{rsu6_forward.12} parent=11 // pred_check_branch
          %159 = sbr.rel (%p157) target = $region24
        $region23: #{rsu6_forward.12} parent=11 // pred_region
          _
        $region24: #{rsu6_forward.12} parent=11 // pred_fallthru
          _
      $region12: #{rsu6_forward.12} parent=5 // pred_fallthru
        _
      %p160 = scmp.lt.s32.totalorder %s11, 2
      // Predicated region
      $region25: #{rsu6_forward.12} parent=5 // pred_check
        %p161 = pneg %p160
      $region26: #{rsu6_forward.12} parent=5 // pred_check_branch
        %163 = sbr.rel (%p161) target = $region28
      $region27: #{rsu6_forward.12} parent=5 // pred_region
        // Predicated region
        $region29: #{rsu6_forward.12} parent=27 // pred_check
          %p164 = pneg %p31
        $region30: #{rsu6_forward.12} parent=27 // pred_check_branch
          %166 = sbr.rel (%p164) target = $region32
        $region31: #{rsu6_forward.12} parent=27 // pred_region
          %p167 = scmp.lt.s32.totalorder %s11, 1
          %s168 = scalar_select %p167, %s11, 1
          %s169 = smul.addr %s168, 2
          %s170 = smul.addr %s169, 8
          %s171 = scalar_lea.vmem %s0, %s170
        $region32: #{rsu6_forward.12} parent=27 // pred_fallthru
          _
      $region28: #{rsu6_forward.12} parent=5 // pred_fallthru
        _
      %p172 = scmp.le.s32.totalorder 1, %s11
      %p173 = scmp.lt.s32.totalorder %s11, 3
      %p174 = pnand %p172, %p173
      %p175 = pneg %p174
      // Predicated region
      $region33: #{rsu6_forward.12} parent=5 // pred_check
        _
      $region34: #{rsu6_forward.12} parent=5 // pred_check_branch
        %177 = sbr.rel (%p174) target = $region36
      $region35: #{rsu6_forward.12} parent=5 // pred_region
        %s178 = ssub.s32 %s11, 1
        // Predicated region
        $region37: #{rsu6_forward.12} parent=35 // pred_check
          %p179 = pneg %p79
        $region38: #{rsu6_forward.12} parent=35 // pred_check_branch
          %181 = sbr.rel (%p179) target = $region40
        $region39: #{rsu6_forward.12} parent=35 // pred_region
          %182 = dma.done [#allocation3], 6144
        $region40: #{rsu6_forward.12} parent=35 // pred_fallthru
          _
        %p183 = scmp.lt.s32.totalorder %s16, 1
        %s184 = scalar_select %p183, %s16, 1
        %s185 = smul.addr %s184, 2
        %s186 = smul.addr %s185, 8
        %s187 = scalar_lea.vmem %s0, %s186
        %p188 = pneg %p37
        %p189 = pneg %p34
        %p190 = pneg %p58
        %p191 = pneg %p55
        %p192 = pneg %p79
        %p193 = pneg %p76
        %p194 = pneg %p100
        %p195 = pneg %p97
        %p196 = pneg %p126
        %p197 = pneg %p123
        %p198 = scmp.lt.s32.totalorder %s16, 1
        %s199 = scalar_select %p198, %s16, 1
        %s200 = smul.addr %s199, 2
        %s201 = smul.addr %s200, 8
        %s202 = scalar_lea.vmem %s4, %s201
        %p203 = scmp.lt.s32.totalorder %s16, 1
        %s204 = scalar_select %p203, %s16, 1
        %s205 = smul.addr %s204, 2
        %s206 = smul.addr %s205, 8
        %s207 = scalar_lea.vmem %s0, %s206
        %p208 = scmp.lt.s32.totalorder %s16, 1
        %s209 = scalar_select %p208, %s16, 1
        %s210 = smul.addr %s209, 2
        %s211 = smul.addr %s210, 8
        %s212 = scalar_lea.vmem %s4, %s211
        %v213 = vld [vmem:[%s207] sm:$0xff]
        %v214 = vld [vmem:[%s207 + $0x8] sm:$0xff]
        %v215 = vld [vmem:[%s1] sm:$0xff]
        %v216 = vld [vmem:[%s1 + $0x8] sm:$0xff]
        %vm217 = vcmask 130048
        %v219 = vsel %vm217, %v215, 0
        %v222 = vsel %vm217, %v216, 0
        %224 = vmatprep.subr.mxu0 0.0
        %225 = vmatpush1.msra.mxu0 %v213
        %226 = vmatprep.subr.mxu0 0.0
        %227 = vmatpush1.msra.mxu0 %v214
        %228 = vmatprep.subr.mxu0 0.0
        %229 = vmatpush1.msra.mxu0 0.0
        %230 = vmatprep.subr.mxu0 0.0
        %231 = vmatpush1.msra.mxu0 0.0
        %232 = vmatprep.subr.mxu0 0.0
        %233 = vmatpush1.msra.mxu0 0.0
        %234 = vmatprep.subr.mxu0 0.0
        %235 = vmatpush1.msra.mxu0 0.0
        %236 = vmatprep.subr.mxu0 0.0
        %237 = vmatpush1.msra.mxu0 0.0
        %238 = vmatprep.subr.mxu0 0.0
        %239 = vmatpush1.msra.mxu0 0.0
        %240 = vmatprep.subr.mxu0 0.0
        %241 = vmatpush1.msra.mxu0 0.0
        %242 = vmatprep.subr.mxu0 0.0
        %243 = vmatpush1.msra.mxu0 0.0
        %244 = vmatprep.subr.mxu0 0.0
        %245 = vmatpush1.msra.mxu0 0.0
        %246 = vmatprep.subr.mxu0 0.0
        %247 = vmatpush1.msra.mxu0 0.0
        %248 = vmatprep.subr.mxu0 0.0
        %249 = vmatpush1.msra.mxu0 0.0
        %250 = vmatprep.subr.mxu0 0.0
        %251 = vmatpush1.msra.mxu0 0.0
        %252 = vmatprep.subr.mxu0 0.0
        %253 = vmatpush1.msra.mxu0 0.0
        %254 = vmatprep.subr.mxu0 0.0
        %255 = vmatpush1.msra.mxu0 0.0
        %256 = vmatprep.subr.mxu0 0.0
        %257 = vmatpush1.msra.mxu0 0.0
        %258 = vmatprep.subr.mxu0 0.0
        %259 = vmatpush1.msra.mxu0 0.0
        %260 = vmatprep.subr.mxu0 0.0
        %261 = vmatpush1.msra.mxu0 0.0
        %262 = vmatprep.subr.mxu0 0.0
        %263 = vmatpush1.msra.mxu0 0.0
        %264 = vmatprep.subr.mxu0 0.0
        %265 = vmatpush1.msra.mxu0 0.0
        %266 = vmatprep.subr.mxu0 0.0
        %267 = vmatpush1.msra.mxu0 0.0
        %268 = vmatprep.subr.mxu0 0.0
        %269 = vmatpush1.msra.mxu0 0.0
        %270 = vmatprep.subr.mxu0 0.0
        %271 = vmatpush1.msra.mxu0 0.0
        %272 = vmatprep.subr.mxu0 0.0
        %273 = vmatpush1.msra.mxu0 0.0
        %274 = vmatprep.subr.mxu0 0.0
        %275 = vmatpush1.msra.mxu0 0.0
        %276 = vmatprep.subr.mxu0 0.0
        %277 = vmatpush1.msra.mxu0 0.0
        %278 = vmatprep.subr.mxu0 0.0
        %279 = vmatpush1.msra.mxu0 0.0
        %280 = vmatprep.subr.mxu0 0.0
        %281 = vmatpush1.msra.mxu0 0.0
        %282 = vmatprep.subr.mxu0 0.0
        %283 = vmatpush1.msra.mxu0 0.0
        %284 = vmatprep.subr.mxu0 0.0
        %285 = vmatpush1.msra.mxu0 0.0
        %286 = vmatprep.subr.mxu0 0.0
        %287 = vmatpush1.msra.mxu0 0.0
        %288 = vmatprep.mubr.f32.mxu0 0.0
        %289 = vmatmul.mubr.f32.gmra.mrb[0].mxu0 %v219
        %v290 = vpop.f32.mrb[0].mxu0
        %v291 = vadd.f32 0.0, %v290
        %v292 = vpop.f32.mrb[0].mxu0
        %293 = vmatprep.mubr.f32.mxu0 0.0
        %294 = vmatmul.mubr.f32.gmra.mrb[0].mxu0 %v222
        %v295 = vpop.f32.mrb[0].mxu0
        %v296 = vadd.f32 0.0, %v295
        %v297 = vpop.f32.mrb[0].mxu0
        %298 = vdwg.mxu0
        %s299 = scalar_lea.vmem %s1, 32
        %v300 = vld [vmem:[%s299] sm:$0xff]
        %v301 = vld [vmem:[%s299 + $0x8] sm:$0xff]
        %v303 = vsel %vm217, %v300, 0
        %v306 = vsel %vm217, %v301, 0
        %308 = vmatprep.subr.mxu0 0.0
        %309 = vmatpush1.msra.mxu0 %v213
        %310 = vmatprep.subr.mxu0 0.0
        %311 = vmatpush1.msra.mxu0 %v214
        %312 = vmatprep.subr.mxu0 0.0
        %313 = vmatpush1.msra.mxu0 0.0
        %314 = vmatprep.subr.mxu0 0.0
        %315 = vmatpush1.msra.mxu0 0.0
        %316 = vmatprep.subr.mxu0 0.0
        %317 = vmatpush1.msra.mxu0 0.0
        %318 = vmatprep.subr.mxu0 0.0
        %319 = vmatpush1.msra.mxu0 0.0
        %320 = vmatprep.subr.mxu0 0.0
        %321 = vmatpush1.msra.mxu0 0.0
        %322 = vmatprep.subr.mxu0 0.0
        %323 = vmatpush1.msra.mxu0 0.0
        %324 = vmatprep.subr.mxu0 0.0
        %325 = vmatpush1.msra.mxu0 0.0
        %326 = vmatprep.subr.mxu0 0.0
        %327 = vmatpush1.msra.mxu0 0.0
        %328 = vmatprep.subr.mxu0 0.0
        %329 = vmatpush1.msra.mxu0 0.0
        %330 = vmatprep.subr.mxu0 0.0
        %331 = vmatpush1.msra.mxu0 0.0
        %332 = vmatprep.subr.mxu0 0.0
        %333 = vmatpush1.msra.mxu0 0.0
        %334 = vmatprep.subr.mxu0 0.0
        %335 = vmatpush1.msra.mxu0 0.0
        %336 = vmatprep.subr.mxu0 0.0
        %337 = vmatpush1.msra.mxu0 0.0
        %338 = vmatprep.subr.mxu0 0.0
        %339 = vmatpush1.msra.mxu0 0.0
        %340 = vmatprep.subr.mxu0 0.0
        %341 = vmatpush1.msra.mxu0 0.0
        %342 = vmatprep.subr.mxu0 0.0
        %343 = vmatpush1.msra.mxu0 0.0
        %344 = vmatprep.subr.mxu0 0.0
        %345 = vmatpush1.msra.mxu0 0.0
        %346 = vmatprep.subr.mxu0 0.0
        %347 = vmatpush1.msra.mxu0 0.0
        %348 = vmatprep.subr.mxu0 0.0
        %349 = vmatpush1.msra.mxu0 0.0
        %350 = vmatprep.subr.mxu0 0.0
        %351 = vmatpush1.msra.mxu0 0.0
        %352 = vmatprep.subr.mxu0 0.0
        %353 = vmatpush1.msra.mxu0 0.0
        %354 = vmatprep.subr.mxu0 0.0
        %355 = vmatpush1.msra.mxu0 0.0
        %356 = vmatprep.subr.mxu0 0.0
        %357 = vmatpush1.msra.mxu0 0.0
        %358 = vmatprep.subr.mxu0 0.0
        %359 = vmatpush1.msra.mxu0 0.0
        %360 = vmatprep.subr.mxu0 0.0
        %361 = vmatpush1.msra.mxu0 0.0
        %362 = vmatprep.subr.mxu0 0.0
        %363 = vmatpush1.msra.mxu0 0.0
        %364 = vmatprep.subr.mxu0 0.0
        %365 = vmatpush1.msra.mxu0 0.0
        %366 = vmatprep.subr.mxu0 0.0
        %367 = vmatpush1.msra.mxu0 0.0
        %368 = vmatprep.subr.mxu0 0.0
        %369 = vmatpush1.msra.mxu0 0.0
        %370 = vmatprep.subr.mxu0 0.0
        %371 = vmatpush1.msra.mxu0 0.0
        %372 = vmatprep.mubr.f32.mxu0 0.0
        %373 = vmatmul.mubr.f32.gmra.mrb[0].mxu0 %v303
        %v374 = vpop.f32.mrb[0].mxu0
        %v375 = vadd.f32 0.0, %v374
        %v376 = vpop.f32.mrb[0].mxu0
        %377 = vmatprep.mubr.f32.mxu0 0.0
        %378 = vmatmul.mubr.f32.gmra.mrb[0].mxu0 %v306
        %v379 = vpop.f32.mrb[0].mxu0
        %v380 = vadd.f32 0.0, %v379
        %v381 = vpop.f32.mrb[0].mxu0
        %382 = vdwg.mxu0
        %v383 = vld [vmem:[#allocation2] sm:$0xff]
        %v384 = vld [vmem:[#allocation2 + $0x8] sm:$0xff]
        %v385 = vld [vmem:[#allocation2 + $0x10] sm:$0xff]
        %v386 = vld [vmem:[#allocation2 + $0x18] sm:$0xff]
        %v387 = vld [vmem:[#allocation2 + $0x20] sm:$0xff]
        %v388 = vld [vmem:[#allocation2 + $0x28] sm:$0xff]
        %v389 = vld [vmem:[#allocation2 + $0x30] sm:$0xff]
        %v390 = vld [vmem:[#allocation2 + $0x38] sm:$0xff]
        %v391 = vld [vmem:[#allocation2 + $0x40] sm:$0xff]
        %v392 = vld [vmem:[#allocation2 + $0x48] sm:$0xff]
        %v393 = vld [vmem:[#allocation2 + $0x50] sm:$0xff]
        %v394 = vld [vmem:[#allocation2 + $0x58] sm:$0xff]
        %v395 = vld [vmem:[#allocation2 + $0x60] sm:$0xff]
        %v396 = vld [vmem:[#allocation2 + $0x68] sm:$0xff]
        %v397 = vld [vmem:[#allocation2 + $0x70] sm:$0xff]
        %v398 = vld [vmem:[#allocation2 + $0x78] sm:$0xff]
        %v399 = vld [vmem:[#allocation2 + $0x80] sm:$0xff]
        %v400 = vld [vmem:[#allocation2 + $0x88] sm:$0xff]
        %v401 = vld [vmem:[#allocation2 + $0x90] sm:$0xff]
        %v402 = vld [vmem:[#allocation2 + $0x98] sm:$0xff]
        %v403 = vld [vmem:[#allocation2 + $0xa0] sm:$0xff]
        %v404 = vld [vmem:[#allocation2 + $0xa8] sm:$0xff]
        %v405 = vld [vmem:[#allocation2 + $0xb0] sm:$0xff]
        %v406 = vld [vmem:[#allocation2 + $0xb8] sm:$0xff]
        %v407 = vld [vmem:[#allocation2 + $0xc0] sm:$0xff]
        %v408 = vld [vmem:[#allocation2 + $0xc8] sm:$0xff]
        %v409 = vld [vmem:[#allocation2 + $0xd0] sm:$0xff]
        %v410 = vld [vmem:[#allocation2 + $0xd8] sm:$0xff]
        %v411 = vld [vmem:[#allocation2 + $0xe0] sm:$0xff]
        %v412 = vld [vmem:[#allocation2 + $0xe8] sm:$0xff]
        %v413 = vld [vmem:[#allocation2 + $0xf0] sm:$0xff]
        %v414 = vld [vmem:[#allocation2 + $0xf8] sm:$0xff]
        %v415 = vld [vmem:[#allocation2 + $0x100] sm:$0xff]
        %v416 = vld [vmem:[#allocation2 + $0x108] sm:$0xff]
        %v417 = vld [vmem:[#allocation2 + $0x110] sm:$0xff]
        %v418 = vld [vmem:[#allocation2 + $0x118] sm:$0xff]
        %v419 = vld [vmem:[#allocation2 + $0x120] sm:$0xff]
        %v420 = vld [vmem:[#allocation2 + $0x128] sm:$0xff]
        %v421 = vld [vmem:[#allocation2 + $0x130] sm:$0xff]
        %v422 = vld [vmem:[#allocation2 + $0x138] sm:$0xff]
        %v423 = vld [vmem:[#allocation2 + $0x140] sm:$0xff]
        %v424 = vld [vmem:[#allocation2 + $0x148] sm:$0xff]
        %v425 = vld [vmem:[#allocation2 + $0x150] sm:$0xff]
        %v426 = vld [vmem:[#allocation2 + $0x158] sm:$0xff]
        %v427 = vld [vmem:[#allocation2 + $0x160] sm:$0xff]
        %v428 = vld [vmem:[#allocation2 + $0x168] sm:$0xff]
        %v429 = vld [vmem:[#allocation2 + $0x170] sm:$0xff]
        %v430 = vld [vmem:[#allocation2 + $0x178] sm:$0xff]
        %431 = vmatprep.subr.mxu0 0.0
        %432 = vmatpush1.msra.mxu0 %v383
        %433 = vmatprep.subr.mxu0 0.0
        %434 = vmatpush1.msra.mxu0 %v384
        %435 = vmatprep.subr.mxu0 0.0
        %436 = vmatpush1.msra.mxu0 %v385
        %437 = vmatprep.subr.mxu0 0.0
        %438 = vmatpush1.msra.mxu0 %v386
        %439 = vmatprep.subr.mxu0 0.0
        %440 = vmatpush1.msra.mxu0 %v387
        %441 = vmatprep.subr.mxu0 0.0
        %442 = vmatpush1.msra.mxu0 %v388
        %443 = vmatprep.subr.mxu0 0.0
        %444 = vmatpush1.msra.mxu0 %v389
        %445 = vmatprep.subr.mxu0 0.0
        %446 = vmatpush1.msra.mxu0 %v390
        %447 = vmatprep.subr.mxu0 0.0
        %448 = vmatpush1.msra.mxu0 %v391
        %449 = vmatprep.subr.mxu0 0.0
        %450 = vmatpush1.msra.mxu0 %v392
        %451 = vmatprep.subr.mxu0 0.0
        %452 = vmatpush1.msra.mxu0 %v393
        %453 = vmatprep.subr.mxu0 0.0
        %454 = vmatpush1.msra.mxu0 %v394
        %455 = vmatprep.subr.mxu0 0.0
        %456 = vmatpush1.msra.mxu0 %v395
        %457 = vmatprep.subr.mxu0 0.0
        %458 = vmatpush1.msra.mxu0 %v396
        %459 = vmatprep.subr.mxu0 0.0
        %460 = vmatpush1.msra.mxu0 %v397
        %461 = vmatprep.subr.mxu0 0.0
        %462 = vmatpush1.msra.mxu0 %v398
        %463 = vmatprep.subr.mxu0 0.0
        %464 = vmatpush1.msra.mxu0 %v399
        %465 = vmatprep.subr.mxu0 0.0
        %466 = vmatpush1.msra.mxu0 %v400
        %467 = vmatprep.subr.mxu0 0.0
        %468 = vmatpush1.msra.mxu0 %v401
        %469 = vmatprep.subr.mxu0 0.0
        %470 = vmatpush1.msra.mxu0 %v402
        %471 = vmatprep.subr.mxu0 0.0
        %472 = vmatpush1.msra.mxu0 %v403
        %473 = vmatprep.subr.mxu0 0.0
        %474 = vmatpush1.msra.mxu0 %v404
        %475 = vmatprep.subr.mxu0 0.0
        %476 = vmatpush1.msra.mxu0 %v405
        %477 = vmatprep.subr.mxu0 0.0
        %478 = vmatpush1.msra.mxu0 %v406
        %479 = vmatprep.subr.mxu0 0.0
        %480 = vmatpush1.msra.mxu0 %v407
        %481 = vmatprep.subr.mxu0 0.0
        %482 = vmatpush1.msra.mxu0 %v408
        %483 = vmatprep.subr.mxu0 0.0
        %484 = vmatpush1.msra.mxu0 %v409
        %485 = vmatprep.subr.mxu0 0.0
        %486 = vmatpush1.msra.mxu0 %v410
        %487 = vmatprep.subr.mxu0 0.0
        %488 = vmatpush1.msra.mxu0 %v411
        %489 = vmatprep.subr.mxu0 0.0
        %490 = vmatpush1.msra.mxu0 %v412
        %491 = vmatprep.subr.mxu0 0.0
        %492 = vmatpush1.msra.mxu0 %v413
        %493 = vmatprep.subr.mxu0 0.0
        %494 = vmatpush1.msra.mxu0 %v414
        %495 = vmatprep.mubr.f32.mxu0 %v213
        %496 = vmatmul.mubr.f32.gmra.mrb[0].mxu0 %v291
        %v497 = vpop.f32.mrb[0].mxu0
        %v498 = vadd.f32 0.0, %v497
        %v499 = vpop.f32.mrb[0].mxu0
        %500 = vmatprep.mubr.f32.mxu0 %v214
        %501 = vmatmul.mubr.f32.gmra.mrb[0].mxu0 %v296
        %v502 = vpop.f32.mrb[0].mxu0
        %v503 = vadd.f32 0.0, %v502
        %v504 = vpop.f32.mrb[0].mxu0
        %505 = vdwg.mxu0
        %506 = vmatprep.subr.mxu0 0.0
        %507 = vmatpush1.msra.mxu0 %v415
        %508 = vmatprep.subr.mxu0 0.0
        %509 = vmatpush1.msra.mxu0 %v416
        %510 = vmatprep.subr.mxu0 0.0
        %511 = vmatpush1.msra.mxu0 %v417
        %512 = vmatprep.subr.mxu0 0.0
        %513 = vmatpush1.msra.mxu0 %v418
        %514 = vmatprep.subr.mxu0 0.0
        %515 = vmatpush1.msra.mxu0 %v419
        %516 = vmatprep.subr.mxu0 0.0
        %517 = vmatpush1.msra.mxu0 %v420
        %518 = vmatprep.subr.mxu0 0.0
        %519 = vmatpush1.msra.mxu0 %v421
        %520 = vmatprep.subr.mxu0 0.0
        %521 = vmatpush1.msra.mxu0 %v422
        %522 = vmatprep.subr.mxu0 0.0
        %523 = vmatpush1.msra.mxu0 %v423
        %524 = vmatprep.subr.mxu0 0.0
        %525 = vmatpush1.msra.mxu0 %v424
        %526 = vmatprep.subr.mxu0 0.0
        %527 = vmatpush1.msra.mxu0 %v425
        %528 = vmatprep.subr.mxu0 0.0
        %529 = vmatpush1.msra.mxu0 %v426
        %530 = vmatprep.subr.mxu0 0.0
        %531 = vmatpush1.msra.mxu0 %v427
        %532 = vmatprep.subr.mxu0 0.0
        %533 = vmatpush1.msra.mxu0 %v428
        %534 = vmatprep.subr.mxu0 0.0
        %535 = vmatpush1.msra.mxu0 %v429
        %536 = vmatprep.subr.mxu0 0.0
        %537 = vmatpush1.msra.mxu0 %v430
        %538 = vmatprep.subr.mxu0 0.0
        %539 = vmatpush1.msra.mxu0 0.0
        %540 = vmatprep.subr.mxu0 0.0
        %541 = vmatpush1.msra.mxu0 0.0
        %542 = vmatprep.subr.mxu0 0.0
        %543 = vmatpush1.msra.mxu0 0.0
        %544 = vmatprep.subr.mxu0 0.0
        %545 = vmatpush1.msra.mxu0 0.0
        %546 = vmatprep.subr.mxu0 0.0
        %547 = vmatpush1.msra.mxu0 0.0
        %548 = vmatprep.subr.mxu0 0.0
        %549 = vmatpush1.msra.mxu0 0.0
        %550 = vmatprep.subr.mxu0 0.0
        %551 = vmatpush1.msra.mxu0 0.0
        %552 = vmatprep.subr.mxu0 0.0
        %553 = vmatpush1.msra.mxu0 0.0
        %554 = vmatprep.subr.mxu0 0.0
        %555 = vmatpush1.msra.mxu0 0.0
        %556 = vmatprep.subr.mxu0 0.0
        %557 = vmatpush1.msra.mxu0 0.0
        %558 = vmatprep.subr.mxu0 0.0
        %559 = vmatpush1.msra.mxu0 0.0
        %560 = vmatprep.subr.mxu0 0.0
        %561 = vmatpush1.msra.mxu0 0.0
        %562 = vmatprep.subr.mxu0 0.0
        %563 = vmatpush1.msra.mxu0 0.0
        %564 = vmatprep.subr.mxu0 0.0
        %565 = vmatpush1.msra.mxu0 0.0
        %566 = vmatprep.subr.mxu0 0.0
        %567 = vmatpush1.msra.mxu0 0.0
        %568 = vmatprep.subr.mxu0 0.0
        %569 = vmatpush1.msra.mxu0 0.0
        %570 = vmatprep.mubr.f32.mxu0 0.0
        %571 = vmatmul.mubr.f32.gmra.mrb[0].mxu0 %v375
        %v572 = vpop.f32.mrb[0].mxu0
        %v573 = vadd.f32 %v498, %v572
        %v574 = vpop.f32.mrb[0].mxu0
        %575 = vmatprep.mubr.f32.mxu0 0.0
        %576 = vmatmul.mubr.f32.gmra.mrb[0].mxu0 %v380
        %v577 = vpop.f32.mrb[0].mxu0
        %v578 = vadd.f32 %v503, %v577
        %v579 = vpop.f32.mrb[0].mxu0
        %580 = vdwg.mxu0
        %v581 = vld [vmem:[%s3] sm:$0x1]
        %v582 = vlaneseq
        %v583 = vshrl.u32 %v582, 7
        %v584 = vsub.s32 0, %v583
        %v585 = vrot.slane %v581, %v584
        %v586 = vmul.f32 %v573, %v585
        %v587 = vmul.f32 %v578, %v585
        %v588 = vld [vmem:[%s3 + $0x1] sm:$0x1]
        %v589 = vlaneseq
        %v590 = vshrl.u32 %v589, 7
        %v591 = vsub.s32 0, %v590
        %v592 = vrot.slane %v588, %v591
        %v593 = vadd.f32 %v586, %v592
        %v594 = vadd.f32 %v587, %v592
        %v595 = vmax.f32 %v593, 0.0
        %v596 = vmax.f32 %v594, 0.0
        %597 = vst [vmem:[%s212] sm:$0xff] %v595
        %598 = vst [vmem:[%s212 + $0x8] sm:$0xff] %v596
        %p599 = scmp.lt.s32.totalorder %s16, 1
        %s600 = scalar_select %p599, %s16, 1
        %s601 = smul.addr %s600, 2
        %s602 = smul.addr %s601, 8
        %s603 = scalar_lea.vmem %s4, %s602
        // Predicated region
        $region41: #{rsu6_forward.12} parent=35 // pred_check
          %p604 = pneg %p123
        $region42: #{rsu6_forward.12} parent=35 // pred_check_branch
          %606 = sbr.rel (%p604) target = $region44
        $region43: #{rsu6_forward.12} parent=35 // pred_region
          _
        $region44: #{rsu6_forward.12} parent=35 // pred_fallthru
          _
      $region36: #{rsu6_forward.12} parent=5 // pred_fallthru
        _
      %p607 = scmp.le.s32.totalorder 2, %s11
      // Predicated region
      $region45: #{rsu6_forward.12} parent=5 // pred_check
        %p608 = pneg %p607
      $region46: #{rsu6_forward.12} parent=5 // pred_check_branch
        %610 = sbr.rel (%p608) target = $region48
      $region47: #{rsu6_forward.12} parent=5 // pred_region
        %s611 = ssub.s32 %s11, 2
        // Predicated region
        $region49: #{rsu6_forward.12} parent=47 // pred_check
          %p612 = pneg %p129
        $region50: #{rsu6_forward.12} parent=47 // pred_check_branch
          %614 = sbr.rel (%p612) target = $region52
        $region51: #{rsu6_forward.12} parent=47 // pred_region
          %p615 = scmp.lt.s32.totalorder %s17, 1
          %s616 = scalar_select %p615, %s17, 1
          %s617 = smul.addr %s616, 2
          %s618 = smul.addr %s617, 8
          %s619 = scalar_lea.vmem %s4, %s618
        $region52: #{rsu6_forward.12} parent=47 // pred_fallthru
          _
      $region48: #{rsu6_forward.12} parent=5 // pred_fallthru
        _
    $region6: #{rsu6_forward.12} parent=1 // loop_footer
      %s15 = sadd.s32 1, %s11
    $region7: #{rsu6_forward.12} parent=1 // loop_footer_branch
      %10 = sbr.rel target = $region3
    $region8: #{rsu6_forward.12} parent=1 // loop_exit
      _
    %620 = vsyncpa [#allocation3], 1
    %s621 = scalar_lea.sflag [#allocation3], 1
    %622 = vsyncpa %s621, 1

// kernel: rsu6_forward.15
$region0: #{rsu6_forward.15}
  #allocation0 [shape = 'u32[]', space=smem, size = 0x4, offset = 0x4, fixed_abs, tag = 'smem constant byte address 0x4 - core index']
  #allocation1 [shape = 'u32[144,128]{1,0:T(1,128)}', space=vmem, size = 0x12000, scoped, tag = 'internal scratch']
  %s0 = inlined_call_operand.vmem [shape: f32[2,4,64], index: 0, kind: input, shape index: {}]
  %s1 = inlined_call_operand.vmem [shape: f32[3,4,4], index: 1, kind: input, shape index: {}]
  %s2 = inlined_call_operand.vmem [shape: f32[192,64], index: 2, kind: input, shape index: {}]
  %s3 = inlined_call_operand.vmem [shape: f32[2,64], index: 3, kind: input, shape index: {}]
  %s4 = inlined_call_operand.vmem [shape: f32[2,4,64], index: 4, kind: output, shape index: {0}]
  %s5 = inlined_call_operand.vmem [shape: f32[2,2,32], index: 5, kind: output, shape index: {1}]
  %6 = xla_tuple %s4, %s5
  %s7 = sld [smem:[#allocation0]]
  $region57: #{rsu6_forward.15} parent=0
    _
  %s9 = ssub.s32 1, %s7
  %s10 = scalar_select 0, %s9, %s7
  loop: start=0, step=1, limit=4
  $region2: #{rsu6_forward.15} parent=0 // loop_pre_header
    _
  $region3: #{rsu6_forward.15} parent=0 // loop_header
    %s12 = sphi 0, %s16
    %p13 = scmp.ge.s32.totalorder %s12, 4
    %s22 = sphi 0, %s24
    %s25 = sphi 0, %s22
    %s26 = sphi 0, %s25
    %s42 = sphi 0, %s26
    %s46 = sphi 0, %s46
    %s48 = sphi 0, %s46
    %s49 = sphi 0, %s48
    %s63 = sphi 0, %s49
    %s67 = sphi 0, %s67
    %s69 = sphi 0, %s67
    %s70 = sphi 0, %s69
    %s84 = sphi 0, %s70
    %s88 = sphi 0, %s88
    %s90 = sphi 0, %s88
    %s91 = sphi 0, %s90
    %s105 = sphi 0, %s91
    %s111 = sphi 0, %s113
    %s114 = sphi 0, %s111
    %s115 = sphi 0, %s114
    %s131 = sphi 0, %s115
    %s137 = sphi 0, %s139
    %s140 = sphi 0, %s137
    %s141 = sphi 0, %s140
    %s157 = sphi 0, %s141
  $region4: #{rsu6_forward.15} parent=0 // loop_header_branch
    %15 = sbr.rel (%p13) target = $region8
  $region5: #{rsu6_forward.15} parent=0 // loop_body
    %s17 = ssub.s32 %s12, 1
    %s18 = ssub.s32 %s12, 2
    %s19 = sadd.s32 %s12, 1
    %s20 = ssub.s32 %s12, %s19
    %p21 = scmp.eq.s32.totalorder %s20, 0
    %s23 = sadd.s32 %s22, 1
    %s24 = scalar_select %p21, %s22, %s23
    %p27 = pneg %p21
    %p28 = scmp.eq.s32.totalorder %s12, 1
    %p29 = por %p27, %p28
    %p30 = scmp.ne.s32.totalorder %s22, %s25
    %p31 = scmp.eq.s32.totalorder %s12, 0
    %p32 = por %p30, %p31
    %p33 = scmp.ne.s32.totalorder %s22, %s25
    %p34 = scmp.eq.s32.totalorder %s17, 1
    %p35 = por %p33, %p34
    %p36 = scmp.ne.s32.totalorder %s25, %s26
    %p37 = scmp.eq.s32.totalorder %s17, 0
    %p38 = por %p36, %p37
    %p39 = scmp.ne.s32.totalorder %s25, %s26
    %p40 = scmp.eq.s32.totalorder %s18, 1
    %p41 = por %p39, %p40
    %p43 = scmp.ne.s32.totalorder %s26, %s42
    %p44 = scmp.eq.s32.totalorder %s18, 0
    %p45 = por %p43, %p44
    %s47 = sadd.s32 %s46, 1
    %p50 = scmp.eq.s32.totalorder %s12, 1
    %p51 = scmp.ne.s32.totalorder %s46, %s48
    %p52 = scmp.eq.s32.totalorder %s12, 0
    %p53 = por %p51, %p52
    %p54 = scmp.ne.s32.totalorder %s46, %s48
    %p55 = scmp.eq.s32.totalorder %s17, 1
    %p56 = por %p54, %p55
    %p57 = scmp.ne.s32.totalorder %s48, %s49
    %p58 = scmp.eq.s32.totalorder %s17, 0
    %p59 = por %p57, %p58
    %p60 = scmp.ne.s32.totalorder %s48, %s49
    %p61 = scmp.eq.s32.totalorder %s18, 1
    %p62 = por %p60, %p61
    %p64 = scmp.ne.s32.totalorder %s49, %s63
    %p65 = scmp.eq.s32.totalorder %s18, 0
    %p66 = por %p64, %p65
    %s68 = sadd.s32 %s67, 1
    %p71 = scmp.eq.s32.totalorder %s12, 1
    %p72 = scmp.ne.s32.totalorder %s67, %s69
    %p73 = scmp.eq.s32.totalorder %s12, 0
    %p74 = por %p72, %p73
    %p75 = scmp.ne.s32.totalorder %s67, %s69
    %p76 = scmp.eq.s32.totalorder %s17, 1
    %p77 = por %p75, %p76
    %p78 = scmp.ne.s32.totalorder %s69, %s70
    %p79 = scmp.eq.s32.totalorder %s17, 0
    %p80 = por %p78, %p79
    %p81 = scmp.ne.s32.totalorder %s69, %s70
    %p82 = scmp.eq.s32.totalorder %s18, 1
    %p83 = por %p81, %p82
    %p85 = scmp.ne.s32.totalorder %s70, %s84
    %p86 = scmp.eq.s32.totalorder %s18, 0
    %p87 = por %p85, %p86
    %s89 = sadd.s32 %s88, 1
    %p92 = scmp.eq.s32.totalorder %s12, 1
    %p93 = scmp.ne.s32.totalorder %s88, %s90
    %p94 = scmp.eq.s32.totalorder %s12, 0
    %p95 = por %p93, %p94
    %p96 = scmp.ne.s32.totalorder %s88, %s90
    %p97 = scmp.eq.s32.totalorder %s17, 1
    %p98 = por %p96, %p97
    %p99 = scmp.ne.s32.totalorder %s90, %s91
    %p100 = scmp.eq.s32.totalorder %s17, 0
    %p101 = por %p99, %p100
    %p102 = scmp.ne.s32.totalorder %s90, %s91
    %p103 = scmp.eq.s32.totalorder %s18, 1
    %p104 = por %p102, %p103
    %p106 = scmp.ne.s32.totalorder %s91, %s105
    %p107 = scmp.eq.s32.totalorder %s18, 0
    %p108 = por %p106, %p107
    %s109 = ssub.s32 %s12, %s19
    %p110 = scmp.eq.s32.totalorder %s109, 0
    %s112 = sadd.s32 %s111, 1
    %s113 = scalar_select %p110, %s111, %s112
    %p116 = pneg %p110
    %p117 = scmp.eq.s32.totalorder %s12, 1
    %p118 = por %p116, %p117
    %p119 = scmp.ne.s32.totalorder %s111, %s114
    %p120 = scmp.eq.s32.totalorder %s12, 0
    %p121 = por %p119, %p120
    %p122 = scmp.ne.s32.totalorder %s111, %s114
    %p123 = scmp.eq.s32.totalorder %s17, 1
    %p124 = por %p122, %p123
    %p125 = scmp.ne.s32.totalorder %s114, %s115
    %p126 = scmp.eq.s32.totalorder %s17, 0
    %p127 = por %p125, %p126
    %p128 = scmp.ne.s32.totalorder %s114, %s115
    %p129 = scmp.eq.s32.totalorder %s18, 1
    %p130 = por %p128, %p129
    %p132 = scmp.ne.s32.totalorder %s115, %s131
    %p133 = scmp.eq.s32.totalorder %s18, 0
    %p134 = por %p132, %p133
    %s135 = ssub.s32 %s12, %s19
    %p136 = scmp.eq.s32.totalorder %s135, 0
    %s138 = sadd.s32 %s137, 1
    %s139 = scalar_select %p136, %s137, %s138
    %p142 = pneg %p136
    %p143 = scmp.eq.s32.totalorder %s12, 1
    %p144 = por %p142, %p143
    %p145 = scmp.ne.s32.totalorder %s137, %s140
    %p146 = scmp.eq.s32.totalorder %s12, 0
    %p147 = por %p145, %p146
    %p148 = scmp.ne.s32.totalorder %s137, %s140
    %p149 = scmp.eq.s32.totalorder %s17, 1
    %p150 = por %p148, %p149
    %p151 = scmp.ne.s32.totalorder %s140, %s141
    %p152 = scmp.eq.s32.totalorder %s17, 0
    %p153 = por %p151, %p152
    %p154 = scmp.ne.s32.totalorder %s140, %s141
    %p155 = scmp.eq.s32.totalorder %s18, 1
    %p156 = por %p154, %p155
    %p158 = scmp.ne.s32.totalorder %s141, %s157
    %p159 = scmp.eq.s32.totalorder %s18, 0
    %p160 = por %p158, %p159
    %p161 = scmp.le.s32.totalorder 1, %s12
    %p162 = scmp.lt.s32.totalorder %s12, 3
    %p163 = pnand %p161, %p162
    %p164 = pneg %p163
    // Predicated region
    $region9: #{rsu6_forward.15} parent=5 // pred_check
      _
    $region10: #{rsu6_forward.15} parent=5 // pred_check_branch
      %166 = sbr.rel (%p163) target = $region12
    $region11: #{rsu6_forward.15} parent=5 // pred_region
      %s167 = ssub.s32 %s12, 1
      // Predicated region
      $region13: #{rsu6_forward.15} parent=11 // pred_check
        %p168 = pneg %p59
      $region14: #{rsu6_forward.15} parent=11 // pred_check_branch
        %170 = sbr.rel (%p168) target = $region16
      $region15: #{rsu6_forward.15} parent=11 // pred_region
        _
      $region16: #{rsu6_forward.15} parent=11 // pred_fallthru
        _
      // Predicated region
      $region17: #{rsu6_forward.15} parent=11 // pred_check
        %p171 = pneg %p80
      $region18: #{rsu6_forward.15} parent=11 // pred_check_branch
        %173 = sbr.rel (%p171) target = $region20
      $region19: #{rsu6_forward.15} parent=11 // pred_region
        _
      $region20: #{rsu6_forward.15} parent=11 // pred_fallthru
        _
      // Predicated region
      $region21: #{rsu6_forward.15} parent=11 // pred_check
        %p174 = pneg %p101
      $region22: #{rsu6_forward.15} parent=11 // pred_check_branch
        %176 = sbr.rel (%p174) target = $region24
      $region23: #{rsu6_forward.15} parent=11 // pred_region
        _
      $region24: #{rsu6_forward.15} parent=11 // pred_fallthru
        _
    $region12: #{rsu6_forward.15} parent=5 // pred_fallthru
      _
    %p177 = scmp.lt.s32.totalorder %s12, 2
    // Predicated region
    $region25: #{rsu6_forward.15} parent=5 // pred_check
      %p178 = pneg %p177
    $region26: #{rsu6_forward.15} parent=5 // pred_check_branch
      %180 = sbr.rel (%p178) target = $region28
    $region27: #{rsu6_forward.15} parent=5 // pred_region
      // Predicated region
      $region29: #{rsu6_forward.15} parent=27 // pred_check
        %p181 = pneg %p32
      $region30: #{rsu6_forward.15} parent=27 // pred_check_branch
        %183 = sbr.rel (%p181) target = $region32
      $region31: #{rsu6_forward.15} parent=27 // pred_region
        %p184 = scmp.lt.s32.totalorder %s12, 1
        %s185 = scalar_select %p184, %s12, 1
        %s186 = smul.addr %s185, 4
        %s187 = scalar_lea.vmem %s0, %s186
      $region32: #{rsu6_forward.15} parent=27 // pred_fallthru
        _
    $region28: #{rsu6_forward.15} parent=5 // pred_fallthru
      _
    %p188 = scmp.le.s32.totalorder 1, %s12
    %p189 = scmp.lt.s32.totalorder %s12, 3
    %p190 = pnand %p188, %p189
    %p191 = pneg %p190
    // Predicated region
    $region33: #{rsu6_forward.15} parent=5 // pred_check
      _
    $region34: #{rsu6_forward.15} parent=5 // pred_check_branch
      %193 = sbr.rel (%p190) target = $region36
    $region35: #{rsu6_forward.15} parent=5 // pred_region
      %s194 = ssub.s32 %s12, 1
      %p195 = scmp.lt.s32.totalorder %s17, 1
      %s196 = scalar_select %p195, %s17, 1
      %s197 = smul.addr %s196, 4
      %s198 = scalar_lea.vmem %s0, %s197
      %p199 = pneg %p38
      %p200 = pneg %p35
      %p201 = pneg %p59
      %p202 = pneg %p56
      %p203 = pneg %p80
      %p204 = pneg %p77
      %p205 = pneg %p101
      %p206 = pneg %p98
      %p207 = pneg %p127
      %p208 = pneg %p124
      %p209 = scmp.lt.s32.totalorder %s17, 1
      %s210 = scalar_select %p209, %s17, 1
      %s211 = smul.addr %s210, 4
      %s212 = scalar_lea.vmem %s4, %s211
      %p213 = pneg %p153
      %p214 = pneg %p150
      %p215 = scmp.lt.s32.totalorder %s17, 1
      %s216 = scalar_select %p215, %s17, 1
      %s217 = smul.addr %s216, 2
      %s218 = scalar_lea.vmem %s5, %s217
      %p219 = scmp.lt.s32.totalorder %s17, 1
      %s220 = scalar_select %p219, %s17, 1
      %s221 = smul.addr %s220, 4
      %s222 = scalar_lea.vmem %s0, %s221
      %p223 = scmp.lt.s32.totalorder %s17, 1
      %s224 = scalar_select %p223, %s17, 1
      %s225 = smul.addr %s224, 4
      %s226 = scalar_lea.vmem %s4, %s225
      %p227 = scmp.lt.s32.totalorder %s17, 1
      %s228 = scalar_select %p227, %s17, 1
      %s229 = smul.addr %s228, 2
      %s230 = scalar_lea.vmem %s5, %s229
      %v231 = vld [vmem:[%s222] sm:$0xf]
      %v232 = vld [vmem:[%s1] sm:$0xf]
      %vm233 = vcmask 31744
      %v235 = vsel %vm233, %v232, 0
      %vm237 = vcmask 1043456
      %v239 = vsel %vm237, %v231, 0
      %241 = vmatprep.subr.mxu0 0.0
      %242 = vmatpush1.msra.mxu0 %v239
      %243 = vmatprep.subr.mxu0 0.0
      %244 = vmatpush1.msra.mxu0 0.0
      %245 = vmatprep.subr.mxu0 0.0
      %246 = vmatpush1.msra.mxu0 0.0
      %247 = vmatprep.subr.mxu0 0.0
      %248 = vmatpush1.msra.mxu0 0.0
      %249 = vmatprep.subr.mxu0 0.0
      %250 = vmatpush1.msra.mxu0 0.0
      %251 = vmatprep.subr.mxu0 0.0
      %252 = vmatpush1.msra.mxu0 0.0
      %253 = vmatprep.subr.mxu0 0.0
      %254 = vmatpush1.msra.mxu0 0.0
      %255 = vmatprep.subr.mxu0 0.0
      %256 = vmatpush1.msra.mxu0 0.0
      %257 = vmatprep.subr.mxu0 0.0
      %258 = vmatpush1.msra.mxu0 0.0
      %259 = vmatprep.subr.mxu0 0.0
      %260 = vmatpush1.msra.mxu0 0.0
      %261 = vmatprep.subr.mxu0 0.0
      %262 = vmatpush1.msra.mxu0 0.0
      %263 = vmatprep.subr.mxu0 0.0
      %264 = vmatpush1.msra.mxu0 0.0
      %265 = vmatprep.subr.mxu0 0.0
      %266 = vmatpush1.msra.mxu0 0.0
      %267 = vmatprep.subr.mxu0 0.0
      %268 = vmatpush1.msra.mxu0 0.0
      %269 = vmatprep.subr.mxu0 0.0
      %270 = vmatpush1.msra.mxu0 0.0
      %271 = vmatprep.subr.mxu0 0.0
      %272 = vmatpush1.msra.mxu0 0.0
      %273 = vmatprep.subr.mxu0 0.0
      %274 = vmatpush1.msra.mxu0 0.0
      %275 = vmatprep.subr.mxu0 0.0
      %276 = vmatpush1.msra.mxu0 0.0
      %277 = vmatprep.subr.mxu0 0.0
      %278 = vmatpush1.msra.mxu0 0.0
      %279 = vmatprep.subr.mxu0 0.0
      %280 = vmatpush1.msra.mxu0 0.0
      %281 = vmatprep.subr.mxu0 0.0
      %282 = vmatpush1.msra.mxu0 0.0
      %283 = vmatprep.subr.mxu0 0.0
      %284 = vmatpush1.msra.mxu0 0.0
      %285 = vmatprep.subr.mxu0 0.0
      %286 = vmatpush1.msra.mxu0 0.0
      %287 = vmatprep.subr.mxu0 0.0
      %288 = vmatpush1.msra.mxu0 0.0
      %289 = vmatprep.subr.mxu0 0.0
      %290 = vmatpush1.msra.mxu0 0.0
      %291 = vmatprep.subr.mxu0 0.0
      %292 = vmatpush1.msra.mxu0 0.0
      %293 = vmatprep.subr.mxu0 0.0
      %294 = vmatpush1.msra.mxu0 0.0
      %295 = vmatprep.subr.mxu0 0.0
      %296 = vmatpush1.msra.mxu0 0.0
      %297 = vmatprep.subr.mxu0 0.0
      %298 = vmatpush1.msra.mxu0 0.0
      %299 = vmatprep.subr.mxu0 0.0
      %300 = vmatpush1.msra.mxu0 0.0
      %301 = vmatprep.subr.mxu0 0.0
      %302 = vmatpush1.msra.mxu0 0.0
      %303 = vmatprep.subr.mxu0 0.0
      %304 = vmatpush1.msra.mxu0 0.0
      %305 = vmatprep.mubr.f32.mxu0 0.0
      %306 = vmatmul.mubr.f32.gmra.mrb[0].mxu0 %v235
      %v307 = vpop.f32.mrb[0].mxu0
      %v308 = vadd.f32 0.0, %v307
      %v309 = vpop.f32.mrb[0].mxu0
      %310 = vdwg.mxu0
      %s311 = scalar_lea.vmem %s1, 8
      %v312 = vld [vmem:[%s311] sm:$0xf]
      %v314 = vsel %vm233, %v312, 0
      %316 = vmatprep.subr.mxu0 0.0
      %317 = vmatpush1.msra.mxu0 %v239
      %318 = vmatprep.subr.mxu0 0.0
      %319 = vmatpush1.msra.mxu0 0.0
      %320 = vmatprep.subr.mxu0 0.0
      %321 = vmatpush1.msra.mxu0 0.0
      %322 = vmatprep.subr.mxu0 0.0
      %323 = vmatpush1.msra.mxu0 0.0
      %324 = vmatprep.subr.mxu0 0.0
      %325 = vmatpush1.msra.mxu0 0.0
      %326 = vmatprep.subr.mxu0 0.0
      %327 = vmatpush1.msra.mxu0 0.0
      %328 = vmatprep.subr.mxu0 0.0
      %329 = vmatpush1.msra.mxu0 0.0
      %330 = vmatprep.subr.mxu0 0.0
      %331 = vmatpush1.msra.mxu0 0.0
      %332 = vmatprep.subr.mxu0 0.0
      %333 = vmatpush1.msra.mxu0 0.0
      %334 = vmatprep.subr.mxu0 0.0
      %335 = vmatpush1.msra.mxu0 0.0
      %336 = vmatprep.subr.mxu0 0.0
      %337 = vmatpush1.msra.mxu0 0.0
      %338 = vmatprep.subr.mxu0 0.0
      %339 = vmatpush1.msra.mxu0 0.0
      %340 = vmatprep.subr.mxu0 0.0
      %341 = vmatpush1.msra.mxu0 0.0
      %342 = vmatprep.subr.mxu0 0.0
      %343 = vmatpush1.msra.mxu0 0.0
      %344 = vmatprep.subr.mxu0 0.0
      %345 = vmatpush1.msra.mxu0 0.0
      %346 = vmatprep.subr.mxu0 0.0
      %347 = vmatpush1.msra.mxu0 0.0
      %348 = vmatprep.subr.mxu0 0.0
      %349 = vmatpush1.msra.mxu0 0.0
      %350 = vmatprep.subr.mxu0 0.0
      %351 = vmatpush1.msra.mxu0 0.0
      %352 = vmatprep.subr.mxu0 0.0
      %353 = vmatpush1.msra.mxu0 0.0
      %354 = vmatprep.subr.mxu0 0.0
      %355 = vmatpush1.msra.mxu0 0.0
      %356 = vmatprep.subr.mxu0 0.0
      %357 = vmatpush1.msra.mxu0 0.0
      %358 = vmatprep.subr.mxu0 0.0
      %359 = vmatpush1.msra.mxu0 0.0
      %360 = vmatprep.subr.mxu0 0.0
      %361 = vmatpush1.msra.mxu0 0.0
      %362 = vmatprep.subr.mxu0 0.0
      %363 = vmatpush1.msra.mxu0 0.0
      %364 = vmatprep.subr.mxu0 0.0
      %365 = vmatpush1.msra.mxu0 0.0
      %366 = vmatprep.subr.mxu0 0.0
      %367 = vmatpush1.msra.mxu0 0.0
      %368 = vmatprep.subr.mxu0 0.0
      %369 = vmatpush1.msra.mxu0 0.0
      %370 = vmatprep.subr.mxu0 0.0
      %371 = vmatpush1.msra.mxu0 0.0
      %372 = vmatprep.subr.mxu0 0.0
      %373 = vmatpush1.msra.mxu0 0.0
      %374 = vmatprep.subr.mxu0 0.0
      %375 = vmatpush1.msra.mxu0 0.0
      %376 = vmatprep.subr.mxu0 0.0
      %377 = vmatpush1.msra.mxu0 0.0
      %378 = vmatprep.subr.mxu0 0.0
      %379 = vmatpush1.msra.mxu0 0.0
      %380 = vmatprep.mubr.f32.mxu0 0.0
      %381 = vmatmul.mubr.f32.gmra.mrb[0].mxu0 %v314
      %v382 = vpop.f32.mrb[0].mxu0
      %v383 = vadd.f32 0.0, %v382
      %v384 = vpop.f32.mrb[0].mxu0
      %385 = vdwg.mxu0
      %386 = vrot.lane.b32.xlu0 %v231, 64
      %v387 = vpop.permute.xlu0 %386
      %vm389 = vcmask 523264
      %v390 = vsel %vm389, %v308, %v387
      %v391 = vld [vmem:[%s2] sm:$0xff]
      %v392 = vld [vmem:[%s2 + $0x8] sm:$0xff]
      %v393 = vld [vmem:[%s2 + $0x10] sm:$0xff]
      %v394 = vld [vmem:[%s2 + $0x18] sm:$0xff]
      %v395 = vld [vmem:[%s2 + $0x20] sm:$0xff]
      %v396 = vld [vmem:[%s2 + $0x28] sm:$0xff]
      %v397 = vld [vmem:[%s2 + $0x30] sm:$0xff]
      %v398 = vld [vmem:[%s2 + $0x38] sm:$0xff]
      %v399 = vld [vmem:[%s2 + $0x40] sm:$0xff]
      %v400 = vld [vmem:[%s2 + $0x48] sm:$0xff]
      %v401 = vld [vmem:[%s2 + $0x50] sm:$0xff]
      %v402 = vld [vmem:[%s2 + $0x58] sm:$0xff]
      %v403 = vld [vmem:[%s2 + $0x60] sm:$0xff]
      %v404 = vld [vmem:[%s2 + $0x68] sm:$0xff]
      %v405 = vld [vmem:[%s2 + $0x70] sm:$0xff]
      %v406 = vld [vmem:[%s2 + $0x78] sm:$0xff]
      %v407 = vld [vmem:[%s2 + $0x80] sm:$0xff]
      %v408 = vld [vmem:[%s2 + $0x88] sm:$0xff]
      %v409 = vld [vmem:[%s2 + $0x90] sm:$0xff]
      %v410 = vld [vmem:[%s2 + $0x98] sm:$0xff]
      %v411 = vld [vmem:[%s2 + $0xa0] sm:$0xff]
      %v412 = vld [vmem:[%s2 + $0xa8] sm:$0xff]
      %v413 = vld [vmem:[%s2 + $0xb0] sm:$0xff]
      %v414 = vld [vmem:[%s2 + $0xb8] sm:$0xff]
      %v416 = vsel %vm389, %v383, 0
      %418 = vmatprep.subr.mxu0 0.0
      %419 = vmatpush1.msra.mxu0 %v391
      %420 = vmatprep.subr.mxu0 0.0
      %421 = vmatpush1.msra.mxu0 %v392
      %422 = vmatprep.subr.mxu0 0.0
      %423 = vmatpush1.msra.mxu0 %v393
      %424 = vmatprep.subr.mxu0 0.0
      %425 = vmatpush1.msra.mxu0 %v394
      %426 = vmatprep.subr.mxu0 0.0
      %427 = vmatpush1.msra.mxu0 %v395
      %428 = vmatprep.subr.mxu0 0.0
      %429 = vmatpush1.msra.mxu0 %v396
      %430 = vmatprep.subr.mxu0 0.0
      %431 = vmatpush1.msra.mxu0 %v397
      %432 = vmatprep.subr.mxu0 0.0
      %433 = vmatpush1.msra.mxu0 %v398
      %434 = vmatprep.subr.mxu0 0.0
      %435 = vmatpush1.msra.mxu0 %v399
      %436 = vmatprep.subr.mxu0 0.0
      %437 = vmatpush1.msra.mxu0 %v400
      %438 = vmatprep.subr.mxu0 0.0
      %439 = vmatpush1.msra.mxu0 %v401
      %440 = vmatprep.subr.mxu0 0.0
      %441 = vmatpush1.msra.mxu0 %v402
      %442 = vmatprep.subr.mxu0 0.0
      %443 = vmatpush1.msra.mxu0 %v403
      %444 = vmatprep.subr.mxu0 0.0
      %445 = vmatpush1.msra.mxu0 %v404
      %446 = vmatprep.subr.mxu0 0.0
      %447 = vmatpush1.msra.mxu0 %v405
      %448 = vmatprep.subr.mxu0 0.0
      %449 = vmatpush1.msra.mxu0 %v406
      %450 = vmatprep.subr.mxu0 0.0
      %451 = vmatpush1.msra.mxu0 %v407
      %452 = vmatprep.subr.mxu0 0.0
      %453 = vmatpush1.msra.mxu0 %v408
      %454 = vmatprep.subr.mxu0 0.0
      %455 = vmatpush1.msra.mxu0 %v409
      %456 = vmatprep.subr.mxu0 0.0
      %457 = vmatpush1.msra.mxu0 %v410
      %458 = vmatprep.subr.mxu0 0.0
      %459 = vmatpush1.msra.mxu0 %v411
      %460 = vmatprep.subr.mxu0 0.0
      %461 = vmatpush1.msra.mxu0 %v412
      %462 = vmatprep.subr.mxu0 0.0
      %463 = vmatpush1.msra.mxu0 %v413
      %464 = vmatprep.subr.mxu0 0.0
      %465 = vmatpush1.msra.mxu0 %v414
      %466 = vmatprep.subr.mxu0 0.0
      %467 = vmatpush1.msra.mxu0 0.0
      %468 = vmatprep.subr.mxu0 0.0
      %469 = vmatpush1.msra.mxu0 0.0
      %470 = vmatprep.subr.mxu0 0.0
      %471 = vmatpush1.msra.mxu0 0.0
      %472 = vmatprep.subr.mxu0 0.0
      %473 = vmatpush1.msra.mxu0 0.0
      %474 = vmatprep.subr.mxu0 0.0
      %475 = vmatpush1.msra.mxu0 0.0
      %476 = vmatprep.subr.mxu0 0.0
      %477 = vmatpush1.msra.mxu0 0.0
      %478 = vmatprep.subr.mxu0 0.0
      %479 = vmatpush1.msra.mxu0 0.0
      %480 = vmatprep.subr.mxu0 0.0
      %481 = vmatpush1.msra.mxu0 0.0
      %482 = vmatprep.mubr.f32.mxu0 %v416
      %483 = vmatmul.mubr.f32.gmra.mrb[0].mxu0 %v390
      %v484 = vpop.f32.mrb[0].mxu0
      %v485 = vadd.f32 0.0, %v484
      %v486 = vpop.f32.mrb[0].mxu0
      %487 = vdwg.mxu0
      %v488 = vld [vmem:[%s3] sm:$0x1]
      %v489 = vlaneseq
      %v490 = vshrl.u32 %v489, 7
      %v491 = vsub.s32 0, %v490
      %v492 = vrot.slane %v488, %v491
      %v493 = vmul.f32 %v485, %v492
      %v494 = vld [vmem:[%s3 + $0x1] sm:$0x1]
      %v495 = vlaneseq
      %v496 = vshrl.u32 %v495, 7
      %v497 = vsub.s32 0, %v496
      %v498 = vrot.slane %v494, %v497
      %v499 = vadd.f32 %v493, %v498
      %v500 = vmax.f32 %v499, 0.0
      %vm501 = vcmask 519168
      %502 = vst.msk [vmem:[%s226] sm:$0xf] %vm501, %v500
      %v504 = vrot.slane %v500, 1
      %v506 = vmax.f32 %v500, %v504
      %v508 = vrot.slane %v506, 1
      %vm510 = vcmask 1040384
      %v511 = vsel %vm510, %v506, %v508
      %513 = vrot.lane.b32.xlu0 %v511, 112
      %v514 = vpop.permute.xlu0 %513
      %v516 = vmax.f32 %v511, %v514
      %518 = vrot.lane.b32.xlu0 %v516, 112
      %v519 = vpop.permute.xlu0 %518
      %vm521 = vcmask 130048
      %v522 = vsel %vm521, %v516, %v519
      %vm523 = vcmask 254976
      %524 = vst.msk [vmem:[%s230] sm:$0x3] %vm523, %v522
      %p525 = scmp.lt.s32.totalorder %s17, 1
      %s526 = scalar_select %p525, %s17, 1
      %s527 = smul.addr %s526, 4
      %s528 = scalar_lea.vmem %s4, %s527
      %p529 = scmp.lt.s32.totalorder %s17, 1
      %s530 = scalar_select %p529, %s17, 1
      %s531 = smul.addr %s530, 2
      %s532 = scalar_lea.vmem %s5, %s531
      // Predicated region
      $region37: #{rsu6_forward.15} parent=35 // pred_check
        %p533 = pneg %p124
      $region38: #{rsu6_forward.15} parent=35 // pred_check_branch
        %535 = sbr.rel (%p533) target = $region40
      $region39: #{rsu6_forward.15} parent=35 // pred_region
        _
      $region40: #{rsu6_forward.15} parent=35 // pred_fallthru
        _
      // Predicated region
      $region41: #{rsu6_forward.15} parent=35 // pred_check
        %p536 = pneg %p150
      $region42: #{rsu6_forward.15} parent=35 // pred_check_branch
        %538 = sbr.rel (%p536) target = $region44
      $region43: #{rsu6_forward.15} parent=35 // pred_region
        _
      $region44: #{rsu6_forward.15} parent=35 // pred_fallthru
        _
    $region36: #{rsu6_forward.15} parent=5 // pred_fallthru
      _
    %p539 = scmp.le.s32.totalorder 2, %s12
    // Predicated region
    $region45: #{rsu6_forward.15} parent=5 // pred_check
      %p540 = pneg %p539
    $region46: #{rsu6_forward.15} parent=5 // pred_check_branch
      %542 = sbr.rel (%p540) target = $region48
    $region47: #{rsu6_forward.15} parent=5 // pred_region
      %s543 = ssub.s32 %s12, 2
      // Predicated region
      $region49: #{rsu6_forward.15} parent=47 // pred_check
        %p544 = pneg %p130
      $region50: #{rsu6_forward.15} parent=47 // pred_check_branch
        %546 = sbr.rel (%p544) target = $region52
      $region51: #{rsu6_forward.15} parent=47 // pred_region
        %p547 = scmp.lt.s32.totalorder %s18, 1
        %s548 = scalar_select %p547, %s18, 1
        %s549 = smul.addr %s548, 4
        %s550 = scalar_lea.vmem %s4, %s549
      $region52: #{rsu6_forward.15} parent=47 // pred_fallthru
        _
      // Predicated region
      $region53: #{rsu6_forward.15} parent=47 // pred_check
        %p551 = pneg %p156
      $region54: #{rsu6_forward.15} parent=47 // pred_check_branch
        %553 = sbr.rel (%p551) target = $region56
      $region55: #{rsu6_forward.15} parent=47 // pred_region
        %p554 = scmp.lt.s32.totalorder %s18, 1
        %s555 = scalar_select %p554, %s18, 1
        %s556 = smul.addr %s555, 2
        %s557 = scalar_lea.vmem %s5, %s556
      $region56: #{rsu6_forward.15} parent=47 // pred_fallthru
        _
    $region48: #{rsu6_forward.15} parent=5 // pred_fallthru
      _
  $region6: #{rsu6_forward.15} parent=0 // loop_footer
    %s16 = sadd.s32 1, %s12
  $region7: #{rsu6_forward.15} parent=0 // loop_footer_branch
    %11 = sbr.rel target = $region3
  $region8: #{rsu6_forward.15} parent=0 // loop_exit
    _

// kernel: rsu6_forward.14
$region0: #{rsu6_forward.14}
  #allocation0 [shape = 'u32[]', space=smem, size = 0x4, offset = 0x4, fixed_abs, tag = 'smem constant byte address 0x4 - core index']
  #allocation1 [shape = 'u32[144,128]{1,0:T(1,128)}', space=vmem, size = 0x12000, scoped, tag = 'internal scratch']
  %s0 = inlined_call_operand.vmem [shape: f32[2,8,128], index: 0, kind: input, shape index: {}]
  %s1 = inlined_call_operand.vmem [shape: f32[3,8,8], index: 1, kind: input, shape index: {}]
  %s2 = inlined_call_operand.vmem [shape: f32[384,128], index: 2, kind: input, shape index: {}]
  %s3 = inlined_call_operand.vmem [shape: f32[2,128], index: 3, kind: input, shape index: {}]
  %s4 = inlined_call_operand.vmem [shape: f32[2,8,128], index: 4, kind: output, shape index: {0}]
  %s5 = inlined_call_operand.vmem [shape: f32[2,4,64], index: 5, kind: output, shape index: {1}]
  %6 = xla_tuple %s4, %s5
  %s7 = sld [smem:[#allocation0]]
  $region57: #{rsu6_forward.14} parent=0
    _
  %s9 = ssub.s32 1, %s7
  %s10 = scalar_select 0, %s9, %s7
  loop: start=0, step=1, limit=4
  $region2: #{rsu6_forward.14} parent=0 // loop_pre_header
    _
  $region3: #{rsu6_forward.14} parent=0 // loop_header
    %s12 = sphi 0, %s16
    %p13 = scmp.ge.s32.totalorder %s12, 4
    %s22 = sphi 0, %s24
    %s25 = sphi 0, %s22
    %s26 = sphi 0, %s25
    %s42 = sphi 0, %s26
    %s46 = sphi 0, %s46
    %s48 = sphi 0, %s46
    %s49 = sphi 0, %s48
    %s63 = sphi 0, %s49
    %s67 = sphi 0, %s67
    %s69 = sphi 0, %s67
    %s70 = sphi 0, %s69
    %s84 = sphi 0, %s70
    %s88 = sphi 0, %s88
    %s90 = sphi 0, %s88
    %s91 = sphi 0, %s90
    %s105 = sphi 0, %s91
    %s111 = sphi 0, %s113
    %s114 = sphi 0, %s111
    %s115 = sphi 0, %s114
    %s131 = sphi 0, %s115
    %s137 = sphi 0, %s139
    %s140 = sphi 0, %s137
    %s141 = sphi 0, %s140
    %s157 = sphi 0, %s141
  $region4: #{rsu6_forward.14} parent=0 // loop_header_branch
    %15 = sbr.rel (%p13) target = $region8
  $region5: #{rsu6_forward.14} parent=0 // loop_body
    %s17 = ssub.s32 %s12, 1
    %s18 = ssub.s32 %s12, 2
    %s19 = sadd.s32 %s12, 1
    %s20 = ssub.s32 %s12, %s19
    %p21 = scmp.eq.s32.totalorder %s20, 0
    %s23 = sadd.s32 %s22, 1
    %s24 = scalar_select %p21, %s22, %s23
    %p27 = pneg %p21
    %p28 = scmp.eq.s32.totalorder %s12, 1
    %p29 = por %p27, %p28
    %p30 = scmp.ne.s32.totalorder %s22, %s25
    %p31 = scmp.eq.s32.totalorder %s12, 0
    %p32 = por %p30, %p31
    %p33 = scmp.ne.s32.totalorder %s22, %s25
    %p34 = scmp.eq.s32.totalorder %s17, 1
    %p35 = por %p33, %p34
    %p36 = scmp.ne.s32.totalorder %s25, %s26
    %p37 = scmp.eq.s32.totalorder %s17, 0
    %p38 = por %p36, %p37
    %p39 = scmp.ne.s32.totalorder %s25, %s26
    %p40 = scmp.eq.s32.totalorder %s18, 1
    %p41 = por %p39, %p40
    %p43 = scmp.ne.s32.totalorder %s26, %s42
    %p44 = scmp.eq.s32.totalorder %s18, 0
    %p45 = por %p43, %p44
    %s47 = sadd.s32 %s46, 1
    %p50 = scmp.eq.s32.totalorder %s12, 1
    %p51 = scmp.ne.s32.totalorder %s46, %s48
    %p52 = scmp.eq.s32.totalorder %s12, 0
    %p53 = por %p51, %p52
    %p54 = scmp.ne.s32.totalorder %s46, %s48
    %p55 = scmp.eq.s32.totalorder %s17, 1
    %p56 = por %p54, %p55
    %p57 = scmp.ne.s32.totalorder %s48, %s49
    %p58 = scmp.eq.s32.totalorder %s17, 0
    %p59 = por %p57, %p58
    %p60 = scmp.ne.s32.totalorder %s48, %s49
    %p61 = scmp.eq.s32.totalorder %s18, 1
    %p62 = por %p60, %p61
    %p64 = scmp.ne.s32.totalorder %s49, %s63
    %p65 = scmp.eq.s32.totalorder %s18, 0
    %p66 = por %p64, %p65
    %s68 = sadd.s32 %s67, 1
    %p71 = scmp.eq.s32.totalorder %s12, 1
    %p72 = scmp.ne.s32.totalorder %s67, %s69
    %p73 = scmp.eq.s32.totalorder %s12, 0
    %p74 = por %p72, %p73
    %p75 = scmp.ne.s32.totalorder %s67, %s69
    %p76 = scmp.eq.s32.totalorder %s17, 1
    %p77 = por %p75, %p76
    %p78 = scmp.ne.s32.totalorder %s69, %s70
    %p79 = scmp.eq.s32.totalorder %s17, 0
    %p80 = por %p78, %p79
    %p81 = scmp.ne.s32.totalorder %s69, %s70
    %p82 = scmp.eq.s32.totalorder %s18, 1
    %p83 = por %p81, %p82
    %p85 = scmp.ne.s32.totalorder %s70, %s84
    %p86 = scmp.eq.s32.totalorder %s18, 0
    %p87 = por %p85, %p86
    %s89 = sadd.s32 %s88, 1
    %p92 = scmp.eq.s32.totalorder %s12, 1
    %p93 = scmp.ne.s32.totalorder %s88, %s90
    %p94 = scmp.eq.s32.totalorder %s12, 0
    %p95 = por %p93, %p94
    %p96 = scmp.ne.s32.totalorder %s88, %s90
    %p97 = scmp.eq.s32.totalorder %s17, 1
    %p98 = por %p96, %p97
    %p99 = scmp.ne.s32.totalorder %s90, %s91
    %p100 = scmp.eq.s32.totalorder %s17, 0
    %p101 = por %p99, %p100
    %p102 = scmp.ne.s32.totalorder %s90, %s91
    %p103 = scmp.eq.s32.totalorder %s18, 1
    %p104 = por %p102, %p103
    %p106 = scmp.ne.s32.totalorder %s91, %s105
    %p107 = scmp.eq.s32.totalorder %s18, 0
    %p108 = por %p106, %p107
    %s109 = ssub.s32 %s12, %s19
    %p110 = scmp.eq.s32.totalorder %s109, 0
    %s112 = sadd.s32 %s111, 1
    %s113 = scalar_select %p110, %s111, %s112
    %p116 = pneg %p110
    %p117 = scmp.eq.s32.totalorder %s12, 1
    %p118 = por %p116, %p117
    %p119 = scmp.ne.s32.totalorder %s111, %s114
    %p120 = scmp.eq.s32.totalorder %s12, 0
    %p121 = por %p119, %p120
    %p122 = scmp.ne.s32.totalorder %s111, %s114
    %p123 = scmp.eq.s32.totalorder %s17, 1
    %p124 = por %p122, %p123
    %p125 = scmp.ne.s32.totalorder %s114, %s115
    %p126 = scmp.eq.s32.totalorder %s17, 0
    %p127 = por %p125, %p126
    %p128 = scmp.ne.s32.totalorder %s114, %s115
    %p129 = scmp.eq.s32.totalorder %s18, 1
    %p130 = por %p128, %p129
    %p132 = scmp.ne.s32.totalorder %s115, %s131
    %p133 = scmp.eq.s32.totalorder %s18, 0
    %p134 = por %p132, %p133
    %s135 = ssub.s32 %s12, %s19
    %p136 = scmp.eq.s32.totalorder %s135, 0
    %s138 = sadd.s32 %s137, 1
    %s139 = scalar_select %p136, %s137, %s138
    %p142 = pneg %p136
    %p143 = scmp.eq.s32.totalorder %s12, 1
    %p144 = por %p142, %p143
    %p145 = scmp.ne.s32.totalorder %s137, %s140
    %p146 = scmp.eq.s32.totalorder %s12, 0
    %p147 = por %p145, %p146
    %p148 = scmp.ne.s32.totalorder %s137, %s140
    %p149 = scmp.eq.s32.totalorder %s17, 1
    %p150 = por %p148, %p149
    %p151 = scmp.ne.s32.totalorder %s140, %s141
    %p152 = scmp.eq.s32.totalorder %s17, 0
    %p153 = por %p151, %p152
    %p154 = scmp.ne.s32.totalorder %s140, %s141
    %p155 = scmp.eq.s32.totalorder %s18, 1
    %p156 = por %p154, %p155
    %p158 = scmp.ne.s32.totalorder %s141, %s157
    %p159 = scmp.eq.s32.totalorder %s18, 0
    %p160 = por %p158, %p159
    %p161 = scmp.le.s32.totalorder 1, %s12
    %p162 = scmp.lt.s32.totalorder %s12, 3
    %p163 = pnand %p161, %p162
    %p164 = pneg %p163
    // Predicated region
    $region9: #{rsu6_forward.14} parent=5 // pred_check
      _
    $region10: #{rsu6_forward.14} parent=5 // pred_check_branch
      %166 = sbr.rel (%p163) target = $region12
    $region11: #{rsu6_forward.14} parent=5 // pred_region
      %s167 = ssub.s32 %s12, 1
      // Predicated region
      $region13: #{rsu6_forward.14} parent=11 // pred_check
        %p168 = pneg %p59
      $region14: #{rsu6_forward.14} parent=11 // pred_check_branch
        %170 = sbr.rel (%p168) target = $region16
      $region15: #{rsu6_forward.14} parent=11 // pred_region
        _
      $region16: #{rsu6_forward.14} parent=11 // pred_fallthru
        _
      // Predicated region
      $region17: #{rsu6_forward.14} parent=11 // pred_check
        %p171 = pneg %p80
      $region18: #{rsu6_forward.14} parent=11 // pred_check_branch
        %173 = sbr.rel (%p171) target = $region20
      $region19: #{rsu6_forward.14} parent=11 // pred_region
        _
      $region20: #{rsu6_forward.14} parent=11 // pred_fallthru
        _
      // Predicated region
      $region21: #{rsu6_forward.14} parent=11 // pred_check
        %p174 = pneg %p101
      $region22: #{rsu6_forward.14} parent=11 // pred_check_branch
        %176 = sbr.rel (%p174) target = $region24
      $region23: #{rsu6_forward.14} parent=11 // pred_region
        _
      $region24: #{rsu6_forward.14} parent=11 // pred_fallthru
        _
    $region12: #{rsu6_forward.14} parent=5 // pred_fallthru
      _
    %p177 = scmp.lt.s32.totalorder %s12, 2
    // Predicated region
    $region25: #{rsu6_forward.14} parent=5 // pred_check
      %p178 = pneg %p177
    $region26: #{rsu6_forward.14} parent=5 // pred_check_branch
      %180 = sbr.rel (%p178) target = $region28
    $region27: #{rsu6_forward.14} parent=5 // pred_region
      // Predicated region
      $region29: #{rsu6_forward.14} parent=27 // pred_check
        %p181 = pneg %p32
      $region30: #{rsu6_forward.14} parent=27 // pred_check_branch
        %183 = sbr.rel (%p181) target = $region32
      $region31: #{rsu6_forward.14} parent=27 // pred_region
        %p184 = scmp.lt.s32.totalorder %s12, 1
        %s185 = scalar_select %p184, %s12, 1
        %s186 = smul.addr %s185, 8
        %s187 = scalar_lea.vmem %s0, %s186
      $region32: #{rsu6_forward.14} parent=27 // pred_fallthru
        _
    $region28: #{rsu6_forward.14} parent=5 // pred_fallthru
      _
    %p188 = scmp.le.s32.totalorder 1, %s12
    %p189 = scmp.lt.s32.totalorder %s12, 3
    %p190 = pnand %p188, %p189
    %p191 = pneg %p190
    // Predicated region
    $region33: #{rsu6_forward.14} parent=5 // pred_check
      _
    $region34: #{rsu6_forward.14} parent=5 // pred_check_branch
      %193 = sbr.rel (%p190) target = $region36
    $region35: #{rsu6_forward.14} parent=5 // pred_region
      %s194 = ssub.s32 %s12, 1
      %p195 = scmp.lt.s32.totalorder %s17, 1
      %s196 = scalar_select %p195, %s17, 1
      %s197 = smul.addr %s196, 8
      %s198 = scalar_lea.vmem %s0, %s197
      %p199 = pneg %p38
      %p200 = pneg %p35
      %p201 = pneg %p59
      %p202 = pneg %p56
      %p203 = pneg %p80
      %p204 = pneg %p77
      %p205 = pneg %p101
      %p206 = pneg %p98
      %p207 = pneg %p127
      %p208 = pneg %p124
      %p209 = scmp.lt.s32.totalorder %s17, 1
      %s210 = scalar_select %p209, %s17, 1
      %s211 = smul.addr %s210, 8
      %s212 = scalar_lea.vmem %s4, %s211
      %p213 = pneg %p153
      %p214 = pneg %p150
      %p215 = scmp.lt.s32.totalorder %s17, 1
      %s216 = scalar_select %p215, %s17, 1
      %s217 = smul.addr %s216, 4
      %s218 = scalar_lea.vmem %s5, %s217
      %p219 = scmp.lt.s32.totalorder %s17, 1
      %s220 = scalar_select %p219, %s17, 1
      %s221 = smul.addr %s220, 8
      %s222 = scalar_lea.vmem %s0, %s221
      %p223 = scmp.lt.s32.totalorder %s17, 1
      %s224 = scalar_select %p223, %s17, 1
      %s225 = smul.addr %s224, 8
      %s226 = scalar_lea.vmem %s4, %s225
      %p227 = scmp.lt.s32.totalorder %s17, 1
      %s228 = scalar_select %p227, %s17, 1
      %s229 = smul.addr %s228, 4
      %s230 = scalar_lea.vmem %s5, %s229
      %v231 = vld [vmem:[%s222] sm:$0xff]
      %v232 = vld [vmem:[%s1] sm:$0xff]
      %vm233 = vcmask 64512
      %v235 = vsel %vm233, %v232, 0
      %237 = vmatprep.subr.mxu0 0.0
      %238 = vmatpush1.msra.mxu0 %v231
      %239 = vmatprep.subr.mxu0 0.0
      %240 = vmatpush1.msra.mxu0 0.0
      %241 = vmatprep.subr.mxu0 0.0
      %242 = vmatpush1.msra.mxu0 0.0
      %243 = vmatprep.subr.mxu0 0.0
      %244 = vmatpush1.msra.mxu0 0.0
      %245 = vmatprep.subr.mxu0 0.0
      %246 = vmatpush1.msra.mxu0 0.0
      %247 = vmatprep.subr.mxu0 0.0
      %248 = vmatpush1.msra.mxu0 0.0
      %249 = vmatprep.subr.mxu0 0.0
      %250 = vmatpush1.msra.mxu0 0.0
      %251 = vmatprep.subr.mxu0 0.0
      %252 = vmatpush1.msra.mxu0 0.0
      %253 = vmatprep.subr.mxu0 0.0
      %254 = vmatpush1.msra.mxu0 0.0
      %255 = vmatprep.subr.mxu0 0.0
      %256 = vmatpush1.msra.mxu0 0.0
      %257 = vmatprep.subr.mxu0 0.0
      %258 = vmatpush1.msra.mxu0 0.0
      %259 = vmatprep.subr.mxu0 0.0
      %260 = vmatpush1.msra.mxu0 0.0
      %261 = vmatprep.subr.mxu0 0.0
      %262 = vmatpush1.msra.mxu0 0.0
      %263 = vmatprep.subr.mxu0 0.0
      %264 = vmatpush1.msra.mxu0 0.0
      %265 = vmatprep.subr.mxu0 0.0
      %266 = vmatpush1.msra.mxu0 0.0
      %267 = vmatprep.subr.mxu0 0.0
      %268 = vmatpush1.msra.mxu0 0.0
      %269 = vmatprep.subr.mxu0 0.0
      %270 = vmatpush1.msra.mxu0 0.0
      %271 = vmatprep.subr.mxu0 0.0
      %272 = vmatpush1.msra.mxu0 0.0
      %273 = vmatprep.subr.mxu0 0.0
      %274 = vmatpush1.msra.mxu0 0.0
      %275 = vmatprep.subr.mxu0 0.0
      %276 = vmatpush1.msra.mxu0 0.0
      %277 = vmatprep.subr.mxu0 0.0
      %278 = vmatpush1.msra.mxu0 0.0
      %279 = vmatprep.subr.mxu0 0.0
      %280 = vmatpush1.msra.mxu0 0.0
      %281 = vmatprep.subr.mxu0 0.0
      %282 = vmatpush1.msra.mxu0 0.0
      %283 = vmatprep.subr.mxu0 0.0
      %284 = vmatpush1.msra.mxu0 0.0
      %285 = vmatprep.subr.mxu0 0.0
      %286 = vmatpush1.msra.mxu0 0.0
      %287 = vmatprep.subr.mxu0 0.0
      %288 = vmatpush1.msra.mxu0 0.0
      %289 = vmatprep.subr.mxu0 0.0
      %290 = vmatpush1.msra.mxu0 0.0
      %291 = vmatprep.subr.mxu0 0.0
      %292 = vmatpush1.msra.mxu0 0.0
      %293 = vmatprep.subr.mxu0 0.0
      %294 = vmatpush1.msra.mxu0 0.0
      %295 = vmatprep.subr.mxu0 0.0
      %296 = vmatpush1.msra.mxu0 0.0
      %297 = vmatprep.subr.mxu0 0.0
      %298 = vmatpush1.msra.mxu0 0.0
      %299 = vmatprep.subr.mxu0 0.0
      %300 = vmatpush1.msra.mxu0 0.0
      %301 = vmatprep.mubr.f32.mxu0 0.0
      %302 = vmatmul.mubr.f32.gmra.mrb[0].mxu0 %v235
      %v303 = vpop.f32.mrb[0].mxu0
      %v304 = vadd.f32 0.0, %v303
      %v305 = vpop.f32.mrb[0].mxu0
      %306 = vdwg.mxu0
      %s307 = scalar_lea.vmem %s1, 16
      %v308 = vld [vmem:[%s307] sm:$0xff]
      %v310 = vsel %vm233, %v308, 0
      %312 = vmatprep.subr.mxu0 0.0
      %313 = vmatpush1.msra.mxu0 %v231
      %314 = vmatprep.subr.mxu0 0.0
      %315 = vmatpush1.msra.mxu0 0.0
      %316 = vmatprep.subr.mxu0 0.0
      %317 = vmatpush1.msra.mxu0 0.0
      %318 = vmatprep.subr.mxu0 0.0
      %319 = vmatpush1.msra.mxu0 0.0
      %320 = vmatprep.subr.mxu0 0.0
      %321 = vmatpush1.msra.mxu0 0.0
      %322 = vmatprep.subr.mxu0 0.0
      %323 = vmatpush1.msra.mxu0 0.0
      %324 = vmatprep.subr.mxu0 0.0
      %325 = vmatpush1.msra.mxu0 0.0
      %326 = vmatprep.subr.mxu0 0.0
      %327 = vmatpush1.msra.mxu0 0.0
      %328 = vmatprep.subr.mxu0 0.0
      %329 = vmatpush1.msra.mxu0 0.0
      %330 = vmatprep.subr.mxu0 0.0
      %331 = vmatpush1.msra.mxu0 0.0
      %332 = vmatprep.subr.mxu0 0.0
      %333 = vmatpush1.msra.mxu0 0.0
      %334 = vmatprep.subr.mxu0 0.0
      %335 = vmatpush1.msra.mxu0 0.0
      %336 = vmatprep.subr.mxu0 0.0
      %337 = vmatpush1.msra.mxu0 0.0
      %338 = vmatprep.subr.mxu0 0.0
      %339 = vmatpush1.msra.mxu0 0.0
      %340 = vmatprep.subr.mxu0 0.0
      %341 = vmatpush1.msra.mxu0 0.0
      %342 = vmatprep.subr.mxu0 0.0
      %343 = vmatpush1.msra.mxu0 0.0
      %344 = vmatprep.subr.mxu0 0.0
      %345 = vmatpush1.msra.mxu0 0.0
      %346 = vmatprep.subr.mxu0 0.0
      %347 = vmatpush1.msra.mxu0 0.0
      %348 = vmatprep.subr.mxu0 0.0
      %349 = vmatpush1.msra.mxu0 0.0
      %350 = vmatprep.subr.mxu0 0.0
      %351 = vmatpush1.msra.mxu0 0.0
      %352 = vmatprep.subr.mxu0 0.0
      %353 = vmatpush1.msra.mxu0 0.0
      %354 = vmatprep.subr.mxu0 0.0
      %355 = vmatpush1.msra.mxu0 0.0
      %356 = vmatprep.subr.mxu0 0.0
      %357 = vmatpush1.msra.mxu0 0.0
      %358 = vmatprep.subr.mxu0 0.0
      %359 = vmatpush1.msra.mxu0 0.0
      %360 = vmatprep.subr.mxu0 0.0
      %361 = vmatpush1.msra.mxu0 0.0
      %362 = vmatprep.subr.mxu0 0.0
      %363 = vmatpush1.msra.mxu0 0.0
      %364 = vmatprep.subr.mxu0 0.0
      %365 = vmatpush1.msra.mxu0 0.0
      %366 = vmatprep.subr.mxu0 0.0
      %367 = vmatpush1.msra.mxu0 0.0
      %368 = vmatprep.subr.mxu0 0.0
      %369 = vmatpush1.msra.mxu0 0.0
      %370 = vmatprep.subr.mxu0 0.0
      %371 = vmatpush1.msra.mxu0 0.0
      %372 = vmatprep.subr.mxu0 0.0
      %373 = vmatpush1.msra.mxu0 0.0
      %374 = vmatprep.subr.mxu0 0.0
      %375 = vmatpush1.msra.mxu0 0.0
      %376 = vmatprep.mubr.f32.mxu0 0.0
      %377 = vmatmul.mubr.f32.gmra.mrb[0].mxu0 %v310
      %v378 = vpop.f32.mrb[0].mxu0
      %v379 = vadd.f32 0.0, %v378
      %v380 = vpop.f32.mrb[0].mxu0
      %381 = vdwg.mxu0
      %v382 = vld [vmem:[%s2] sm:$0xff]
      %v383 = vld [vmem:[%s2 + $0x8] sm:$0xff]
      %v384 = vld [vmem:[%s2 + $0x10] sm:$0xff]
      %v385 = vld [vmem:[%s2 + $0x18] sm:$0xff]
      %v386 = vld [vmem:[%s2 + $0x20] sm:$0xff]
      %v387 = vld [vmem:[%s2 + $0x28] sm:$0xff]
      %v388 = vld [vmem:[%s2 + $0x30] sm:$0xff]
      %v389 = vld [vmem:[%s2 + $0x38] sm:$0xff]
      %v390 = vld [vmem:[%s2 + $0x40] sm:$0xff]
      %v391 = vld [vmem:[%s2 + $0x48] sm:$0xff]
      %v392 = vld [vmem:[%s2 + $0x50] sm:$0xff]
      %v393 = vld [vmem:[%s2 + $0x58] sm:$0xff]
      %v394 = vld [vmem:[%s2 + $0x60] sm:$0xff]
      %v395 = vld [vmem:[%s2 + $0x68] sm:$0xff]
      %v396 = vld [vmem:[%s2 + $0x70] sm:$0xff]
      %v397 = vld [vmem:[%s2 + $0x78] sm:$0xff]
      %v398 = vld [vmem:[%s2 + $0x80] sm:$0xff]
      %v399 = vld [vmem:[%s2 + $0x88] sm:$0xff]
      %v400 = vld [vmem:[%s2 + $0x90] sm:$0xff]
      %v401 = vld [vmem:[%s2 + $0x98] sm:$0xff]
      %v402 = vld [vmem:[%s2 + $0xa0] sm:$0xff]
      %v403 = vld [vmem:[%s2 + $0xa8] sm:$0xff]
      %v404 = vld [vmem:[%s2 + $0xb0] sm:$0xff]
      %v405 = vld [vmem:[%s2 + $0xb8] sm:$0xff]
      %v406 = vld [vmem:[%s2 + $0xc0] sm:$0xff]
      %v407 = vld [vmem:[%s2 + $0xc8] sm:$0xff]
      %v408 = vld [vmem:[%s2 + $0xd0] sm:$0xff]
      %v409 = vld [vmem:[%s2 + $0xd8] sm:$0xff]
      %v410 = vld [vmem:[%s2 + $0xe0] sm:$0xff]
      %v411 = vld [vmem:[%s2 + $0xe8] sm:$0xff]
      %v412 = vld [vmem:[%s2 + $0xf0] sm:$0xff]
      %v413 = vld [vmem:[%s2 + $0xf8] sm:$0xff]
      %v414 = vld [vmem:[%s2 + $0x100] sm:$0xff]
      %v415 = vld [vmem:[%s2 + $0x108] sm:$0xff]
      %v416 = vld [vmem:[%s2 + $0x110] sm:$0xff]
      %v417 = vld [vmem:[%s2 + $0x118] sm:$0xff]
      %v418 = vld [vmem:[%s2 + $0x120] sm:$0xff]
      %v419 = vld [vmem:[%s2 + $0x128] sm:$0xff]
      %v420 = vld [vmem:[%s2 + $0x130] sm:$0xff]
      %v421 = vld [vmem:[%s2 + $0x138] sm:$0xff]
      %v422 = vld [vmem:[%s2 + $0x140] sm:$0xff]
      %v423 = vld [vmem:[%s2 + $0x148] sm:$0xff]
      %v424 = vld [vmem:[%s2 + $0x150] sm:$0xff]
      %v425 = vld [vmem:[%s2 + $0x158] sm:$0xff]
      %v426 = vld [vmem:[%s2 + $0x160] sm:$0xff]
      %v427 = vld [vmem:[%s2 + $0x168] sm:$0xff]
      %v428 = vld [vmem:[%s2 + $0x170] sm:$0xff]
      %v429 = vld [vmem:[%s2 + $0x178] sm:$0xff]
      %430 = vmatprep.subr.mxu0 0.0
      %431 = vmatpush1.msra.mxu0 %v382
      %432 = vmatprep.subr.mxu0 0.0
      %433 = vmatpush1.msra.mxu0 %v383
      %434 = vmatprep.subr.mxu0 0.0
      %435 = vmatpush1.msra.mxu0 %v384
      %436 = vmatprep.subr.mxu0 0.0
      %437 = vmatpush1.msra.mxu0 %v385
      %438 = vmatprep.subr.mxu0 0.0
      %439 = vmatpush1.msra.mxu0 %v386
      %440 = vmatprep.subr.mxu0 0.0
      %441 = vmatpush1.msra.mxu0 %v387
      %442 = vmatprep.subr.mxu0 0.0
      %443 = vmatpush1.msra.mxu0 %v388
      %444 = vmatprep.subr.mxu0 0.0
      %445 = vmatpush1.msra.mxu0 %v389
      %446 = vmatprep.subr.mxu0 0.0
      %447 = vmatpush1.msra.mxu0 %v390
      %448 = vmatprep.subr.mxu0 0.0
      %449 = vmatpush1.msra.mxu0 %v391
      %450 = vmatprep.subr.mxu0 0.0
      %451 = vmatpush1.msra.mxu0 %v392
      %452 = vmatprep.subr.mxu0 0.0
      %453 = vmatpush1.msra.mxu0 %v393
      %454 = vmatprep.subr.mxu0 0.0
      %455 = vmatpush1.msra.mxu0 %v394
      %456 = vmatprep.subr.mxu0 0.0
      %457 = vmatpush1.msra.mxu0 %v395
      %458 = vmatprep.subr.mxu0 0.0
      %459 = vmatpush1.msra.mxu0 %v396
      %460 = vmatprep.subr.mxu0 0.0
      %461 = vmatpush1.msra.mxu0 %v397
      %462 = vmatprep.subr.mxu0 0.0
      %463 = vmatpush1.msra.mxu0 %v398
      %464 = vmatprep.subr.mxu0 0.0
      %465 = vmatpush1.msra.mxu0 %v399
      %466 = vmatprep.subr.mxu0 0.0
      %467 = vmatpush1.msra.mxu0 %v400
      %468 = vmatprep.subr.mxu0 0.0
      %469 = vmatpush1.msra.mxu0 %v401
      %470 = vmatprep.subr.mxu0 0.0
      %471 = vmatpush1.msra.mxu0 %v402
      %472 = vmatprep.subr.mxu0 0.0
      %473 = vmatpush1.msra.mxu0 %v403
      %474 = vmatprep.subr.mxu0 0.0
      %475 = vmatpush1.msra.mxu0 %v404
      %476 = vmatprep.subr.mxu0 0.0
      %477 = vmatpush1.msra.mxu0 %v405
      %478 = vmatprep.subr.mxu0 0.0
      %479 = vmatpush1.msra.mxu0 %v406
      %480 = vmatprep.subr.mxu0 0.0
      %481 = vmatpush1.msra.mxu0 %v407
      %482 = vmatprep.subr.mxu0 0.0
      %483 = vmatpush1.msra.mxu0 %v408
      %484 = vmatprep.subr.mxu0 0.0
      %485 = vmatpush1.msra.mxu0 %v409
      %486 = vmatprep.subr.mxu0 0.0
      %487 = vmatpush1.msra.mxu0 %v410
      %488 = vmatprep.subr.mxu0 0.0
      %489 = vmatpush1.msra.mxu0 %v411
      %490 = vmatprep.subr.mxu0 0.0
      %491 = vmatpush1.msra.mxu0 %v412
      %492 = vmatprep.subr.mxu0 0.0
      %493 = vmatpush1.msra.mxu0 %v413
      %494 = vmatprep.mubr.f32.mxu0 %v231
      %495 = vmatmul.mubr.f32.gmra.mrb[0].mxu0 %v304
      %v496 = vpop.f32.mrb[0].mxu0
      %v497 = vadd.f32 0.0, %v496
      %v498 = vpop.f32.mrb[0].mxu0
      %499 = vdwg.mxu0
      %500 = vmatprep.subr.mxu0 0.0
      %501 = vmatpush1.msra.mxu0 %v414
      %502 = vmatprep.subr.mxu0 0.0
      %503 = vmatpush1.msra.mxu0 %v415
      %504 = vmatprep.subr.mxu0 0.0
      %505 = vmatpush1.msra.mxu0 %v416
      %506 = vmatprep.subr.mxu0 0.0
      %507 = vmatpush1.msra.mxu0 %v417
      %508 = vmatprep.subr.mxu0 0.0
      %509 = vmatpush1.msra.mxu0 %v418
      %510 = vmatprep.subr.mxu0 0.0
      %511 = vmatpush1.msra.mxu0 %v419
      %512 = vmatprep.subr.mxu0 0.0
      %513 = vmatpush1.msra.mxu0 %v420
      %514 = vmatprep.subr.mxu0 0.0
      %515 = vmatpush1.msra.mxu0 %v421
      %516 = vmatprep.subr.mxu0 0.0
      %517 = vmatpush1.msra.mxu0 %v422
      %518 = vmatprep.subr.mxu0 0.0
      %519 = vmatpush1.msra.mxu0 %v423
      %520 = vmatprep.subr.mxu0 0.0
      %521 = vmatpush1.msra.mxu0 %v424
      %522 = vmatprep.subr.mxu0 0.0
      %523 = vmatpush1.msra.mxu0 %v425
      %524 = vmatprep.subr.mxu0 0.0
      %525 = vmatpush1.msra.mxu0 %v426
      %526 = vmatprep.subr.mxu0 0.0
      %527 = vmatpush1.msra.mxu0 %v427
      %528 = vmatprep.subr.mxu0 0.0
      %529 = vmatpush1.msra.mxu0 %v428
      %530 = vmatprep.subr.mxu0 0.0
      %531 = vmatpush1.msra.mxu0 %v429
      %532 = vmatprep.subr.mxu0 0.0
      %533 = vmatpush1.msra.mxu0 0.0
      %534 = vmatprep.subr.mxu0 0.0
      %535 = vmatpush1.msra.mxu0 0.0
      %536 = vmatprep.subr.mxu0 0.0
      %537 = vmatpush1.msra.mxu0 0.0
      %538 = vmatprep.subr.mxu0 0.0
      %539 = vmatpush1.msra.mxu0 0.0
      %540 = vmatprep.subr.mxu0 0.0
      %541 = vmatpush1.msra.mxu0 0.0
      %542 = vmatprep.subr.mxu0 0.0
      %543 = vmatpush1.msra.mxu0 0.0
      %544 = vmatprep.subr.mxu0 0.0
      %545 = vmatpush1.msra.mxu0 0.0
      %546 = vmatprep.subr.mxu0 0.0
      %547 = vmatpush1.msra.mxu0 0.0
      %548 = vmatprep.subr.mxu0 0.0
      %549 = vmatpush1.msra.mxu0 0.0
      %550 = vmatprep.subr.mxu0 0.0
      %551 = vmatpush1.msra.mxu0 0.0
      %552 = vmatprep.subr.mxu0 0.0
      %553 = vmatpush1.msra.mxu0 0.0
      %554 = vmatprep.subr.mxu0 0.0
      %555 = vmatpush1.msra.mxu0 0.0
      %556 = vmatprep.subr.mxu0 0.0
      %557 = vmatpush1.msra.mxu0 0.0
      %558 = vmatprep.subr.mxu0 0.0
      %559 = vmatpush1.msra.mxu0 0.0
      %560 = vmatprep.subr.mxu0 0.0
      %561 = vmatpush1.msra.mxu0 0.0
      %562 = vmatprep.subr.mxu0 0.0
      %563 = vmatpush1.msra.mxu0 0.0
      %564 = vmatprep.mubr.f32.mxu0 0.0
      %565 = vmatmul.mubr.f32.gmra.mrb[0].mxu0 %v379
      %v566 = vpop.f32.mrb[0].mxu0
      %v567 = vadd.f32 %v497, %v566
      %v568 = vpop.f32.mrb[0].mxu0
      %569 = vdwg.mxu0
      %v570 = vld [vmem:[%s3] sm:$0x1]
      %v571 = vlaneseq
      %v572 = vshrl.u32 %v571, 7
      %v573 = vsub.s32 0, %v572
      %v574 = vrot.slane %v570, %v573
      %v575 = vmul.f32 %v567, %v574
      %v576 = vld [vmem:[%s3 + $0x1] sm:$0x1]
      %v577 = vlaneseq
      %v578 = vshrl.u32 %v577, 7
      %v579 = vsub.s32 0, %v578
      %v580 = vrot.slane %v576, %v579
      %v581 = vadd.f32 %v575, %v580
      %v582 = vmax.f32 %v581, 0.0
      %583 = vst [vmem:[%s226] sm:$0xff] %v582
      %v585 = vrot.slane %v582, 1
      %v587 = vmax.f32 %v582, %v585
      %v589 = vrot.slane %v587, 1
      %v591 = vrot.slane %v587, 2
      %v593 = vrot.slane %v587, 3
      %vm595 = vcmask 1040384
      %v596 = vsel %vm595, %v587, %v589
      %vm597 = vcmask 1041408
      %v598 = vsel %vm597, %v596, %v591
      %vm599 = vcmask 1042432
      %v600 = vsel %vm599, %v598, %v593
      %602 = vrot.lane.b32.xlu0 %v600, 112
      %v603 = vpop.permute.xlu0 %602
      %v605 = vmax.f32 %v600, %v603
      %607 = vrot.lane.b32.xlu0 %v605, 112
      %v608 = vpop.permute.xlu0 %607
      %610 = vrot.lane.b32.xlu0 %v605, 96
      %v611 = vpop.permute.xlu0 %610
      %613 = vrot.lane.b32.xlu0 %v605, 80
      %v614 = vpop.permute.xlu0 %613
      %vm616 = vcmask 130048
      %v617 = vsel %vm616, %v605, %v608
      %vm618 = vcmask 261120
      %v619 = vsel %vm618, %v617, %v611
      %vm620 = vcmask 392192
      %v621 = vsel %vm620, %v619, %v614
      %vm622 = vcmask 519168
      %623 = vst.msk [vmem:[%s230] sm:$0xf] %vm622, %v621
      %p624 = scmp.lt.s32.totalorder %s17, 1
      %s625 = scalar_select %p624, %s17, 1
      %s626 = smul.addr %s625, 8
      %s627 = scalar_lea.vmem %s4, %s626
      %p628 = scmp.lt.s32.totalorder %s17, 1
      %s629 = scalar_select %p628, %s17, 1
      %s630 = smul.addr %s629, 4
      %s631 = scalar_lea.vmem %s5, %s630
      // Predicated region
      $region37: #{rsu6_forward.14} parent=35 // pred_check
        %p632 = pneg %p124
      $region38: #{rsu6_forward.14} parent=35 // pred_check_branch
        %634 = sbr.rel (%p632) target = $region40
      $region39: #{rsu6_forward.14} parent=35 // pred_region
        _
      $region40: #{rsu6_forward.14} parent=35 // pred_fallthru
        _
      // Predicated region
      $region41: #{rsu6_forward.14} parent=35 // pred_check
        %p635 = pneg %p150
      $region42: #{rsu6_forward.14} parent=35 // pred_check_branch
        %637 = sbr.rel (%p635) target = $region44
      $region43: #{rsu6_forward.14} parent=35 // pred_region
        _
      $region44: #{rsu6_forward.14} parent=35 // pred_fallthru
        _
    $region36: #{rsu6_forward.14} parent=5 // pred_fallthru
      _
    %p638 = scmp.le.s32.totalorder 2, %s12
    // Predicated region
    $region45: #{rsu6_forward.14} parent=5 // pred_check
      %p639 = pneg %p638
    $region46: #{rsu6_forward.14} parent=5 // pred_check_branch
      %641 = sbr.rel (%p639) target = $region48
    $region47: #{rsu6_forward.14} parent=5 // pred_region
      %s642 = ssub.s32 %s12, 2
      // Predicated region
      $region49: #{rsu6_forward.14} parent=47 // pred_check
        %p643 = pneg %p130
      $region50: #{rsu6_forward.14} parent=47 // pred_check_branch
        %645 = sbr.rel (%p643) target = $region52
      $region51: #{rsu6_forward.14} parent=47 // pred_region
        %p646 = scmp.lt.s32.totalorder %s18, 1
        %s647 = scalar_select %p646, %s18, 1
        %s648 = smul.addr %s647, 8
        %s649 = scalar_lea.vmem %s4, %s648
      $region52: #{rsu6_forward.14} parent=47 // pred_fallthru
        _
      // Predicated region
      $region53: #{rsu6_forward.14} parent=47 // pred_check
        %p650 = pneg %p156
      $region54: #{rsu6_forward.14} parent=47 // pred_check_branch
        %652 = sbr.rel (%p650) target = $region56
      $region55: #{rsu6_forward.14} parent=47 // pred_region
        %p653 = scmp.lt.s32.totalorder %s18, 1
        %s654 = scalar_select %p653, %s18, 1
        %s655 = smul.addr %s654, 4
        %s656 = scalar_lea.vmem %s5, %s655
      $region56: #{rsu6_forward.14} parent=47 // pred_fallthru
        _
    $region48: #{rsu6_forward.14} parent=5 // pred_fallthru
      _
  $region6: #{rsu6_forward.14} parent=0 // loop_footer
    %s16 = sadd.s32 1, %s12
  $region7: #{rsu6_forward.14} parent=0 // loop_footer_branch
    %11 = sbr.rel target = $region3
  $region8: #{rsu6_forward.14} parent=0 // loop_exit
    _

// kernel: rsu6_forward.13
$region0: #{rsu6_forward.13}
  #allocation0 [shape = 'u32[]', space=smem, size = 0x4, offset = 0x4, fixed_abs, tag = 'smem constant byte address 0x4 - core index']
  #allocation1 [shape = 'u32[144,128]{1,0:T(1,128)}', space=vmem, size = 0x12000, scoped, tag = 'internal scratch']
  %s0 = inlined_call_operand.vmem [shape: f32[2,16,128], index: 0, kind: input, shape index: {}]
  %s1 = inlined_call_operand.vmem [shape: f32[3,16,16], index: 1, kind: input, shape index: {}]
  %s2 = inlined_call_operand.vmem [shape: f32[384,256], index: 2, kind: input, shape index: {}]
  %s3 = inlined_call_operand.vmem [shape: f32[2,256], index: 3, kind: input, shape index: {}]
  %s4 = inlined_call_operand.vmem [shape: f32[2,16,256], index: 4, kind: output, shape index: {0}]
  %s5 = inlined_call_operand.vmem [shape: f32[2,8,128], index: 5, kind: output, shape index: {1}]
  %6 = xla_tuple %s4, %s5
  %s7 = sld [smem:[#allocation0]]
  $region57: #{rsu6_forward.13} parent=0
    _
  %s9 = ssub.s32 1, %s7
  %s10 = scalar_select 0, %s9, %s7
  loop: start=0, step=1, limit=4
  $region2: #{rsu6_forward.13} parent=0 // loop_pre_header
    _
  $region3: #{rsu6_forward.13} parent=0 // loop_header
    %s12 = sphi 0, %s16
    %p13 = scmp.ge.s32.totalorder %s12, 4
    %s22 = sphi 0, %s24
    %s25 = sphi 0, %s22
    %s26 = sphi 0, %s25
    %s42 = sphi 0, %s26
    %s46 = sphi 0, %s46
    %s48 = sphi 0, %s46
    %s49 = sphi 0, %s48
    %s63 = sphi 0, %s49
    %s67 = sphi 0, %s67
    %s69 = sphi 0, %s67
    %s70 = sphi 0, %s69
    %s84 = sphi 0, %s70
    %s88 = sphi 0, %s88
    %s90 = sphi 0, %s88
    %s91 = sphi 0, %s90
    %s105 = sphi 0, %s91
    %s111 = sphi 0, %s113
    %s114 = sphi 0, %s111
    %s115 = sphi 0, %s114
    %s131 = sphi 0, %s115
    %s137 = sphi 0, %s139
    %s140 = sphi 0, %s137
    %s141 = sphi 0, %s140
    %s157 = sphi 0, %s141
  $region4: #{rsu6_forward.13} parent=0 // loop_header_branch
    %15 = sbr.rel (%p13) target = $region8
  $region5: #{rsu6_forward.13} parent=0 // loop_body
    %s17 = ssub.s32 %s12, 1
    %s18 = ssub.s32 %s12, 2
    %s19 = sadd.s32 %s12, 1
    %s20 = ssub.s32 %s12, %s19
    %p21 = scmp.eq.s32.totalorder %s20, 0
    %s23 = sadd.s32 %s22, 1
    %s24 = scalar_select %p21, %s22, %s23
    %p27 = pneg %p21
    %p28 = scmp.eq.s32.totalorder %s12, 1
    %p29 = por %p27, %p28
    %p30 = scmp.ne.s32.totalorder %s22, %s25
    %p31 = scmp.eq.s32.totalorder %s12, 0
    %p32 = por %p30, %p31
    %p33 = scmp.ne.s32.totalorder %s22, %s25
    %p34 = scmp.eq.s32.totalorder %s17, 1
    %p35 = por %p33, %p34
    %p36 = scmp.ne.s32.totalorder %s25, %s26
    %p37 = scmp.eq.s32.totalorder %s17, 0
    %p38 = por %p36, %p37
    %p39 = scmp.ne.s32.totalorder %s25, %s26
    %p40 = scmp.eq.s32.totalorder %s18, 1
    %p41 = por %p39, %p40
    %p43 = scmp.ne.s32.totalorder %s26, %s42
    %p44 = scmp.eq.s32.totalorder %s18, 0
    %p45 = por %p43, %p44
    %s47 = sadd.s32 %s46, 1
    %p50 = scmp.eq.s32.totalorder %s12, 1
    %p51 = scmp.ne.s32.totalorder %s46, %s48
    %p52 = scmp.eq.s32.totalorder %s12, 0
    %p53 = por %p51, %p52
    %p54 = scmp.ne.s32.totalorder %s46, %s48
    %p55 = scmp.eq.s32.totalorder %s17, 1
    %p56 = por %p54, %p55
    %p57 = scmp.ne.s32.totalorder %s48, %s49
    %p58 = scmp.eq.s32.totalorder %s17, 0
    %p59 = por %p57, %p58
    %p60 = scmp.ne.s32.totalorder %s48, %s49
    %p61 = scmp.eq.s32.totalorder %s18, 1
    %p62 = por %p60, %p61
    %p64 = scmp.ne.s32.totalorder %s49, %s63
    %p65 = scmp.eq.s32.totalorder %s18, 0
    %p66 = por %p64, %p65
    %s68 = sadd.s32 %s67, 1
    %p71 = scmp.eq.s32.totalorder %s12, 1
    %p72 = scmp.ne.s32.totalorder %s67, %s69
    %p73 = scmp.eq.s32.totalorder %s12, 0
    %p74 = por %p72, %p73
    %p75 = scmp.ne.s32.totalorder %s67, %s69
    %p76 = scmp.eq.s32.totalorder %s17, 1
    %p77 = por %p75, %p76
    %p78 = scmp.ne.s32.totalorder %s69, %s70
    %p79 = scmp.eq.s32.totalorder %s17, 0
    %p80 = por %p78, %p79
    %p81 = scmp.ne.s32.totalorder %s69, %s70
    %p82 = scmp.eq.s32.totalorder %s18, 1
    %p83 = por %p81, %p82
    %p85 = scmp.ne.s32.totalorder %s70, %s84
    %p86 = scmp.eq.s32.totalorder %s18, 0
    %p87 = por %p85, %p86
    %s89 = sadd.s32 %s88, 1
    %p92 = scmp.eq.s32.totalorder %s12, 1
    %p93 = scmp.ne.s32.totalorder %s88, %s90
    %p94 = scmp.eq.s32.totalorder %s12, 0
    %p95 = por %p93, %p94
    %p96 = scmp.ne.s32.totalorder %s88, %s90
    %p97 = scmp.eq.s32.totalorder %s17, 1
    %p98 = por %p96, %p97
    %p99 = scmp.ne.s32.totalorder %s90, %s91
    %p100 = scmp.eq.s32.totalorder %s17, 0
    %p101 = por %p99, %p100
    %p102 = scmp.ne.s32.totalorder %s90, %s91
    %p103 = scmp.eq.s32.totalorder %s18, 1
    %p104 = por %p102, %p103
    %p106 = scmp.ne.s32.totalorder %s91, %s105
    %p107 = scmp.eq.s32.totalorder %s18, 0
    %p108 = por %p106, %p107
    %s109 = ssub.s32 %s12, %s19
    %p110 = scmp.eq.s32.totalorder %s109, 0
    %s112 = sadd.s32 %s111, 1
    %s113 = scalar_select %p110, %s111, %s112
    %p116 = pneg %p110
    %p117 = scmp.eq.s32.totalorder %s12, 1
    %p118 = por %p116, %p117
    %p119 = scmp.ne.s32.totalorder %s111, %s114
    %p120 = scmp.eq.s32.totalorder %s12, 0
    %p121 = por %p119, %p120
    %p122 = scmp.ne.s32.totalorder %s111, %s114
    %p123 = scmp.eq.s32.totalorder %s17, 1
    %p124 = por %p122, %p123
    %p125 = scmp.ne.s32.totalorder %s114, %s115
    %p126 = scmp.eq.s32.totalorder %s17, 0
    %p127 = por %p125, %p126
    %p128 = scmp.ne.s32.totalorder %s114, %s115
    %p129 = scmp.eq.s32.totalorder %s18, 1
    %p130 = por %p128, %p129
    %p132 = scmp.ne.s32.totalorder %s115, %s131
    %p133 = scmp.eq.s32.totalorder %s18, 0
    %p134 = por %p132, %p133
    %s135 = ssub.s32 %s12, %s19
    %p136 = scmp.eq.s32.totalorder %s135, 0
    %s138 = sadd.s32 %s137, 1
    %s139 = scalar_select %p136, %s137, %s138
    %p142 = pneg %p136
    %p143 = scmp.eq.s32.totalorder %s12, 1
    %p144 = por %p142, %p143
    %p145 = scmp.ne.s32.totalorder %s137, %s140
    %p146 = scmp.eq.s32.totalorder %s12, 0
    %p147 = por %p145, %p146
    %p148 = scmp.ne.s32.totalorder %s137, %s140
    %p149 = scmp.eq.s32.totalorder %s17, 1
    %p150 = por %p148, %p149
    %p151 = scmp.ne.s32.totalorder %s140, %s141
    %p152 = scmp.eq.s32.totalorder %s17, 0
    %p153 = por %p151, %p152
    %p154 = scmp.ne.s32.totalorder %s140, %s141
    %p155 = scmp.eq.s32.totalorder %s18, 1
    %p156 = por %p154, %p155
    %p158 = scmp.ne.s32.totalorder %s141, %s157
    %p159 = scmp.eq.s32.totalorder %s18, 0
    %p160 = por %p158, %p159
    %p161 = scmp.le.s32.totalorder 1, %s12
    %p162 = scmp.lt.s32.totalorder %s12, 3
    %p163 = pnand %p161, %p162
    %p164 = pneg %p163
    // Predicated region
    $region9: #{rsu6_forward.13} parent=5 // pred_check
      _
    $region10: #{rsu6_forward.13} parent=5 // pred_check_branch
      %166 = sbr.rel (%p163) target = $region12
    $region11: #{rsu6_forward.13} parent=5 // pred_region
      %s167 = ssub.s32 %s12, 1
      // Predicated region
      $region13: #{rsu6_forward.13} parent=11 // pred_check
        %p168 = pneg %p59
      $region14: #{rsu6_forward.13} parent=11 // pred_check_branch
        %170 = sbr.rel (%p168) target = $region16
      $region15: #{rsu6_forward.13} parent=11 // pred_region
        _
      $region16: #{rsu6_forward.13} parent=11 // pred_fallthru
        _
      // Predicated region
      $region17: #{rsu6_forward.13} parent=11 // pred_check
        %p171 = pneg %p80
      $region18: #{rsu6_forward.13} parent=11 // pred_check_branch
        %173 = sbr.rel (%p171) target = $region20
      $region19: #{rsu6_forward.13} parent=11 // pred_region
        _
      $region20: #{rsu6_forward.13} parent=11 // pred_fallthru
        _
      // Predicated region
      $region21: #{rsu6_forward.13} parent=11 // pred_check
        %p174 = pneg %p101
      $region22: #{rsu6_forward.13} parent=11 // pred_check_branch
        %176 = sbr.rel (%p174) target = $region24
      $region23: #{rsu6_forward.13} parent=11 // pred_region
        _
      $region24: #{rsu6_forward.13} parent=11 // pred_fallthru
        _
    $region12: #{rsu6_forward.13} parent=5 // pred_fallthru
      _
    %p177 = scmp.lt.s32.totalorder %s12, 2
    // Predicated region
    $region25: #{rsu6_forward.13} parent=5 // pred_check
      %p178 = pneg %p177
    $region26: #{rsu6_forward.13} parent=5 // pred_check_branch
      %180 = sbr.rel (%p178) target = $region28
    $region27: #{rsu6_forward.13} parent=5 // pred_region
      // Predicated region
      $region29: #{rsu6_forward.13} parent=27 // pred_check
        %p181 = pneg %p32
      $region30: #{rsu6_forward.13} parent=27 // pred_check_branch
        %183 = sbr.rel (%p181) target = $region32
      $region31: #{rsu6_forward.13} parent=27 // pred_region
        %p184 = scmp.lt.s32.totalorder %s12, 1
        %s185 = scalar_select %p184, %s12, 1
        %s186 = smul.addr %s185, 2
        %s187 = smul.addr %s186, 8
        %s188 = scalar_lea.vmem %s0, %s187
      $region32: #{rsu6_forward.13} parent=27 // pred_fallthru
        _
    $region28: #{rsu6_forward.13} parent=5 // pred_fallthru
      _
    %p189 = scmp.le.s32.totalorder 1, %s12
    %p190 = scmp.lt.s32.totalorder %s12, 3
    %p191 = pnand %p189, %p190
    %p192 = pneg %p191
    // Predicated region
    $region33: #{rsu6_forward.13} parent=5 // pred_check
      _
    $region34: #{rsu6_forward.13} parent=5 // pred_check_branch
      %194 = sbr.rel (%p191) target = $region36
    $region35: #{rsu6_forward.13} parent=5 // pred_region
      %s195 = ssub.s32 %s12, 1
      %p196 = scmp.lt.s32.totalorder %s17, 1
      %s197 = scalar_select %p196, %s17, 1
      %s198 = smul.addr %s197, 2
      %s199 = smul.addr %s198, 8
      %s200 = scalar_lea.vmem %s0, %s199
      %p201 = pneg %p38
      %p202 = pneg %p35
      %p203 = pneg %p59
      %p204 = pneg %p56
      %p205 = pneg %p80
      %p206 = pneg %p77
      %p207 = pneg %p101
      %p208 = pneg %p98
      %p209 = pneg %p127
      %p210 = pneg %p124
      %p211 = scmp.lt.s32.totalorder %s17, 1
      %s212 = scalar_select %p211, %s17, 1
      %s213 = smul.addr %s212, 4
      %s214 = smul.addr %s213, 8
      %s215 = scalar_lea.vmem %s4, %s214
      %p216 = pneg %p153
      %p217 = pneg %p150
      %p218 = scmp.lt.s32.totalorder %s17, 1
      %s219 = scalar_select %p218, %s17, 1
      %s220 = smul.addr %s219, 8
      %s221 = scalar_lea.vmem %s5, %s220
      %p222 = scmp.lt.s32.totalorder %s17, 1
      %s223 = scalar_select %p222, %s17, 1
      %s224 = smul.addr %s223, 2
      %s225 = smul.addr %s224, 8
      %s226 = scalar_lea.vmem %s0, %s225
      %p227 = scmp.lt.s32.totalorder %s17, 1
      %s228 = scalar_select %p227, %s17, 1
      %s229 = smul.addr %s228, 4
      %s230 = smul.addr %s229, 8
      %s231 = scalar_lea.vmem %s4, %s230
      %p232 = scmp.lt.s32.totalorder %s17, 1
      %s233 = scalar_select %p232, %s17, 1
      %s234 = smul.addr %s233, 8
      %s235 = scalar_lea.vmem %s5, %s234
      %v236 = vld [vmem:[%s226] sm:$0xff]
      %v237 = vld [vmem:[%s226 + $0x8] sm:$0xff]
      %v238 = vld [vmem:[%s1] sm:$0xff]
      %v239 = vld [vmem:[%s1 + $0x8] sm:$0xff]
      %vm240 = vcmask 130048
      %v242 = vsel %vm240, %v238, 0
      %v245 = vsel %vm240, %v239, 0
      %247 = vmatprep.subr.mxu0 0.0
      %248 = vmatpush1.msra.mxu0 %v236
      %249 = vmatprep.subr.mxu0 0.0
      %250 = vmatpush1.msra.mxu0 %v237
      %251 = vmatprep.subr.mxu0 0.0
      %252 = vmatpush1.msra.mxu0 0.0
      %253 = vmatprep.subr.mxu0 0.0
      %254 = vmatpush1.msra.mxu0 0.0
      %255 = vmatprep.subr.mxu0 0.0
      %256 = vmatpush1.msra.mxu0 0.0
      %257 = vmatprep.subr.mxu0 0.0
      %258 = vmatpush1.msra.mxu0 0.0
      %259 = vmatprep.subr.mxu0 0.0
      %260 = vmatpush1.msra.mxu0 0.0
      %261 = vmatprep.subr.mxu0 0.0
      %262 = vmatpush1.msra.mxu0 0.0
      %263 = vmatprep.subr.mxu0 0.0
      %264 = vmatpush1.msra.mxu0 0.0
      %265 = vmatprep.subr.mxu0 0.0
      %266 = vmatpush1.msra.mxu0 0.0
      %267 = vmatprep.subr.mxu0 0.0
      %268 = vmatpush1.msra.mxu0 0.0
      %269 = vmatprep.subr.mxu0 0.0
      %270 = vmatpush1.msra.mxu0 0.0
      %271 = vmatprep.subr.mxu0 0.0
      %272 = vmatpush1.msra.mxu0 0.0
      %273 = vmatprep.subr.mxu0 0.0
      %274 = vmatpush1.msra.mxu0 0.0
      %275 = vmatprep.subr.mxu0 0.0
      %276 = vmatpush1.msra.mxu0 0.0
      %277 = vmatprep.subr.mxu0 0.0
      %278 = vmatpush1.msra.mxu0 0.0
      %279 = vmatprep.subr.mxu0 0.0
      %280 = vmatpush1.msra.mxu0 0.0
      %281 = vmatprep.subr.mxu0 0.0
      %282 = vmatpush1.msra.mxu0 0.0
      %283 = vmatprep.subr.mxu0 0.0
      %284 = vmatpush1.msra.mxu0 0.0
      %285 = vmatprep.subr.mxu0 0.0
      %286 = vmatpush1.msra.mxu0 0.0
      %287 = vmatprep.subr.mxu0 0.0
      %288 = vmatpush1.msra.mxu0 0.0
      %289 = vmatprep.subr.mxu0 0.0
      %290 = vmatpush1.msra.mxu0 0.0
      %291 = vmatprep.subr.mxu0 0.0
      %292 = vmatpush1.msra.mxu0 0.0
      %293 = vmatprep.subr.mxu0 0.0
      %294 = vmatpush1.msra.mxu0 0.0
      %295 = vmatprep.subr.mxu0 0.0
      %296 = vmatpush1.msra.mxu0 0.0
      %297 = vmatprep.subr.mxu0 0.0
      %298 = vmatpush1.msra.mxu0 0.0
      %299 = vmatprep.subr.mxu0 0.0
      %300 = vmatpush1.msra.mxu0 0.0
      %301 = vmatprep.subr.mxu0 0.0
      %302 = vmatpush1.msra.mxu0 0.0
      %303 = vmatprep.subr.mxu0 0.0
      %304 = vmatpush1.msra.mxu0 0.0
      %305 = vmatprep.subr.mxu0 0.0
      %306 = vmatpush1.msra.mxu0 0.0
      %307 = vmatprep.subr.mxu0 0.0
      %308 = vmatpush1.msra.mxu0 0.0
      %309 = vmatprep.subr.mxu0 0.0
      %310 = vmatpush1.msra.mxu0 0.0
      %311 = vmatprep.mubr.f32.mxu0 0.0
      %312 = vmatmul.mubr.f32.gmra.mrb[0].mxu0 %v242
      %v313 = vpop.f32.mrb[0].mxu0
      %v314 = vadd.f32 0.0, %v313
      %v315 = vpop.f32.mrb[0].mxu0
      %316 = vmatprep.mubr.f32.mxu0 0.0
      %317 = vmatmul.mubr.f32.gmra.mrb[0].mxu0 %v245
      %v318 = vpop.f32.mrb[0].mxu0
      %v319 = vadd.f32 0.0, %v318
      %v320 = vpop.f32.mrb[0].mxu0
      %321 = vdwg.mxu0
      %s322 = scalar_lea.vmem %s1, 32
      %v323 = vld [vmem:[%s322] sm:$0xff]
      %v324 = vld [vmem:[%s322 + $0x8] sm:$0xff]
      %v326 = vsel %vm240, %v323, 0
      %v329 = vsel %vm240, %v324, 0
      %331 = vmatprep.subr.mxu0 0.0
      %332 = vmatpush1.msra.mxu0 %v236
      %333 = vmatprep.subr.mxu0 0.0
      %334 = vmatpush1.msra.mxu0 %v237
      %335 = vmatprep.subr.mxu0 0.0
      %336 = vmatpush1.msra.mxu0 0.0
      %337 = vmatprep.subr.mxu0 0.0
      %338 = vmatpush1.msra.mxu0 0.0
      %339 = vmatprep.subr.mxu0 0.0
      %340 = vmatpush1.msra.mxu0 0.0
      %341 = vmatprep.subr.mxu0 0.0
      %342 = vmatpush1.msra.mxu0 0.0
      %343 = vmatprep.subr.mxu0 0.0
      %344 = vmatpush1.msra.mxu0 0.0
      %345 = vmatprep.subr.mxu0 0.0
      %346 = vmatpush1.msra.mxu0 0.0
      %347 = vmatprep.subr.mxu0 0.0
      %348 = vmatpush1.msra.mxu0 0.0
      %349 = vmatprep.subr.mxu0 0.0
      %350 = vmatpush1.msra.mxu0 0.0
      %351 = vmatprep.subr.mxu0 0.0
      %352 = vmatpush1.msra.mxu0 0.0
      %353 = vmatprep.subr.mxu0 0.0
      %354 = vmatpush1.msra.mxu0 0.0
      %355 = vmatprep.subr.mxu0 0.0
      %356 = vmatpush1.msra.mxu0 0.0
      %357 = vmatprep.subr.mxu0 0.0
      %358 = vmatpush1.msra.mxu0 0.0
      %359 = vmatprep.subr.mxu0 0.0
      %360 = vmatpush1.msra.mxu0 0.0
      %361 = vmatprep.subr.mxu0 0.0
      %362 = vmatpush1.msra.mxu0 0.0
      %363 = vmatprep.subr.mxu0 0.0
      %364 = vmatpush1.msra.mxu0 0.0
      %365 = vmatprep.subr.mxu0 0.0
      %366 = vmatpush1.msra.mxu0 0.0
      %367 = vmatprep.subr.mxu0 0.0
      %368 = vmatpush1.msra.mxu0 0.0
      %369 = vmatprep.subr.mxu0 0.0
      %370 = vmatpush1.msra.mxu0 0.0
      %371 = vmatprep.subr.mxu0 0.0
      %372 = vmatpush1.msra.mxu0 0.0
      %373 = vmatprep.subr.mxu0 0.0
      %374 = vmatpush1.msra.mxu0 0.0
      %375 = vmatprep.subr.mxu0 0.0
      %376 = vmatpush1.msra.mxu0 0.0
      %377 = vmatprep.subr.mxu0 0.0
      %378 = vmatpush1.msra.mxu0 0.0
      %379 = vmatprep.subr.mxu0 0.0
      %380 = vmatpush1.msra.mxu0 0.0
      %381 = vmatprep.subr.mxu0 0.0
      %382 = vmatpush1.msra.mxu0 0.0
      %383 = vmatprep.subr.mxu0 0.0
      %384 = vmatpush1.msra.mxu0 0.0
      %385 = vmatprep.subr.mxu0 0.0
      %386 = vmatpush1.msra.mxu0 0.0
      %387 = vmatprep.subr.mxu0 0.0
      %388 = vmatpush1.msra.mxu0 0.0
      %389 = vmatprep.subr.mxu0 0.0
      %390 = vmatpush1.msra.mxu0 0.0
      %391 = vmatprep.subr.mxu0 0.0
      %392 = vmatpush1.msra.mxu0 0.0
      %393 = vmatprep.subr.mxu0 0.0
      %394 = vmatpush1.msra.mxu0 0.0
      %395 = vmatprep.mubr.f32.mxu0 0.0
      %396 = vmatmul.mubr.f32.gmra.mrb[0].mxu0 %v326
      %v397 = vpop.f32.mrb[0].mxu0
      %v398 = vadd.f32 0.0, %v397
      %v399 = vpop.f32.mrb[0].mxu0
      %400 = vmatprep.mubr.f32.mxu0 0.0
      %401 = vmatmul.mubr.f32.gmra.mrb[0].mxu0 %v329
      %v402 = vpop.f32.mrb[0].mxu0
      %v403 = vadd.f32 0.0, %v402
      %v404 = vpop.f32.mrb[0].mxu0
      %405 = vdwg.mxu0
      %v406 = vld [vmem:[%s2] sm:$0xff]
      %v407 = vld [vmem:[%s2 + $0x8] sm:$0xff]
      %v408 = vld [vmem:[%s2 + $0x10] sm:$0xff]
      %v409 = vld [vmem:[%s2 + $0x18] sm:$0xff]
      %v410 = vld [vmem:[%s2 + $0x20] sm:$0xff]
      %v411 = vld [vmem:[%s2 + $0x28] sm:$0xff]
      %v412 = vld [vmem:[%s2 + $0x30] sm:$0xff]
      %v413 = vld [vmem:[%s2 + $0x38] sm:$0xff]
      %v414 = vld [vmem:[%s2 + $0x40] sm:$0xff]
      %v415 = vld [vmem:[%s2 + $0x48] sm:$0xff]
      %v416 = vld [vmem:[%s2 + $0x50] sm:$0xff]
      %v417 = vld [vmem:[%s2 + $0x58] sm:$0xff]
      %v418 = vld [vmem:[%s2 + $0x60] sm:$0xff]
      %v419 = vld [vmem:[%s2 + $0x68] sm:$0xff]
      %v420 = vld [vmem:[%s2 + $0x70] sm:$0xff]
      %v421 = vld [vmem:[%s2 + $0x78] sm:$0xff]
      %v422 = vld [vmem:[%s2 + $0x80] sm:$0xff]
      %v423 = vld [vmem:[%s2 + $0x88] sm:$0xff]
      %v424 = vld [vmem:[%s2 + $0x90] sm:$0xff]
      %v425 = vld [vmem:[%s2 + $0x98] sm:$0xff]
      %v426 = vld [vmem:[%s2 + $0xa0] sm:$0xff]
      %v427 = vld [vmem:[%s2 + $0xa8] sm:$0xff]
      %v428 = vld [vmem:[%s2 + $0xb0] sm:$0xff]
      %v429 = vld [vmem:[%s2 + $0xb8] sm:$0xff]
      %v430 = vld [vmem:[%s2 + $0xc0] sm:$0xff]
      %v431 = vld [vmem:[%s2 + $0xc8] sm:$0xff]
      %v432 = vld [vmem:[%s2 + $0xd0] sm:$0xff]
      %v433 = vld [vmem:[%s2 + $0xd8] sm:$0xff]
      %v434 = vld [vmem:[%s2 + $0xe0] sm:$0xff]
      %v435 = vld [vmem:[%s2 + $0xe8] sm:$0xff]
      %v436 = vld [vmem:[%s2 + $0xf0] sm:$0xff]
      %v437 = vld [vmem:[%s2 + $0xf8] sm:$0xff]
      %v438 = vld [vmem:[%s2 + $0x100] sm:$0xff]
      %v439 = vld [vmem:[%s2 + $0x108] sm:$0xff]
      %v440 = vld [vmem:[%s2 + $0x110] sm:$0xff]
      %v441 = vld [vmem:[%s2 + $0x118] sm:$0xff]
      %v442 = vld [vmem:[%s2 + $0x120] sm:$0xff]
      %v443 = vld [vmem:[%s2 + $0x128] sm:$0xff]
      %v444 = vld [vmem:[%s2 + $0x130] sm:$0xff]
      %v445 = vld [vmem:[%s2 + $0x138] sm:$0xff]
      %v446 = vld [vmem:[%s2 + $0x140] sm:$0xff]
      %v447 = vld [vmem:[%s2 + $0x148] sm:$0xff]
      %v448 = vld [vmem:[%s2 + $0x150] sm:$0xff]
      %v449 = vld [vmem:[%s2 + $0x158] sm:$0xff]
      %v450 = vld [vmem:[%s2 + $0x160] sm:$0xff]
      %v451 = vld [vmem:[%s2 + $0x168] sm:$0xff]
      %v452 = vld [vmem:[%s2 + $0x170] sm:$0xff]
      %v453 = vld [vmem:[%s2 + $0x178] sm:$0xff]
      %v454 = vld [vmem:[%s2 + $0x180] sm:$0xff]
      %v455 = vld [vmem:[%s2 + $0x188] sm:$0xff]
      %v456 = vld [vmem:[%s2 + $0x190] sm:$0xff]
      %v457 = vld [vmem:[%s2 + $0x198] sm:$0xff]
      %v458 = vld [vmem:[%s2 + $0x1a0] sm:$0xff]
      %v459 = vld [vmem:[%s2 + $0x1a8] sm:$0xff]
      %v460 = vld [vmem:[%s2 + $0x1b0] sm:$0xff]
      %v461 = vld [vmem:[%s2 + $0x1b8] sm:$0xff]
      %v462 = vld [vmem:[%s2 + $0x1c0] sm:$0xff]
      %v463 = vld [vmem:[%s2 + $0x1c8] sm:$0xff]
      %v464 = vld [vmem:[%s2 + $0x1d0] sm:$0xff]
      %v465 = vld [vmem:[%s2 + $0x1d8] sm:$0xff]
      %v466 = vld [vmem:[%s2 + $0x1e0] sm:$0xff]
      %v467 = vld [vmem:[%s2 + $0x1e8] sm:$0xff]
      %v468 = vld [vmem:[%s2 + $0x1f0] sm:$0xff]
      %v469 = vld [vmem:[%s2 + $0x1f8] sm:$0xff]
      %v470 = vld [vmem:[%s2 + $0x200] sm:$0xff]
      %v471 = vld [vmem:[%s2 + $0x208] sm:$0xff]
      %v472 = vld [vmem:[%s2 + $0x210] sm:$0xff]
      %v473 = vld [vmem:[%s2 + $0x218] sm:$0xff]
      %v474 = vld [vmem:[%s2 + $0x220] sm:$0xff]
      %v475 = vld [vmem:[%s2 + $0x228] sm:$0xff]
      %v476 = vld [vmem:[%s2 + $0x230] sm:$0xff]
      %v477 = vld [vmem:[%s2 + $0x238] sm:$0xff]
      %v478 = vld [vmem:[%s2 + $0x240] sm:$0xff]
      %v479 = vld [vmem:[%s2 + $0x248] sm:$0xff]
      %v480 = vld [vmem:[%s2 + $0x250] sm:$0xff]
      %v481 = vld [vmem:[%s2 + $0x258] sm:$0xff]
      %v482 = vld [vmem:[%s2 + $0x260] sm:$0xff]
      %v483 = vld [vmem:[%s2 + $0x268] sm:$0xff]
      %v484 = vld [vmem:[%s2 + $0x270] sm:$0xff]
      %v485 = vld [vmem:[%s2 + $0x278] sm:$0xff]
      %v486 = vld [vmem:[%s2 + $0x280] sm:$0xff]
      %v487 = vld [vmem:[%s2 + $0x288] sm:$0xff]
      %v488 = vld [vmem:[%s2 + $0x290] sm:$0xff]
      %v489 = vld [vmem:[%s2 + $0x298] sm:$0xff]
      %v490 = vld [vmem:[%s2 + $0x2a0] sm:$0xff]
      %v491 = vld [vmem:[%s2 + $0x2a8] sm:$0xff]
      %v492 = vld [vmem:[%s2 + $0x2b0] sm:$0xff]
      %v493 = vld [vmem:[%s2 + $0x2b8] sm:$0xff]
      %v494 = vld [vmem:[%s2 + $0x2c0] sm:$0xff]
      %v495 = vld [vmem:[%s2 + $0x2c8] sm:$0xff]
      %v496 = vld [vmem:[%s2 + $0x2d0] sm:$0xff]
      %v497 = vld [vmem:[%s2 + $0x2d8] sm:$0xff]
      %v498 = vld [vmem:[%s2 + $0x2e0] sm:$0xff]
      %v499 = vld [vmem:[%s2 + $0x2e8] sm:$0xff]
      %v500 = vld [vmem:[%s2 + $0x2f0] sm:$0xff]
      %v501 = vld [vmem:[%s2 + $0x2f8] sm:$0xff]
      %502 = vmatprep.subr.mxu0 %v407
      %503 = vmatpush1.msra.mxu0 %v406
      %504 = vmatprep.subr.mxu0 %v409
      %505 = vmatpush1.msra.mxu0 %v408
      %506 = vmatprep.subr.mxu0 %v411
      %507 = vmatpush1.msra.mxu0 %v410
      %508 = vmatprep.subr.mxu0 %v413
      %509 = vmatpush1.msra.mxu0 %v412
      %510 = vmatprep.subr.mxu0 %v415
      %511 = vmatpush1.msra.mxu0 %v414
      %512 = vmatprep.subr.mxu0 %v417
      %513 = vmatpush1.msra.mxu0 %v416
      %514 = vmatprep.subr.mxu0 %v419
      %515 = vmatpush1.msra.mxu0 %v418
      %516 = vmatprep.subr.mxu0 %v421
      %517 = vmatpush1.msra.mxu0 %v420
      %518 = vmatprep.subr.mxu0 %v423
      %519 = vmatpush1.msra.mxu0 %v422
      %520 = vmatprep.subr.mxu0 %v425
      %521 = vmatpush1.msra.mxu0 %v424
      %522 = vmatprep.subr.mxu0 %v427
      %523 = vmatpush1.msra.mxu0 %v426
      %524 = vmatprep.subr.mxu0 %v429
      %525 = vmatpush1.msra.mxu0 %v428
      %526 = vmatprep.subr.mxu0 %v431
      %527 = vmatpush1.msra.mxu0 %v430
      %528 = vmatprep.subr.mxu0 %v433
      %529 = vmatpush1.msra.mxu0 %v432
      %530 = vmatprep.subr.mxu0 %v435
      %531 = vmatpush1.msra.mxu0 %v434
      %532 = vmatprep.subr.mxu0 %v437
      %533 = vmatpush1.msra.mxu0 %v436
      %534 = vmatprep.subr.mxu0 %v439
      %535 = vmatpush1.msra.mxu0 %v438
      %536 = vmatprep.subr.mxu0 %v441
      %537 = vmatpush1.msra.mxu0 %v440
      %538 = vmatprep.subr.mxu0 %v443
      %539 = vmatpush1.msra.mxu0 %v442
      %540 = vmatprep.subr.mxu0 %v445
      %541 = vmatpush1.msra.mxu0 %v444
      %542 = vmatprep.subr.mxu0 %v447
      %543 = vmatpush1.msra.mxu0 %v446
      %544 = vmatprep.subr.mxu0 %v449
      %545 = vmatpush1.msra.mxu0 %v448
      %546 = vmatprep.subr.mxu0 %v451
      %547 = vmatpush1.msra.mxu0 %v450
      %548 = vmatprep.subr.mxu0 %v453
      %549 = vmatpush1.msra.mxu0 %v452
      %550 = vmatprep.subr.mxu0 %v455
      %551 = vmatpush1.msra.mxu0 %v454
      %552 = vmatprep.subr.mxu0 %v457
      %553 = vmatpush1.msra.mxu0 %v456
      %554 = vmatprep.subr.mxu0 %v459
      %555 = vmatpush1.msra.mxu0 %v458
      %556 = vmatprep.subr.mxu0 %v461
      %557 = vmatpush1.msra.mxu0 %v460
      %558 = vmatprep.subr.mxu0 %v463
      %559 = vmatpush1.msra.mxu0 %v462
      %560 = vmatprep.subr.mxu0 %v465
      %561 = vmatpush1.msra.mxu0 %v464
      %562 = vmatprep.subr.mxu0 %v467
      %563 = vmatpush1.msra.mxu0 %v466
      %564 = vmatprep.subr.mxu0 %v469
      %565 = vmatpush1.msra.mxu0 %v468
      %566 = vmatprep.mubr.f32.mxu0 %v236
      %567 = vmatmul.mubr.f32.gmra.mrb[0].mxu0 %v314
      %v568 = vpop.f32.mrb[0].mxu0
      %v569 = vadd.f32 0.0, %v568
      %v570 = vpop.f32.mrb[0].mxu0
      %v571 = vadd.f32 0.0, %v570
      %572 = vmatprep.mubr.f32.mxu0 %v237
      %573 = vmatmul.mubr.f32.gmra.mrb[0].mxu0 %v319
      %v574 = vpop.f32.mrb[0].mxu0
      %v575 = vadd.f32 0.0, %v574
      %v576 = vpop.f32.mrb[0].mxu0
      %v577 = vadd.f32 0.0, %v576
      %578 = vdwg.mxu0
      %579 = vmatprep.subr.mxu0 %v471
      %580 = vmatpush1.msra.mxu0 %v470
      %581 = vmatprep.subr.mxu0 %v473
      %582 = vmatpush1.msra.mxu0 %v472
      %583 = vmatprep.subr.mxu0 %v475
      %584 = vmatpush1.msra.mxu0 %v474
      %585 = vmatprep.subr.mxu0 %v477
      %586 = vmatpush1.msra.mxu0 %v476
      %587 = vmatprep.subr.mxu0 %v479
      %588 = vmatpush1.msra.mxu0 %v478
      %589 = vmatprep.subr.mxu0 %v481
      %590 = vmatpush1.msra.mxu0 %v480
      %591 = vmatprep.subr.mxu0 %v483
      %592 = vmatpush1.msra.mxu0 %v482
      %593 = vmatprep.subr.mxu0 %v485
      %594 = vmatpush1.msra.mxu0 %v484
      %595 = vmatprep.subr.mxu0 %v487
      %596 = vmatpush1.msra.mxu0 %v486
      %597 = vmatprep.subr.mxu0 %v489
      %598 = vmatpush1.msra.mxu0 %v488
      %599 = vmatprep.subr.mxu0 %v491
      %600 = vmatpush1.msra.mxu0 %v490
      %601 = vmatprep.subr.mxu0 %v493
      %602 = vmatpush1.msra.mxu0 %v492
      %603 = vmatprep.subr.mxu0 %v495
      %604 = vmatpush1.msra.mxu0 %v494
      %605 = vmatprep.subr.mxu0 %v497
      %606 = vmatpush1.msra.mxu0 %v496
      %607 = vmatprep.subr.mxu0 %v499
      %608 = vmatpush1.msra.mxu0 %v498
      %609 = vmatprep.subr.mxu0 %v501
      %610 = vmatpush1.msra.mxu0 %v500
      %611 = vmatprep.subr.mxu0 0.0
      %612 = vmatpush1.msra.mxu0 0.0
      %613 = vmatprep.subr.mxu0 0.0
      %614 = vmatpush1.msra.mxu0 0.0
      %615 = vmatprep.subr.mxu0 0.0
      %616 = vmatpush1.msra.mxu0 0.0
      %617 = vmatprep.subr.mxu0 0.0
      %618 = vmatpush1.msra.mxu0 0.0
      %619 = vmatprep.subr.mxu0 0.0
      %620 = vmatpush1.msra.mxu0 0.0
      %621 = vmatprep.subr.mxu0 0.0
      %622 = vmatpush1.msra.mxu0 0.0
      %623 = vmatprep.subr.mxu0 0.0
      %624 = vmatpush1.msra.mxu0 0.0
      %625 = vmatprep.subr.mxu0 0.0
      %626 = vmatpush1.msra.mxu0 0.0
      %627 = vmatprep.subr.mxu0 0.0
      %628 = vmatpush1.msra.mxu0 0.0
      %629 = vmatprep.subr.mxu0 0.0
      %630 = vmatpush1.msra.mxu0 0.0
      %631 = vmatprep.subr.mxu0 0.0
      %632 = vmatpush1.msra.mxu0 0.0
      %633 = vmatprep.subr.mxu0 0.0
      %634 = vmatpush1.msra.mxu0 0.0
      %635 = vmatprep.subr.mxu0 0.0
      %636 = vmatpush1.msra.mxu0 0.0
      %637 = vmatprep.subr.mxu0 0.0
      %638 = vmatpush1.msra.mxu0 0.0
      %639 = vmatprep.subr.mxu0 0.0
      %640 = vmatpush1.msra.mxu0 0.0
      %641 = vmatprep.subr.mxu0 0.0
      %642 = vmatpush1.msra.mxu0 0.0
      %643 = vmatprep.mubr.f32.mxu0 0.0
      %644 = vmatmul.mubr.f32.gmra.mrb[0].mxu0 %v398
      %v645 = vpop.f32.mrb[0].mxu0
      %v646 = vadd.f32 %v569, %v645
      %v647 = vpop.f32.mrb[0].mxu0
      %v648 = vadd.f32 %v571, %v647
      %649 = vmatprep.mubr.f32.mxu0 0.0
      %650 = vmatmul.mubr.f32.gmra.mrb[0].mxu0 %v403
      %v651 = vpop.f32.mrb[0].mxu0
      %v652 = vadd.f32 %v575, %v651
      %v653 = vpop.f32.mrb[0].mxu0
      %v654 = vadd.f32 %v577, %v653
      %655 = vdwg.mxu0
      %v656 = vld [vmem:[%s3] ss:$2 sm:$0x3]
      %v658 = vlaneseq
      %v659 = vshrl.u32 %v658, 7
      %v660 = vsub.s32 0, %v659
      %v661 = vrot.slane %v656, %v660
      %v662 = vlaneseq
      %v663 = vshrl.u32 %v662, 7
      %v664 = vsub.s32 1, %v663
      %v665 = vrot.slane %v656, %v664
      %v668 = vmul.f32 %v646, %v661
      %v669 = vmul.f32 %v648, %v665
      %v670 = vmul.f32 %v652, %v661
      %v671 = vmul.f32 %v654, %v665
      %s672 = scalar_lea.vmem %s3, 1
      %v673 = vld [vmem:[%s672] ss:$2 sm:$0x3]
      %v675 = vlaneseq
      %v676 = vshrl.u32 %v675, 7
      %v677 = vsub.s32 0, %v676
      %v678 = vrot.slane %v673, %v677
      %v679 = vlaneseq
      %v680 = vshrl.u32 %v679, 7
      %v681 = vsub.s32 1, %v680
      %v682 = vrot.slane %v673, %v681
      %v685 = vadd.f32 %v668, %v678
      %v686 = vadd.f32 %v669, %v682
      %v687 = vadd.f32 %v670, %v678
      %v688 = vadd.f32 %v671, %v682
      %v689 = vmax.f32 %v685, 0.0
      %v690 = vmax.f32 %v686, 0.0
      %v691 = vmax.f32 %v687, 0.0
      %v692 = vmax.f32 %v688, 0.0
      %693 = vst [vmem:[%s231] sm:$0xff] %v689
      %694 = vst [vmem:[%s231 + $0x8] sm:$0xff] %v690
      %695 = vst [vmem:[%s231 + $0x10] sm:$0xff] %v691
      %696 = vst [vmem:[%s231 + $0x18] sm:$0xff] %v692
      %v699 = vrot.slane %v689, 1
      %v700 = vrot.slane %v690, 1
      %v703 = vmax.f32 %v689, %v699
      %v704 = vmax.f32 %v690, %v700
      %v707 = vrot.slane %v691, 1
      %v708 = vrot.slane %v692, 1
      %v711 = vmax.f32 %v691, %v707
      %v712 = vmax.f32 %v692, %v708
      %v715 = vrot.slane %v703, 1
      %v716 = vrot.slane %v704, 1
      %v719 = vrot.slane %v703, 2
      %v720 = vrot.slane %v704, 2
      %v723 = vrot.slane %v703, 3
      %v724 = vrot.slane %v704, 3
      %v729 = vrot.slane %v711, 4
      %v730 = vrot.slane %v712, 4
      %v733 = vrot.slane %v711, 5
      %v734 = vrot.slane %v712, 5
      %v737 = vrot.slane %v711, 6
      %v738 = vrot.slane %v712, 6
      %v741 = vrot.slane %v711, 7
      %v742 = vrot.slane %v712, 7
      %vm745 = vcmask 1040384
      %v746 = vsel %vm745, %v703, %v715
      %v747 = vsel %vm745, %v704, %v716
      %vm748 = vcmask 1041408
      %v749 = vsel %vm748, %v746, %v719
      %v750 = vsel %vm748, %v747, %v720
      %vm751 = vcmask 1042432
      %v752 = vsel %vm751, %v749, %v723
      %v753 = vsel %vm751, %v750, %v724
      %vm754 = vcmask 1043456
      %v755 = vsel %vm754, %v752, %v729
      %v756 = vsel %vm754, %v753, %v730
      %vm757 = vcmask 1044480
      %v758 = vsel %vm757, %v755, %v733
      %v759 = vsel %vm757, %v756, %v734
      %vm760 = vcmask 1045504
      %v761 = vsel %vm760, %v758, %v737
      %v762 = vsel %vm760, %v759, %v738
      %vm763 = vcmask 1046528
      %v764 = vsel %vm763, %v761, %v741
      %v765 = vsel %vm763, %v762, %v742
      %767 = vrot.lane.b32.xlu0 %v764, 112
      %v768 = vpop.permute.xlu0 %767
      %v770 = vmax.f32 %v764, %v768
      %772 = vrot.lane.b32.xlu0 %v765, 112
      %v773 = vpop.permute.xlu0 %772
      %v775 = vmax.f32 %v765, %v773
      %777 = vrot.lane.b32.xlu0 %v770, 112
      %v778 = vpop.permute.xlu0 %777
      %780 = vrot.lane.b32.xlu0 %v770, 96
      %v781 = vpop.permute.xlu0 %780
      %783 = vrot.lane.b32.xlu0 %v770, 80
      %v784 = vpop.permute.xlu0 %783
      %787 = vrot.lane.b32.xlu0 %v775, 64
      %v788 = vpop.permute.xlu0 %787
      %790 = vrot.lane.b32.xlu0 %v775, 48
      %v791 = vpop.permute.xlu0 %790
      %793 = vrot.lane.b32.xlu0 %v775, 32
      %v794 = vpop.permute.xlu0 %793
      %796 = vrot.lane.b32.xlu0 %v775, 16
      %v797 = vpop.permute.xlu0 %796
      %v799 = vsel %vm240, %v770, %v778
      %vm800 = vcmask 261120
      %v801 = vsel %vm800, %v799, %v781
      %vm802 = vcmask 392192
      %v803 = vsel %vm802, %v801, %v784
      %vm804 = vcmask 523264
      %v805 = vsel %vm804, %v803, %v788
      %vm806 = vcmask 654336
      %v807 = vsel %vm806, %v805, %v791
      %vm808 = vcmask 785408
      %v809 = vsel %vm808, %v807, %v794
      %vm810 = vcmask 916480
      %v811 = vsel %vm810, %v809, %v797
      %812 = vst [vmem:[%s235] sm:$0xff] %v811
      %p813 = scmp.lt.s32.totalorder %s17, 1
      %s814 = scalar_select %p813, %s17, 1
      %s815 = smul.addr %s814, 4
      %s816 = smul.addr %s815, 8
      %s817 = scalar_lea.vmem %s4, %s816
      %p818 = scmp.lt.s32.totalorder %s17, 1
      %s819 = scalar_select %p818, %s17, 1
      %s820 = smul.addr %s819, 8
      %s821 = scalar_lea.vmem %s5, %s820
      // Predicated region
      $region37: #{rsu6_forward.13} parent=35 // pred_check
        %p822 = pneg %p124
      $region38: #{rsu6_forward.13} parent=35 // pred_check_branch
        %824 = sbr.rel (%p822) target = $region40
      $region39: #{rsu6_forward.13} parent=35 // pred_region
        _
      $region40: #{rsu6_forward.13} parent=35 // pred_fallthru
        _
      // Predicated region
      $region41: #{rsu6_forward.13} parent=35 // pred_check
        %p825 = pneg %p150
      $region42: #{rsu6_forward.13} parent=35 // pred_check_branch
        %827 = sbr.rel (%p825) target = $region44
      $region43: #{rsu6_forward.13} parent=35 // pred_region
        _
      $region44: #{rsu6_forward.13} parent=35 // pred_fallthru
        _
    $region36: #{rsu6_forward.13} parent=5 // pred_fallthru
      _
    %p828 = scmp.le.s32.totalorder 2, %s12
    // Predicated region
    $region45: #{rsu6_forward.13} parent=5 // pred_check
      %p829 = pneg %p828
    $region46: #{rsu6_forward.13} parent=5 // pred_check_branch
      %831 = sbr.rel (%p829) target = $region48
    $region47: #{rsu6_forward.13} parent=5 // pred_region
      %s832 = ssub.s32 %s12, 2
      // Predicated region
      $region49: #{rsu6_forward.13} parent=47 // pred_check
        %p833 = pneg %p130
      $region50: #{rsu6_forward.13} parent=47 // pred_check_branch
        %835 = sbr.rel (%p833) target = $region52
      $region51: #{rsu6_forward.13} parent=47 // pred_region
        %p836 = scmp.lt.s32.totalorder %s18, 1
        %s837 = scalar_select %p836, %s18, 1
        %s838 = smul.addr %s837, 4
        %s839 = smul.addr %s838, 8
        %s840 = scalar_lea.vmem %s4, %s839
      $region52: #{rsu6_forward.13} parent=47 // pred_fallthru
        _
      // Predicated region
      $region53: #{rsu6_forward.13} parent=47 // pred_check
        %p841 = pneg %p156
      $region54: #{rsu6_forward.13} parent=47 // pred_check_branch
        %843 = sbr.rel (%p841) target = $region56
      $region55: #{rsu6_forward.13} parent=47 // pred_region
        %p844 = scmp.lt.s32.totalorder %s18, 1
        %s845 = scalar_select %p844, %s18, 1
        %s846 = smul.addr %s845, 8
        %s847 = scalar_lea.vmem %s5, %s846
      $region56: #{rsu6_forward.13} parent=47 // pred_fallthru
        _
    $region48: #{rsu6_forward.13} parent=5 // pred_fallthru
      _
  $region6: #{rsu6_forward.13} parent=0 // loop_footer
    %s16 = sadd.s32 1, %s12
  $region7: #{rsu6_forward.13} parent=0 // loop_footer_branch
    %11 = sbr.rel target = $region3
  $region8: #{rsu6_forward.13} parent=0 // loop_exit
    _

// kernel: rsu6_forward.16
$region0: #{rsu6_forward.16}
  #allocation0 [shape = 'u32[]', space=smem, size = 0x4, offset = 0x4, fixed_abs, tag = 'smem constant byte address 0x4 - core index']
  #allocation1 [shape = 'u32[144,128]{1,0:T(1,128)}', space=vmem, size = 0x12000, scoped, tag = 'internal scratch']
  %s0 = inlined_call_operand.vmem [shape: f32[2,2,32], index: 0, kind: input, shape index: {}]
  %s1 = inlined_call_operand.vmem [shape: f32[3,2,2], index: 1, kind: input, shape index: {}]
  %s2 = inlined_call_operand.vmem [shape: f32[96,32], index: 2, kind: input, shape index: {}]
  %s3 = inlined_call_operand.vmem [shape: f32[2,32], index: 3, kind: input, shape index: {}]
  %s4 = inlined_call_operand.vmem [shape: f32[2,2,32], index: 4, kind: output, shape index: {0}]
  %s5 = inlined_call_operand.vmem [shape: f32[2,1,16], index: 5, kind: output, shape index: {1}]
  %6 = xla_tuple %s4, %s5
  %s7 = sld [smem:[#allocation0]]
  $region57: #{rsu6_forward.16} parent=0
    _
  %s9 = ssub.s32 1, %s7
  %s10 = scalar_select 0, %s9, %s7
  loop: start=0, step=1, limit=4
  $region2: #{rsu6_forward.16} parent=0 // loop_pre_header
    _
  $region3: #{rsu6_forward.16} parent=0 // loop_header
    %s12 = sphi 0, %s16
    %p13 = scmp.ge.s32.totalorder %s12, 4
    %s22 = sphi 0, %s24
    %s25 = sphi 0, %s22
    %s26 = sphi 0, %s25
    %s42 = sphi 0, %s26
    %s46 = sphi 0, %s46
    %s48 = sphi 0, %s46
    %s49 = sphi 0, %s48
    %s63 = sphi 0, %s49
    %s67 = sphi 0, %s67
    %s69 = sphi 0, %s67
    %s70 = sphi 0, %s69
    %s84 = sphi 0, %s70
    %s88 = sphi 0, %s88
    %s90 = sphi 0, %s88
    %s91 = sphi 0, %s90
    %s105 = sphi 0, %s91
    %s111 = sphi 0, %s113
    %s114 = sphi 0, %s111
    %s115 = sphi 0, %s114
    %s131 = sphi 0, %s115
    %s137 = sphi 0, %s139
    %s140 = sphi 0, %s137
    %s141 = sphi 0, %s140
    %s157 = sphi 0, %s141
  $region4: #{rsu6_forward.16} parent=0 // loop_header_branch
    %15 = sbr.rel (%p13) target = $region8
  $region5: #{rsu6_forward.16} parent=0 // loop_body
    %s17 = ssub.s32 %s12, 1
    %s18 = ssub.s32 %s12, 2
    %s19 = sadd.s32 %s12, 1
    %s20 = ssub.s32 %s12, %s19
    %p21 = scmp.eq.s32.totalorder %s20, 0
    %s23 = sadd.s32 %s22, 1
    %s24 = scalar_select %p21, %s22, %s23
    %p27 = pneg %p21
    %p28 = scmp.eq.s32.totalorder %s12, 1
    %p29 = por %p27, %p28
    %p30 = scmp.ne.s32.totalorder %s22, %s25
    %p31 = scmp.eq.s32.totalorder %s12, 0
    %p32 = por %p30, %p31
    %p33 = scmp.ne.s32.totalorder %s22, %s25
    %p34 = scmp.eq.s32.totalorder %s17, 1
    %p35 = por %p33, %p34
    %p36 = scmp.ne.s32.totalorder %s25, %s26
    %p37 = scmp.eq.s32.totalorder %s17, 0
    %p38 = por %p36, %p37
    %p39 = scmp.ne.s32.totalorder %s25, %s26
    %p40 = scmp.eq.s32.totalorder %s18, 1
    %p41 = por %p39, %p40
    %p43 = scmp.ne.s32.totalorder %s26, %s42
    %p44 = scmp.eq.s32.totalorder %s18, 0
    %p45 = por %p43, %p44
    %s47 = sadd.s32 %s46, 1
    %p50 = scmp.eq.s32.totalorder %s12, 1
    %p51 = scmp.ne.s32.totalorder %s46, %s48
    %p52 = scmp.eq.s32.totalorder %s12, 0
    %p53 = por %p51, %p52
    %p54 = scmp.ne.s32.totalorder %s46, %s48
    %p55 = scmp.eq.s32.totalorder %s17, 1
    %p56 = por %p54, %p55
    %p57 = scmp.ne.s32.totalorder %s48, %s49
    %p58 = scmp.eq.s32.totalorder %s17, 0
    %p59 = por %p57, %p58
    %p60 = scmp.ne.s32.totalorder %s48, %s49
    %p61 = scmp.eq.s32.totalorder %s18, 1
    %p62 = por %p60, %p61
    %p64 = scmp.ne.s32.totalorder %s49, %s63
    %p65 = scmp.eq.s32.totalorder %s18, 0
    %p66 = por %p64, %p65
    %s68 = sadd.s32 %s67, 1
    %p71 = scmp.eq.s32.totalorder %s12, 1
    %p72 = scmp.ne.s32.totalorder %s67, %s69
    %p73 = scmp.eq.s32.totalorder %s12, 0
    %p74 = por %p72, %p73
    %p75 = scmp.ne.s32.totalorder %s67, %s69
    %p76 = scmp.eq.s32.totalorder %s17, 1
    %p77 = por %p75, %p76
    %p78 = scmp.ne.s32.totalorder %s69, %s70
    %p79 = scmp.eq.s32.totalorder %s17, 0
    %p80 = por %p78, %p79
    %p81 = scmp.ne.s32.totalorder %s69, %s70
    %p82 = scmp.eq.s32.totalorder %s18, 1
    %p83 = por %p81, %p82
    %p85 = scmp.ne.s32.totalorder %s70, %s84
    %p86 = scmp.eq.s32.totalorder %s18, 0
    %p87 = por %p85, %p86
    %s89 = sadd.s32 %s88, 1
    %p92 = scmp.eq.s32.totalorder %s12, 1
    %p93 = scmp.ne.s32.totalorder %s88, %s90
    %p94 = scmp.eq.s32.totalorder %s12, 0
    %p95 = por %p93, %p94
    %p96 = scmp.ne.s32.totalorder %s88, %s90
    %p97 = scmp.eq.s32.totalorder %s17, 1
    %p98 = por %p96, %p97
    %p99 = scmp.ne.s32.totalorder %s90, %s91
    %p100 = scmp.eq.s32.totalorder %s17, 0
    %p101 = por %p99, %p100
    %p102 = scmp.ne.s32.totalorder %s90, %s91
    %p103 = scmp.eq.s32.totalorder %s18, 1
    %p104 = por %p102, %p103
    %p106 = scmp.ne.s32.totalorder %s91, %s105
    %p107 = scmp.eq.s32.totalorder %s18, 0
    %p108 = por %p106, %p107
    %s109 = ssub.s32 %s12, %s19
    %p110 = scmp.eq.s32.totalorder %s109, 0
    %s112 = sadd.s32 %s111, 1
    %s113 = scalar_select %p110, %s111, %s112
    %p116 = pneg %p110
    %p117 = scmp.eq.s32.totalorder %s12, 1
    %p118 = por %p116, %p117
    %p119 = scmp.ne.s32.totalorder %s111, %s114
    %p120 = scmp.eq.s32.totalorder %s12, 0
    %p121 = por %p119, %p120
    %p122 = scmp.ne.s32.totalorder %s111, %s114
    %p123 = scmp.eq.s32.totalorder %s17, 1
    %p124 = por %p122, %p123
    %p125 = scmp.ne.s32.totalorder %s114, %s115
    %p126 = scmp.eq.s32.totalorder %s17, 0
    %p127 = por %p125, %p126
    %p128 = scmp.ne.s32.totalorder %s114, %s115
    %p129 = scmp.eq.s32.totalorder %s18, 1
    %p130 = por %p128, %p129
    %p132 = scmp.ne.s32.totalorder %s115, %s131
    %p133 = scmp.eq.s32.totalorder %s18, 0
    %p134 = por %p132, %p133
    %s135 = ssub.s32 %s12, %s19
    %p136 = scmp.eq.s32.totalorder %s135, 0
    %s138 = sadd.s32 %s137, 1
    %s139 = scalar_select %p136, %s137, %s138
    %p142 = pneg %p136
    %p143 = scmp.eq.s32.totalorder %s12, 1
    %p144 = por %p142, %p143
    %p145 = scmp.ne.s32.totalorder %s137, %s140
    %p146 = scmp.eq.s32.totalorder %s12, 0
    %p147 = por %p145, %p146
    %p148 = scmp.ne.s32.totalorder %s137, %s140
    %p149 = scmp.eq.s32.totalorder %s17, 1
    %p150 = por %p148, %p149
    %p151 = scmp.ne.s32.totalorder %s140, %s141
    %p152 = scmp.eq.s32.totalorder %s17, 0
    %p153 = por %p151, %p152
    %p154 = scmp.ne.s32.totalorder %s140, %s141
    %p155 = scmp.eq.s32.totalorder %s18, 1
    %p156 = por %p154, %p155
    %p158 = scmp.ne.s32.totalorder %s141, %s157
    %p159 = scmp.eq.s32.totalorder %s18, 0
    %p160 = por %p158, %p159
    %p161 = scmp.le.s32.totalorder 1, %s12
    %p162 = scmp.lt.s32.totalorder %s12, 3
    %p163 = pnand %p161, %p162
    %p164 = pneg %p163
    // Predicated region
    $region9: #{rsu6_forward.16} parent=5 // pred_check
      _
    $region10: #{rsu6_forward.16} parent=5 // pred_check_branch
      %166 = sbr.rel (%p163) target = $region12
    $region11: #{rsu6_forward.16} parent=5 // pred_region
      %s167 = ssub.s32 %s12, 1
      // Predicated region
      $region13: #{rsu6_forward.16} parent=11 // pred_check
        %p168 = pneg %p59
      $region14: #{rsu6_forward.16} parent=11 // pred_check_branch
        %170 = sbr.rel (%p168) target = $region16
      $region15: #{rsu6_forward.16} parent=11 // pred_region
        _
      $region16: #{rsu6_forward.16} parent=11 // pred_fallthru
        _
      // Predicated region
      $region17: #{rsu6_forward.16} parent=11 // pred_check
        %p171 = pneg %p80
      $region18: #{rsu6_forward.16} parent=11 // pred_check_branch
        %173 = sbr.rel (%p171) target = $region20
      $region19: #{rsu6_forward.16} parent=11 // pred_region
        _
      $region20: #{rsu6_forward.16} parent=11 // pred_fallthru
        _
      // Predicated region
      $region21: #{rsu6_forward.16} parent=11 // pred_check
        %p174 = pneg %p101
      $region22: #{rsu6_forward.16} parent=11 // pred_check_branch
        %176 = sbr.rel (%p174) target = $region24
      $region23: #{rsu6_forward.16} parent=11 // pred_region
        _
      $region24: #{rsu6_forward.16} parent=11 // pred_fallthru
        _
    $region12: #{rsu6_forward.16} parent=5 // pred_fallthru
      _
    %p177 = scmp.lt.s32.totalorder %s12, 2
    // Predicated region
    $region25: #{rsu6_forward.16} parent=5 // pred_check
      %p178 = pneg %p177
    $region26: #{rsu6_forward.16} parent=5 // pred_check_branch
      %180 = sbr.rel (%p178) target = $region28
    $region27: #{rsu6_forward.16} parent=5 // pred_region
      // Predicated region
      $region29: #{rsu6_forward.16} parent=27 // pred_check
        %p181 = pneg %p32
      $region30: #{rsu6_forward.16} parent=27 // pred_check_branch
        %183 = sbr.rel (%p181) target = $region32
      $region31: #{rsu6_forward.16} parent=27 // pred_region
        %p184 = scmp.lt.s32.totalorder %s12, 1
        %s185 = scalar_select %p184, %s12, 1
        %s186 = smul.addr %s185, 2
        %s187 = scalar_lea.vmem %s0, %s186
      $region32: #{rsu6_forward.16} parent=27 // pred_fallthru
        _
    $region28: #{rsu6_forward.16} parent=5 // pred_fallthru
      _
    %p188 = scmp.le.s32.totalorder 1, %s12
    %p189 = scmp.lt.s32.totalorder %s12, 3
    %p190 = pnand %p188, %p189
    %p191 = pneg %p190
    // Predicated region
    $region33: #{rsu6_forward.16} parent=5 // pred_check
      _
    $region34: #{rsu6_forward.16} parent=5 // pred_check_branch
      %193 = sbr.rel (%p190) target = $region36
    $region35: #{rsu6_forward.16} parent=5 // pred_region
      %s194 = ssub.s32 %s12, 1
      %p195 = scmp.lt.s32.totalorder %s17, 1
      %s196 = scalar_select %p195, %s17, 1
      %s197 = smul.addr %s196, 2
      %s198 = scalar_lea.vmem %s0, %s197
      %p199 = pneg %p38
      %p200 = pneg %p35
      %p201 = pneg %p59
      %p202 = pneg %p56
      %p203 = pneg %p80
      %p204 = pneg %p77
      %p205 = pneg %p101
      %p206 = pneg %p98
      %p207 = pneg %p127
      %p208 = pneg %p124
      %p209 = scmp.lt.s32.totalorder %s17, 1
      %s210 = scalar_select %p209, %s17, 1
      %s211 = smul.addr %s210, 2
      %s212 = scalar_lea.vmem %s4, %s211
      %p213 = pneg %p153
      %p214 = pneg %p150
      %p215 = scmp.lt.s32.totalorder %s17, 1
      %s216 = scalar_select %p215, %s17, 1
      %s217 = scalar_lea.vmem %s5, %s216
      %p218 = scmp.lt.s32.totalorder %s17, 1
      %s219 = scalar_select %p218, %s17, 1
      %s220 = smul.addr %s219, 2
      %s221 = scalar_lea.vmem %s0, %s220
      %p222 = scmp.lt.s32.totalorder %s17, 1
      %s223 = scalar_select %p222, %s17, 1
      %s224 = smul.addr %s223, 2
      %s225 = scalar_lea.vmem %s4, %s224
      %p226 = scmp.lt.s32.totalorder %s17, 1
      %s227 = scalar_select %p226, %s17, 1
      %s228 = scalar_lea.vmem %s5, %s227
      %v229 = vld [vmem:[%s221] sm:$0x3]
      %v230 = vld [vmem:[%s1] sm:$0x3]
      %vm231 = vcmask 15360
      %v233 = vsel %vm231, %v230, 0
      %vm235 = vcmask 1041408
      %v237 = vsel %vm235, %v229, 0
      %239 = vmatprep.subr.mxu0 0.0
      %240 = vmatpush1.msra.mxu0 %v237
      %241 = vmatprep.subr.mxu0 0.0
      %242 = vmatpush1.msra.mxu0 0.0
      %243 = vmatprep.subr.mxu0 0.0
      %244 = vmatpush1.msra.mxu0 0.0
      %245 = vmatprep.subr.mxu0 0.0
      %246 = vmatpush1.msra.mxu0 0.0
      %247 = vmatprep.subr.mxu0 0.0
      %248 = vmatpush1.msra.mxu0 0.0
      %249 = vmatprep.subr.mxu0 0.0
      %250 = vmatpush1.msra.mxu0 0.0
      %251 = vmatprep.subr.mxu0 0.0
      %252 = vmatpush1.msra.mxu0 0.0
      %253 = vmatprep.subr.mxu0 0.0
      %254 = vmatpush1.msra.mxu0 0.0
      %255 = vmatprep.subr.mxu0 0.0
      %256 = vmatpush1.msra.mxu0 0.0
      %257 = vmatprep.subr.mxu0 0.0
      %258 = vmatpush1.msra.mxu0 0.0
      %259 = vmatprep.subr.mxu0 0.0
      %260 = vmatpush1.msra.mxu0 0.0
      %261 = vmatprep.subr.mxu0 0.0
      %262 = vmatpush1.msra.mxu0 0.0
      %263 = vmatprep.subr.mxu0 0.0
      %264 = vmatpush1.msra.mxu0 0.0
      %265 = vmatprep.subr.mxu0 0.0
      %266 = vmatpush1.msra.mxu0 0.0
      %267 = vmatprep.subr.mxu0 0.0
      %268 = vmatpush1.msra.mxu0 0.0
      %269 = vmatprep.subr.mxu0 0.0
      %270 = vmatpush1.msra.mxu0 0.0
      %271 = vmatprep.subr.mxu0 0.0
      %272 = vmatpush1.msra.mxu0 0.0
      %273 = vmatprep.subr.mxu0 0.0
      %274 = vmatpush1.msra.mxu0 0.0
      %275 = vmatprep.subr.mxu0 0.0
      %276 = vmatpush1.msra.mxu0 0.0
      %277 = vmatprep.subr.mxu0 0.0
      %278 = vmatpush1.msra.mxu0 0.0
      %279 = vmatprep.subr.mxu0 0.0
      %280 = vmatpush1.msra.mxu0 0.0
      %281 = vmatprep.subr.mxu0 0.0
      %282 = vmatpush1.msra.mxu0 0.0
      %283 = vmatprep.subr.mxu0 0.0
      %284 = vmatpush1.msra.mxu0 0.0
      %285 = vmatprep.subr.mxu0 0.0
      %286 = vmatpush1.msra.mxu0 0.0
      %287 = vmatprep.subr.mxu0 0.0
      %288 = vmatpush1.msra.mxu0 0.0
      %289 = vmatprep.subr.mxu0 0.0
      %290 = vmatpush1.msra.mxu0 0.0
      %291 = vmatprep.subr.mxu0 0.0
      %292 = vmatpush1.msra.mxu0 0.0
      %293 = vmatprep.subr.mxu0 0.0
      %294 = vmatpush1.msra.mxu0 0.0
      %295 = vmatprep.subr.mxu0 0.0
      %296 = vmatpush1.msra.mxu0 0.0
      %297 = vmatprep.subr.mxu0 0.0
      %298 = vmatpush1.msra.mxu0 0.0
      %299 = vmatprep.subr.mxu0 0.0
      %300 = vmatpush1.msra.mxu0 0.0
      %301 = vmatprep.subr.mxu0 0.0
      %302 = vmatpush1.msra.mxu0 0.0
      %303 = vmatprep.mubr.f32.mxu0 0.0
      %304 = vmatmul.mubr.f32.gmra.mrb[0].mxu0 %v233
      %v305 = vpop.f32.mrb[0].mxu0
      %v306 = vadd.f32 0.0, %v305
      %v307 = vpop.f32.mrb[0].mxu0
      %308 = vdwg.mxu0
      %s309 = scalar_lea.vmem %s1, 4
      %v310 = vld [vmem:[%s309] sm:$0x3]
      %v312 = vsel %vm231, %v310, 0
      %314 = vmatprep.subr.mxu0 0.0
      %315 = vmatpush1.msra.mxu0 %v237
      %316 = vmatprep.subr.mxu0 0.0
      %317 = vmatpush1.msra.mxu0 0.0
      %318 = vmatprep.subr.mxu0 0.0
      %319 = vmatpush1.msra.mxu0 0.0
      %320 = vmatprep.subr.mxu0 0.0
      %321 = vmatpush1.msra.mxu0 0.0
      %322 = vmatprep.subr.mxu0 0.0
      %323 = vmatpush1.msra.mxu0 0.0
      %324 = vmatprep.subr.mxu0 0.0
      %325 = vmatpush1.msra.mxu0 0.0
      %326 = vmatprep.subr.mxu0 0.0
      %327 = vmatpush1.msra.mxu0 0.0
      %328 = vmatprep.subr.mxu0 0.0
      %329 = vmatpush1.msra.mxu0 0.0
      %330 = vmatprep.subr.mxu0 0.0
      %331 = vmatpush1.msra.mxu0 0.0
      %332 = vmatprep.subr.mxu0 0.0
      %333 = vmatpush1.msra.mxu0 0.0
      %334 = vmatprep.subr.mxu0 0.0
      %335 = vmatpush1.msra.mxu0 0.0
      %336 = vmatprep.subr.mxu0 0.0
      %337 = vmatpush1.msra.mxu0 0.0
      %338 = vmatprep.subr.mxu0 0.0
      %339 = vmatpush1.msra.mxu0 0.0
      %340 = vmatprep.subr.mxu0 0.0
      %341 = vmatpush1.msra.mxu0 0.0
      %342 = vmatprep.subr.mxu0 0.0
      %343 = vmatpush1.msra.mxu0 0.0
      %344 = vmatprep.subr.mxu0 0.0
      %345 = vmatpush1.msra.mxu0 0.0
      %346 = vmatprep.subr.mxu0 0.0
      %347 = vmatpush1.msra.mxu0 0.0
      %348 = vmatprep.subr.mxu0 0.0
      %349 = vmatpush1.msra.mxu0 0.0
      %350 = vmatprep.subr.mxu0 0.0
      %351 = vmatpush1.msra.mxu0 0.0
      %352 = vmatprep.subr.mxu0 0.0
      %353 = vmatpush1.msra.mxu0 0.0
      %354 = vmatprep.subr.mxu0 0.0
      %355 = vmatpush1.msra.mxu0 0.0
      %356 = vmatprep.subr.mxu0 0.0
      %357 = vmatpush1.msra.mxu0 0.0
      %358 = vmatprep.subr.mxu0 0.0
      %359 = vmatpush1.msra.mxu0 0.0
      %360 = vmatprep.subr.mxu0 0.0
      %361 = vmatpush1.msra.mxu0 0.0
      %362 = vmatprep.subr.mxu0 0.0
      %363 = vmatpush1.msra.mxu0 0.0
      %364 = vmatprep.subr.mxu0 0.0
      %365 = vmatpush1.msra.mxu0 0.0
      %366 = vmatprep.subr.mxu0 0.0
      %367 = vmatpush1.msra.mxu0 0.0
      %368 = vmatprep.subr.mxu0 0.0
      %369 = vmatpush1.msra.mxu0 0.0
      %370 = vmatprep.subr.mxu0 0.0
      %371 = vmatpush1.msra.mxu0 0.0
      %372 = vmatprep.subr.mxu0 0.0
      %373 = vmatpush1.msra.mxu0 0.0
      %374 = vmatprep.subr.mxu0 0.0
      %375 = vmatpush1.msra.mxu0 0.0
      %376 = vmatprep.subr.mxu0 0.0
      %377 = vmatpush1.msra.mxu0 0.0
      %378 = vmatprep.mubr.f32.mxu0 0.0
      %379 = vmatmul.mubr.f32.gmra.mrb[0].mxu0 %v312
      %v380 = vpop.f32.mrb[0].mxu0
      %v381 = vadd.f32 0.0, %v380
      %v382 = vpop.f32.mrb[0].mxu0
      %383 = vdwg.mxu0
      %384 = vrot.lane.b32.xlu0 %v229, 32
      %v385 = vpop.permute.xlu0 %384
      %388 = vrot.lane.b32.xlu0 %v381, 64
      %v389 = vpop.permute.xlu0 %388
      %vm391 = vcmask 261120
      %v392 = vsel %vm391, %v306, %v385
      %vm393 = vcmask 523264
      %v394 = vsel %vm393, %v392, %v389
      %v395 = vld [vmem:[%s2] sm:$0xff]
      %v396 = vld [vmem:[%s2 + $0x8] sm:$0xff]
      %v397 = vld [vmem:[%s2 + $0x10] sm:$0xff]
      %v398 = vld [vmem:[%s2 + $0x18] sm:$0xff]
      %v399 = vld [vmem:[%s2 + $0x20] sm:$0xff]
      %v400 = vld [vmem:[%s2 + $0x28] sm:$0xff]
      %v401 = vld [vmem:[%s2 + $0x30] sm:$0xff]
      %v402 = vld [vmem:[%s2 + $0x38] sm:$0xff]
      %v403 = vld [vmem:[%s2 + $0x40] sm:$0xff]
      %v404 = vld [vmem:[%s2 + $0x48] sm:$0xff]
      %v405 = vld [vmem:[%s2 + $0x50] sm:$0xff]
      %v406 = vld [vmem:[%s2 + $0x58] sm:$0xff]
      %vm407 = vcmask 785408
      %v409 = vsel %vm407, %v394, 0
      %411 = vmatprep.subr.mxu0 0.0
      %412 = vmatpush1.msra.mxu0 %v395
      %413 = vmatprep.subr.mxu0 0.0
      %414 = vmatpush1.msra.mxu0 %v396
      %415 = vmatprep.subr.mxu0 0.0
      %416 = vmatpush1.msra.mxu0 %v397
      %417 = vmatprep.subr.mxu0 0.0
      %418 = vmatpush1.msra.mxu0 %v398
      %419 = vmatprep.subr.mxu0 0.0
      %420 = vmatpush1.msra.mxu0 %v399
      %421 = vmatprep.subr.mxu0 0.0
      %422 = vmatpush1.msra.mxu0 %v400
      %423 = vmatprep.subr.mxu0 0.0
      %424 = vmatpush1.msra.mxu0 %v401
      %425 = vmatprep.subr.mxu0 0.0
      %426 = vmatpush1.msra.mxu0 %v402
      %427 = vmatprep.subr.mxu0 0.0
      %428 = vmatpush1.msra.mxu0 %v403
      %429 = vmatprep.subr.mxu0 0.0
      %430 = vmatpush1.msra.mxu0 %v404
      %431 = vmatprep.subr.mxu0 0.0
      %432 = vmatpush1.msra.mxu0 %v405
      %433 = vmatprep.subr.mxu0 0.0
      %434 = vmatpush1.msra.mxu0 %v406
      %435 = vmatprep.subr.mxu0 0.0
      %436 = vmatpush1.msra.mxu0 0.0
      %437 = vmatprep.subr.mxu0 0.0
      %438 = vmatpush1.msra.mxu0 0.0
      %439 = vmatprep.subr.mxu0 0.0
      %440 = vmatpush1.msra.mxu0 0.0
      %441 = vmatprep.subr.mxu0 0.0
      %442 = vmatpush1.msra.mxu0 0.0
      %443 = vmatprep.subr.mxu0 0.0
      %444 = vmatpush1.msra.mxu0 0.0
      %445 = vmatprep.subr.mxu0 0.0
      %446 = vmatpush1.msra.mxu0 0.0
      %447 = vmatprep.subr.mxu0 0.0
      %448 = vmatpush1.msra.mxu0 0.0
      %449 = vmatprep.subr.mxu0 0.0
      %450 = vmatpush1.msra.mxu0 0.0
      %451 = vmatprep.subr.mxu0 0.0
      %452 = vmatpush1.msra.mxu0 0.0
      %453 = vmatprep.subr.mxu0 0.0
      %454 = vmatpush1.msra.mxu0 0.0
      %455 = vmatprep.subr.mxu0 0.0
      %456 = vmatpush1.msra.mxu0 0.0
      %457 = vmatprep.subr.mxu0 0.0
      %458 = vmatpush1.msra.mxu0 0.0
      %459 = vmatprep.subr.mxu0 0.0
      %460 = vmatpush1.msra.mxu0 0.0
      %461 = vmatprep.subr.mxu0 0.0
      %462 = vmatpush1.msra.mxu0 0.0
      %463 = vmatprep.subr.mxu0 0.0
      %464 = vmatpush1.msra.mxu0 0.0
      %465 = vmatprep.subr.mxu0 0.0
      %466 = vmatpush1.msra.mxu0 0.0
      %467 = vmatprep.subr.mxu0 0.0
      %468 = vmatpush1.msra.mxu0 0.0
      %469 = vmatprep.subr.mxu0 0.0
      %470 = vmatpush1.msra.mxu0 0.0
      %471 = vmatprep.subr.mxu0 0.0
      %472 = vmatpush1.msra.mxu0 0.0
      %473 = vmatprep.subr.mxu0 0.0
      %474 = vmatpush1.msra.mxu0 0.0
      %475 = vmatprep.mubr.f32.mxu0 0.0
      %476 = vmatmul.mubr.f32.gmra.mrb[0].mxu0 %v409
      %v477 = vpop.f32.mrb[0].mxu0
      %v478 = vadd.f32 0.0, %v477
      %v479 = vpop.f32.mrb[0].mxu0
      %480 = vdwg.mxu0
      %v481 = vld [vmem:[%s3] sm:$0x1]
      %v482 = vlaneseq
      %v483 = vshrl.u32 %v482, 7
      %v484 = vsub.s32 0, %v483
      %v485 = vrot.slane %v481, %v484
      %v486 = vmul.f32 %v478, %v485
      %v487 = vld [vmem:[%s3 + $0x1] sm:$0x1]
      %v488 = vlaneseq
      %v489 = vshrl.u32 %v488, 7
      %v490 = vsub.s32 0, %v489
      %v491 = vrot.slane %v487, %v490
      %v492 = vadd.f32 %v486, %v491
      %v493 = vmax.f32 %v492, 0.0
      %vm494 = vcmask 254976
      %495 = vst.msk [vmem:[%s225] sm:$0x3] %vm494, %v493
      %v497 = vrot.slane %v493, 1
      %v499 = vmax.f32 %v493, %v497
      %501 = vrot.lane.b32.xlu0 %v499, 112
      %v502 = vpop.permute.xlu0 %501
      %v504 = vmax.f32 %v499, %v502
      %vm505 = vcmask 122880
      %506 = vst.msk [vmem:[%s228] sm:$0x1] %vm505, %v504
      %p507 = scmp.lt.s32.totalorder %s17, 1
      %s508 = scalar_select %p507, %s17, 1
      %s509 = smul.addr %s508, 2
      %s510 = scalar_lea.vmem %s4, %s509
      %p511 = scmp.lt.s32.totalorder %s17, 1
      %s512 = scalar_select %p511, %s17, 1
      %s513 = scalar_lea.vmem %s5, %s512
      // Predicated region
      $region37: #{rsu6_forward.16} parent=35 // pred_check
        %p514 = pneg %p124
      $region38: #{rsu6_forward.16} parent=35 // pred_check_branch
        %516 = sbr.rel (%p514) target = $region40
      $region39: #{rsu6_forward.16} parent=35 // pred_region
        _
      $region40: #{rsu6_forward.16} parent=35 // pred_fallthru
        _
      // Predicated region
      $region41: #{rsu6_forward.16} parent=35 // pred_check
        %p517 = pneg %p150
      $region42: #{rsu6_forward.16} parent=35 // pred_check_branch
        %519 = sbr.rel (%p517) target = $region44
      $region43: #{rsu6_forward.16} parent=35 // pred_region
        _
      $region44: #{rsu6_forward.16} parent=35 // pred_fallthru
        _
    $region36: #{rsu6_forward.16} parent=5 // pred_fallthru
      _
    %p520 = scmp.le.s32.totalorder 2, %s12
    // Predicated region
    $region45: #{rsu6_forward.16} parent=5 // pred_check
      %p521 = pneg %p520
    $region46: #{rsu6_forward.16} parent=5 // pred_check_branch
      %523 = sbr.rel (%p521) target = $region48
    $region47: #{rsu6_forward.16} parent=5 // pred_region
      %s524 = ssub.s32 %s12, 2
      // Predicated region
      $region49: #{rsu6_forward.16} parent=47 // pred_check
        %p525 = pneg %p130
      $region50: #{rsu6_forward.16} parent=47 // pred_check_branch
        %527 = sbr.rel (%p525) target = $region52
      $region51: #{rsu6_forward.16} parent=47 // pred_region
        %p528 = scmp.lt.s32.totalorder %s18, 1
        %s529 = scalar_select %p528, %s18, 1
        %s530 = smul.addr %s529, 2
        %s531 = scalar_lea.vmem %s4, %s530
      $region52: #{rsu6_forward.16} parent=47 // pred_fallthru
        _
      // Predicated region
      $region53: #{rsu6_forward.16} parent=47 // pred_check
        %p532 = pneg %p156
      $region54: #{rsu6_forward.16} parent=47 // pred_check_branch
        %534 = sbr.rel (%p532) target = $region56
      $region55: #{rsu6_forward.16} parent=47 // pred_region
        %p535 = scmp.lt.s32.totalorder %s18, 1
        %s536 = scalar_select %p535, %s18, 1
        %s537 = scalar_lea.vmem %s5, %s536
      $region56: #{rsu6_forward.16} parent=47 // pred_fallthru
        _
    $region48: #{rsu6_forward.16} parent=5 // pred_fallthru
      _
  $region6: #{rsu6_forward.16} parent=0 // loop_footer
    %s16 = sadd.s32 1, %s12
  $region7: #{rsu6_forward.16} parent=0 // loop_footer_branch
    %11 = sbr.rel target = $region3
  $region8: #{rsu6_forward.16} parent=0 // loop_exit
    _

// kernel: rsu6_forward.17
$region0: #{rsu6_forward.17}
  #allocation0 [shape = 'u32[]', space=smem, size = 0x4, offset = 0x4, fixed_abs, tag = 'smem constant byte address 0x4 - core index']
  #allocation1 [shape = 'u32[144,128]{1,0:T(1,128)}', space=vmem, size = 0x12000, scoped, tag = 'internal scratch']
  %s0 = inlined_call_operand.vmem [shape: f32[2,1,16], index: 0, kind: input, shape index: {}]
  %s1 = inlined_call_operand.vmem [shape: f32[3,1,1], index: 1, kind: input, shape index: {}]
  %s2 = inlined_call_operand.vmem [shape: f32[48,16], index: 2, kind: input, shape index: {}]
  %s3 = inlined_call_operand.vmem [shape: f32[2,16], index: 3, kind: input, shape index: {}]
  %s4 = inlined_call_operand.vmem [shape: f32[2,1,16], index: 4, kind: output, shape index: {}]
  %s5 = sld [smem:[#allocation0]]
  $region49: #{rsu6_forward.17} parent=0
    _
  %s7 = ssub.s32 1, %s5
  %s8 = scalar_select 0, %s7, %s5
  loop: start=0, step=1, limit=4
  $region2: #{rsu6_forward.17} parent=0 // loop_pre_header
    _
  $region3: #{rsu6_forward.17} parent=0 // loop_header
    %s10 = sphi 0, %s14
    %p11 = scmp.ge.s32.totalorder %s10, 4
    %s20 = sphi 0, %s22
    %s23 = sphi 0, %s20
    %s24 = sphi 0, %s23
    %s40 = sphi 0, %s24
    %s44 = sphi 0, %s44
    %s46 = sphi 0, %s44
    %s47 = sphi 0, %s46
    %s61 = sphi 0, %s47
    %s65 = sphi 0, %s65
    %s67 = sphi 0, %s65
    %s68 = sphi 0, %s67
    %s82 = sphi 0, %s68
    %s86 = sphi 0, %s86
    %s88 = sphi 0, %s86
    %s89 = sphi 0, %s88
    %s103 = sphi 0, %s89
    %s109 = sphi 0, %s111
    %s112 = sphi 0, %s109
    %s113 = sphi 0, %s112
    %s129 = sphi 0, %s113
  $region4: #{rsu6_forward.17} parent=0 // loop_header_branch
    %13 = sbr.rel (%p11) target = $region8
  $region5: #{rsu6_forward.17} parent=0 // loop_body
    %s15 = ssub.s32 %s10, 1
    %s16 = ssub.s32 %s10, 2
    %s17 = sadd.s32 %s10, 1
    %s18 = ssub.s32 %s10, %s17
    %p19 = scmp.eq.s32.totalorder %s18, 0
    %s21 = sadd.s32 %s20, 1
    %s22 = scalar_select %p19, %s20, %s21
    %p25 = pneg %p19
    %p26 = scmp.eq.s32.totalorder %s10, 1
    %p27 = por %p25, %p26
    %p28 = scmp.ne.s32.totalorder %s20, %s23
    %p29 = scmp.eq.s32.totalorder %s10, 0
    %p30 = por %p28, %p29
    %p31 = scmp.ne.s32.totalorder %s20, %s23
    %p32 = scmp.eq.s32.totalorder %s15, 1
    %p33 = por %p31, %p32
    %p34 = scmp.ne.s32.totalorder %s23, %s24
    %p35 = scmp.eq.s32.totalorder %s15, 0
    %p36 = por %p34, %p35
    %p37 = scmp.ne.s32.totalorder %s23, %s24
    %p38 = scmp.eq.s32.totalorder %s16, 1
    %p39 = por %p37, %p38
    %p41 = scmp.ne.s32.totalorder %s24, %s40
    %p42 = scmp.eq.s32.totalorder %s16, 0
    %p43 = por %p41, %p42
    %s45 = sadd.s32 %s44, 1
    %p48 = scmp.eq.s32.totalorder %s10, 1
    %p49 = scmp.ne.s32.totalorder %s44, %s46
    %p50 = scmp.eq.s32.totalorder %s10, 0
    %p51 = por %p49, %p50
    %p52 = scmp.ne.s32.totalorder %s44, %s46
    %p53 = scmp.eq.s32.totalorder %s15, 1
    %p54 = por %p52, %p53
    %p55 = scmp.ne.s32.totalorder %s46, %s47
    %p56 = scmp.eq.s32.totalorder %s15, 0
    %p57 = por %p55, %p56
    %p58 = scmp.ne.s32.totalorder %s46, %s47
    %p59 = scmp.eq.s32.totalorder %s16, 1
    %p60 = por %p58, %p59
    %p62 = scmp.ne.s32.totalorder %s47, %s61
    %p63 = scmp.eq.s32.totalorder %s16, 0
    %p64 = por %p62, %p63
    %s66 = sadd.s32 %s65, 1
    %p69 = scmp.eq.s32.totalorder %s10, 1
    %p70 = scmp.ne.s32.totalorder %s65, %s67
    %p71 = scmp.eq.s32.totalorder %s10, 0
    %p72 = por %p70, %p71
    %p73 = scmp.ne.s32.totalorder %s65, %s67
    %p74 = scmp.eq.s32.totalorder %s15, 1
    %p75 = por %p73, %p74
    %p76 = scmp.ne.s32.totalorder %s67, %s68
    %p77 = scmp.eq.s32.totalorder %s15, 0
    %p78 = por %p76, %p77
    %p79 = scmp.ne.s32.totalorder %s67, %s68
    %p80 = scmp.eq.s32.totalorder %s16, 1
    %p81 = por %p79, %p80
    %p83 = scmp.ne.s32.totalorder %s68, %s82
    %p84 = scmp.eq.s32.totalorder %s16, 0
    %p85 = por %p83, %p84
    %s87 = sadd.s32 %s86, 1
    %p90 = scmp.eq.s32.totalorder %s10, 1
    %p91 = scmp.ne.s32.totalorder %s86, %s88
    %p92 = scmp.eq.s32.totalorder %s10, 0
    %p93 = por %p91, %p92
    %p94 = scmp.ne.s32.totalorder %s86, %s88
    %p95 = scmp.eq.s32.totalorder %s15, 1
    %p96 = por %p94, %p95
    %p97 = scmp.ne.s32.totalorder %s88, %s89
    %p98 = scmp.eq.s32.totalorder %s15, 0
    %p99 = por %p97, %p98
    %p100 = scmp.ne.s32.totalorder %s88, %s89
    %p101 = scmp.eq.s32.totalorder %s16, 1
    %p102 = por %p100, %p101
    %p104 = scmp.ne.s32.totalorder %s89, %s103
    %p105 = scmp.eq.s32.totalorder %s16, 0
    %p106 = por %p104, %p105
    %s107 = ssub.s32 %s10, %s17
    %p108 = scmp.eq.s32.totalorder %s107, 0
    %s110 = sadd.s32 %s109, 1
    %s111 = scalar_select %p108, %s109, %s110
    %p114 = pneg %p108
    %p115 = scmp.eq.s32.totalorder %s10, 1
    %p116 = por %p114, %p115
    %p117 = scmp.ne.s32.totalorder %s109, %s112
    %p118 = scmp.eq.s32.totalorder %s10, 0
    %p119 = por %p117, %p118
    %p120 = scmp.ne.s32.totalorder %s109, %s112
    %p121 = scmp.eq.s32.totalorder %s15, 1
    %p122 = por %p120, %p121
    %p123 = scmp.ne.s32.totalorder %s112, %s113
    %p124 = scmp.eq.s32.totalorder %s15, 0
    %p125 = por %p123, %p124
    %p126 = scmp.ne.s32.totalorder %s112, %s113
    %p127 = scmp.eq.s32.totalorder %s16, 1
    %p128 = por %p126, %p127
    %p130 = scmp.ne.s32.totalorder %s113, %s129
    %p131 = scmp.eq.s32.totalorder %s16, 0
    %p132 = por %p130, %p131
    %p133 = scmp.le.s32.totalorder 1, %s10
    %p134 = scmp.lt.s32.totalorder %s10, 3
    %p135 = pnand %p133, %p134
    %p136 = pneg %p135
    // Predicated region
    $region9: #{rsu6_forward.17} parent=5 // pred_check
      _
    $region10: #{rsu6_forward.17} parent=5 // pred_check_branch
      %138 = sbr.rel (%p135) target = $region12
    $region11: #{rsu6_forward.17} parent=5 // pred_region
      %s139 = ssub.s32 %s10, 1
      // Predicated region
      $region13: #{rsu6_forward.17} parent=11 // pred_check
        %p140 = pneg %p57
      $region14: #{rsu6_forward.17} parent=11 // pred_check_branch
        %142 = sbr.rel (%p140) target = $region16
      $region15: #{rsu6_forward.17} parent=11 // pred_region
        _
      $region16: #{rsu6_forward.17} parent=11 // pred_fallthru
        _
      // Predicated region
      $region17: #{rsu6_forward.17} parent=11 // pred_check
        %p143 = pneg %p78
      $region18: #{rsu6_forward.17} parent=11 // pred_check_branch
        %145 = sbr.rel (%p143) target = $region20
      $region19: #{rsu6_forward.17} parent=11 // pred_region
        _
      $region20: #{rsu6_forward.17} parent=11 // pred_fallthru
        _
      // Predicated region
      $region21: #{rsu6_forward.17} parent=11 // pred_check
        %p146 = pneg %p99
      $region22: #{rsu6_forward.17} parent=11 // pred_check_branch
        %148 = sbr.rel (%p146) target = $region24
      $region23: #{rsu6_forward.17} parent=11 // pred_region
        _
      $region24: #{rsu6_forward.17} parent=11 // pred_fallthru
        _
    $region12: #{rsu6_forward.17} parent=5 // pred_fallthru
      _
    %p149 = scmp.lt.s32.totalorder %s10, 2
    // Predicated region
    $region25: #{rsu6_forward.17} parent=5 // pred_check
      %p150 = pneg %p149
    $region26: #{rsu6_forward.17} parent=5 // pred_check_branch
      %152 = sbr.rel (%p150) target = $region28
    $region27: #{rsu6_forward.17} parent=5 // pred_region
      // Predicated region
      $region29: #{rsu6_forward.17} parent=27 // pred_check
        %p153 = pneg %p30
      $region30: #{rsu6_forward.17} parent=27 // pred_check_branch
        %155 = sbr.rel (%p153) target = $region32
      $region31: #{rsu6_forward.17} parent=27 // pred_region
        %p156 = scmp.lt.s32.totalorder %s10, 1
        %s157 = scalar_select %p156, %s10, 1
        %s158 = scalar_lea.vmem %s0, %s157
      $region32: #{rsu6_forward.17} parent=27 // pred_fallthru
        _
    $region28: #{rsu6_forward.17} parent=5 // pred_fallthru
      _
    %p159 = scmp.le.s32.totalorder 1, %s10
    %p160 = scmp.lt.s32.totalorder %s10, 3
    %p161 = pnand %p159, %p160
    %p162 = pneg %p161
    // Predicated region
    $region33: #{rsu6_forward.17} parent=5 // pred_check
      _
    $region34: #{rsu6_forward.17} parent=5 // pred_check_branch
      %164 = sbr.rel (%p161) target = $region36
    $region35: #{rsu6_forward.17} parent=5 // pred_region
      %s165 = ssub.s32 %s10, 1
      %p166 = scmp.lt.s32.totalorder %s15, 1
      %s167 = scalar_select %p166, %s15, 1
      %s168 = scalar_lea.vmem %s0, %s167
      %p169 = pneg %p36
      %p170 = pneg %p33
      %p171 = pneg %p57
      %p172 = pneg %p54
      %p173 = pneg %p78
      %p174 = pneg %p75
      %p175 = pneg %p99
      %p176 = pneg %p96
      %p177 = pneg %p125
      %p178 = pneg %p122
      %p179 = scmp.lt.s32.totalorder %s15, 1
      %s180 = scalar_select %p179, %s15, 1
      %s181 = scalar_lea.vmem %s4, %s180
      %p182 = scmp.lt.s32.totalorder %s15, 1
      %s183 = scalar_select %p182, %s15, 1
      %s184 = scalar_lea.vmem %s0, %s183
      %p185 = scmp.lt.s32.totalorder %s15, 1
      %s186 = scalar_select %p185, %s15, 1
      %s187 = scalar_lea.vmem %s4, %s186
      %v188 = vld [vmem:[%s184] sm:$0x1]
      %v189 = vld [vmem:[%s1] sm:$0x1]
      %vm190 = vcmask 7168
      %v192 = vsel %vm190, %v189, 0
      %vm194 = vcmask 1040384
      %v196 = vsel %vm194, %v188, 0
      %198 = vmatprep.subr.mxu0 0.0
      %199 = vmatpush1.msra.mxu0 %v196
      %200 = vmatprep.subr.mxu0 0.0
      %201 = vmatpush1.msra.mxu0 0.0
      %202 = vmatprep.subr.mxu0 0.0
      %203 = vmatpush1.msra.mxu0 0.0
      %204 = vmatprep.subr.mxu0 0.0
      %205 = vmatpush1.msra.mxu0 0.0
      %206 = vmatprep.subr.mxu0 0.0
      %207 = vmatpush1.msra.mxu0 0.0
      %208 = vmatprep.subr.mxu0 0.0
      %209 = vmatpush1.msra.mxu0 0.0
      %210 = vmatprep.subr.mxu0 0.0
      %211 = vmatpush1.msra.mxu0 0.0
      %212 = vmatprep.subr.mxu0 0.0
      %213 = vmatpush1.msra.mxu0 0.0
      %214 = vmatprep.subr.mxu0 0.0
      %215 = vmatpush1.msra.mxu0 0.0
      %216 = vmatprep.subr.mxu0 0.0
      %217 = vmatpush1.msra.mxu0 0.0
      %218 = vmatprep.subr.mxu0 0.0
      %219 = vmatpush1.msra.mxu0 0.0
      %220 = vmatprep.subr.mxu0 0.0
      %221 = vmatpush1.msra.mxu0 0.0
      %222 = vmatprep.subr.mxu0 0.0
      %223 = vmatpush1.msra.mxu0 0.0
      %224 = vmatprep.subr.mxu0 0.0
      %225 = vmatpush1.msra.mxu0 0.0
      %226 = vmatprep.subr.mxu0 0.0
      %227 = vmatpush1.msra.mxu0 0.0
      %228 = vmatprep.subr.mxu0 0.0
      %229 = vmatpush1.msra.mxu0 0.0
      %230 = vmatprep.subr.mxu0 0.0
      %231 = vmatpush1.msra.mxu0 0.0
      %232 = vmatprep.subr.mxu0 0.0
      %233 = vmatpush1.msra.mxu0 0.0
      %234 = vmatprep.subr.mxu0 0.0
      %235 = vmatpush1.msra.mxu0 0.0
      %236 = vmatprep.subr.mxu0 0.0
      %237 = vmatpush1.msra.mxu0 0.0
      %238 = vmatprep.subr.mxu0 0.0
      %239 = vmatpush1.msra.mxu0 0.0
      %240 = vmatprep.subr.mxu0 0.0
      %241 = vmatpush1.msra.mxu0 0.0
      %242 = vmatprep.subr.mxu0 0.0
      %243 = vmatpush1.msra.mxu0 0.0
      %244 = vmatprep.subr.mxu0 0.0
      %245 = vmatpush1.msra.mxu0 0.0
      %246 = vmatprep.subr.mxu0 0.0
      %247 = vmatpush1.msra.mxu0 0.0
      %248 = vmatprep.subr.mxu0 0.0
      %249 = vmatpush1.msra.mxu0 0.0
      %250 = vmatprep.subr.mxu0 0.0
      %251 = vmatpush1.msra.mxu0 0.0
      %252 = vmatprep.subr.mxu0 0.0
      %253 = vmatpush1.msra.mxu0 0.0
      %254 = vmatprep.subr.mxu0 0.0
      %255 = vmatpush1.msra.mxu0 0.0
      %256 = vmatprep.subr.mxu0 0.0
      %257 = vmatpush1.msra.mxu0 0.0
      %258 = vmatprep.subr.mxu0 0.0
      %259 = vmatpush1.msra.mxu0 0.0
      %260 = vmatprep.subr.mxu0 0.0
      %261 = vmatpush1.msra.mxu0 0.0
      %262 = vmatprep.mubr.f32.mxu0 0.0
      %263 = vmatmul.mubr.f32.gmra.mrb[0].mxu0 %v192
      %v264 = vpop.f32.mrb[0].mxu0
      %v265 = vadd.f32 0.0, %v264
      %v266 = vpop.f32.mrb[0].mxu0
      %267 = vdwg.mxu0
      %s268 = scalar_lea.vmem %s1, 2
      %v269 = vld [vmem:[%s268] sm:$0x1]
      %v271 = vsel %vm190, %v269, 0
      %273 = vmatprep.subr.mxu0 0.0
      %274 = vmatpush1.msra.mxu0 %v196
      %275 = vmatprep.subr.mxu0 0.0
      %276 = vmatpush1.msra.mxu0 0.0
      %277 = vmatprep.subr.mxu0 0.0
      %278 = vmatpush1.msra.mxu0 0.0
      %279 = vmatprep.subr.mxu0 0.0
      %280 = vmatpush1.msra.mxu0 0.0
      %281 = vmatprep.subr.mxu0 0.0
      %282 = vmatpush1.msra.mxu0 0.0
      %283 = vmatprep.subr.mxu0 0.0
      %284 = vmatpush1.msra.mxu0 0.0
      %285 = vmatprep.subr.mxu0 0.0
      %286 = vmatpush1.msra.mxu0 0.0
      %287 = vmatprep.subr.mxu0 0.0
      %288 = vmatpush1.msra.mxu0 0.0
      %289 = vmatprep.subr.mxu0 0.0
      %290 = vmatpush1.msra.mxu0 0.0
      %291 = vmatprep.subr.mxu0 0.0
      %292 = vmatpush1.msra.mxu0 0.0
      %293 = vmatprep.subr.mxu0 0.0
      %294 = vmatpush1.msra.mxu0 0.0
      %295 = vmatprep.subr.mxu0 0.0
      %296 = vmatpush1.msra.mxu0 0.0
      %297 = vmatprep.subr.mxu0 0.0
      %298 = vmatpush1.msra.mxu0 0.0
      %299 = vmatprep.subr.mxu0 0.0
      %300 = vmatpush1.msra.mxu0 0.0
      %301 = vmatprep.subr.mxu0 0.0
      %302 = vmatpush1.msra.mxu0 0.0
      %303 = vmatprep.subr.mxu0 0.0
      %304 = vmatpush1.msra.mxu0 0.0
      %305 = vmatprep.subr.mxu0 0.0
      %306 = vmatpush1.msra.mxu0 0.0
      %307 = vmatprep.subr.mxu0 0.0
      %308 = vmatpush1.msra.mxu0 0.0
      %309 = vmatprep.subr.mxu0 0.0
      %310 = vmatpush1.msra.mxu0 0.0
      %311 = vmatprep.subr.mxu0 0.0
      %312 = vmatpush1.msra.mxu0 0.0
      %313 = vmatprep.subr.mxu0 0.0
      %314 = vmatpush1.msra.mxu0 0.0
      %315 = vmatprep.subr.mxu0 0.0
      %316 = vmatpush1.msra.mxu0 0.0
      %317 = vmatprep.subr.mxu0 0.0
      %318 = vmatpush1.msra.mxu0 0.0
      %319 = vmatprep.subr.mxu0 0.0
      %320 = vmatpush1.msra.mxu0 0.0
      %321 = vmatprep.subr.mxu0 0.0
      %322 = vmatpush1.msra.mxu0 0.0
      %323 = vmatprep.subr.mxu0 0.0
      %324 = vmatpush1.msra.mxu0 0.0
      %325 = vmatprep.subr.mxu0 0.0
      %326 = vmatpush1.msra.mxu0 0.0
      %327 = vmatprep.subr.mxu0 0.0
      %328 = vmatpush1.msra.mxu0 0.0
      %329 = vmatprep.subr.mxu0 0.0
      %330 = vmatpush1.msra.mxu0 0.0
      %331 = vmatprep.subr.mxu0 0.0
      %332 = vmatpush1.msra.mxu0 0.0
      %333 = vmatprep.subr.mxu0 0.0
      %334 = vmatpush1.msra.mxu0 0.0
      %335 = vmatprep.subr.mxu0 0.0
      %336 = vmatpush1.msra.mxu0 0.0
      %337 = vmatprep.mubr.f32.mxu0 0.0
      %338 = vmatmul.mubr.f32.gmra.mrb[0].mxu0 %v271
      %v339 = vpop.f32.mrb[0].mxu0
      %v340 = vadd.f32 0.0, %v339
      %v341 = vpop.f32.mrb[0].mxu0
      %342 = vdwg.mxu0
      %v343 = vlaneseq
      %v344 = vshrl.u32 %v343, 7
      %v345 = vsub.s32 0, %v344
      %v346 = vrot.slane %v188, %v345
      %347 = vrot.lane.b32.xlu0 %v346, 16
      %v348 = vpop.permute.xlu0 %347
      %351 = vrot.lane.b32.xlu0 %v340, 32
      %v352 = vpop.permute.xlu0 %351
      %vm354 = vcmask 130048
      %v355 = vsel %vm354, %v265, %v348
      %vm356 = vcmask 261120
      %v357 = vsel %vm356, %v355, %v352
      %v358 = vld [vmem:[%s2] sm:$0xff]
      %v359 = vld [vmem:[%s2 + $0x8] sm:$0xff]
      %v360 = vld [vmem:[%s2 + $0x10] sm:$0xff]
      %v361 = vld [vmem:[%s2 + $0x18] sm:$0xff]
      %v362 = vld [vmem:[%s2 + $0x20] sm:$0xff]
      %v363 = vld [vmem:[%s2 + $0x28] sm:$0xff]
      %vm364 = vcmask 392192
      %v366 = vsel %vm364, %v357, 0
      %368 = vmatprep.subr.mxu0 0.0
      %369 = vmatpush1.msra.mxu0 %v358
      %370 = vmatprep.subr.mxu0 0.0
      %371 = vmatpush1.msra.mxu0 %v359
      %372 = vmatprep.subr.mxu0 0.0
      %373 = vmatpush1.msra.mxu0 %v360
      %374 = vmatprep.subr.mxu0 0.0
      %375 = vmatpush1.msra.mxu0 %v361
      %376 = vmatprep.subr.mxu0 0.0
      %377 = vmatpush1.msra.mxu0 %v362
      %378 = vmatprep.subr.mxu0 0.0
      %379 = vmatpush1.msra.mxu0 %v363
      %380 = vmatprep.subr.mxu0 0.0
      %381 = vmatpush1.msra.mxu0 0.0
      %382 = vmatprep.subr.mxu0 0.0
      %383 = vmatpush1.msra.mxu0 0.0
      %384 = vmatprep.subr.mxu0 0.0
      %385 = vmatpush1.msra.mxu0 0.0
      %386 = vmatprep.subr.mxu0 0.0
      %387 = vmatpush1.msra.mxu0 0.0
      %388 = vmatprep.subr.mxu0 0.0
      %389 = vmatpush1.msra.mxu0 0.0
      %390 = vmatprep.subr.mxu0 0.0
      %391 = vmatpush1.msra.mxu0 0.0
      %392 = vmatprep.subr.mxu0 0.0
      %393 = vmatpush1.msra.mxu0 0.0
      %394 = vmatprep.subr.mxu0 0.0
      %395 = vmatpush1.msra.mxu0 0.0
      %396 = vmatprep.subr.mxu0 0.0
      %397 = vmatpush1.msra.mxu0 0.0
      %398 = vmatprep.subr.mxu0 0.0
      %399 = vmatpush1.msra.mxu0 0.0
      %400 = vmatprep.subr.mxu0 0.0
      %401 = vmatpush1.msra.mxu0 0.0
      %402 = vmatprep.subr.mxu0 0.0
      %403 = vmatpush1.msra.mxu0 0.0
      %404 = vmatprep.subr.mxu0 0.0
      %405 = vmatpush1.msra.mxu0 0.0
      %406 = vmatprep.subr.mxu0 0.0
      %407 = vmatpush1.msra.mxu0 0.0
      %408 = vmatprep.subr.mxu0 0.0
      %409 = vmatpush1.msra.mxu0 0.0
      %410 = vmatprep.subr.mxu0 0.0
      %411 = vmatpush1.msra.mxu0 0.0
      %412 = vmatprep.subr.mxu0 0.0
      %413 = vmatpush1.msra.mxu0 0.0
      %414 = vmatprep.subr.mxu0 0.0
      %415 = vmatpush1.msra.mxu0 0.0
      %416 = vmatprep.subr.mxu0 0.0
      %417 = vmatpush1.msra.mxu0 0.0
      %418 = vmatprep.subr.mxu0 0.0
      %419 = vmatpush1.msra.mxu0 0.0
      %420 = vmatprep.subr.mxu0 0.0
      %421 = vmatpush1.msra.mxu0 0.0
      %422 = vmatprep.subr.mxu0 0.0
      %423 = vmatpush1.msra.mxu0 0.0
      %424 = vmatprep.subr.mxu0 0.0
      %425 = vmatpush1.msra.mxu0 0.0
      %426 = vmatprep.subr.mxu0 0.0
      %427 = vmatpush1.msra.mxu0 0.0
      %428 = vmatprep.subr.mxu0 0.0
      %429 = vmatpush1.msra.mxu0 0.0
      %430 = vmatprep.subr.mxu0 0.0
      %431 = vmatpush1.msra.mxu0 0.0
      %432 = vmatprep.mubr.f32.mxu0 0.0
      %433 = vmatmul.mubr.f32.gmra.mrb[0].mxu0 %v366
      %v434 = vpop.f32.mrb[0].mxu0
      %v435 = vadd.f32 0.0, %v434
      %v436 = vpop.f32.mrb[0].mxu0
      %437 = vdwg.mxu0
      %v438 = vld [vmem:[%s3] sm:$0x1]
      %v439 = vmul.f32 %v435, %v438
      %v440 = vld [vmem:[%s3 + $0x1] sm:$0x1]
      %v441 = vadd.f32 %v439, %v440
      %v442 = vmax.f32 %v441, 0.0
      %vm443 = vcmask 122880
      %444 = vst.msk [vmem:[%s187] sm:$0x1] %vm443, %v442
      %p445 = scmp.lt.s32.totalorder %s15, 1
      %s446 = scalar_select %p445, %s15, 1
      %s447 = scalar_lea.vmem %s4, %s446
      // Predicated region
      $region37: #{rsu6_forward.17} parent=35 // pred_check
        %p448 = pneg %p122
      $region38: #{rsu6_forward.17} parent=35 // pred_check_branch
        %450 = sbr.rel (%p448) target = $region40
      $region39: #{rsu6_forward.17} parent=35 // pred_region
        _
      $region40: #{rsu6_forward.17} parent=35 // pred_fallthru
        _
    $region36: #{rsu6_forward.17} parent=5 // pred_fallthru
      _
    %p451 = scmp.le.s32.totalorder 2, %s10
    // Predicated region
    $region41: #{rsu6_forward.17} parent=5 // pred_check
      %p452 = pneg %p451
    $region42: #{rsu6_forward.17} parent=5 // pred_check_branch
      %454 = sbr.rel (%p452) target = $region44
    $region43: #{rsu6_forward.17} parent=5 // pred_region
      %s455 = ssub.s32 %s10, 2
      // Predicated region
      $region45: #{rsu6_forward.17} parent=43 // pred_check
        %p456 = pneg %p128
      $region46: #{rsu6_forward.17} parent=43 // pred_check_branch
        %458 = sbr.rel (%p456) target = $region48
      $region47: #{rsu6_forward.17} parent=43 // pred_region
        %p459 = scmp.lt.s32.totalorder %s16, 1
        %s460 = scalar_select %p459, %s16, 1
        %s461 = scalar_lea.vmem %s4, %s460
      $region48: #{rsu6_forward.17} parent=43 // pred_fallthru
        _
    $region44: #{rsu6_forward.17} parent=5 // pred_fallthru
      _
  $region6: #{rsu6_forward.17} parent=0 // loop_footer
    %s14 = sadd.s32 1, %s10
  $region7: #{rsu6_forward.17} parent=0 // loop_footer_branch
    %9 = sbr.rel target = $region3
  $region8: #{rsu6_forward.17} parent=0 // loop_exit
    _

// kernel: rsu6_forward.19
$region0: #{rsu6_forward.19}
  #allocation0 [shape = 'u32[]', space=smem, size = 0x4, offset = 0x4, fixed_abs, tag = 'smem constant byte address 0x4 - core index']
  #allocation1 [shape = 'u32[144,128]{1,0:T(1,128)}', space=vmem, size = 0x12000, scoped, tag = 'internal scratch']
  %s0 = inlined_call_operand.vmem [shape: f32[2,1,16], index: 0, kind: input, shape index: {}]
  %s1 = inlined_call_operand.vmem [shape: f32[2,1,16], index: 1, kind: input, shape index: {}]
  %s2 = inlined_call_operand.vmem [shape: f32[3,1,1], index: 2, kind: input, shape index: {}, may-alias: {2,3}]
  %s3 = inlined_call_operand.vmem [shape: f32[3,1,1], index: 3, kind: input, shape index: {}, may-alias: {2,3}]
  %s4 = inlined_call_operand.vmem [shape: f32[96,16], index: 4, kind: input, shape index: {}]
  %s5 = inlined_call_operand.vmem [shape: f32[2,16], index: 5, kind: input, shape index: {}]
  %s6 = inlined_call_operand.vmem [shape: f32[2,1,16], index: 6, kind: output, shape index: {}]
  %s7 = sld [smem:[#allocation0]]
  $region57: #{rsu6_forward.19} parent=0
    _
  %s9 = ssub.s32 1, %s7
  %s10 = scalar_select 0, %s9, %s7
  loop: start=0, step=1, limit=4
  $region2: #{rsu6_forward.19} parent=0 // loop_pre_header
    _
  $region3: #{rsu6_forward.19} parent=0 // loop_header
    %s12 = sphi 0, %s16
    %p13 = scmp.ge.s32.totalorder %s12, 4
    %s22 = sphi 0, %s24
    %s25 = sphi 0, %s22
    %s26 = sphi 0, %s25
    %s42 = sphi 0, %s26
    %s48 = sphi 0, %s50
    %s51 = sphi 0, %s48
    %s52 = sphi 0, %s51
    %s68 = sphi 0, %s52
    %s72 = sphi 0, %s72
    %s74 = sphi 0, %s72
    %s75 = sphi 0, %s74
    %s89 = sphi 0, %s75
    %s93 = sphi 0, %s93
    %s95 = sphi 0, %s93
    %s96 = sphi 0, %s95
    %s110 = sphi 0, %s96
    %s114 = sphi 0, %s114
    %s116 = sphi 0, %s114
    %s117 = sphi 0, %s116
    %s131 = sphi 0, %s117
    %s135 = sphi 0, %s135
    %s137 = sphi 0, %s135
    %s138 = sphi 0, %s137
    %s152 = sphi 0, %s138
    %s158 = sphi 0, %s160
    %s161 = sphi 0, %s158
    %s162 = sphi 0, %s161
    %s178 = sphi 0, %s162
  $region4: #{rsu6_forward.19} parent=0 // loop_header_branch
    %15 = sbr.rel (%p13) target = $region8
  $region5: #{rsu6_forward.19} parent=0 // loop_body
    %s17 = ssub.s32 %s12, 1
    %s18 = ssub.s32 %s12, 2
    %s19 = sadd.s32 %s12, 1
    %s20 = ssub.s32 %s12, %s19
    %p21 = scmp.eq.s32.totalorder %s20, 0
    %s23 = sadd.s32 %s22, 1
    %s24 = scalar_select %p21, %s22, %s23
    %p27 = pneg %p21
    %p28 = scmp.eq.s32.totalorder %s12, 1
    %p29 = por %p27, %p28
    %p30 = scmp.ne.s32.totalorder %s22, %s25
    %p31 = scmp.eq.s32.totalorder %s12, 0
    %p32 = por %p30, %p31
    %p33 = scmp.ne.s32.totalorder %s22, %s25
    %p34 = scmp.eq.s32.totalorder %s17, 1
    %p35 = por %p33, %p34
    %p36 = scmp.ne.s32.totalorder %s25, %s26
    %p37 = scmp.eq.s32.totalorder %s17, 0
    %p38 = por %p36, %p37
    %p39 = scmp.ne.s32.totalorder %s25, %s26
    %p40 = scmp.eq.s32.totalorder %s18, 1
    %p41 = por %p39, %p40
    %p43 = scmp.ne.s32.totalorder %s26, %s42
    %p44 = scmp.eq.s32.totalorder %s18, 0
    %p45 = por %p43, %p44
    %s46 = ssub.s32 %s12, %s19
    %p47 = scmp.eq.s32.totalorder %s46, 0
    %s49 = sadd.s32 %s48, 1
    %s50 = scalar_select %p47, %s48, %s49
    %p53 = pneg %p47
    %p54 = scmp.eq.s32.totalorder %s12, 1
    %p55 = por %p53, %p54
    %p56 = scmp.ne.s32.totalorder %s48, %s51
    %p57 = scmp.eq.s32.totalorder %s12, 0
    %p58 = por %p56, %p57
    %p59 = scmp.ne.s32.totalorder %s48, %s51
    %p60 = scmp.eq.s32.totalorder %s17, 1
    %p61 = por %p59, %p60
    %p62 = scmp.ne.s32.totalorder %s51, %s52
    %p63 = scmp.eq.s32.totalorder %s17, 0
    %p64 = por %p62, %p63
    %p65 = scmp.ne.s32.totalorder %s51, %s52
    %p66 = scmp.eq.s32.totalorder %s18, 1
    %p67 = por %p65, %p66
    %p69 = scmp.ne.s32.totalorder %s52, %s68
    %p70 = scmp.eq.s32.totalorder %s18, 0
    %p71 = por %p69, %p70
    %s73 = sadd.s32 %s72, 1
    %p76 = scmp.eq.s32.totalorder %s12, 1
    %p77 = scmp.ne.s32.totalorder %s72, %s74
    %p78 = scmp.eq.s32.totalorder %s12, 0
    %p79 = por %p77, %p78
    %p80 = scmp.ne.s32.totalorder %s72, %s74
    %p81 = scmp.eq.s32.totalorder %s17, 1
    %p82 = por %p80, %p81
    %p83 = scmp.ne.s32.totalorder %s74, %s75
    %p84 = scmp.eq.s32.totalorder %s17, 0
    %p85 = por %p83, %p84
    %p86 = scmp.ne.s32.totalorder %s74, %s75
    %p87 = scmp.eq.s32.totalorder %s18, 1
    %p88 = por %p86, %p87
    %p90 = scmp.ne.s32.totalorder %s75, %s89
    %p91 = scmp.eq.s32.totalorder %s18, 0
    %p92 = por %p90, %p91
    %s94 = sadd.s32 %s93, 1
    %p97 = scmp.eq.s32.totalorder %s12, 1
    %p98 = scmp.ne.s32.totalorder %s93, %s95
    %p99 = scmp.eq.s32.totalorder %s12, 0
    %p100 = por %p98, %p99
    %p101 = scmp.ne.s32.totalorder %s93, %s95
    %p102 = scmp.eq.s32.totalorder %s17, 1
    %p103 = por %p101, %p102
    %p104 = scmp.ne.s32.totalorder %s95, %s96
    %p105 = scmp.eq.s32.totalorder %s17, 0
    %p106 = por %p104, %p105
    %p107 = scmp.ne.s32.totalorder %s95, %s96
    %p108 = scmp.eq.s32.totalorder %s18, 1
    %p109 = por %p107, %p108
    %p111 = scmp.ne.s32.totalorder %s96, %s110
    %p112 = scmp.eq.s32.totalorder %s18, 0
    %p113 = por %p111, %p112
    %s115 = sadd.s32 %s114, 1
    %p118 = scmp.eq.s32.totalorder %s12, 1
    %p119 = scmp.ne.s32.totalorder %s114, %s116
    %p120 = scmp.eq.s32.totalorder %s12, 0
    %p121 = por %p119, %p120
    %p122 = scmp.ne.s32.totalorder %s114, %s116
    %p123 = scmp.eq.s32.totalorder %s17, 1
    %p124 = por %p122, %p123
    %p125 = scmp.ne.s32.totalorder %s116, %s117
    %p126 = scmp.eq.s32.totalorder %s17, 0
    %p127 = por %p125, %p126
    %p128 = scmp.ne.s32.totalorder %s116, %s117
    %p129 = scmp.eq.s32.totalorder %s18, 1
    %p130 = por %p128, %p129
    %p132 = scmp.ne.s32.totalorder %s117, %s131
    %p133 = scmp.eq.s32.totalorder %s18, 0
    %p134 = por %p132, %p133
    %s136 = sadd.s32 %s135, 1
    %p139 = scmp.eq.s32.totalorder %s12, 1
    %p140 = scmp.ne.s32.totalorder %s135, %s137
    %p141 = scmp.eq.s32.totalorder %s12, 0
    %p142 = por %p140, %p141
    %p143 = scmp.ne.s32.totalorder %s135, %s137
    %p144 = scmp.eq.s32.totalorder %s17, 1
    %p145 = por %p143, %p144
    %p146 = scmp.ne.s32.totalorder %s137, %s138
    %p147 = scmp.eq.s32.totalorder %s17, 0
    %p148 = por %p146, %p147
    %p149 = scmp.ne.s32.totalorder %s137, %s138
    %p150 = scmp.eq.s32.totalorder %s18, 1
    %p151 = por %p149, %p150
    %p153 = scmp.ne.s32.totalorder %s138, %s152
    %p154 = scmp.eq.s32.totalorder %s18, 0
    %p155 = por %p153, %p154
    %s156 = ssub.s32 %s12, %s19
    %p157 = scmp.eq.s32.totalorder %s156, 0
    %s159 = sadd.s32 %s158, 1
    %s160 = scalar_select %p157, %s158, %s159
    %p163 = pneg %p157
    %p164 = scmp.eq.s32.totalorder %s12, 1
    %p165 = por %p163, %p164
    %p166 = scmp.ne.s32.totalorder %s158, %s161
    %p167 = scmp.eq.s32.totalorder %s12, 0
    %p168 = por %p166, %p167
    %p169 = scmp.ne.s32.totalorder %s158, %s161
    %p170 = scmp.eq.s32.totalorder %s17, 1
    %p171 = por %p169, %p170
    %p172 = scmp.ne.s32.totalorder %s161, %s162
    %p173 = scmp.eq.s32.totalorder %s17, 0
    %p174 = por %p172, %p173
    %p175 = scmp.ne.s32.totalorder %s161, %s162
    %p176 = scmp.eq.s32.totalorder %s18, 1
    %p177 = por %p175, %p176
    %p179 = scmp.ne.s32.totalorder %s162, %s178
    %p180 = scmp.eq.s32.totalorder %s18, 0
    %p181 = por %p179, %p180
    %p182 = scmp.le.s32.totalorder 1, %s12
    %p183 = scmp.lt.s32.totalorder %s12, 3
    %p184 = pnand %p182, %p183
    %p185 = pneg %p184
    // Predicated region
    $region9: #{rsu6_forward.19} parent=5 // pred_check
      _
    $region10: #{rsu6_forward.19} parent=5 // pred_check_branch
      %187 = sbr.rel (%p184) target = $region12
    $region11: #{rsu6_forward.19} parent=5 // pred_region
      %s188 = ssub.s32 %s12, 1
      // Predicated region
      $region13: #{rsu6_forward.19} parent=11 // pred_check
        %p189 = pneg %p85
      $region14: #{rsu6_forward.19} parent=11 // pred_check_branch
        %191 = sbr.rel (%p189) target = $region16
      $region15: #{rsu6_forward.19} parent=11 // pred_region
        _
      $region16: #{rsu6_forward.19} parent=11 // pred_fallthru
        _
      // Predicated region
      $region17: #{rsu6_forward.19} parent=11 // pred_check
        %p192 = pneg %p106
      $region18: #{rsu6_forward.19} parent=11 // pred_check_branch
        %194 = sbr.rel (%p192) target = $region20
      $region19: #{rsu6_forward.19} parent=11 // pred_region
        _
      $region20: #{rsu6_forward.19} parent=11 // pred_fallthru
        _
      // Predicated region
      $region21: #{rsu6_forward.19} parent=11 // pred_check
        %p195 = pneg %p127
      $region22: #{rsu6_forward.19} parent=11 // pred_check_branch
        %197 = sbr.rel (%p195) target = $region24
      $region23: #{rsu6_forward.19} parent=11 // pred_region
        _
      $region24: #{rsu6_forward.19} parent=11 // pred_fallthru
        _
      // Predicated region
      $region25: #{rsu6_forward.19} parent=11 // pred_check
        %p198 = pneg %p148
      $region26: #{rsu6_forward.19} parent=11 // pred_check_branch
        %200 = sbr.rel (%p198) target = $region28
      $region27: #{rsu6_forward.19} parent=11 // pred_region
        _
      $region28: #{rsu6_forward.19} parent=11 // pred_fallthru
        _
    $region12: #{rsu6_forward.19} parent=5 // pred_fallthru
      _
    %p201 = scmp.lt.s32.totalorder %s12, 2
    // Predicated region
    $region29: #{rsu6_forward.19} parent=5 // pred_check
      %p202 = pneg %p201
    $region30: #{rsu6_forward.19} parent=5 // pred_check_branch
      %204 = sbr.rel (%p202) target = $region32
    $region31: #{rsu6_forward.19} parent=5 // pred_region
      // Predicated region
      $region33: #{rsu6_forward.19} parent=31 // pred_check
        %p205 = pneg %p32
      $region34: #{rsu6_forward.19} parent=31 // pred_check_branch
        %207 = sbr.rel (%p205) target = $region36
      $region35: #{rsu6_forward.19} parent=31 // pred_region
        %p208 = scmp.lt.s32.totalorder %s12, 1
        %s209 = scalar_select %p208, %s12, 1
        %s210 = scalar_lea.vmem %s0, %s209
      $region36: #{rsu6_forward.19} parent=31 // pred_fallthru
        _
      // Predicated region
      $region37: #{rsu6_forward.19} parent=31 // pred_check
        %p211 = pneg %p58
      $region38: #{rsu6_forward.19} parent=31 // pred_check_branch
        %213 = sbr.rel (%p211) target = $region40
      $region39: #{rsu6_forward.19} parent=31 // pred_region
        %p214 = scmp.lt.s32.totalorder %s12, 1
        %s215 = scalar_select %p214, %s12, 1
        %s216 = scalar_lea.vmem %s1, %s215
      $region40: #{rsu6_forward.19} parent=31 // pred_fallthru
        _
    $region32: #{rsu6_forward.19} parent=5 // pred_fallthru
      _
    %p217 = scmp.le.s32.totalorder 1, %s12
    %p218 = scmp.lt.s32.totalorder %s12, 3
    %p219 = pnand %p217, %p218
    %p220 = pneg %p219
    // Predicated region
    $region41: #{rsu6_forward.19} parent=5 // pred_check
      _
    $region42: #{rsu6_forward.19} parent=5 // pred_check_branch
      %222 = sbr.rel (%p219) target = $region44
    $region43: #{rsu6_forward.19} parent=5 // pred_region
      %s223 = ssub.s32 %s12, 1
      %p224 = scmp.lt.s32.totalorder %s17, 1
      %s225 = scalar_select %p224, %s17, 1
      %s226 = scalar_lea.vmem %s0, %s225
      %p227 = pneg %p38
      %p228 = pneg %p35
      %p229 = scmp.lt.s32.totalorder %s17, 1
      %s230 = scalar_select %p229, %s17, 1
      %s231 = scalar_lea.vmem %s1, %s230
      %p232 = pneg %p64
      %p233 = pneg %p61
      %p234 = pneg %p85
      %p235 = pneg %p82
      %p236 = pneg %p106
      %p237 = pneg %p103
      %p238 = pneg %p127
      %p239 = pneg %p124
      %p240 = pneg %p148
      %p241 = pneg %p145
      %p242 = pneg %p174
      %p243 = pneg %p171
      %p244 = scmp.lt.s32.totalorder %s17, 1
      %s245 = scalar_select %p244, %s17, 1
      %s246 = scalar_lea.vmem %s6, %s245
      %p247 = scmp.lt.s32.totalorder %s17, 1
      %s248 = scalar_select %p247, %s17, 1
      %s249 = scalar_lea.vmem %s0, %s248
      %p250 = scmp.lt.s32.totalorder %s17, 1
      %s251 = scalar_select %p250, %s17, 1
      %s252 = scalar_lea.vmem %s1, %s251
      %p253 = scmp.lt.s32.totalorder %s17, 1
      %s254 = scalar_select %p253, %s17, 1
      %s255 = scalar_lea.vmem %s6, %s254
      %v256 = vld [vmem:[%s249] sm:$0x1]
      %v257 = vld [vmem:[%s2] sm:$0x1]
      %vm258 = vcmask 7168
      %v260 = vsel %vm258, %v257, 0
      %vm262 = vcmask 1040384
      %v264 = vsel %vm262, %v256, 0
      %266 = vmatprep.subr.mxu0 0.0
      %267 = vmatpush1.msra.mxu0 %v264
      %268 = vmatprep.subr.mxu0 0.0
      %269 = vmatpush1.msra.mxu0 0.0
      %270 = vmatprep.subr.mxu0 0.0
      %271 = vmatpush1.msra.mxu0 0.0
      %272 = vmatprep.subr.mxu0 0.0
      %273 = vmatpush1.msra.mxu0 0.0
      %274 = vmatprep.subr.mxu0 0.0
      %275 = vmatpush1.msra.mxu0 0.0
      %276 = vmatprep.subr.mxu0 0.0
      %277 = vmatpush1.msra.mxu0 0.0
      %278 = vmatprep.subr.mxu0 0.0
      %279 = vmatpush1.msra.mxu0 0.0
      %280 = vmatprep.subr.mxu0 0.0
      %281 = vmatpush1.msra.mxu0 0.0
      %282 = vmatprep.subr.mxu0 0.0
      %283 = vmatpush1.msra.mxu0 0.0
      %284 = vmatprep.subr.mxu0 0.0
      %285 = vmatpush1.msra.mxu0 0.0
      %286 = vmatprep.subr.mxu0 0.0
      %287 = vmatpush1.msra.mxu0 0.0
      %288 = vmatprep.subr.mxu0 0.0
      %289 = vmatpush1.msra.mxu0 0.0
      %290 = vmatprep.subr.mxu0 0.0
      %291 = vmatpush1.msra.mxu0 0.0
      %292 = vmatprep.subr.mxu0 0.0
      %293 = vmatpush1.msra.mxu0 0.0
      %294 = vmatprep.subr.mxu0 0.0
      %295 = vmatpush1.msra.mxu0 0.0
      %296 = vmatprep.subr.mxu0 0.0
      %297 = vmatpush1.msra.mxu0 0.0
      %298 = vmatprep.subr.mxu0 0.0
      %299 = vmatpush1.msra.mxu0 0.0
      %300 = vmatprep.subr.mxu0 0.0
      %301 = vmatpush1.msra.mxu0 0.0
      %302 = vmatprep.subr.mxu0 0.0
      %303 = vmatpush1.msra.mxu0 0.0
      %304 = vmatprep.subr.mxu0 0.0
      %305 = vmatpush1.msra.mxu0 0.0
      %306 = vmatprep.subr.mxu0 0.0
      %307 = vmatpush1.msra.mxu0 0.0
      %308 = vmatprep.subr.mxu0 0.0
      %309 = vmatpush1.msra.mxu0 0.0
      %310 = vmatprep.subr.mxu0 0.0
      %311 = vmatpush1.msra.mxu0 0.0
      %312 = vmatprep.subr.mxu0 0.0
      %313 = vmatpush1.msra.mxu0 0.0
      %314 = vmatprep.subr.mxu0 0.0
      %315 = vmatpush1.msra.mxu0 0.0
      %316 = vmatprep.subr.mxu0 0.0
      %317 = vmatpush1.msra.mxu0 0.0
      %318 = vmatprep.subr.mxu0 0.0
      %319 = vmatpush1.msra.mxu0 0.0
      %320 = vmatprep.subr.mxu0 0.0
      %321 = vmatpush1.msra.mxu0 0.0
      %322 = vmatprep.subr.mxu0 0.0
      %323 = vmatpush1.msra.mxu0 0.0
      %324 = vmatprep.subr.mxu0 0.0
      %325 = vmatpush1.msra.mxu0 0.0
      %326 = vmatprep.subr.mxu0 0.0
      %327 = vmatpush1.msra.mxu0 0.0
      %328 = vmatprep.subr.mxu0 0.0
      %329 = vmatpush1.msra.mxu0 0.0
      %330 = vmatprep.mubr.f32.mxu0 0.0
      %331 = vmatmul.mubr.f32.gmra.mrb[0].mxu0 %v260
      %v332 = vpop.f32.mrb[0].mxu0
      %v333 = vadd.f32 0.0, %v332
      %v334 = vpop.f32.mrb[0].mxu0
      %335 = vdwg.mxu0
      %s336 = scalar_lea.vmem %s2, 2
      %v337 = vld [vmem:[%s336] sm:$0x1]
      %v339 = vsel %vm258, %v337, 0
      %341 = vmatprep.subr.mxu0 0.0
      %342 = vmatpush1.msra.mxu0 %v264
      %343 = vmatprep.subr.mxu0 0.0
      %344 = vmatpush1.msra.mxu0 0.0
      %345 = vmatprep.subr.mxu0 0.0
      %346 = vmatpush1.msra.mxu0 0.0
      %347 = vmatprep.subr.mxu0 0.0
      %348 = vmatpush1.msra.mxu0 0.0
      %349 = vmatprep.subr.mxu0 0.0
      %350 = vmatpush1.msra.mxu0 0.0
      %351 = vmatprep.subr.mxu0 0.0
      %352 = vmatpush1.msra.mxu0 0.0
      %353 = vmatprep.subr.mxu0 0.0
      %354 = vmatpush1.msra.mxu0 0.0
      %355 = vmatprep.subr.mxu0 0.0
      %356 = vmatpush1.msra.mxu0 0.0
      %357 = vmatprep.subr.mxu0 0.0
      %358 = vmatpush1.msra.mxu0 0.0
      %359 = vmatprep.subr.mxu0 0.0
      %360 = vmatpush1.msra.mxu0 0.0
      %361 = vmatprep.subr.mxu0 0.0
      %362 = vmatpush1.msra.mxu0 0.0
      %363 = vmatprep.subr.mxu0 0.0
      %364 = vmatpush1.msra.mxu0 0.0
      %365 = vmatprep.subr.mxu0 0.0
      %366 = vmatpush1.msra.mxu0 0.0
      %367 = vmatprep.subr.mxu0 0.0
      %368 = vmatpush1.msra.mxu0 0.0
      %369 = vmatprep.subr.mxu0 0.0
      %370 = vmatpush1.msra.mxu0 0.0
      %371 = vmatprep.subr.mxu0 0.0
      %372 = vmatpush1.msra.mxu0 0.0
      %373 = vmatprep.subr.mxu0 0.0
      %374 = vmatpush1.msra.mxu0 0.0
      %375 = vmatprep.subr.mxu0 0.0
      %376 = vmatpush1.msra.mxu0 0.0
      %377 = vmatprep.subr.mxu0 0.0
      %378 = vmatpush1.msra.mxu0 0.0
      %379 = vmatprep.subr.mxu0 0.0
      %380 = vmatpush1.msra.mxu0 0.0
      %381 = vmatprep.subr.mxu0 0.0
      %382 = vmatpush1.msra.mxu0 0.0
      %383 = vmatprep.subr.mxu0 0.0
      %384 = vmatpush1.msra.mxu0 0.0
      %385 = vmatprep.subr.mxu0 0.0
      %386 = vmatpush1.msra.mxu0 0.0
      %387 = vmatprep.subr.mxu0 0.0
      %388 = vmatpush1.msra.mxu0 0.0
      %389 = vmatprep.subr.mxu0 0.0
      %390 = vmatpush1.msra.mxu0 0.0
      %391 = vmatprep.subr.mxu0 0.0
      %392 = vmatpush1.msra.mxu0 0.0
      %393 = vmatprep.subr.mxu0 0.0
      %394 = vmatpush1.msra.mxu0 0.0
      %395 = vmatprep.subr.mxu0 0.0
      %396 = vmatpush1.msra.mxu0 0.0
      %397 = vmatprep.subr.mxu0 0.0
      %398 = vmatpush1.msra.mxu0 0.0
      %399 = vmatprep.subr.mxu0 0.0
      %400 = vmatpush1.msra.mxu0 0.0
      %401 = vmatprep.subr.mxu0 0.0
      %402 = vmatpush1.msra.mxu0 0.0
      %403 = vmatprep.subr.mxu0 0.0
      %404 = vmatpush1.msra.mxu0 0.0
      %405 = vmatprep.mubr.f32.mxu0 0.0
      %406 = vmatmul.mubr.f32.gmra.mrb[0].mxu0 %v339
      %v407 = vpop.f32.mrb[0].mxu0
      %v408 = vadd.f32 0.0, %v407
      %v409 = vpop.f32.mrb[0].mxu0
      %410 = vdwg.mxu0
      %v411 = vld [vmem:[%s252] sm:$0x1]
      %v412 = vld [vmem:[%s3] sm:$0x1]
      %v414 = vsel %vm258, %v412, 0
      %v417 = vsel %vm262, %v411, 0
      %419 = vmatprep.subr.mxu0 0.0
      %420 = vmatpush1.msra.mxu0 %v417
      %421 = vmatprep.subr.mxu0 0.0
      %422 = vmatpush1.msra.mxu0 0.0
      %423 = vmatprep.subr.mxu0 0.0
      %424 = vmatpush1.msra.mxu0 0.0
      %425 = vmatprep.subr.mxu0 0.0
      %426 = vmatpush1.msra.mxu0 0.0
      %427 = vmatprep.subr.mxu0 0.0
      %428 = vmatpush1.msra.mxu0 0.0
      %429 = vmatprep.subr.mxu0 0.0
      %430 = vmatpush1.msra.mxu0 0.0
      %431 = vmatprep.subr.mxu0 0.0
      %432 = vmatpush1.msra.mxu0 0.0
      %433 = vmatprep.subr.mxu0 0.0
      %434 = vmatpush1.msra.mxu0 0.0
      %435 = vmatprep.subr.mxu0 0.0
      %436 = vmatpush1.msra.mxu0 0.0
      %437 = vmatprep.subr.mxu0 0.0
      %438 = vmatpush1.msra.mxu0 0.0
      %439 = vmatprep.subr.mxu0 0.0
      %440 = vmatpush1.msra.mxu0 0.0
      %441 = vmatprep.subr.mxu0 0.0
      %442 = vmatpush1.msra.mxu0 0.0
      %443 = vmatprep.subr.mxu0 0.0
      %444 = vmatpush1.msra.mxu0 0.0
      %445 = vmatprep.subr.mxu0 0.0
      %446 = vmatpush1.msra.mxu0 0.0
      %447 = vmatprep.subr.mxu0 0.0
      %448 = vmatpush1.msra.mxu0 0.0
      %449 = vmatprep.subr.mxu0 0.0
      %450 = vmatpush1.msra.mxu0 0.0
      %451 = vmatprep.subr.mxu0 0.0
      %452 = vmatpush1.msra.mxu0 0.0
      %453 = vmatprep.subr.mxu0 0.0
      %454 = vmatpush1.msra.mxu0 0.0
      %455 = vmatprep.subr.mxu0 0.0
      %456 = vmatpush1.msra.mxu0 0.0
      %457 = vmatprep.subr.mxu0 0.0
      %458 = vmatpush1.msra.mxu0 0.0
      %459 = vmatprep.subr.mxu0 0.0
      %460 = vmatpush1.msra.mxu0 0.0
      %461 = vmatprep.subr.mxu0 0.0
      %462 = vmatpush1.msra.mxu0 0.0
      %463 = vmatprep.subr.mxu0 0.0
      %464 = vmatpush1.msra.mxu0 0.0
      %465 = vmatprep.subr.mxu0 0.0
      %466 = vmatpush1.msra.mxu0 0.0
      %467 = vmatprep.subr.mxu0 0.0
      %468 = vmatpush1.msra.mxu0 0.0
      %469 = vmatprep.subr.mxu0 0.0
      %470 = vmatpush1.msra.mxu0 0.0
      %471 = vmatprep.subr.mxu0 0.0
      %472 = vmatpush1.msra.mxu0 0.0
      %473 = vmatprep.subr.mxu0 0.0
      %474 = vmatpush1.msra.mxu0 0.0
      %475 = vmatprep.subr.mxu0 0.0
      %476 = vmatpush1.msra.mxu0 0.0
      %477 = vmatprep.subr.mxu0 0.0
      %478 = vmatpush1.msra.mxu0 0.0
      %479 = vmatprep.subr.mxu0 0.0
      %480 = vmatpush1.msra.mxu0 0.0
      %481 = vmatprep.subr.mxu0 0.0
      %482 = vmatpush1.msra.mxu0 0.0
      %483 = vmatprep.mubr.f32.mxu0 0.0
      %484 = vmatmul.mubr.f32.gmra.mrb[0].mxu0 %v414
      %v485 = vpop.f32.mrb[0].mxu0
      %v486 = vadd.f32 0.0, %v485
      %v487 = vpop.f32.mrb[0].mxu0
      %488 = vdwg.mxu0
      %s489 = scalar_lea.vmem %s3, 2
      %v490 = vld [vmem:[%s489] sm:$0x1]
      %v492 = vsel %vm258, %v490, 0
      %494 = vmatprep.subr.mxu0 0.0
      %495 = vmatpush1.msra.mxu0 %v417
      %496 = vmatprep.subr.mxu0 0.0
      %497 = vmatpush1.msra.mxu0 0.0
      %498 = vmatprep.subr.mxu0 0.0
      %499 = vmatpush1.msra.mxu0 0.0
      %500 = vmatprep.subr.mxu0 0.0
      %501 = vmatpush1.msra.mxu0 0.0
      %502 = vmatprep.subr.mxu0 0.0
      %503 = vmatpush1.msra.mxu0 0.0
      %504 = vmatprep.subr.mxu0 0.0
      %505 = vmatpush1.msra.mxu0 0.0
      %506 = vmatprep.subr.mxu0 0.0
      %507 = vmatpush1.msra.mxu0 0.0
      %508 = vmatprep.subr.mxu0 0.0
      %509 = vmatpush1.msra.mxu0 0.0
      %510 = vmatprep.subr.mxu0 0.0
      %511 = vmatpush1.msra.mxu0 0.0
      %512 = vmatprep.subr.mxu0 0.0
      %513 = vmatpush1.msra.mxu0 0.0
      %514 = vmatprep.subr.mxu0 0.0
      %515 = vmatpush1.msra.mxu0 0.0
      %516 = vmatprep.subr.mxu0 0.0
      %517 = vmatpush1.msra.mxu0 0.0
      %518 = vmatprep.subr.mxu0 0.0
      %519 = vmatpush1.msra.mxu0 0.0
      %520 = vmatprep.subr.mxu0 0.0
      %521 = vmatpush1.msra.mxu0 0.0
      %522 = vmatprep.subr.mxu0 0.0
      %523 = vmatpush1.msra.mxu0 0.0
      %524 = vmatprep.subr.mxu0 0.0
      %525 = vmatpush1.msra.mxu0 0.0
      %526 = vmatprep.subr.mxu0 0.0
      %527 = vmatpush1.msra.mxu0 0.0
      %528 = vmatprep.subr.mxu0 0.0
      %529 = vmatpush1.msra.mxu0 0.0
      %530 = vmatprep.subr.mxu0 0.0
      %531 = vmatpush1.msra.mxu0 0.0
      %532 = vmatprep.subr.mxu0 0.0
      %533 = vmatpush1.msra.mxu0 0.0
      %534 = vmatprep.subr.mxu0 0.0
      %535 = vmatpush1.msra.mxu0 0.0
      %536 = vmatprep.subr.mxu0 0.0
      %537 = vmatpush1.msra.mxu0 0.0
      %538 = vmatprep.subr.mxu0 0.0
      %539 = vmatpush1.msra.mxu0 0.0
      %540 = vmatprep.subr.mxu0 0.0
      %541 = vmatpush1.msra.mxu0 0.0
      %542 = vmatprep.subr.mxu0 0.0
      %543 = vmatpush1.msra.mxu0 0.0
      %544 = vmatprep.subr.mxu0 0.0
      %545 = vmatpush1.msra.mxu0 0.0
      %546 = vmatprep.subr.mxu0 0.0
      %547 = vmatpush1.msra.mxu0 0.0
      %548 = vmatprep.subr.mxu0 0.0
      %549 = vmatpush1.msra.mxu0 0.0
      %550 = vmatprep.subr.mxu0 0.0
      %551 = vmatpush1.msra.mxu0 0.0
      %552 = vmatprep.subr.mxu0 0.0
      %553 = vmatpush1.msra.mxu0 0.0
      %554 = vmatprep.subr.mxu0 0.0
      %555 = vmatpush1.msra.mxu0 0.0
      %556 = vmatprep.subr.mxu0 0.0
      %557 = vmatpush1.msra.mxu0 0.0
      %558 = vmatprep.mubr.f32.mxu0 0.0
      %559 = vmatmul.mubr.f32.gmra.mrb[0].mxu0 %v492
      %v560 = vpop.f32.mrb[0].mxu0
      %v561 = vadd.f32 0.0, %v560
      %v562 = vpop.f32.mrb[0].mxu0
      %563 = vdwg.mxu0
      %v564 = vlaneseq
      %v565 = vshrl.u32 %v564, 7
      %v566 = vsub.s32 0, %v565
      %v567 = vrot.slane %v256, %v566
      %568 = vrot.lane.b32.xlu0 %v567, 16
      %v569 = vpop.permute.xlu0 %568
      %572 = vrot.lane.b32.xlu0 %v408, 32
      %v573 = vpop.permute.xlu0 %572
      %576 = vrot.lane.b32.xlu0 %v486, 48
      %v577 = vpop.permute.xlu0 %576
      %v579 = vlaneseq
      %v580 = vshrl.u32 %v579, 7
      %v581 = vsub.s32 0, %v580
      %v582 = vrot.slane %v411, %v581
      %583 = vrot.lane.b32.xlu0 %v582, 64
      %v584 = vpop.permute.xlu0 %583
      %587 = vrot.lane.b32.xlu0 %v561, 80
      %v588 = vpop.permute.xlu0 %587
      %vm590 = vcmask 130048
      %v591 = vsel %vm590, %v333, %v569
      %vm592 = vcmask 261120
      %v593 = vsel %vm592, %v591, %v573
      %vm594 = vcmask 392192
      %v595 = vsel %vm594, %v593, %v577
      %vm596 = vcmask 523264
      %v597 = vsel %vm596, %v595, %v584
      %vm598 = vcmask 654336
      %v599 = vsel %vm598, %v597, %v588
      %v600 = vld [vmem:[%s4] sm:$0xff]
      %v601 = vld [vmem:[%s4 + $0x8] sm:$0xff]
      %v602 = vld [vmem:[%s4 + $0x10] sm:$0xff]
      %v603 = vld [vmem:[%s4 + $0x18] sm:$0xff]
      %v604 = vld [vmem:[%s4 + $0x20] sm:$0xff]
      %v605 = vld [vmem:[%s4 + $0x28] sm:$0xff]
      %v606 = vld [vmem:[%s4 + $0x30] sm:$0xff]
      %v607 = vld [vmem:[%s4 + $0x38] sm:$0xff]
      %v608 = vld [vmem:[%s4 + $0x40] sm:$0xff]
      %v609 = vld [vmem:[%s4 + $0x48] sm:$0xff]
      %v610 = vld [vmem:[%s4 + $0x50] sm:$0xff]
      %v611 = vld [vmem:[%s4 + $0x58] sm:$0xff]
      %vm612 = vcmask 785408
      %v614 = vsel %vm612, %v599, 0
      %616 = vmatprep.subr.mxu0 0.0
      %617 = vmatpush1.msra.mxu0 %v600
      %618 = vmatprep.subr.mxu0 0.0
      %619 = vmatpush1.msra.mxu0 %v601
      %620 = vmatprep.subr.mxu0 0.0
      %621 = vmatpush1.msra.mxu0 %v602
      %622 = vmatprep.subr.mxu0 0.0
      %623 = vmatpush1.msra.mxu0 %v603
      %624 = vmatprep.subr.mxu0 0.0
      %625 = vmatpush1.msra.mxu0 %v604
      %626 = vmatprep.subr.mxu0 0.0
      %627 = vmatpush1.msra.mxu0 %v605
      %628 = vmatprep.subr.mxu0 0.0
      %629 = vmatpush1.msra.mxu0 %v606
      %630 = vmatprep.subr.mxu0 0.0
      %631 = vmatpush1.msra.mxu0 %v607
      %632 = vmatprep.subr.mxu0 0.0
      %633 = vmatpush1.msra.mxu0 %v608
      %634 = vmatprep.subr.mxu0 0.0
      %635 = vmatpush1.msra.mxu0 %v609
      %636 = vmatprep.subr.mxu0 0.0
      %637 = vmatpush1.msra.mxu0 %v610
      %638 = vmatprep.subr.mxu0 0.0
      %639 = vmatpush1.msra.mxu0 %v611
      %640 = vmatprep.subr.mxu0 0.0
      %641 = vmatpush1.msra.mxu0 0.0
      %642 = vmatprep.subr.mxu0 0.0
      %643 = vmatpush1.msra.mxu0 0.0
      %644 = vmatprep.subr.mxu0 0.0
      %645 = vmatpush1.msra.mxu0 0.0
      %646 = vmatprep.subr.mxu0 0.0
      %647 = vmatpush1.msra.mxu0 0.0
      %648 = vmatprep.subr.mxu0 0.0
      %649 = vmatpush1.msra.mxu0 0.0
      %650 = vmatprep.subr.mxu0 0.0
      %651 = vmatpush1.msra.mxu0 0.0
      %652 = vmatprep.subr.mxu0 0.0
      %653 = vmatpush1.msra.mxu0 0.0
      %654 = vmatprep.subr.mxu0 0.0
      %655 = vmatpush1.msra.mxu0 0.0
      %656 = vmatprep.subr.mxu0 0.0
      %657 = vmatpush1.msra.mxu0 0.0
      %658 = vmatprep.subr.mxu0 0.0
      %659 = vmatpush1.msra.mxu0 0.0
      %660 = vmatprep.subr.mxu0 0.0
      %661 = vmatpush1.msra.mxu0 0.0
      %662 = vmatprep.subr.mxu0 0.0
      %663 = vmatpush1.msra.mxu0 0.0
      %664 = vmatprep.subr.mxu0 0.0
      %665 = vmatpush1.msra.mxu0 0.0
      %666 = vmatprep.subr.mxu0 0.0
      %667 = vmatpush1.msra.mxu0 0.0
      %668 = vmatprep.subr.mxu0 0.0
      %669 = vmatpush1.msra.mxu0 0.0
      %670 = vmatprep.subr.mxu0 0.0
      %671 = vmatpush1.msra.mxu0 0.0
      %672 = vmatprep.subr.mxu0 0.0
      %673 = vmatpush1.msra.mxu0 0.0
      %674 = vmatprep.subr.mxu0 0.0
      %675 = vmatpush1.msra.mxu0 0.0
      %676 = vmatprep.subr.mxu0 0.0
      %677 = vmatpush1.msra.mxu0 0.0
      %678 = vmatprep.subr.mxu0 0.0
      %679 = vmatpush1.msra.mxu0 0.0
      %680 = vmatprep.mubr.f32.mxu0 0.0
      %681 = vmatmul.mubr.f32.gmra.mrb[0].mxu0 %v614
      %v682 = vpop.f32.mrb[0].mxu0
      %v683 = vadd.f32 0.0, %v682
      %v684 = vpop.f32.mrb[0].mxu0
      %685 = vdwg.mxu0
      %v686 = vld [vmem:[%s5] sm:$0x1]
      %v687 = vmul.f32 %v683, %v686
      %v688 = vld [vmem:[%s5 + $0x1] sm:$0x1]
      %v689 = vadd.f32 %v687, %v688
      %v690 = vmax.f32 %v689, 0.0
      %vm691 = vcmask 122880
      %692 = vst.msk [vmem:[%s255] sm:$0x1] %vm691, %v690
      %p693 = scmp.lt.s32.totalorder %s17, 1
      %s694 = scalar_select %p693, %s17, 1
      %s695 = scalar_lea.vmem %s6, %s694
      // Predicated region
      $region45: #{rsu6_forward.19} parent=43 // pred_check
        %p696 = pneg %p171
      $region46: #{rsu6_forward.19} parent=43 // pred_check_branch
        %698 = sbr.rel (%p696) target = $region48
      $region47: #{rsu6_forward.19} parent=43 // pred_region
        _
      $region48: #{rsu6_forward.19} parent=43 // pred_fallthru
        _
    $region44: #{rsu6_forward.19} parent=5 // pred_fallthru
      _
    %p699 = scmp.le.s32.totalorder 2, %s12
    // Predicated region
    $region49: #{rsu6_forward.19} parent=5 // pred_check
      %p700 = pneg %p699
    $region50: #{rsu6_forward.19} parent=5 // pred_check_branch
      %702 = sbr.rel (%p700) target = $region52
    $region51: #{rsu6_forward.19} parent=5 // pred_region
      %s703 = ssub.s32 %s12, 2
      // Predicated region
      $region53: #{rsu6_forward.19} parent=51 // pred_check
        %p704 = pneg %p177
      $region54: #{rsu6_forward.19} parent=51 // pred_check_branch
        %706 = sbr.rel (%p704) target = $region56
      $region55: #{rsu6_forward.19} parent=51 // pred_region
        %p707 = scmp.lt.s32.totalorder %s18, 1
        %s708 = scalar_select %p707, %s18, 1
        %s709 = scalar_lea.vmem %s6, %s708
      $region56: #{rsu6_forward.19} parent=51 // pred_fallthru
        _
    $region52: #{rsu6_forward.19} parent=5 // pred_fallthru
      _
  $region6: #{rsu6_forward.19} parent=0 // loop_footer
    %s16 = sadd.s32 1, %s12
  $region7: #{rsu6_forward.19} parent=0 // loop_footer_branch
    %11 = sbr.rel target = $region3
  $region8: #{rsu6_forward.19} parent=0 // loop_exit
    _

// kernel: rsu6_forward.20
$region0: #{rsu6_forward.20}
  #allocation0 [shape = 'u32[]', space=smem, size = 0x4, offset = 0x4, fixed_abs, tag = 'smem constant byte address 0x4 - core index']
  #allocation1 [shape = 'u32[144,128]{1,0:T(1,128)}', space=vmem, size = 0x12000, scoped, tag = 'internal scratch']
  %s0 = inlined_call_operand.vmem [shape: f32[2,1,16], index: 0, kind: input, shape index: {}]
  %s1 = inlined_call_operand.vmem [shape: f32[2,2,32], index: 1, kind: input, shape index: {}]
  %s2 = inlined_call_operand.vmem [shape: f32[3,2,1], index: 2, kind: input, shape index: {}]
  %s3 = inlined_call_operand.vmem [shape: f32[3,2,2], index: 3, kind: input, shape index: {}]
  %s4 = inlined_call_operand.vmem [shape: f32[144,32], index: 4, kind: input, shape index: {}]
  %s5 = inlined_call_operand.vmem [shape: f32[2,32], index: 5, kind: input, shape index: {}]
  %s6 = inlined_call_operand.vmem [shape: f32[2,2,32], index: 6, kind: output, shape index: {}]
  %s7 = sld [smem:[#allocation0]]
  $region57: #{rsu6_forward.20} parent=0
    _
  %s9 = ssub.s32 1, %s7
  %s10 = scalar_select 0, %s9, %s7
  loop: start=0, step=1, limit=4
  $region2: #{rsu6_forward.20} parent=0 // loop_pre_header
    _
  $region3: #{rsu6_forward.20} parent=0 // loop_header
    %s12 = sphi 0, %s16
    %p13 = scmp.ge.s32.totalorder %s12, 4
    %s22 = sphi 0, %s24
    %s25 = sphi 0, %s22
    %s26 = sphi 0, %s25
    %s42 = sphi 0, %s26
    %s48 = sphi 0, %s50
    %s51 = sphi 0, %s48
    %s52 = sphi 0, %s51
    %s68 = sphi 0, %s52
    %s72 = sphi 0, %s72
    %s74 = sphi 0, %s72
    %s75 = sphi 0, %s74
    %s89 = sphi 0, %s75
    %s93 = sphi 0, %s93
    %s95 = sphi 0, %s93
    %s96 = sphi 0, %s95
    %s110 = sphi 0, %s96
    %s114 = sphi 0, %s114
    %s116 = sphi 0, %s114
    %s117 = sphi 0, %s116
    %s131 = sphi 0, %s117
    %s135 = sphi 0, %s135
    %s137 = sphi 0, %s135
    %s138 = sphi 0, %s137
    %s152 = sphi 0, %s138
    %s158 = sphi 0, %s160
    %s161 = sphi 0, %s158
    %s162 = sphi 0, %s161
    %s178 = sphi 0, %s162
  $region4: #{rsu6_forward.20} parent=0 // loop_header_branch
    %15 = sbr.rel (%p13) target = $region8
  $region5: #{rsu6_forward.20} parent=0 // loop_body
    %s17 = ssub.s32 %s12, 1
    %s18 = ssub.s32 %s12, 2
    %s19 = sadd.s32 %s12, 1
    %s20 = ssub.s32 %s12, %s19
    %p21 = scmp.eq.s32.totalorder %s20, 0
    %s23 = sadd.s32 %s22, 1
    %s24 = scalar_select %p21, %s22, %s23
    %p27 = pneg %p21
    %p28 = scmp.eq.s32.totalorder %s12, 1
    %p29 = por %p27, %p28
    %p30 = scmp.ne.s32.totalorder %s22, %s25
    %p31 = scmp.eq.s32.totalorder %s12, 0
    %p32 = por %p30, %p31
    %p33 = scmp.ne.s32.totalorder %s22, %s25
    %p34 = scmp.eq.s32.totalorder %s17, 1
    %p35 = por %p33, %p34
    %p36 = scmp.ne.s32.totalorder %s25, %s26
    %p37 = scmp.eq.s32.totalorder %s17, 0
    %p38 = por %p36, %p37
    %p39 = scmp.ne.s32.totalorder %s25, %s26
    %p40 = scmp.eq.s32.totalorder %s18, 1
    %p41 = por %p39, %p40
    %p43 = scmp.ne.s32.totalorder %s26, %s42
    %p44 = scmp.eq.s32.totalorder %s18, 0
    %p45 = por %p43, %p44
    %s46 = ssub.s32 %s12, %s19
    %p47 = scmp.eq.s32.totalorder %s46, 0
    %s49 = sadd.s32 %s48, 1
    %s50 = scalar_select %p47, %s48, %s49
    %p53 = pneg %p47
    %p54 = scmp.eq.s32.totalorder %s12, 1
    %p55 = por %p53, %p54
    %p56 = scmp.ne.s32.totalorder %s48, %s51
    %p57 = scmp.eq.s32.totalorder %s12, 0
    %p58 = por %p56, %p57
    %p59 = scmp.ne.s32.totalorder %s48, %s51
    %p60 = scmp.eq.s32.totalorder %s17, 1
    %p61 = por %p59, %p60
    %p62 = scmp.ne.s32.totalorder %s51, %s52
    %p63 = scmp.eq.s32.totalorder %s17, 0
    %p64 = por %p62, %p63
    %p65 = scmp.ne.s32.totalorder %s51, %s52
    %p66 = scmp.eq.s32.totalorder %s18, 1
    %p67 = por %p65, %p66
    %p69 = scmp.ne.s32.totalorder %s52, %s68
    %p70 = scmp.eq.s32.totalorder %s18, 0
    %p71 = por %p69, %p70
    %s73 = sadd.s32 %s72, 1
    %p76 = scmp.eq.s32.totalorder %s12, 1
    %p77 = scmp.ne.s32.totalorder %s72, %s74
    %p78 = scmp.eq.s32.totalorder %s12, 0
    %p79 = por %p77, %p78
    %p80 = scmp.ne.s32.totalorder %s72, %s74
    %p81 = scmp.eq.s32.totalorder %s17, 1
    %p82 = por %p80, %p81
    %p83 = scmp.ne.s32.totalorder %s74, %s75
    %p84 = scmp.eq.s32.totalorder %s17, 0
    %p85 = por %p83, %p84
    %p86 = scmp.ne.s32.totalorder %s74, %s75
    %p87 = scmp.eq.s32.totalorder %s18, 1
    %p88 = por %p86, %p87
    %p90 = scmp.ne.s32.totalorder %s75, %s89
    %p91 = scmp.eq.s32.totalorder %s18, 0
    %p92 = por %p90, %p91
    %s94 = sadd.s32 %s93, 1
    %p97 = scmp.eq.s32.totalorder %s12, 1
    %p98 = scmp.ne.s32.totalorder %s93, %s95
    %p99 = scmp.eq.s32.totalorder %s12, 0
    %p100 = por %p98, %p99
    %p101 = scmp.ne.s32.totalorder %s93, %s95
    %p102 = scmp.eq.s32.totalorder %s17, 1
    %p103 = por %p101, %p102
    %p104 = scmp.ne.s32.totalorder %s95, %s96
    %p105 = scmp.eq.s32.totalorder %s17, 0
    %p106 = por %p104, %p105
    %p107 = scmp.ne.s32.totalorder %s95, %s96
    %p108 = scmp.eq.s32.totalorder %s18, 1
    %p109 = por %p107, %p108
    %p111 = scmp.ne.s32.totalorder %s96, %s110
    %p112 = scmp.eq.s32.totalorder %s18, 0
    %p113 = por %p111, %p112
    %s115 = sadd.s32 %s114, 1
    %p118 = scmp.eq.s32.totalorder %s12, 1
    %p119 = scmp.ne.s32.totalorder %s114, %s116
    %p120 = scmp.eq.s32.totalorder %s12, 0
    %p121 = por %p119, %p120
    %p122 = scmp.ne.s32.totalorder %s114, %s116
    %p123 = scmp.eq.s32.totalorder %s17, 1
    %p124 = por %p122, %p123
    %p125 = scmp.ne.s32.totalorder %s116, %s117
    %p126 = scmp.eq.s32.totalorder %s17, 0
    %p127 = por %p125, %p126
    %p128 = scmp.ne.s32.totalorder %s116, %s117
    %p129 = scmp.eq.s32.totalorder %s18, 1
    %p130 = por %p128, %p129
    %p132 = scmp.ne.s32.totalorder %s117, %s131
    %p133 = scmp.eq.s32.totalorder %s18, 0
    %p134 = por %p132, %p133
    %s136 = sadd.s32 %s135, 1
    %p139 = scmp.eq.s32.totalorder %s12, 1
    %p140 = scmp.ne.s32.totalorder %s135, %s137
    %p141 = scmp.eq.s32.totalorder %s12, 0
    %p142 = por %p140, %p141
    %p143 = scmp.ne.s32.totalorder %s135, %s137
    %p144 = scmp.eq.s32.totalorder %s17, 1
    %p145 = por %p143, %p144
    %p146 = scmp.ne.s32.totalorder %s137, %s138
    %p147 = scmp.eq.s32.totalorder %s17, 0
    %p148 = por %p146, %p147
    %p149 = scmp.ne.s32.totalorder %s137, %s138
    %p150 = scmp.eq.s32.totalorder %s18, 1
    %p151 = por %p149, %p150
    %p153 = scmp.ne.s32.totalorder %s138, %s152
    %p154 = scmp.eq.s32.totalorder %s18, 0
    %p155 = por %p153, %p154
    %s156 = ssub.s32 %s12, %s19
    %p157 = scmp.eq.s32.totalorder %s156, 0
    %s159 = sadd.s32 %s158, 1
    %s160 = scalar_select %p157, %s158, %s159
    %p163 = pneg %p157
    %p164 = scmp.eq.s32.totalorder %s12, 1
    %p165 = por %p163, %p164
    %p166 = scmp.ne.s32.totalorder %s158, %s161
    %p167 = scmp.eq.s32.totalorder %s12, 0
    %p168 = por %p166, %p167
    %p169 = scmp.ne.s32.totalorder %s158, %s161
    %p170 = scmp.eq.s32.totalorder %s17, 1
    %p171 = por %p169, %p170
    %p172 = scmp.ne.s32.totalorder %s161, %s162
    %p173 = scmp.eq.s32.totalorder %s17, 0
    %p174 = por %p172, %p173
    %p175 = scmp.ne.s32.totalorder %s161, %s162
    %p176 = scmp.eq.s32.totalorder %s18, 1
    %p177 = por %p175, %p176
    %p179 = scmp.ne.s32.totalorder %s162, %s178
    %p180 = scmp.eq.s32.totalorder %s18, 0
    %p181 = por %p179, %p180
    %p182 = scmp.le.s32.totalorder 1, %s12
    %p183 = scmp.lt.s32.totalorder %s12, 3
    %p184 = pnand %p182, %p183
    %p185 = pneg %p184
    // Predicated region
    $region9: #{rsu6_forward.20} parent=5 // pred_check
      _
    $region10: #{rsu6_forward.20} parent=5 // pred_check_branch
      %187 = sbr.rel (%p184) target = $region12
    $region11: #{rsu6_forward.20} parent=5 // pred_region
      %s188 = ssub.s32 %s12, 1
      // Predicated region
      $region13: #{rsu6_forward.20} parent=11 // pred_check
        %p189 = pneg %p85
      $region14: #{rsu6_forward.20} parent=11 // pred_check_branch
        %191 = sbr.rel (%p189) target = $region16
      $region15: #{rsu6_forward.20} parent=11 // pred_region
        _
      $region16: #{rsu6_forward.20} parent=11 // pred_fallthru
        _
      // Predicated region
      $region17: #{rsu6_forward.20} parent=11 // pred_check
        %p192 = pneg %p106
      $region18: #{rsu6_forward.20} parent=11 // pred_check_branch
        %194 = sbr.rel (%p192) target = $region20
      $region19: #{rsu6_forward.20} parent=11 // pred_region
        _
      $region20: #{rsu6_forward.20} parent=11 // pred_fallthru
        _
      // Predicated region
      $region21: #{rsu6_forward.20} parent=11 // pred_check
        %p195 = pneg %p127
      $region22: #{rsu6_forward.20} parent=11 // pred_check_branch
        %197 = sbr.rel (%p195) target = $region24
      $region23: #{rsu6_forward.20} parent=11 // pred_region
        _
      $region24: #{rsu6_forward.20} parent=11 // pred_fallthru
        _
      // Predicated region
      $region25: #{rsu6_forward.20} parent=11 // pred_check
        %p198 = pneg %p148
      $region26: #{rsu6_forward.20} parent=11 // pred_check_branch
        %200 = sbr.rel (%p198) target = $region28
      $region27: #{rsu6_forward.20} parent=11 // pred_region
        _
      $region28: #{rsu6_forward.20} parent=11 // pred_fallthru
        _
    $region12: #{rsu6_forward.20} parent=5 // pred_fallthru
      _
    %p201 = scmp.lt.s32.totalorder %s12, 2
    // Predicated region
    $region29: #{rsu6_forward.20} parent=5 // pred_check
      %p202 = pneg %p201
    $region30: #{rsu6_forward.20} parent=5 // pred_check_branch
      %204 = sbr.rel (%p202) target = $region32
    $region31: #{rsu6_forward.20} parent=5 // pred_region
      // Predicated region
      $region33: #{rsu6_forward.20} parent=31 // pred_check
        %p205 = pneg %p32
      $region34: #{rsu6_forward.20} parent=31 // pred_check_branch
        %207 = sbr.rel (%p205) target = $region36
      $region35: #{rsu6_forward.20} parent=31 // pred_region
        %p208 = scmp.lt.s32.totalorder %s12, 1
        %s209 = scalar_select %p208, %s12, 1
        %s210 = scalar_lea.vmem %s0, %s209
      $region36: #{rsu6_forward.20} parent=31 // pred_fallthru
        _
      // Predicated region
      $region37: #{rsu6_forward.20} parent=31 // pred_check
        %p211 = pneg %p58
      $region38: #{rsu6_forward.20} parent=31 // pred_check_branch
        %213 = sbr.rel (%p211) target = $region40
      $region39: #{rsu6_forward.20} parent=31 // pred_region
        %p214 = scmp.lt.s32.totalorder %s12, 1
        %s215 = scalar_select %p214, %s12, 1
        %s216 = smul.addr %s215, 2
        %s217 = scalar_lea.vmem %s1, %s216
      $region40: #{rsu6_forward.20} parent=31 // pred_fallthru
        _
    $region32: #{rsu6_forward.20} parent=5 // pred_fallthru
      _
    %p218 = scmp.le.s32.totalorder 1, %s12
    %p219 = scmp.lt.s32.totalorder %s12, 3
    %p220 = pnand %p218, %p219
    %p221 = pneg %p220
    // Predicated region
    $region41: #{rsu6_forward.20} parent=5 // pred_check
      _
    $region42: #{rsu6_forward.20} parent=5 // pred_check_branch
      %223 = sbr.rel (%p220) target = $region44
    $region43: #{rsu6_forward.20} parent=5 // pred_region
      %s224 = ssub.s32 %s12, 1
      %p225 = scmp.lt.s32.totalorder %s17, 1
      %s226 = scalar_select %p225, %s17, 1
      %s227 = scalar_lea.vmem %s0, %s226
      %p228 = pneg %p38
      %p229 = pneg %p35
      %p230 = scmp.lt.s32.totalorder %s17, 1
      %s231 = scalar_select %p230, %s17, 1
      %s232 = smul.addr %s231, 2
      %s233 = scalar_lea.vmem %s1, %s232
      %p234 = pneg %p64
      %p235 = pneg %p61
      %p236 = pneg %p85
      %p237 = pneg %p82
      %p238 = pneg %p106
      %p239 = pneg %p103
      %p240 = pneg %p127
      %p241 = pneg %p124
      %p242 = pneg %p148
      %p243 = pneg %p145
      %p244 = pneg %p174
      %p245 = pneg %p171
      %p246 = scmp.lt.s32.totalorder %s17, 1
      %s247 = scalar_select %p246, %s17, 1
      %s248 = smul.addr %s247, 2
      %s249 = scalar_lea.vmem %s6, %s248
      %p250 = scmp.lt.s32.totalorder %s17, 1
      %s251 = scalar_select %p250, %s17, 1
      %s252 = scalar_lea.vmem %s0, %s251
      %p253 = scmp.lt.s32.totalorder %s17, 1
      %s254 = scalar_select %p253, %s17, 1
      %s255 = smul.addr %s254, 2
      %s256 = scalar_lea.vmem %s1, %s255
      %p257 = scmp.lt.s32.totalorder %s17, 1
      %s258 = scalar_select %p257, %s17, 1
      %s259 = smul.addr %s258, 2
      %s260 = scalar_lea.vmem %s6, %s259
      %v261 = vld [vmem:[%s252] sm:$0x1]
      %v262 = vld [vmem:[%s2] sm:$0x3]
      %vm263 = vcmask 7168
      %v265 = vsel %vm263, %v262, 0
      %vm267 = vcmask 1040384
      %v269 = vsel %vm267, %v261, 0
      %271 = vmatprep.subr.mxu0 0.0
      %272 = vmatpush1.msra.mxu0 %v269
      %273 = vmatprep.subr.mxu0 0.0
      %274 = vmatpush1.msra.mxu0 0.0
      %275 = vmatprep.subr.mxu0 0.0
      %276 = vmatpush1.msra.mxu0 0.0
      %277 = vmatprep.subr.mxu0 0.0
      %278 = vmatpush1.msra.mxu0 0.0
      %279 = vmatprep.subr.mxu0 0.0
      %280 = vmatpush1.msra.mxu0 0.0
      %281 = vmatprep.subr.mxu0 0.0
      %282 = vmatpush1.msra.mxu0 0.0
      %283 = vmatprep.subr.mxu0 0.0
      %284 = vmatpush1.msra.mxu0 0.0
      %285 = vmatprep.subr.mxu0 0.0
      %286 = vmatpush1.msra.mxu0 0.0
      %287 = vmatprep.subr.mxu0 0.0
      %288 = vmatpush1.msra.mxu0 0.0
      %289 = vmatprep.subr.mxu0 0.0
      %290 = vmatpush1.msra.mxu0 0.0
      %291 = vmatprep.subr.mxu0 0.0
      %292 = vmatpush1.msra.mxu0 0.0
      %293 = vmatprep.subr.mxu0 0.0
      %294 = vmatpush1.msra.mxu0 0.0
      %295 = vmatprep.subr.mxu0 0.0
      %296 = vmatpush1.msra.mxu0 0.0
      %297 = vmatprep.subr.mxu0 0.0
      %298 = vmatpush1.msra.mxu0 0.0
      %299 = vmatprep.subr.mxu0 0.0
      %300 = vmatpush1.msra.mxu0 0.0
      %301 = vmatprep.subr.mxu0 0.0
      %302 = vmatpush1.msra.mxu0 0.0
      %303 = vmatprep.subr.mxu0 0.0
      %304 = vmatpush1.msra.mxu0 0.0
      %305 = vmatprep.subr.mxu0 0.0
      %306 = vmatpush1.msra.mxu0 0.0
      %307 = vmatprep.subr.mxu0 0.0
      %308 = vmatpush1.msra.mxu0 0.0
      %309 = vmatprep.subr.mxu0 0.0
      %310 = vmatpush1.msra.mxu0 0.0
      %311 = vmatprep.subr.mxu0 0.0
      %312 = vmatpush1.msra.mxu0 0.0
      %313 = vmatprep.subr.mxu0 0.0
      %314 = vmatpush1.msra.mxu0 0.0
      %315 = vmatprep.subr.mxu0 0.0
      %316 = vmatpush1.msra.mxu0 0.0
      %317 = vmatprep.subr.mxu0 0.0
      %318 = vmatpush1.msra.mxu0 0.0
      %319 = vmatprep.subr.mxu0 0.0
      %320 = vmatpush1.msra.mxu0 0.0
      %321 = vmatprep.subr.mxu0 0.0
      %322 = vmatpush1.msra.mxu0 0.0
      %323 = vmatprep.subr.mxu0 0.0
      %324 = vmatpush1.msra.mxu0 0.0
      %325 = vmatprep.subr.mxu0 0.0
      %326 = vmatpush1.msra.mxu0 0.0
      %327 = vmatprep.subr.mxu0 0.0
      %328 = vmatpush1.msra.mxu0 0.0
      %329 = vmatprep.subr.mxu0 0.0
      %330 = vmatpush1.msra.mxu0 0.0
      %331 = vmatprep.subr.mxu0 0.0
      %332 = vmatpush1.msra.mxu0 0.0
      %333 = vmatprep.subr.mxu0 0.0
      %334 = vmatpush1.msra.mxu0 0.0
      %335 = vmatprep.mubr.f32.mxu0 0.0
      %336 = vmatmul.mubr.f32.gmra.mrb[0].mxu0 %v265
      %v337 = vpop.f32.mrb[0].mxu0
      %v338 = vadd.f32 0.0, %v337
      %v339 = vpop.f32.mrb[0].mxu0
      %340 = vdwg.mxu0
      %s341 = scalar_lea.vmem %s2, 2
      %v342 = vld [vmem:[%s341] sm:$0x3]
      %v344 = vsel %vm263, %v342, 0
      %346 = vmatprep.subr.mxu0 0.0
      %347 = vmatpush1.msra.mxu0 %v269
      %348 = vmatprep.subr.mxu0 0.0
      %349 = vmatpush1.msra.mxu0 0.0
      %350 = vmatprep.subr.mxu0 0.0
      %351 = vmatpush1.msra.mxu0 0.0
      %352 = vmatprep.subr.mxu0 0.0
      %353 = vmatpush1.msra.mxu0 0.0
      %354 = vmatprep.subr.mxu0 0.0
      %355 = vmatpush1.msra.mxu0 0.0
      %356 = vmatprep.subr.mxu0 0.0
      %357 = vmatpush1.msra.mxu0 0.0
      %358 = vmatprep.subr.mxu0 0.0
      %359 = vmatpush1.msra.mxu0 0.0
      %360 = vmatprep.subr.mxu0 0.0
      %361 = vmatpush1.msra.mxu0 0.0
      %362 = vmatprep.subr.mxu0 0.0
      %363 = vmatpush1.msra.mxu0 0.0
      %364 = vmatprep.subr.mxu0 0.0
      %365 = vmatpush1.msra.mxu0 0.0
      %366 = vmatprep.subr.mxu0 0.0
      %367 = vmatpush1.msra.mxu0 0.0
      %368 = vmatprep.subr.mxu0 0.0
      %369 = vmatpush1.msra.mxu0 0.0
      %370 = vmatprep.subr.mxu0 0.0
      %371 = vmatpush1.msra.mxu0 0.0
      %372 = vmatprep.subr.mxu0 0.0
      %373 = vmatpush1.msra.mxu0 0.0
      %374 = vmatprep.subr.mxu0 0.0
      %375 = vmatpush1.msra.mxu0 0.0
      %376 = vmatprep.subr.mxu0 0.0
      %377 = vmatpush1.msra.mxu0 0.0
      %378 = vmatprep.subr.mxu0 0.0
      %379 = vmatpush1.msra.mxu0 0.0
      %380 = vmatprep.subr.mxu0 0.0
      %381 = vmatpush1.msra.mxu0 0.0
      %382 = vmatprep.subr.mxu0 0.0
      %383 = vmatpush1.msra.mxu0 0.0
      %384 = vmatprep.subr.mxu0 0.0
      %385 = vmatpush1.msra.mxu0 0.0
      %386 = vmatprep.subr.mxu0 0.0
      %387 = vmatpush1.msra.mxu0 0.0
      %388 = vmatprep.subr.mxu0 0.0
      %389 = vmatpush1.msra.mxu0 0.0
      %390 = vmatprep.subr.mxu0 0.0
      %391 = vmatpush1.msra.mxu0 0.0
      %392 = vmatprep.subr.mxu0 0.0
      %393 = vmatpush1.msra.mxu0 0.0
      %394 = vmatprep.subr.mxu0 0.0
      %395 = vmatpush1.msra.mxu0 0.0
      %396 = vmatprep.subr.mxu0 0.0
      %397 = vmatpush1.msra.mxu0 0.0
      %398 = vmatprep.subr.mxu0 0.0
      %399 = vmatpush1.msra.mxu0 0.0
      %400 = vmatprep.subr.mxu0 0.0
      %401 = vmatpush1.msra.mxu0 0.0
      %402 = vmatprep.subr.mxu0 0.0
      %403 = vmatpush1.msra.mxu0 0.0
      %404 = vmatprep.subr.mxu0 0.0
      %405 = vmatpush1.msra.mxu0 0.0
      %406 = vmatprep.subr.mxu0 0.0
      %407 = vmatpush1.msra.mxu0 0.0
      %408 = vmatprep.subr.mxu0 0.0
      %409 = vmatpush1.msra.mxu0 0.0
      %410 = vmatprep.mubr.f32.mxu0 0.0
      %411 = vmatmul.mubr.f32.gmra.mrb[0].mxu0 %v344
      %v412 = vpop.f32.mrb[0].mxu0
      %v413 = vadd.f32 0.0, %v412
      %v414 = vpop.f32.mrb[0].mxu0
      %415 = vdwg.mxu0
      %s416 = scalar_lea.vmem %s2, 4
      %v417 = vld [vmem:[%s416] sm:$0x3]
      %v419 = vsel %vm263, %v417, 0
      %421 = vmatprep.subr.mxu0 0.0
      %422 = vmatpush1.msra.mxu0 %v269
      %423 = vmatprep.subr.mxu0 0.0
      %424 = vmatpush1.msra.mxu0 0.0
      %425 = vmatprep.subr.mxu0 0.0
      %426 = vmatpush1.msra.mxu0 0.0
      %427 = vmatprep.subr.mxu0 0.0
      %428 = vmatpush1.msra.mxu0 0.0
      %429 = vmatprep.subr.mxu0 0.0
      %430 = vmatpush1.msra.mxu0 0.0
      %431 = vmatprep.subr.mxu0 0.0
      %432 = vmatpush1.msra.mxu0 0.0
      %433 = vmatprep.subr.mxu0 0.0
      %434 = vmatpush1.msra.mxu0 0.0
      %435 = vmatprep.subr.mxu0 0.0
      %436 = vmatpush1.msra.mxu0 0.0
      %437 = vmatprep.subr.mxu0 0.0
      %438 = vmatpush1.msra.mxu0 0.0
      %439 = vmatprep.subr.mxu0 0.0
      %440 = vmatpush1.msra.mxu0 0.0
      %441 = vmatprep.subr.mxu0 0.0
      %442 = vmatpush1.msra.mxu0 0.0
      %443 = vmatprep.subr.mxu0 0.0
      %444 = vmatpush1.msra.mxu0 0.0
      %445 = vmatprep.subr.mxu0 0.0
      %446 = vmatpush1.msra.mxu0 0.0
      %447 = vmatprep.subr.mxu0 0.0
      %448 = vmatpush1.msra.mxu0 0.0
      %449 = vmatprep.subr.mxu0 0.0
      %450 = vmatpush1.msra.mxu0 0.0
      %451 = vmatprep.subr.mxu0 0.0
      %452 = vmatpush1.msra.mxu0 0.0
      %453 = vmatprep.subr.mxu0 0.0
      %454 = vmatpush1.msra.mxu0 0.0
      %455 = vmatprep.subr.mxu0 0.0
      %456 = vmatpush1.msra.mxu0 0.0
      %457 = vmatprep.subr.mxu0 0.0
      %458 = vmatpush1.msra.mxu0 0.0
      %459 = vmatprep.subr.mxu0 0.0
      %460 = vmatpush1.msra.mxu0 0.0
      %461 = vmatprep.subr.mxu0 0.0
      %462 = vmatpush1.msra.mxu0 0.0
      %463 = vmatprep.subr.mxu0 0.0
      %464 = vmatpush1.msra.mxu0 0.0
      %465 = vmatprep.subr.mxu0 0.0
      %466 = vmatpush1.msra.mxu0 0.0
      %467 = vmatprep.subr.mxu0 0.0
      %468 = vmatpush1.msra.mxu0 0.0
      %469 = vmatprep.subr.mxu0 0.0
      %470 = vmatpush1.msra.mxu0 0.0
      %471 = vmatprep.subr.mxu0 0.0
      %472 = vmatpush1.msra.mxu0 0.0
      %473 = vmatprep.subr.mxu0 0.0
      %474 = vmatpush1.msra.mxu0 0.0
      %475 = vmatprep.subr.mxu0 0.0
      %476 = vmatpush1.msra.mxu0 0.0
      %477 = vmatprep.subr.mxu0 0.0
      %478 = vmatpush1.msra.mxu0 0.0
      %479 = vmatprep.subr.mxu0 0.0
      %480 = vmatpush1.msra.mxu0 0.0
      %481 = vmatprep.subr.mxu0 0.0
      %482 = vmatpush1.msra.mxu0 0.0
      %483 = vmatprep.subr.mxu0 0.0
      %484 = vmatpush1.msra.mxu0 0.0
      %485 = vmatprep.mubr.f32.mxu0 0.0
      %486 = vmatmul.mubr.f32.gmra.mrb[0].mxu0 %v419
      %v487 = vpop.f32.mrb[0].mxu0
      %v488 = vadd.f32 0.0, %v487
      %v489 = vpop.f32.mrb[0].mxu0
      %490 = vdwg.mxu0
      %v491 = vld [vmem:[%s256] sm:$0x3]
      %v492 = vld [vmem:[%s3] sm:$0x3]
      %vm493 = vcmask 15360
      %v495 = vsel %vm493, %v492, 0
      %vm497 = vcmask 1041408
      %v499 = vsel %vm497, %v491, 0
      %501 = vmatprep.subr.mxu0 0.0
      %502 = vmatpush1.msra.mxu0 %v499
      %503 = vmatprep.subr.mxu0 0.0
      %504 = vmatpush1.msra.mxu0 0.0
      %505 = vmatprep.subr.mxu0 0.0
      %506 = vmatpush1.msra.mxu0 0.0
      %507 = vmatprep.subr.mxu0 0.0
      %508 = vmatpush1.msra.mxu0 0.0
      %509 = vmatprep.subr.mxu0 0.0
      %510 = vmatpush1.msra.mxu0 0.0
      %511 = vmatprep.subr.mxu0 0.0
      %512 = vmatpush1.msra.mxu0 0.0
      %513 = vmatprep.subr.mxu0 0.0
      %514 = vmatpush1.msra.mxu0 0.0
      %515 = vmatprep.subr.mxu0 0.0
      %516 = vmatpush1.msra.mxu0 0.0
      %517 = vmatprep.subr.mxu0 0.0
      %518 = vmatpush1.msra.mxu0 0.0
      %519 = vmatprep.subr.mxu0 0.0
      %520 = vmatpush1.msra.mxu0 0.0
      %521 = vmatprep.subr.mxu0 0.0
      %522 = vmatpush1.msra.mxu0 0.0
      %523 = vmatprep.subr.mxu0 0.0
      %524 = vmatpush1.msra.mxu0 0.0
      %525 = vmatprep.subr.mxu0 0.0
      %526 = vmatpush1.msra.mxu0 0.0
      %527 = vmatprep.subr.mxu0 0.0
      %528 = vmatpush1.msra.mxu0 0.0
      %529 = vmatprep.subr.mxu0 0.0
      %530 = vmatpush1.msra.mxu0 0.0
      %531 = vmatprep.subr.mxu0 0.0
      %532 = vmatpush1.msra.mxu0 0.0
      %533 = vmatprep.subr.mxu0 0.0
      %534 = vmatpush1.msra.mxu0 0.0
      %535 = vmatprep.subr.mxu0 0.0
      %536 = vmatpush1.msra.mxu0 0.0
      %537 = vmatprep.subr.mxu0 0.0
      %538 = vmatpush1.msra.mxu0 0.0
      %539 = vmatprep.subr.mxu0 0.0
      %540 = vmatpush1.msra.mxu0 0.0
      %541 = vmatprep.subr.mxu0 0.0
      %542 = vmatpush1.msra.mxu0 0.0
      %543 = vmatprep.subr.mxu0 0.0
      %544 = vmatpush1.msra.mxu0 0.0
      %545 = vmatprep.subr.mxu0 0.0
      %546 = vmatpush1.msra.mxu0 0.0
      %547 = vmatprep.subr.mxu0 0.0
      %548 = vmatpush1.msra.mxu0 0.0
      %549 = vmatprep.subr.mxu0 0.0
      %550 = vmatpush1.msra.mxu0 0.0
      %551 = vmatprep.subr.mxu0 0.0
      %552 = vmatpush1.msra.mxu0 0.0
      %553 = vmatprep.subr.mxu0 0.0
      %554 = vmatpush1.msra.mxu0 0.0
      %555 = vmatprep.subr.mxu0 0.0
      %556 = vmatpush1.msra.mxu0 0.0
      %557 = vmatprep.subr.mxu0 0.0
      %558 = vmatpush1.msra.mxu0 0.0
      %559 = vmatprep.subr.mxu0 0.0
      %560 = vmatpush1.msra.mxu0 0.0
      %561 = vmatprep.subr.mxu0 0.0
      %562 = vmatpush1.msra.mxu0 0.0
      %563 = vmatprep.subr.mxu0 0.0
      %564 = vmatpush1.msra.mxu0 0.0
      %565 = vmatprep.mubr.f32.mxu0 0.0
      %566 = vmatmul.mubr.f32.gmra.mrb[0].mxu0 %v495
      %v567 = vpop.f32.mrb[0].mxu0
      %v568 = vadd.f32 0.0, %v567
      %v569 = vpop.f32.mrb[0].mxu0
      %570 = vdwg.mxu0
      %s571 = scalar_lea.vmem %s3, 4
      %v572 = vld [vmem:[%s571] sm:$0x3]
      %v574 = vsel %vm493, %v572, 0
      %576 = vmatprep.subr.mxu0 0.0
      %577 = vmatpush1.msra.mxu0 %v499
      %578 = vmatprep.subr.mxu0 0.0
      %579 = vmatpush1.msra.mxu0 0.0
      %580 = vmatprep.subr.mxu0 0.0
      %581 = vmatpush1.msra.mxu0 0.0
      %582 = vmatprep.subr.mxu0 0.0
      %583 = vmatpush1.msra.mxu0 0.0
      %584 = vmatprep.subr.mxu0 0.0
      %585 = vmatpush1.msra.mxu0 0.0
      %586 = vmatprep.subr.mxu0 0.0
      %587 = vmatpush1.msra.mxu0 0.0
      %588 = vmatprep.subr.mxu0 0.0
      %589 = vmatpush1.msra.mxu0 0.0
      %590 = vmatprep.subr.mxu0 0.0
      %591 = vmatpush1.msra.mxu0 0.0
      %592 = vmatprep.subr.mxu0 0.0
      %593 = vmatpush1.msra.mxu0 0.0
      %594 = vmatprep.subr.mxu0 0.0
      %595 = vmatpush1.msra.mxu0 0.0
      %596 = vmatprep.subr.mxu0 0.0
      %597 = vmatpush1.msra.mxu0 0.0
      %598 = vmatprep.subr.mxu0 0.0
      %599 = vmatpush1.msra.mxu0 0.0
      %600 = vmatprep.subr.mxu0 0.0
      %601 = vmatpush1.msra.mxu0 0.0
      %602 = vmatprep.subr.mxu0 0.0
      %603 = vmatpush1.msra.mxu0 0.0
      %604 = vmatprep.subr.mxu0 0.0
      %605 = vmatpush1.msra.mxu0 0.0
      %606 = vmatprep.subr.mxu0 0.0
      %607 = vmatpush1.msra.mxu0 0.0
      %608 = vmatprep.subr.mxu0 0.0
      %609 = vmatpush1.msra.mxu0 0.0
      %610 = vmatprep.subr.mxu0 0.0
      %611 = vmatpush1.msra.mxu0 0.0
      %612 = vmatprep.subr.mxu0 0.0
      %613 = vmatpush1.msra.mxu0 0.0
      %614 = vmatprep.subr.mxu0 0.0
      %615 = vmatpush1.msra.mxu0 0.0
      %616 = vmatprep.subr.mxu0 0.0
      %617 = vmatpush1.msra.mxu0 0.0
      %618 = vmatprep.subr.mxu0 0.0
      %619 = vmatpush1.msra.mxu0 0.0
      %620 = vmatprep.subr.mxu0 0.0
      %621 = vmatpush1.msra.mxu0 0.0
      %622 = vmatprep.subr.mxu0 0.0
      %623 = vmatpush1.msra.mxu0 0.0
      %624 = vmatprep.subr.mxu0 0.0
      %625 = vmatpush1.msra.mxu0 0.0
      %626 = vmatprep.subr.mxu0 0.0
      %627 = vmatpush1.msra.mxu0 0.0
      %628 = vmatprep.subr.mxu0 0.0
      %629 = vmatpush1.msra.mxu0 0.0
      %630 = vmatprep.subr.mxu0 0.0
      %631 = vmatpush1.msra.mxu0 0.0
      %632 = vmatprep.subr.mxu0 0.0
      %633 = vmatpush1.msra.mxu0 0.0
      %634 = vmatprep.subr.mxu0 0.0
      %635 = vmatpush1.msra.mxu0 0.0
      %636 = vmatprep.subr.mxu0 0.0
      %637 = vmatpush1.msra.mxu0 0.0
      %638 = vmatprep.subr.mxu0 0.0
      %639 = vmatpush1.msra.mxu0 0.0
      %640 = vmatprep.mubr.f32.mxu0 0.0
      %641 = vmatmul.mubr.f32.gmra.mrb[0].mxu0 %v574
      %v642 = vpop.f32.mrb[0].mxu0
      %v643 = vadd.f32 0.0, %v642
      %v644 = vpop.f32.mrb[0].mxu0
      %645 = vdwg.mxu0
      %647 = vrot.lane.b32.xlu0 %v413, 16
      %v648 = vpop.permute.xlu0 %647
      %651 = vrot.lane.b32.xlu0 %v488, 32
      %v652 = vpop.permute.xlu0 %651
      %655 = vrot.lane.b32.xlu0 %v568, 48
      %v656 = vpop.permute.xlu0 %655
      %658 = vrot.lane.b32.xlu0 %v491, 80
      %v659 = vpop.permute.xlu0 %658
      %662 = vrot.lane.b32.xlu0 %v643, 112
      %v663 = vpop.permute.xlu0 %662
      %vm665 = vcmask 130048
      %v666 = vsel %vm665, %v338, %v648
      %vm667 = vcmask 261120
      %v668 = vsel %vm667, %v666, %v652
      %vm669 = vcmask 392192
      %v670 = vsel %vm669, %v668, %v656
      %vm671 = vcmask 654336
      %v672 = vsel %vm671, %v670, %v659
      %vm673 = vcmask 916480
      %v674 = vsel %vm673, %v672, %v663
      %v675 = vld [vmem:[%s4] sm:$0xff]
      %v676 = vld [vmem:[%s4 + $0x8] sm:$0xff]
      %v677 = vld [vmem:[%s4 + $0x10] sm:$0xff]
      %v678 = vld [vmem:[%s4 + $0x18] sm:$0xff]
      %v679 = vld [vmem:[%s4 + $0x20] sm:$0xff]
      %v680 = vld [vmem:[%s4 + $0x28] sm:$0xff]
      %v681 = vld [vmem:[%s4 + $0x30] sm:$0xff]
      %v682 = vld [vmem:[%s4 + $0x38] sm:$0xff]
      %v683 = vld [vmem:[%s4 + $0x40] sm:$0xff]
      %v684 = vld [vmem:[%s4 + $0x48] sm:$0xff]
      %v685 = vld [vmem:[%s4 + $0x50] sm:$0xff]
      %v686 = vld [vmem:[%s4 + $0x58] sm:$0xff]
      %v687 = vld [vmem:[%s4 + $0x60] sm:$0xff]
      %v688 = vld [vmem:[%s4 + $0x68] sm:$0xff]
      %v689 = vld [vmem:[%s4 + $0x70] sm:$0xff]
      %v690 = vld [vmem:[%s4 + $0x78] sm:$0xff]
      %v691 = vld [vmem:[%s4 + $0x80] sm:$0xff]
      %v692 = vld [vmem:[%s4 + $0x88] sm:$0xff]
      %v693 = vsel %vm665, %v663, 0
      %695 = vmatprep.subr.mxu0 0.0
      %696 = vmatpush1.msra.mxu0 %v675
      %697 = vmatprep.subr.mxu0 0.0
      %698 = vmatpush1.msra.mxu0 %v676
      %699 = vmatprep.subr.mxu0 0.0
      %700 = vmatpush1.msra.mxu0 %v677
      %701 = vmatprep.subr.mxu0 0.0
      %702 = vmatpush1.msra.mxu0 %v678
      %703 = vmatprep.subr.mxu0 0.0
      %704 = vmatpush1.msra.mxu0 %v679
      %705 = vmatprep.subr.mxu0 0.0
      %706 = vmatpush1.msra.mxu0 %v680
      %707 = vmatprep.subr.mxu0 0.0
      %708 = vmatpush1.msra.mxu0 %v681
      %709 = vmatprep.subr.mxu0 0.0
      %710 = vmatpush1.msra.mxu0 %v682
      %711 = vmatprep.subr.mxu0 0.0
      %712 = vmatpush1.msra.mxu0 %v683
      %713 = vmatprep.subr.mxu0 0.0
      %714 = vmatpush1.msra.mxu0 %v684
      %715 = vmatprep.subr.mxu0 0.0
      %716 = vmatpush1.msra.mxu0 %v685
      %717 = vmatprep.subr.mxu0 0.0
      %718 = vmatpush1.msra.mxu0 %v686
      %719 = vmatprep.subr.mxu0 0.0
      %720 = vmatpush1.msra.mxu0 %v687
      %721 = vmatprep.subr.mxu0 0.0
      %722 = vmatpush1.msra.mxu0 %v688
      %723 = vmatprep.subr.mxu0 0.0
      %724 = vmatpush1.msra.mxu0 %v689
      %725 = vmatprep.subr.mxu0 0.0
      %726 = vmatpush1.msra.mxu0 %v690
      %727 = vmatprep.subr.mxu0 0.0
      %728 = vmatpush1.msra.mxu0 %v691
      %729 = vmatprep.subr.mxu0 0.0
      %730 = vmatpush1.msra.mxu0 %v692
      %731 = vmatprep.subr.mxu0 0.0
      %732 = vmatpush1.msra.mxu0 0.0
      %733 = vmatprep.subr.mxu0 0.0
      %734 = vmatpush1.msra.mxu0 0.0
      %735 = vmatprep.subr.mxu0 0.0
      %736 = vmatpush1.msra.mxu0 0.0
      %737 = vmatprep.subr.mxu0 0.0
      %738 = vmatpush1.msra.mxu0 0.0
      %739 = vmatprep.subr.mxu0 0.0
      %740 = vmatpush1.msra.mxu0 0.0
      %741 = vmatprep.subr.mxu0 0.0
      %742 = vmatpush1.msra.mxu0 0.0
      %743 = vmatprep.subr.mxu0 0.0
      %744 = vmatpush1.msra.mxu0 0.0
      %745 = vmatprep.subr.mxu0 0.0
      %746 = vmatpush1.msra.mxu0 0.0
      %747 = vmatprep.subr.mxu0 0.0
      %748 = vmatpush1.msra.mxu0 0.0
      %749 = vmatprep.subr.mxu0 0.0
      %750 = vmatpush1.msra.mxu0 0.0
      %751 = vmatprep.subr.mxu0 0.0
      %752 = vmatpush1.msra.mxu0 0.0
      %753 = vmatprep.subr.mxu0 0.0
      %754 = vmatpush1.msra.mxu0 0.0
      %755 = vmatprep.subr.mxu0 0.0
      %756 = vmatpush1.msra.mxu0 0.0
      %757 = vmatprep.subr.mxu0 0.0
      %758 = vmatpush1.msra.mxu0 0.0
      %759 = vmatprep.mubr.f32.mxu0 %v693
      %760 = vmatmul.mubr.f32.gmra.mrb[0].mxu0 %v674
      %v761 = vpop.f32.mrb[0].mxu0
      %v762 = vadd.f32 0.0, %v761
      %v763 = vpop.f32.mrb[0].mxu0
      %764 = vdwg.mxu0
      %v765 = vld [vmem:[%s5] sm:$0x1]
      %v766 = vlaneseq
      %v767 = vshrl.u32 %v766, 7
      %v768 = vsub.s32 0, %v767
      %v769 = vrot.slane %v765, %v768
      %v770 = vmul.f32 %v762, %v769
      %v771 = vld [vmem:[%s5 + $0x1] sm:$0x1]
      %v772 = vlaneseq
      %v773 = vshrl.u32 %v772, 7
      %v774 = vsub.s32 0, %v773
      %v775 = vrot.slane %v771, %v774
      %v776 = vadd.f32 %v770, %v775
      %v777 = vmax.f32 %v776, 0.0
      %vm778 = vcmask 254976
      %779 = vst.msk [vmem:[%s260] sm:$0x3] %vm778, %v777
      %p780 = scmp.lt.s32.totalorder %s17, 1
      %s781 = scalar_select %p780, %s17, 1
      %s782 = smul.addr %s781, 2
      %s783 = scalar_lea.vmem %s6, %s782
      // Predicated region
      $region45: #{rsu6_forward.20} parent=43 // pred_check
        %p784 = pneg %p171
      $region46: #{rsu6_forward.20} parent=43 // pred_check_branch
        %786 = sbr.rel (%p784) target = $region48
      $region47: #{rsu6_forward.20} parent=43 // pred_region
        _
      $region48: #{rsu6_forward.20} parent=43 // pred_fallthru
        _
    $region44: #{rsu6_forward.20} parent=5 // pred_fallthru
      _
    %p787 = scmp.le.s32.totalorder 2, %s12
    // Predicated region
    $region49: #{rsu6_forward.20} parent=5 // pred_check
      %p788 = pneg %p787
    $region50: #{rsu6_forward.20} parent=5 // pred_check_branch
      %790 = sbr.rel (%p788) target = $region52
    $region51: #{rsu6_forward.20} parent=5 // pred_region
      %s791 = ssub.s32 %s12, 2
      // Predicated region
      $region53: #{rsu6_forward.20} parent=51 // pred_check
        %p792 = pneg %p177
      $region54: #{rsu6_forward.20} parent=51 // pred_check_branch
        %794 = sbr.rel (%p792) target = $region56
      $region55: #{rsu6_forward.20} parent=51 // pred_region
        %p795 = scmp.lt.s32.totalorder %s18, 1
        %s796 = scalar_select %p795, %s18, 1
        %s797 = smul.addr %s796, 2
        %s798 = scalar_lea.vmem %s6, %s797
      $region56: #{rsu6_forward.20} parent=51 // pred_fallthru
        _
    $region52: #{rsu6_forward.20} parent=5 // pred_fallthru
      _
  $region6: #{rsu6_forward.20} parent=0 // loop_footer
    %s16 = sadd.s32 1, %s12
  $region7: #{rsu6_forward.20} parent=0 // loop_footer_branch
    %11 = sbr.rel target = $region3
  $region8: #{rsu6_forward.20} parent=0 // loop_exit
    _

// kernel: rsu6_forward.21
$region0: #{rsu6_forward.21}
  #allocation0 [shape = 'u32[]', space=smem, size = 0x4, offset = 0x4, fixed_abs, tag = 'smem constant byte address 0x4 - core index']
  #allocation1 [shape = 'u32[144,128]{1,0:T(1,128)}', space=vmem, size = 0x12000, scoped, tag = 'internal scratch']
  %s0 = inlined_call_operand.vmem [shape: f32[2,2,32], index: 0, kind: input, shape index: {}]
  %s1 = inlined_call_operand.vmem [shape: f32[2,4,64], index: 1, kind: input, shape index: {}]
  %s2 = inlined_call_operand.vmem [shape: f32[3,4,2], index: 2, kind: input, shape index: {}]
  %s3 = inlined_call_operand.vmem [shape: f32[3,4,4], index: 3, kind: input, shape index: {}]
  %s4 = inlined_call_operand.vmem [shape: f32[288,64], index: 4, kind: input, shape index: {}]
  %s5 = inlined_call_operand.vmem [shape: f32[2,64], index: 5, kind: input, shape index: {}]
  %s6 = inlined_call_operand.vmem [shape: f32[2,4,64], index: 6, kind: output, shape index: {}]
  %s7 = sld [smem:[#allocation0]]
  $region57: #{rsu6_forward.21} parent=0
    _
  %s9 = ssub.s32 1, %s7
  %s10 = scalar_select 0, %s9, %s7
  loop: start=0, step=1, limit=4
  $region2: #{rsu6_forward.21} parent=0 // loop_pre_header
    _
  $region3: #{rsu6_forward.21} parent=0 // loop_header
    %s12 = sphi 0, %s16
    %p13 = scmp.ge.s32.totalorder %s12, 4
    %s22 = sphi 0, %s24
    %s25 = sphi 0, %s22
    %s26 = sphi 0, %s25
    %s42 = sphi 0, %s26
    %s48 = sphi 0, %s50
    %s51 = sphi 0, %s48
    %s52 = sphi 0, %s51
    %s68 = sphi 0, %s52
    %s72 = sphi 0, %s72
    %s74 = sphi 0, %s72
    %s75 = sphi 0, %s74
    %s89 = sphi 0, %s75
    %s93 = sphi 0, %s93
    %s95 = sphi 0, %s93
    %s96 = sphi 0, %s95
    %s110 = sphi 0, %s96
    %s114 = sphi 0, %s114
    %s116 = sphi 0, %s114
    %s117 = sphi 0, %s116
    %s131 = sphi 0, %s117
    %s135 = sphi 0, %s135
    %s137 = sphi 0, %s135
    %s138 = sphi 0, %s137
    %s152 = sphi 0, %s138
    %s158 = sphi 0, %s160
    %s161 = sphi 0, %s158
    %s162 = sphi 0, %s161
    %s178 = sphi 0, %s162
  $region4: #{rsu6_forward.21} parent=0 // loop_header_branch
    %15 = sbr.rel (%p13) target = $region8
  $region5: #{rsu6_forward.21} parent=0 // loop_body
    %s17 = ssub.s32 %s12, 1
    %s18 = ssub.s32 %s12, 2
    %s19 = sadd.s32 %s12, 1
    %s20 = ssub.s32 %s12, %s19
    %p21 = scmp.eq.s32.totalorder %s20, 0
    %s23 = sadd.s32 %s22, 1
    %s24 = scalar_select %p21, %s22, %s23
    %p27 = pneg %p21
    %p28 = scmp.eq.s32.totalorder %s12, 1
    %p29 = por %p27, %p28
    %p30 = scmp.ne.s32.totalorder %s22, %s25
    %p31 = scmp.eq.s32.totalorder %s12, 0
    %p32 = por %p30, %p31
    %p33 = scmp.ne.s32.totalorder %s22, %s25
    %p34 = scmp.eq.s32.totalorder %s17, 1
    %p35 = por %p33, %p34
    %p36 = scmp.ne.s32.totalorder %s25, %s26
    %p37 = scmp.eq.s32.totalorder %s17, 0
    %p38 = por %p36, %p37
    %p39 = scmp.ne.s32.totalorder %s25, %s26
    %p40 = scmp.eq.s32.totalorder %s18, 1
    %p41 = por %p39, %p40
    %p43 = scmp.ne.s32.totalorder %s26, %s42
    %p44 = scmp.eq.s32.totalorder %s18, 0
    %p45 = por %p43, %p44
    %s46 = ssub.s32 %s12, %s19
    %p47 = scmp.eq.s32.totalorder %s46, 0
    %s49 = sadd.s32 %s48, 1
    %s50 = scalar_select %p47, %s48, %s49
    %p53 = pneg %p47
    %p54 = scmp.eq.s32.totalorder %s12, 1
    %p55 = por %p53, %p54
    %p56 = scmp.ne.s32.totalorder %s48, %s51
    %p57 = scmp.eq.s32.totalorder %s12, 0
    %p58 = por %p56, %p57
    %p59 = scmp.ne.s32.totalorder %s48, %s51
    %p60 = scmp.eq.s32.totalorder %s17, 1
    %p61 = por %p59, %p60
    %p62 = scmp.ne.s32.totalorder %s51, %s52
    %p63 = scmp.eq.s32.totalorder %s17, 0
    %p64 = por %p62, %p63
    %p65 = scmp.ne.s32.totalorder %s51, %s52
    %p66 = scmp.eq.s32.totalorder %s18, 1
    %p67 = por %p65, %p66
    %p69 = scmp.ne.s32.totalorder %s52, %s68
    %p70 = scmp.eq.s32.totalorder %s18, 0
    %p71 = por %p69, %p70
    %s73 = sadd.s32 %s72, 1
    %p76 = scmp.eq.s32.totalorder %s12, 1
    %p77 = scmp.ne.s32.totalorder %s72, %s74
    %p78 = scmp.eq.s32.totalorder %s12, 0
    %p79 = por %p77, %p78
    %p80 = scmp.ne.s32.totalorder %s72, %s74
    %p81 = scmp.eq.s32.totalorder %s17, 1
    %p82 = por %p80, %p81
    %p83 = scmp.ne.s32.totalorder %s74, %s75
    %p84 = scmp.eq.s32.totalorder %s17, 0
    %p85 = por %p83, %p84
    %p86 = scmp.ne.s32.totalorder %s74, %s75
    %p87 = scmp.eq.s32.totalorder %s18, 1
    %p88 = por %p86, %p87
    %p90 = scmp.ne.s32.totalorder %s75, %s89
    %p91 = scmp.eq.s32.totalorder %s18, 0
    %p92 = por %p90, %p91
    %s94 = sadd.s32 %s93, 1
    %p97 = scmp.eq.s32.totalorder %s12, 1
    %p98 = scmp.ne.s32.totalorder %s93, %s95
    %p99 = scmp.eq.s32.totalorder %s12, 0
    %p100 = por %p98, %p99
    %p101 = scmp.ne.s32.totalorder %s93, %s95
    %p102 = scmp.eq.s32.totalorder %s17, 1
    %p103 = por %p101, %p102
    %p104 = scmp.ne.s32.totalorder %s95, %s96
    %p105 = scmp.eq.s32.totalorder %s17, 0
    %p106 = por %p104, %p105
    %p107 = scmp.ne.s32.totalorder %s95, %s96
    %p108 = scmp.eq.s32.totalorder %s18, 1
    %p109 = por %p107, %p108
    %p111 = scmp.ne.s32.totalorder %s96, %s110
    %p112 = scmp.eq.s32.totalorder %s18, 0
    %p113 = por %p111, %p112
    %s115 = sadd.s32 %s114, 1
    %p118 = scmp.eq.s32.totalorder %s12, 1
    %p119 = scmp.ne.s32.totalorder %s114, %s116
    %p120 = scmp.eq.s32.totalorder %s12, 0
    %p121 = por %p119, %p120
    %p122 = scmp.ne.s32.totalorder %s114, %s116
    %p123 = scmp.eq.s32.totalorder %s17, 1
    %p124 = por %p122, %p123
    %p125 = scmp.ne.s32.totalorder %s116, %s117
    %p126 = scmp.eq.s32.totalorder %s17, 0
    %p127 = por %p125, %p126
    %p128 = scmp.ne.s32.totalorder %s116, %s117
    %p129 = scmp.eq.s32.totalorder %s18, 1
    %p130 = por %p128, %p129
    %p132 = scmp.ne.s32.totalorder %s117, %s131
    %p133 = scmp.eq.s32.totalorder %s18, 0
    %p134 = por %p132, %p133
    %s136 = sadd.s32 %s135, 1
    %p139 = scmp.eq.s32.totalorder %s12, 1
    %p140 = scmp.ne.s32.totalorder %s135, %s137
    %p141 = scmp.eq.s32.totalorder %s12, 0
    %p142 = por %p140, %p141
    %p143 = scmp.ne.s32.totalorder %s135, %s137
    %p144 = scmp.eq.s32.totalorder %s17, 1
    %p145 = por %p143, %p144
    %p146 = scmp.ne.s32.totalorder %s137, %s138
    %p147 = scmp.eq.s32.totalorder %s17, 0
    %p148 = por %p146, %p147
    %p149 = scmp.ne.s32.totalorder %s137, %s138
    %p150 = scmp.eq.s32.totalorder %s18, 1
    %p151 = por %p149, %p150
    %p153 = scmp.ne.s32.totalorder %s138, %s152
    %p154 = scmp.eq.s32.totalorder %s18, 0
    %p155 = por %p153, %p154
    %s156 = ssub.s32 %s12, %s19
    %p157 = scmp.eq.s32.totalorder %s156, 0
    %s159 = sadd.s32 %s158, 1
    %s160 = scalar_select %p157, %s158, %s159
    %p163 = pneg %p157
    %p164 = scmp.eq.s32.totalorder %s12, 1
    %p165 = por %p163, %p164
    %p166 = scmp.ne.s32.totalorder %s158, %s161
    %p167 = scmp.eq.s32.totalorder %s12, 0
    %p168 = por %p166, %p167
    %p169 = scmp.ne.s32.totalorder %s158, %s161
    %p170 = scmp.eq.s32.totalorder %s17, 1
    %p171 = por %p169, %p170
    %p172 = scmp.ne.s32.totalorder %s161, %s162
    %p173 = scmp.eq.s32.totalorder %s17, 0
    %p174 = por %p172, %p173
    %p175 = scmp.ne.s32.totalorder %s161, %s162
    %p176 = scmp.eq.s32.totalorder %s18, 1
    %p177 = por %p175, %p176
    %p179 = scmp.ne.s32.totalorder %s162, %s178
    %p180 = scmp.eq.s32.totalorder %s18, 0
    %p181 = por %p179, %p180
    %p182 = scmp.le.s32.totalorder 1, %s12
    %p183 = scmp.lt.s32.totalorder %s12, 3
    %p184 = pnand %p182, %p183
    %p185 = pneg %p184
    // Predicated region
    $region9: #{rsu6_forward.21} parent=5 // pred_check
      _
    $region10: #{rsu6_forward.21} parent=5 // pred_check_branch
      %187 = sbr.rel (%p184) target = $region12
    $region11: #{rsu6_forward.21} parent=5 // pred_region
      %s188 = ssub.s32 %s12, 1
      // Predicated region
      $region13: #{rsu6_forward.21} parent=11 // pred_check
        %p189 = pneg %p85
      $region14: #{rsu6_forward.21} parent=11 // pred_check_branch
        %191 = sbr.rel (%p189) target = $region16
      $region15: #{rsu6_forward.21} parent=11 // pred_region
        _
      $region16: #{rsu6_forward.21} parent=11 // pred_fallthru
        _
      // Predicated region
      $region17: #{rsu6_forward.21} parent=11 // pred_check
        %p192 = pneg %p106
      $region18: #{rsu6_forward.21} parent=11 // pred_check_branch
        %194 = sbr.rel (%p192) target = $region20
      $region19: #{rsu6_forward.21} parent=11 // pred_region
        _
      $region20: #{rsu6_forward.21} parent=11 // pred_fallthru
        _
      // Predicated region
      $region21: #{rsu6_forward.21} parent=11 // pred_check
        %p195 = pneg %p127
      $region22: #{rsu6_forward.21} parent=11 // pred_check_branch
        %197 = sbr.rel (%p195) target = $region24
      $region23: #{rsu6_forward.21} parent=11 // pred_region
        _
      $region24: #{rsu6_forward.21} parent=11 // pred_fallthru
        _
      // Predicated region
      $region25: #{rsu6_forward.21} parent=11 // pred_check
        %p198 = pneg %p148
      $region26: #{rsu6_forward.21} parent=11 // pred_check_branch
        %200 = sbr.rel (%p198) target = $region28
      $region27: #{rsu6_forward.21} parent=11 // pred_region
        _
      $region28: #{rsu6_forward.21} parent=11 // pred_fallthru
        _
    $region12: #{rsu6_forward.21} parent=5 // pred_fallthru
      _
    %p201 = scmp.lt.s32.totalorder %s12, 2
    // Predicated region
    $region29: #{rsu6_forward.21} parent=5 // pred_check
      %p202 = pneg %p201
    $region30: #{rsu6_forward.21} parent=5 // pred_check_branch
      %204 = sbr.rel (%p202) target = $region32
    $region31: #{rsu6_forward.21} parent=5 // pred_region
      // Predicated region
      $region33: #{rsu6_forward.21} parent=31 // pred_check
        %p205 = pneg %p32
      $region34: #{rsu6_forward.21} parent=31 // pred_check_branch
        %207 = sbr.rel (%p205) target = $region36
      $region35: #{rsu6_forward.21} parent=31 // pred_region
        %p208 = scmp.lt.s32.totalorder %s12, 1
        %s209 = scalar_select %p208, %s12, 1
        %s210 = smul.addr %s209, 2
        %s211 = scalar_lea.vmem %s0, %s210
      $region36: #{rsu6_forward.21} parent=31 // pred_fallthru
        _
      // Predicated region
      $region37: #{rsu6_forward.21} parent=31 // pred_check
        %p212 = pneg %p58
      $region38: #{rsu6_forward.21} parent=31 // pred_check_branch
        %214 = sbr.rel (%p212) target = $region40
      $region39: #{rsu6_forward.21} parent=31 // pred_region
        %p215 = scmp.lt.s32.totalorder %s12, 1
        %s216 = scalar_select %p215, %s12, 1
        %s217 = smul.addr %s216, 4
        %s218 = scalar_lea.vmem %s1, %s217
      $region40: #{rsu6_forward.21} parent=31 // pred_fallthru
        _
    $region32: #{rsu6_forward.21} parent=5 // pred_fallthru
      _
    %p219 = scmp.le.s32.totalorder 1, %s12
    %p220 = scmp.lt.s32.totalorder %s12, 3
    %p221 = pnand %p219, %p220
    %p222 = pneg %p221
    // Predicated region
    $region41: #{rsu6_forward.21} parent=5 // pred_check
      _
    $region42: #{rsu6_forward.21} parent=5 // pred_check_branch
      %224 = sbr.rel (%p221) target = $region44
    $region43: #{rsu6_forward.21} parent=5 // pred_region
      %s225 = ssub.s32 %s12, 1
      %p226 = scmp.lt.s32.totalorder %s17, 1
      %s227 = scalar_select %p226, %s17, 1
      %s228 = smul.addr %s227, 2
      %s229 = scalar_lea.vmem %s0, %s228
      %p230 = pneg %p38
      %p231 = pneg %p35
      %p232 = scmp.lt.s32.totalorder %s17, 1
      %s233 = scalar_select %p232, %s17, 1
      %s234 = smul.addr %s233, 4
      %s235 = scalar_lea.vmem %s1, %s234
      %p236 = pneg %p64
      %p237 = pneg %p61
      %p238 = pneg %p85
      %p239 = pneg %p82
      %p240 = pneg %p106
      %p241 = pneg %p103
      %p242 = pneg %p127
      %p243 = pneg %p124
      %p244 = pneg %p148
      %p245 = pneg %p145
      %p246 = pneg %p174
      %p247 = pneg %p171
      %p248 = scmp.lt.s32.totalorder %s17, 1
      %s249 = scalar_select %p248, %s17, 1
      %s250 = smul.addr %s249, 4
      %s251 = scalar_lea.vmem %s6, %s250
      %p252 = scmp.lt.s32.totalorder %s17, 1
      %s253 = scalar_select %p252, %s17, 1
      %s254 = smul.addr %s253, 2
      %s255 = scalar_lea.vmem %s0, %s254
      %p256 = scmp.lt.s32.totalorder %s17, 1
      %s257 = scalar_select %p256, %s17, 1
      %s258 = smul.addr %s257, 4
      %s259 = scalar_lea.vmem %s1, %s258
      %p260 = scmp.lt.s32.totalorder %s17, 1
      %s261 = scalar_select %p260, %s17, 1
      %s262 = smul.addr %s261, 4
      %s263 = scalar_lea.vmem %s6, %s262
      %v264 = vld [vmem:[%s255] sm:$0x3]
      %v265 = vld [vmem:[%s2] sm:$0xf]
      %vm266 = vcmask 15360
      %v268 = vsel %vm266, %v265, 0
      %vm270 = vcmask 1041408
      %v272 = vsel %vm270, %v264, 0
      %274 = vmatprep.subr.mxu0 0.0
      %275 = vmatpush1.msra.mxu0 %v272
      %276 = vmatprep.subr.mxu0 0.0
      %277 = vmatpush1.msra.mxu0 0.0
      %278 = vmatprep.subr.mxu0 0.0
      %279 = vmatpush1.msra.mxu0 0.0
      %280 = vmatprep.subr.mxu0 0.0
      %281 = vmatpush1.msra.mxu0 0.0
      %282 = vmatprep.subr.mxu0 0.0
      %283 = vmatpush1.msra.mxu0 0.0
      %284 = vmatprep.subr.mxu0 0.0
      %285 = vmatpush1.msra.mxu0 0.0
      %286 = vmatprep.subr.mxu0 0.0
      %287 = vmatpush1.msra.mxu0 0.0
      %288 = vmatprep.subr.mxu0 0.0
      %289 = vmatpush1.msra.mxu0 0.0
      %290 = vmatprep.subr.mxu0 0.0
      %291 = vmatpush1.msra.mxu0 0.0
      %292 = vmatprep.subr.mxu0 0.0
      %293 = vmatpush1.msra.mxu0 0.0
      %294 = vmatprep.subr.mxu0 0.0
      %295 = vmatpush1.msra.mxu0 0.0
      %296 = vmatprep.subr.mxu0 0.0
      %297 = vmatpush1.msra.mxu0 0.0
      %298 = vmatprep.subr.mxu0 0.0
      %299 = vmatpush1.msra.mxu0 0.0
      %300 = vmatprep.subr.mxu0 0.0
      %301 = vmatpush1.msra.mxu0 0.0
      %302 = vmatprep.subr.mxu0 0.0
      %303 = vmatpush1.msra.mxu0 0.0
      %304 = vmatprep.subr.mxu0 0.0
      %305 = vmatpush1.msra.mxu0 0.0
      %306 = vmatprep.subr.mxu0 0.0
      %307 = vmatpush1.msra.mxu0 0.0
      %308 = vmatprep.subr.mxu0 0.0
      %309 = vmatpush1.msra.mxu0 0.0
      %310 = vmatprep.subr.mxu0 0.0
      %311 = vmatpush1.msra.mxu0 0.0
      %312 = vmatprep.subr.mxu0 0.0
      %313 = vmatpush1.msra.mxu0 0.0
      %314 = vmatprep.subr.mxu0 0.0
      %315 = vmatpush1.msra.mxu0 0.0
      %316 = vmatprep.subr.mxu0 0.0
      %317 = vmatpush1.msra.mxu0 0.0
      %318 = vmatprep.subr.mxu0 0.0
      %319 = vmatpush1.msra.mxu0 0.0
      %320 = vmatprep.subr.mxu0 0.0
      %321 = vmatpush1.msra.mxu0 0.0
      %322 = vmatprep.subr.mxu0 0.0
      %323 = vmatpush1.msra.mxu0 0.0
      %324 = vmatprep.subr.mxu0 0.0
      %325 = vmatpush1.msra.mxu0 0.0
      %326 = vmatprep.subr.mxu0 0.0
      %327 = vmatpush1.msra.mxu0 0.0
      %328 = vmatprep.subr.mxu0 0.0
      %329 = vmatpush1.msra.mxu0 0.0
      %330 = vmatprep.subr.mxu0 0.0
      %331 = vmatpush1.msra.mxu0 0.0
      %332 = vmatprep.subr.mxu0 0.0
      %333 = vmatpush1.msra.mxu0 0.0
      %334 = vmatprep.subr.mxu0 0.0
      %335 = vmatpush1.msra.mxu0 0.0
      %336 = vmatprep.subr.mxu0 0.0
      %337 = vmatpush1.msra.mxu0 0.0
      %338 = vmatprep.mubr.f32.mxu0 0.0
      %339 = vmatmul.mubr.f32.gmra.mrb[0].mxu0 %v268
      %v340 = vpop.f32.mrb[0].mxu0
      %v341 = vadd.f32 0.0, %v340
      %v342 = vpop.f32.mrb[0].mxu0
      %343 = vdwg.mxu0
      %s344 = scalar_lea.vmem %s2, 4
      %v345 = vld [vmem:[%s344] sm:$0xf]
      %v347 = vsel %vm266, %v345, 0
      %349 = vmatprep.subr.mxu0 0.0
      %350 = vmatpush1.msra.mxu0 %v272
      %351 = vmatprep.subr.mxu0 0.0
      %352 = vmatpush1.msra.mxu0 0.0
      %353 = vmatprep.subr.mxu0 0.0
      %354 = vmatpush1.msra.mxu0 0.0
      %355 = vmatprep.subr.mxu0 0.0
      %356 = vmatpush1.msra.mxu0 0.0
      %357 = vmatprep.subr.mxu0 0.0
      %358 = vmatpush1.msra.mxu0 0.0
      %359 = vmatprep.subr.mxu0 0.0
      %360 = vmatpush1.msra.mxu0 0.0
      %361 = vmatprep.subr.mxu0 0.0
      %362 = vmatpush1.msra.mxu0 0.0
      %363 = vmatprep.subr.mxu0 0.0
      %364 = vmatpush1.msra.mxu0 0.0
      %365 = vmatprep.subr.mxu0 0.0
      %366 = vmatpush1.msra.mxu0 0.0
      %367 = vmatprep.subr.mxu0 0.0
      %368 = vmatpush1.msra.mxu0 0.0
      %369 = vmatprep.subr.mxu0 0.0
      %370 = vmatpush1.msra.mxu0 0.0
      %371 = vmatprep.subr.mxu0 0.0
      %372 = vmatpush1.msra.mxu0 0.0
      %373 = vmatprep.subr.mxu0 0.0
      %374 = vmatpush1.msra.mxu0 0.0
      %375 = vmatprep.subr.mxu0 0.0
      %376 = vmatpush1.msra.mxu0 0.0
      %377 = vmatprep.subr.mxu0 0.0
      %378 = vmatpush1.msra.mxu0 0.0
      %379 = vmatprep.subr.mxu0 0.0
      %380 = vmatpush1.msra.mxu0 0.0
      %381 = vmatprep.subr.mxu0 0.0
      %382 = vmatpush1.msra.mxu0 0.0
      %383 = vmatprep.subr.mxu0 0.0
      %384 = vmatpush1.msra.mxu0 0.0
      %385 = vmatprep.subr.mxu0 0.0
      %386 = vmatpush1.msra.mxu0 0.0
      %387 = vmatprep.subr.mxu0 0.0
      %388 = vmatpush1.msra.mxu0 0.0
      %389 = vmatprep.subr.mxu0 0.0
      %390 = vmatpush1.msra.mxu0 0.0
      %391 = vmatprep.subr.mxu0 0.0
      %392 = vmatpush1.msra.mxu0 0.0
      %393 = vmatprep.subr.mxu0 0.0
      %394 = vmatpush1.msra.mxu0 0.0
      %395 = vmatprep.subr.mxu0 0.0
      %396 = vmatpush1.msra.mxu0 0.0
      %397 = vmatprep.subr.mxu0 0.0
      %398 = vmatpush1.msra.mxu0 0.0
      %399 = vmatprep.subr.mxu0 0.0
      %400 = vmatpush1.msra.mxu0 0.0
      %401 = vmatprep.subr.mxu0 0.0
      %402 = vmatpush1.msra.mxu0 0.0
      %403 = vmatprep.subr.mxu0 0.0
      %404 = vmatpush1.msra.mxu0 0.0
      %405 = vmatprep.subr.mxu0 0.0
      %406 = vmatpush1.msra.mxu0 0.0
      %407 = vmatprep.subr.mxu0 0.0
      %408 = vmatpush1.msra.mxu0 0.0
      %409 = vmatprep.subr.mxu0 0.0
      %410 = vmatpush1.msra.mxu0 0.0
      %411 = vmatprep.subr.mxu0 0.0
      %412 = vmatpush1.msra.mxu0 0.0
      %413 = vmatprep.mubr.f32.mxu0 0.0
      %414 = vmatmul.mubr.f32.gmra.mrb[0].mxu0 %v347
      %v415 = vpop.f32.mrb[0].mxu0
      %v416 = vadd.f32 0.0, %v415
      %v417 = vpop.f32.mrb[0].mxu0
      %418 = vdwg.mxu0
      %s419 = scalar_lea.vmem %s2, 8
      %v420 = vld [vmem:[%s419] sm:$0xf]
      %v422 = vsel %vm266, %v420, 0
      %424 = vmatprep.subr.mxu0 0.0
      %425 = vmatpush1.msra.mxu0 %v272
      %426 = vmatprep.subr.mxu0 0.0
      %427 = vmatpush1.msra.mxu0 0.0
      %428 = vmatprep.subr.mxu0 0.0
      %429 = vmatpush1.msra.mxu0 0.0
      %430 = vmatprep.subr.mxu0 0.0
      %431 = vmatpush1.msra.mxu0 0.0
      %432 = vmatprep.subr.mxu0 0.0
      %433 = vmatpush1.msra.mxu0 0.0
      %434 = vmatprep.subr.mxu0 0.0
      %435 = vmatpush1.msra.mxu0 0.0
      %436 = vmatprep.subr.mxu0 0.0
      %437 = vmatpush1.msra.mxu0 0.0
      %438 = vmatprep.subr.mxu0 0.0
      %439 = vmatpush1.msra.mxu0 0.0
      %440 = vmatprep.subr.mxu0 0.0
      %441 = vmatpush1.msra.mxu0 0.0
      %442 = vmatprep.subr.mxu0 0.0
      %443 = vmatpush1.msra.mxu0 0.0
      %444 = vmatprep.subr.mxu0 0.0
      %445 = vmatpush1.msra.mxu0 0.0
      %446 = vmatprep.subr.mxu0 0.0
      %447 = vmatpush1.msra.mxu0 0.0
      %448 = vmatprep.subr.mxu0 0.0
      %449 = vmatpush1.msra.mxu0 0.0
      %450 = vmatprep.subr.mxu0 0.0
      %451 = vmatpush1.msra.mxu0 0.0
      %452 = vmatprep.subr.mxu0 0.0
      %453 = vmatpush1.msra.mxu0 0.0
      %454 = vmatprep.subr.mxu0 0.0
      %455 = vmatpush1.msra.mxu0 0.0
      %456 = vmatprep.subr.mxu0 0.0
      %457 = vmatpush1.msra.mxu0 0.0
      %458 = vmatprep.subr.mxu0 0.0
      %459 = vmatpush1.msra.mxu0 0.0
      %460 = vmatprep.subr.mxu0 0.0
      %461 = vmatpush1.msra.mxu0 0.0
      %462 = vmatprep.subr.mxu0 0.0
      %463 = vmatpush1.msra.mxu0 0.0
      %464 = vmatprep.subr.mxu0 0.0
      %465 = vmatpush1.msra.mxu0 0.0
      %466 = vmatprep.subr.mxu0 0.0
      %467 = vmatpush1.msra.mxu0 0.0
      %468 = vmatprep.subr.mxu0 0.0
      %469 = vmatpush1.msra.mxu0 0.0
      %470 = vmatprep.subr.mxu0 0.0
      %471 = vmatpush1.msra.mxu0 0.0
      %472 = vmatprep.subr.mxu0 0.0
      %473 = vmatpush1.msra.mxu0 0.0
      %474 = vmatprep.subr.mxu0 0.0
      %475 = vmatpush1.msra.mxu0 0.0
      %476 = vmatprep.subr.mxu0 0.0
      %477 = vmatpush1.msra.mxu0 0.0
      %478 = vmatprep.subr.mxu0 0.0
      %479 = vmatpush1.msra.mxu0 0.0
      %480 = vmatprep.subr.mxu0 0.0
      %481 = vmatpush1.msra.mxu0 0.0
      %482 = vmatprep.subr.mxu0 0.0
      %483 = vmatpush1.msra.mxu0 0.0
      %484 = vmatprep.subr.mxu0 0.0
      %485 = vmatpush1.msra.mxu0 0.0
      %486 = vmatprep.subr.mxu0 0.0
      %487 = vmatpush1.msra.mxu0 0.0
      %488 = vmatprep.mubr.f32.mxu0 0.0
      %489 = vmatmul.mubr.f32.gmra.mrb[0].mxu0 %v422
      %v490 = vpop.f32.mrb[0].mxu0
      %v491 = vadd.f32 0.0, %v490
      %v492 = vpop.f32.mrb[0].mxu0
      %493 = vdwg.mxu0
      %v494 = vld [vmem:[%s259] sm:$0xf]
      %v495 = vld [vmem:[%s3] sm:$0xf]
      %vm496 = vcmask 31744
      %v498 = vsel %vm496, %v495, 0
      %vm500 = vcmask 1043456
      %v502 = vsel %vm500, %v494, 0
      %504 = vmatprep.subr.mxu0 0.0
      %505 = vmatpush1.msra.mxu0 %v502
      %506 = vmatprep.subr.mxu0 0.0
      %507 = vmatpush1.msra.mxu0 0.0
      %508 = vmatprep.subr.mxu0 0.0
      %509 = vmatpush1.msra.mxu0 0.0
      %510 = vmatprep.subr.mxu0 0.0
      %511 = vmatpush1.msra.mxu0 0.0
      %512 = vmatprep.subr.mxu0 0.0
      %513 = vmatpush1.msra.mxu0 0.0
      %514 = vmatprep.subr.mxu0 0.0
      %515 = vmatpush1.msra.mxu0 0.0
      %516 = vmatprep.subr.mxu0 0.0
      %517 = vmatpush1.msra.mxu0 0.0
      %518 = vmatprep.subr.mxu0 0.0
      %519 = vmatpush1.msra.mxu0 0.0
      %520 = vmatprep.subr.mxu0 0.0
      %521 = vmatpush1.msra.mxu0 0.0
      %522 = vmatprep.subr.mxu0 0.0
      %523 = vmatpush1.msra.mxu0 0.0
      %524 = vmatprep.subr.mxu0 0.0
      %525 = vmatpush1.msra.mxu0 0.0
      %526 = vmatprep.subr.mxu0 0.0
      %527 = vmatpush1.msra.mxu0 0.0
      %528 = vmatprep.subr.mxu0 0.0
      %529 = vmatpush1.msra.mxu0 0.0
      %530 = vmatprep.subr.mxu0 0.0
      %531 = vmatpush1.msra.mxu0 0.0
      %532 = vmatprep.subr.mxu0 0.0
      %533 = vmatpush1.msra.mxu0 0.0
      %534 = vmatprep.subr.mxu0 0.0
      %535 = vmatpush1.msra.mxu0 0.0
      %536 = vmatprep.subr.mxu0 0.0
      %537 = vmatpush1.msra.mxu0 0.0
      %538 = vmatprep.subr.mxu0 0.0
      %539 = vmatpush1.msra.mxu0 0.0
      %540 = vmatprep.subr.mxu0 0.0
      %541 = vmatpush1.msra.mxu0 0.0
      %542 = vmatprep.subr.mxu0 0.0
      %543 = vmatpush1.msra.mxu0 0.0
      %544 = vmatprep.subr.mxu0 0.0
      %545 = vmatpush1.msra.mxu0 0.0
      %546 = vmatprep.subr.mxu0 0.0
      %547 = vmatpush1.msra.mxu0 0.0
      %548 = vmatprep.subr.mxu0 0.0
      %549 = vmatpush1.msra.mxu0 0.0
      %550 = vmatprep.subr.mxu0 0.0
      %551 = vmatpush1.msra.mxu0 0.0
      %552 = vmatprep.subr.mxu0 0.0
      %553 = vmatpush1.msra.mxu0 0.0
      %554 = vmatprep.subr.mxu0 0.0
      %555 = vmatpush1.msra.mxu0 0.0
      %556 = vmatprep.subr.mxu0 0.0
      %557 = vmatpush1.msra.mxu0 0.0
      %558 = vmatprep.subr.mxu0 0.0
      %559 = vmatpush1.msra.mxu0 0.0
      %560 = vmatprep.subr.mxu0 0.0
      %561 = vmatpush1.msra.mxu0 0.0
      %562 = vmatprep.subr.mxu0 0.0
      %563 = vmatpush1.msra.mxu0 0.0
      %564 = vmatprep.subr.mxu0 0.0
      %565 = vmatpush1.msra.mxu0 0.0
      %566 = vmatprep.subr.mxu0 0.0
      %567 = vmatpush1.msra.mxu0 0.0
      %568 = vmatprep.mubr.f32.mxu0 0.0
      %569 = vmatmul.mubr.f32.gmra.mrb[0].mxu0 %v498
      %v570 = vpop.f32.mrb[0].mxu0
      %v571 = vadd.f32 0.0, %v570
      %v572 = vpop.f32.mrb[0].mxu0
      %573 = vdwg.mxu0
      %s574 = scalar_lea.vmem %s3, 8
      %v575 = vld [vmem:[%s574] sm:$0xf]
      %v577 = vsel %vm496, %v575, 0
      %579 = vmatprep.subr.mxu0 0.0
      %580 = vmatpush1.msra.mxu0 %v502
      %581 = vmatprep.subr.mxu0 0.0
      %582 = vmatpush1.msra.mxu0 0.0
      %583 = vmatprep.subr.mxu0 0.0
      %584 = vmatpush1.msra.mxu0 0.0
      %585 = vmatprep.subr.mxu0 0.0
      %586 = vmatpush1.msra.mxu0 0.0
      %587 = vmatprep.subr.mxu0 0.0
      %588 = vmatpush1.msra.mxu0 0.0
      %589 = vmatprep.subr.mxu0 0.0
      %590 = vmatpush1.msra.mxu0 0.0
      %591 = vmatprep.subr.mxu0 0.0
      %592 = vmatpush1.msra.mxu0 0.0
      %593 = vmatprep.subr.mxu0 0.0
      %594 = vmatpush1.msra.mxu0 0.0
      %595 = vmatprep.subr.mxu0 0.0
      %596 = vmatpush1.msra.mxu0 0.0
      %597 = vmatprep.subr.mxu0 0.0
      %598 = vmatpush1.msra.mxu0 0.0
      %599 = vmatprep.subr.mxu0 0.0
      %600 = vmatpush1.msra.mxu0 0.0
      %601 = vmatprep.subr.mxu0 0.0
      %602 = vmatpush1.msra.mxu0 0.0
      %603 = vmatprep.subr.mxu0 0.0
      %604 = vmatpush1.msra.mxu0 0.0
      %605 = vmatprep.subr.mxu0 0.0
      %606 = vmatpush1.msra.mxu0 0.0
      %607 = vmatprep.subr.mxu0 0.0
      %608 = vmatpush1.msra.mxu0 0.0
      %609 = vmatprep.subr.mxu0 0.0
      %610 = vmatpush1.msra.mxu0 0.0
      %611 = vmatprep.subr.mxu0 0.0
      %612 = vmatpush1.msra.mxu0 0.0
      %613 = vmatprep.subr.mxu0 0.0
      %614 = vmatpush1.msra.mxu0 0.0
      %615 = vmatprep.subr.mxu0 0.0
      %616 = vmatpush1.msra.mxu0 0.0
      %617 = vmatprep.subr.mxu0 0.0
      %618 = vmatpush1.msra.mxu0 0.0
      %619 = vmatprep.subr.mxu0 0.0
      %620 = vmatpush1.msra.mxu0 0.0
      %621 = vmatprep.subr.mxu0 0.0
      %622 = vmatpush1.msra.mxu0 0.0
      %623 = vmatprep.subr.mxu0 0.0
      %624 = vmatpush1.msra.mxu0 0.0
      %625 = vmatprep.subr.mxu0 0.0
      %626 = vmatpush1.msra.mxu0 0.0
      %627 = vmatprep.subr.mxu0 0.0
      %628 = vmatpush1.msra.mxu0 0.0
      %629 = vmatprep.subr.mxu0 0.0
      %630 = vmatpush1.msra.mxu0 0.0
      %631 = vmatprep.subr.mxu0 0.0
      %632 = vmatpush1.msra.mxu0 0.0
      %633 = vmatprep.subr.mxu0 0.0
      %634 = vmatpush1.msra.mxu0 0.0
      %635 = vmatprep.subr.mxu0 0.0
      %636 = vmatpush1.msra.mxu0 0.0
      %637 = vmatprep.subr.mxu0 0.0
      %638 = vmatpush1.msra.mxu0 0.0
      %639 = vmatprep.subr.mxu0 0.0
      %640 = vmatpush1.msra.mxu0 0.0
      %641 = vmatprep.subr.mxu0 0.0
      %642 = vmatpush1.msra.mxu0 0.0
      %643 = vmatprep.mubr.f32.mxu0 0.0
      %644 = vmatmul.mubr.f32.gmra.mrb[0].mxu0 %v577
      %v645 = vpop.f32.mrb[0].mxu0
      %v646 = vadd.f32 0.0, %v645
      %v647 = vpop.f32.mrb[0].mxu0
      %648 = vdwg.mxu0
      %650 = vrot.lane.b32.xlu0 %v416, 32
      %v651 = vpop.permute.xlu0 %650
      %654 = vrot.lane.b32.xlu0 %v491, 64
      %v655 = vpop.permute.xlu0 %654
      %658 = vrot.lane.b32.xlu0 %v571, 96
      %v659 = vpop.permute.xlu0 %658
      %661 = vrot.lane.b32.xlu0 %v494, 32
      %v662 = vpop.permute.xlu0 %661
      %665 = vrot.lane.b32.xlu0 %v646, 96
      %v666 = vpop.permute.xlu0 %665
      %vm668 = vcmask 261120
      %v669 = vsel %vm668, %v341, %v651
      %vm670 = vcmask 523264
      %v671 = vsel %vm670, %v669, %v655
      %vm672 = vcmask 785408
      %v673 = vsel %vm672, %v671, %v659
      %v674 = vsel %vm668, %v659, %v662
      %v675 = vsel %vm672, %v674, %v666
      %v676 = vld [vmem:[%s4] sm:$0xff]
      %v677 = vld [vmem:[%s4 + $0x8] sm:$0xff]
      %v678 = vld [vmem:[%s4 + $0x10] sm:$0xff]
      %v679 = vld [vmem:[%s4 + $0x18] sm:$0xff]
      %v680 = vld [vmem:[%s4 + $0x20] sm:$0xff]
      %v681 = vld [vmem:[%s4 + $0x28] sm:$0xff]
      %v682 = vld [vmem:[%s4 + $0x30] sm:$0xff]
      %v683 = vld [vmem:[%s4 + $0x38] sm:$0xff]
      %v684 = vld [vmem:[%s4 + $0x40] sm:$0xff]
      %v685 = vld [vmem:[%s4 + $0x48] sm:$0xff]
      %v686 = vld [vmem:[%s4 + $0x50] sm:$0xff]
      %v687 = vld [vmem:[%s4 + $0x58] sm:$0xff]
      %v688 = vld [vmem:[%s4 + $0x60] sm:$0xff]
      %v689 = vld [vmem:[%s4 + $0x68] sm:$0xff]
      %v690 = vld [vmem:[%s4 + $0x70] sm:$0xff]
      %v691 = vld [vmem:[%s4 + $0x78] sm:$0xff]
      %v692 = vld [vmem:[%s4 + $0x80] sm:$0xff]
      %v693 = vld [vmem:[%s4 + $0x88] sm:$0xff]
      %v694 = vld [vmem:[%s4 + $0x90] sm:$0xff]
      %v695 = vld [vmem:[%s4 + $0x98] sm:$0xff]
      %v696 = vld [vmem:[%s4 + $0xa0] sm:$0xff]
      %v697 = vld [vmem:[%s4 + $0xa8] sm:$0xff]
      %v698 = vld [vmem:[%s4 + $0xb0] sm:$0xff]
      %v699 = vld [vmem:[%s4 + $0xb8] sm:$0xff]
      %v700 = vld [vmem:[%s4 + $0xc0] sm:$0xff]
      %v701 = vld [vmem:[%s4 + $0xc8] sm:$0xff]
      %v702 = vld [vmem:[%s4 + $0xd0] sm:$0xff]
      %v703 = vld [vmem:[%s4 + $0xd8] sm:$0xff]
      %v704 = vld [vmem:[%s4 + $0xe0] sm:$0xff]
      %v705 = vld [vmem:[%s4 + $0xe8] sm:$0xff]
      %v706 = vld [vmem:[%s4 + $0xf0] sm:$0xff]
      %v707 = vld [vmem:[%s4 + $0xf8] sm:$0xff]
      %v708 = vld [vmem:[%s4 + $0x100] sm:$0xff]
      %v709 = vld [vmem:[%s4 + $0x108] sm:$0xff]
      %v710 = vld [vmem:[%s4 + $0x110] sm:$0xff]
      %v711 = vld [vmem:[%s4 + $0x118] sm:$0xff]
      %v712 = vsel %vm668, %v666, 0
      %714 = vmatprep.subr.mxu0 0.0
      %715 = vmatpush1.msra.mxu0 %v676
      %716 = vmatprep.subr.mxu0 0.0
      %717 = vmatpush1.msra.mxu0 %v677
      %718 = vmatprep.subr.mxu0 0.0
      %719 = vmatpush1.msra.mxu0 %v678
      %720 = vmatprep.subr.mxu0 0.0
      %721 = vmatpush1.msra.mxu0 %v679
      %722 = vmatprep.subr.mxu0 0.0
      %723 = vmatpush1.msra.mxu0 %v680
      %724 = vmatprep.subr.mxu0 0.0
      %725 = vmatpush1.msra.mxu0 %v681
      %726 = vmatprep.subr.mxu0 0.0
      %727 = vmatpush1.msra.mxu0 %v682
      %728 = vmatprep.subr.mxu0 0.0
      %729 = vmatpush1.msra.mxu0 %v683
      %730 = vmatprep.subr.mxu0 0.0
      %731 = vmatpush1.msra.mxu0 %v684
      %732 = vmatprep.subr.mxu0 0.0
      %733 = vmatpush1.msra.mxu0 %v685
      %734 = vmatprep.subr.mxu0 0.0
      %735 = vmatpush1.msra.mxu0 %v686
      %736 = vmatprep.subr.mxu0 0.0
      %737 = vmatpush1.msra.mxu0 %v687
      %738 = vmatprep.subr.mxu0 0.0
      %739 = vmatpush1.msra.mxu0 %v688
      %740 = vmatprep.subr.mxu0 0.0
      %741 = vmatpush1.msra.mxu0 %v689
      %742 = vmatprep.subr.mxu0 0.0
      %743 = vmatpush1.msra.mxu0 %v690
      %744 = vmatprep.subr.mxu0 0.0
      %745 = vmatpush1.msra.mxu0 %v691
      %746 = vmatprep.subr.mxu0 0.0
      %747 = vmatpush1.msra.mxu0 %v692
      %748 = vmatprep.subr.mxu0 0.0
      %749 = vmatpush1.msra.mxu0 %v693
      %750 = vmatprep.subr.mxu0 0.0
      %751 = vmatpush1.msra.mxu0 %v694
      %752 = vmatprep.subr.mxu0 0.0
      %753 = vmatpush1.msra.mxu0 %v695
      %754 = vmatprep.subr.mxu0 0.0
      %755 = vmatpush1.msra.mxu0 %v696
      %756 = vmatprep.subr.mxu0 0.0
      %757 = vmatpush1.msra.mxu0 %v697
      %758 = vmatprep.subr.mxu0 0.0
      %759 = vmatpush1.msra.mxu0 %v698
      %760 = vmatprep.subr.mxu0 0.0
      %761 = vmatpush1.msra.mxu0 %v699
      %762 = vmatprep.subr.mxu0 0.0
      %763 = vmatpush1.msra.mxu0 %v700
      %764 = vmatprep.subr.mxu0 0.0
      %765 = vmatpush1.msra.mxu0 %v701
      %766 = vmatprep.subr.mxu0 0.0
      %767 = vmatpush1.msra.mxu0 %v702
      %768 = vmatprep.subr.mxu0 0.0
      %769 = vmatpush1.msra.mxu0 %v703
      %770 = vmatprep.subr.mxu0 0.0
      %771 = vmatpush1.msra.mxu0 %v704
      %772 = vmatprep.subr.mxu0 0.0
      %773 = vmatpush1.msra.mxu0 %v705
      %774 = vmatprep.subr.mxu0 0.0
      %775 = vmatpush1.msra.mxu0 %v706
      %776 = vmatprep.subr.mxu0 0.0
      %777 = vmatpush1.msra.mxu0 %v707
      %778 = vmatprep.mubr.f32.mxu0 %v675
      %779 = vmatmul.mubr.f32.gmra.mrb[0].mxu0 %v673
      %v780 = vpop.f32.mrb[0].mxu0
      %v781 = vadd.f32 0.0, %v780
      %v782 = vpop.f32.mrb[0].mxu0
      %783 = vdwg.mxu0
      %784 = vmatprep.subr.mxu0 0.0
      %785 = vmatpush1.msra.mxu0 %v708
      %786 = vmatprep.subr.mxu0 0.0
      %787 = vmatpush1.msra.mxu0 %v709
      %788 = vmatprep.subr.mxu0 0.0
      %789 = vmatpush1.msra.mxu0 %v710
      %790 = vmatprep.subr.mxu0 0.0
      %791 = vmatpush1.msra.mxu0 %v711
      %792 = vmatprep.subr.mxu0 0.0
      %793 = vmatpush1.msra.mxu0 0.0
      %794 = vmatprep.subr.mxu0 0.0
      %795 = vmatpush1.msra.mxu0 0.0
      %796 = vmatprep.subr.mxu0 0.0
      %797 = vmatpush1.msra.mxu0 0.0
      %798 = vmatprep.subr.mxu0 0.0
      %799 = vmatpush1.msra.mxu0 0.0
      %800 = vmatprep.subr.mxu0 0.0
      %801 = vmatpush1.msra.mxu0 0.0
      %802 = vmatprep.subr.mxu0 0.0
      %803 = vmatpush1.msra.mxu0 0.0
      %804 = vmatprep.subr.mxu0 0.0
      %805 = vmatpush1.msra.mxu0 0.0
      %806 = vmatprep.subr.mxu0 0.0
      %807 = vmatpush1.msra.mxu0 0.0
      %808 = vmatprep.subr.mxu0 0.0
      %809 = vmatpush1.msra.mxu0 0.0
      %810 = vmatprep.subr.mxu0 0.0
      %811 = vmatpush1.msra.mxu0 0.0
      %812 = vmatprep.subr.mxu0 0.0
      %813 = vmatpush1.msra.mxu0 0.0
      %814 = vmatprep.subr.mxu0 0.0
      %815 = vmatpush1.msra.mxu0 0.0
      %816 = vmatprep.subr.mxu0 0.0
      %817 = vmatpush1.msra.mxu0 0.0
      %818 = vmatprep.subr.mxu0 0.0
      %819 = vmatpush1.msra.mxu0 0.0
      %820 = vmatprep.subr.mxu0 0.0
      %821 = vmatpush1.msra.mxu0 0.0
      %822 = vmatprep.subr.mxu0 0.0
      %823 = vmatpush1.msra.mxu0 0.0
      %824 = vmatprep.subr.mxu0 0.0
      %825 = vmatpush1.msra.mxu0 0.0
      %826 = vmatprep.subr.mxu0 0.0
      %827 = vmatpush1.msra.mxu0 0.0
      %828 = vmatprep.subr.mxu0 0.0
      %829 = vmatpush1.msra.mxu0 0.0
      %830 = vmatprep.subr.mxu0 0.0
      %831 = vmatpush1.msra.mxu0 0.0
      %832 = vmatprep.subr.mxu0 0.0
      %833 = vmatpush1.msra.mxu0 0.0
      %834 = vmatprep.subr.mxu0 0.0
      %835 = vmatpush1.msra.mxu0 0.0
      %836 = vmatprep.subr.mxu0 0.0
      %837 = vmatpush1.msra.mxu0 0.0
      %838 = vmatprep.subr.mxu0 0.0
      %839 = vmatpush1.msra.mxu0 0.0
      %840 = vmatprep.subr.mxu0 0.0
      %841 = vmatpush1.msra.mxu0 0.0
      %842 = vmatprep.subr.mxu0 0.0
      %843 = vmatpush1.msra.mxu0 0.0
      %844 = vmatprep.subr.mxu0 0.0
      %845 = vmatpush1.msra.mxu0 0.0
      %846 = vmatprep.subr.mxu0 0.0
      %847 = vmatpush1.msra.mxu0 0.0
      %848 = vmatprep.mubr.f32.mxu0 0.0
      %849 = vmatmul.mubr.f32.gmra.mrb[0].mxu0 %v712
      %v850 = vpop.f32.mrb[0].mxu0
      %v851 = vadd.f32 %v781, %v850
      %v852 = vpop.f32.mrb[0].mxu0
      %853 = vdwg.mxu0
      %v854 = vld [vmem:[%s5] sm:$0x1]
      %v855 = vlaneseq
      %v856 = vshrl.u32 %v855, 7
      %v857 = vsub.s32 0, %v856
      %v858 = vrot.slane %v854, %v857
      %v859 = vmul.f32 %v851, %v858
      %v860 = vld [vmem:[%s5 + $0x1] sm:$0x1]
      %v861 = vlaneseq
      %v862 = vshrl.u32 %v861, 7
      %v863 = vsub.s32 0, %v862
      %v864 = vrot.slane %v860, %v863
      %v865 = vadd.f32 %v859, %v864
      %v866 = vmax.f32 %v865, 0.0
      %vm867 = vcmask 519168
      %868 = vst.msk [vmem:[%s263] sm:$0xf] %vm867, %v866
      %p869 = scmp.lt.s32.totalorder %s17, 1
      %s870 = scalar_select %p869, %s17, 1
      %s871 = smul.addr %s870, 4
      %s872 = scalar_lea.vmem %s6, %s871
      // Predicated region
      $region45: #{rsu6_forward.21} parent=43 // pred_check
        %p873 = pneg %p171
      $region46: #{rsu6_forward.21} parent=43 // pred_check_branch
        %875 = sbr.rel (%p873) target = $region48
      $region47: #{rsu6_forward.21} parent=43 // pred_region
        _
      $region48: #{rsu6_forward.21} parent=43 // pred_fallthru
        _
    $region44: #{rsu6_forward.21} parent=5 // pred_fallthru
      _
    %p876 = scmp.le.s32.totalorder 2, %s12
    // Predicated region
    $region49: #{rsu6_forward.21} parent=5 // pred_check
      %p877 = pneg %p876
    $region50: #{rsu6_forward.21} parent=5 // pred_check_branch
      %879 = sbr.rel (%p877) target = $region52
    $region51: #{rsu6_forward.21} parent=5 // pred_region
      %s880 = ssub.s32 %s12, 2
      // Predicated region
      $region53: #{rsu6_forward.21} parent=51 // pred_check
        %p881 = pneg %p177
      $region54: #{rsu6_forward.21} parent=51 // pred_check_branch
        %883 = sbr.rel (%p881) target = $region56
      $region55: #{rsu6_forward.21} parent=51 // pred_region
        %p884 = scmp.lt.s32.totalorder %s18, 1
        %s885 = scalar_select %p884, %s18, 1
        %s886 = smul.addr %s885, 4
        %s887 = scalar_lea.vmem %s6, %s886
      $region56: #{rsu6_forward.21} parent=51 // pred_fallthru
        _
    $region52: #{rsu6_forward.21} parent=5 // pred_fallthru
      _
  $region6: #{rsu6_forward.21} parent=0 // loop_footer
    %s16 = sadd.s32 1, %s12
  $region7: #{rsu6_forward.21} parent=0 // loop_footer_branch
    %11 = sbr.rel target = $region3
  $region8: #{rsu6_forward.21} parent=0 // loop_exit
    _

// kernel: rsu6_forward.22
$region0: #{rsu6_forward.22}
  #allocation0 [shape = 'u32[]', space=smem, size = 0x4, offset = 0x4, fixed_abs, tag = 'smem constant byte address 0x4 - core index']
  #allocation1 [shape = 'u32[144,128]{1,0:T(1,128)}', space=vmem, size = 0x12000, scoped, tag = 'internal scratch']
  %s0 = inlined_call_operand.vmem [shape: f32[2,4,64], index: 0, kind: input, shape index: {}]
  %s1 = inlined_call_operand.vmem [shape: f32[2,8,128], index: 1, kind: input, shape index: {}]
  %s2 = inlined_call_operand.vmem [shape: f32[3,8,4], index: 2, kind: input, shape index: {}]
  %s3 = inlined_call_operand.vmem [shape: f32[3,8,8], index: 3, kind: input, shape index: {}]
  %s4 = inlined_call_operand.vmem [shape: f32[576,128], index: 4, kind: input, shape index: {}]
  %s5 = inlined_call_operand.vmem [shape: f32[2,128], index: 5, kind: input, shape index: {}]
  %s6 = inlined_call_operand.vmem [shape: f32[2,8,128], index: 6, kind: output, shape index: {}]
  %s7 = sld [smem:[#allocation0]]
  $region57: #{rsu6_forward.22} parent=0
    _
  %s9 = ssub.s32 1, %s7
  %s10 = scalar_select 0, %s9, %s7
  loop: start=0, step=1, limit=4
  $region2: #{rsu6_forward.22} parent=0 // loop_pre_header
    _
  $region3: #{rsu6_forward.22} parent=0 // loop_header
    %s12 = sphi 0, %s16
    %p13 = scmp.ge.s32.totalorder %s12, 4
    %s22 = sphi 0, %s24
    %s25 = sphi 0, %s22
    %s26 = sphi 0, %s25
    %s42 = sphi 0, %s26
    %s48 = sphi 0, %s50
    %s51 = sphi 0, %s48
    %s52 = sphi 0, %s51
    %s68 = sphi 0, %s52
    %s72 = sphi 0, %s72
    %s74 = sphi 0, %s72
    %s75 = sphi 0, %s74
    %s89 = sphi 0, %s75
    %s93 = sphi 0, %s93
    %s95 = sphi 0, %s93
    %s96 = sphi 0, %s95
    %s110 = sphi 0, %s96
    %s114 = sphi 0, %s114
    %s116 = sphi 0, %s114
    %s117 = sphi 0, %s116
    %s131 = sphi 0, %s117
    %s135 = sphi 0, %s135
    %s137 = sphi 0, %s135
    %s138 = sphi 0, %s137
    %s152 = sphi 0, %s138
    %s158 = sphi 0, %s160
    %s161 = sphi 0, %s158
    %s162 = sphi 0, %s161
    %s178 = sphi 0, %s162
  $region4: #{rsu6_forward.22} parent=0 // loop_header_branch
    %15 = sbr.rel (%p13) target = $region8
  $region5: #{rsu6_forward.22} parent=0 // loop_body
    %s17 = ssub.s32 %s12, 1
    %s18 = ssub.s32 %s12, 2
    %s19 = sadd.s32 %s12, 1
    %s20 = ssub.s32 %s12, %s19
    %p21 = scmp.eq.s32.totalorder %s20, 0
    %s23 = sadd.s32 %s22, 1
    %s24 = scalar_select %p21, %s22, %s23
    %p27 = pneg %p21
    %p28 = scmp.eq.s32.totalorder %s12, 1
    %p29 = por %p27, %p28
    %p30 = scmp.ne.s32.totalorder %s22, %s25
    %p31 = scmp.eq.s32.totalorder %s12, 0
    %p32 = por %p30, %p31
    %p33 = scmp.ne.s32.totalorder %s22, %s25
    %p34 = scmp.eq.s32.totalorder %s17, 1
    %p35 = por %p33, %p34
    %p36 = scmp.ne.s32.totalorder %s25, %s26
    %p37 = scmp.eq.s32.totalorder %s17, 0
    %p38 = por %p36, %p37
    %p39 = scmp.ne.s32.totalorder %s25, %s26
    %p40 = scmp.eq.s32.totalorder %s18, 1
    %p41 = por %p39, %p40
    %p43 = scmp.ne.s32.totalorder %s26, %s42
    %p44 = scmp.eq.s32.totalorder %s18, 0
    %p45 = por %p43, %p44
    %s46 = ssub.s32 %s12, %s19
    %p47 = scmp.eq.s32.totalorder %s46, 0
    %s49 = sadd.s32 %s48, 1
    %s50 = scalar_select %p47, %s48, %s49
    %p53 = pneg %p47
    %p54 = scmp.eq.s32.totalorder %s12, 1
    %p55 = por %p53, %p54
    %p56 = scmp.ne.s32.totalorder %s48, %s51
    %p57 = scmp.eq.s32.totalorder %s12, 0
    %p58 = por %p56, %p57
    %p59 = scmp.ne.s32.totalorder %s48, %s51
    %p60 = scmp.eq.s32.totalorder %s17, 1
    %p61 = por %p59, %p60
    %p62 = scmp.ne.s32.totalorder %s51, %s52
    %p63 = scmp.eq.s32.totalorder %s17, 0
    %p64 = por %p62, %p63
    %p65 = scmp.ne.s32.totalorder %s51, %s52
    %p66 = scmp.eq.s32.totalorder %s18, 1
    %p67 = por %p65, %p66
    %p69 = scmp.ne.s32.totalorder %s52, %s68
    %p70 = scmp.eq.s32.totalorder %s18, 0
    %p71 = por %p69, %p70
    %s73 = sadd.s32 %s72, 1
    %p76 = scmp.eq.s32.totalorder %s12, 1
    %p77 = scmp.ne.s32.totalorder %s72, %s74
    %p78 = scmp.eq.s32.totalorder %s12, 0
    %p79 = por %p77, %p78
    %p80 = scmp.ne.s32.totalorder %s72, %s74
    %p81 = scmp.eq.s32.totalorder %s17, 1
    %p82 = por %p80, %p81
    %p83 = scmp.ne.s32.totalorder %s74, %s75
    %p84 = scmp.eq.s32.totalorder %s17, 0
    %p85 = por %p83, %p84
    %p86 = scmp.ne.s32.totalorder %s74, %s75
    %p87 = scmp.eq.s32.totalorder %s18, 1
    %p88 = por %p86, %p87
    %p90 = scmp.ne.s32.totalorder %s75, %s89
    %p91 = scmp.eq.s32.totalorder %s18, 0
    %p92 = por %p90, %p91
    %s94 = sadd.s32 %s93, 1
    %p97 = scmp.eq.s32.totalorder %s12, 1
    %p98 = scmp.ne.s32.totalorder %s93, %s95
    %p99 = scmp.eq.s32.totalorder %s12, 0
    %p100 = por %p98, %p99
    %p101 = scmp.ne.s32.totalorder %s93, %s95
    %p102 = scmp.eq.s32.totalorder %s17, 1
    %p103 = por %p101, %p102
    %p104 = scmp.ne.s32.totalorder %s95, %s96
    %p105 = scmp.eq.s32.totalorder %s17, 0
    %p106 = por %p104, %p105
    %p107 = scmp.ne.s32.totalorder %s95, %s96
    %p108 = scmp.eq.s32.totalorder %s18, 1
    %p109 = por %p107, %p108
    %p111 = scmp.ne.s32.totalorder %s96, %s110
    %p112 = scmp.eq.s32.totalorder %s18, 0
    %p113 = por %p111, %p112
    %s115 = sadd.s32 %s114, 1
    %p118 = scmp.eq.s32.totalorder %s12, 1
    %p119 = scmp.ne.s32.totalorder %s114, %s116
    %p120 = scmp.eq.s32.totalorder %s12, 0
    %p121 = por %p119, %p120
    %p122 = scmp.ne.s32.totalorder %s114, %s116
    %p123 = scmp.eq.s32.totalorder %s17, 1
    %p124 = por %p122, %p123
    %p125 = scmp.ne.s32.totalorder %s116, %s117
    %p126 = scmp.eq.s32.totalorder %s17, 0
    %p127 = por %p125, %p126
    %p128 = scmp.ne.s32.totalorder %s116, %s117
    %p129 = scmp.eq.s32.totalorder %s18, 1
    %p130 = por %p128, %p129
    %p132 = scmp.ne.s32.totalorder %s117, %s131
    %p133 = scmp.eq.s32.totalorder %s18, 0
    %p134 = por %p132, %p133
    %s136 = sadd.s32 %s135, 1
    %p139 = scmp.eq.s32.totalorder %s12, 1
    %p140 = scmp.ne.s32.totalorder %s135, %s137
    %p141 = scmp.eq.s32.totalorder %s12, 0
    %p142 = por %p140, %p141
    %p143 = scmp.ne.s32.totalorder %s135, %s137
    %p144 = scmp.eq.s32.totalorder %s17, 1
    %p145 = por %p143, %p144
    %p146 = scmp.ne.s32.totalorder %s137, %s138
    %p147 = scmp.eq.s32.totalorder %s17, 0
    %p148 = por %p146, %p147
    %p149 = scmp.ne.s32.totalorder %s137, %s138
    %p150 = scmp.eq.s32.totalorder %s18, 1
    %p151 = por %p149, %p150
    %p153 = scmp.ne.s32.totalorder %s138, %s152
    %p154 = scmp.eq.s32.totalorder %s18, 0
    %p155 = por %p153, %p154
    %s156 = ssub.s32 %s12, %s19
    %p157 = scmp.eq.s32.totalorder %s156, 0
    %s159 = sadd.s32 %s158, 1
    %s160 = scalar_select %p157, %s158, %s159
    %p163 = pneg %p157
    %p164 = scmp.eq.s32.totalorder %s12, 1
    %p165 = por %p163, %p164
    %p166 = scmp.ne.s32.totalorder %s158, %s161
    %p167 = scmp.eq.s32.totalorder %s12, 0
    %p168 = por %p166, %p167
    %p169 = scmp.ne.s32.totalorder %s158, %s161
    %p170 = scmp.eq.s32.totalorder %s17, 1
    %p171 = por %p169, %p170
    %p172 = scmp.ne.s32.totalorder %s161, %s162
    %p173 = scmp.eq.s32.totalorder %s17, 0
    %p174 = por %p172, %p173
    %p175 = scmp.ne.s32.totalorder %s161, %s162
    %p176 = scmp.eq.s32.totalorder %s18, 1
    %p177 = por %p175, %p176
    %p179 = scmp.ne.s32.totalorder %s162, %s178
    %p180 = scmp.eq.s32.totalorder %s18, 0
    %p181 = por %p179, %p180
    %p182 = scmp.le.s32.totalorder 1, %s12
    %p183 = scmp.lt.s32.totalorder %s12, 3
    %p184 = pnand %p182, %p183
    %p185 = pneg %p184
    // Predicated region
    $region9: #{rsu6_forward.22} parent=5 // pred_check
      _
    $region10: #{rsu6_forward.22} parent=5 // pred_check_branch
      %187 = sbr.rel (%p184) target = $region12
    $region11: #{rsu6_forward.22} parent=5 // pred_region
      %s188 = ssub.s32 %s12, 1
      // Predicated region
      $region13: #{rsu6_forward.22} parent=11 // pred_check
        %p189 = pneg %p85
      $region14: #{rsu6_forward.22} parent=11 // pred_check_branch
        %191 = sbr.rel (%p189) target = $region16
      $region15: #{rsu6_forward.22} parent=11 // pred_region
        _
      $region16: #{rsu6_forward.22} parent=11 // pred_fallthru
        _
      // Predicated region
      $region17: #{rsu6_forward.22} parent=11 // pred_check
        %p192 = pneg %p106
      $region18: #{rsu6_forward.22} parent=11 // pred_check_branch
        %194 = sbr.rel (%p192) target = $region20
      $region19: #{rsu6_forward.22} parent=11 // pred_region
        _
      $region20: #{rsu6_forward.22} parent=11 // pred_fallthru
        _
      // Predicated region
      $region21: #{rsu6_forward.22} parent=11 // pred_check
        %p195 = pneg %p127
      $region22: #{rsu6_forward.22} parent=11 // pred_check_branch
        %197 = sbr.rel (%p195) target = $region24
      $region23: #{rsu6_forward.22} parent=11 // pred_region
        _
      $region24: #{rsu6_forward.22} parent=11 // pred_fallthru
        _
      // Predicated region
      $region25: #{rsu6_forward.22} parent=11 // pred_check
        %p198 = pneg %p148
      $region26: #{rsu6_forward.22} parent=11 // pred_check_branch
        %200 = sbr.rel (%p198) target = $region28
      $region27: #{rsu6_forward.22} parent=11 // pred_region
        _
      $region28: #{rsu6_forward.22} parent=11 // pred_fallthru
        _
    $region12: #{rsu6_forward.22} parent=5 // pred_fallthru
      _
    %p201 = scmp.lt.s32.totalorder %s12, 2
    // Predicated region
    $region29: #{rsu6_forward.22} parent=5 // pred_check
      %p202 = pneg %p201
    $region30: #{rsu6_forward.22} parent=5 // pred_check_branch
      %204 = sbr.rel (%p202) target = $region32
    $region31: #{rsu6_forward.22} parent=5 // pred_region
      // Predicated region
      $region33: #{rsu6_forward.22} parent=31 // pred_check
        %p205 = pneg %p32
      $region34: #{rsu6_forward.22} parent=31 // pred_check_branch
        %207 = sbr.rel (%p205) target = $region36
      $region35: #{rsu6_forward.22} parent=31 // pred_region
        %p208 = scmp.lt.s32.totalorder %s12, 1
        %s209 = scalar_select %p208, %s12, 1
        %s210 = smul.addr %s209, 4
        %s211 = scalar_lea.vmem %s0, %s210
      $region36: #{rsu6_forward.22} parent=31 // pred_fallthru
        _
      // Predicated region
      $region37: #{rsu6_forward.22} parent=31 // pred_check
        %p212 = pneg %p58
      $region38: #{rsu6_forward.22} parent=31 // pred_check_branch
        %214 = sbr.rel (%p212) target = $region40
      $region39: #{rsu6_forward.22} parent=31 // pred_region
        %p215 = scmp.lt.s32.totalorder %s12, 1
        %s216 = scalar_select %p215, %s12, 1
        %s217 = smul.addr %s216, 8
        %s218 = scalar_lea.vmem %s1, %s217
      $region40: #{rsu6_forward.22} parent=31 // pred_fallthru
        _
    $region32: #{rsu6_forward.22} parent=5 // pred_fallthru
      _
    %p219 = scmp.le.s32.totalorder 1, %s12
    %p220 = scmp.lt.s32.totalorder %s12, 3
    %p221 = pnand %p219, %p220
    %p222 = pneg %p221
    // Predicated region
    $region41: #{rsu6_forward.22} parent=5 // pred_check
      _
    $region42: #{rsu6_forward.22} parent=5 // pred_check_branch
      %224 = sbr.rel (%p221) target = $region44
    $region43: #{rsu6_forward.22} parent=5 // pred_region
      %s225 = ssub.s32 %s12, 1
      %p226 = scmp.lt.s32.totalorder %s17, 1
      %s227 = scalar_select %p226, %s17, 1
      %s228 = smul.addr %s227, 4
      %s229 = scalar_lea.vmem %s0, %s228
      %p230 = pneg %p38
      %p231 = pneg %p35
      %p232 = scmp.lt.s32.totalorder %s17, 1
      %s233 = scalar_select %p232, %s17, 1
      %s234 = smul.addr %s233, 8
      %s235 = scalar_lea.vmem %s1, %s234
      %p236 = pneg %p64
      %p237 = pneg %p61
      %p238 = pneg %p85
      %p239 = pneg %p82
      %p240 = pneg %p106
      %p241 = pneg %p103
      %p242 = pneg %p127
      %p243 = pneg %p124
      %p244 = pneg %p148
      %p245 = pneg %p145
      %p246 = pneg %p174
      %p247 = pneg %p171
      %p248 = scmp.lt.s32.totalorder %s17, 1
      %s249 = scalar_select %p248, %s17, 1
      %s250 = smul.addr %s249, 8
      %s251 = scalar_lea.vmem %s6, %s250
      %p252 = scmp.lt.s32.totalorder %s17, 1
      %s253 = scalar_select %p252, %s17, 1
      %s254 = smul.addr %s253, 4
      %s255 = scalar_lea.vmem %s0, %s254
      %p256 = scmp.lt.s32.totalorder %s17, 1
      %s257 = scalar_select %p256, %s17, 1
      %s258 = smul.addr %s257, 8
      %s259 = scalar_lea.vmem %s1, %s258
      %p260 = scmp.lt.s32.totalorder %s17, 1
      %s261 = scalar_select %p260, %s17, 1
      %s262 = smul.addr %s261, 8
      %s263 = scalar_lea.vmem %s6, %s262
      %v264 = vld [vmem:[%s255] sm:$0xf]
      %v265 = vld [vmem:[%s2] sm:$0xff]
      %vm266 = vcmask 31744
      %v268 = vsel %vm266, %v265, 0
      %vm270 = vcmask 1043456
      %v272 = vsel %vm270, %v264, 0
      %274 = vmatprep.subr.mxu0 0.0
      %275 = vmatpush1.msra.mxu0 %v272
      %276 = vmatprep.subr.mxu0 0.0
      %277 = vmatpush1.msra.mxu0 0.0
      %278 = vmatprep.subr.mxu0 0.0
      %279 = vmatpush1.msra.mxu0 0.0
      %280 = vmatprep.subr.mxu0 0.0
      %281 = vmatpush1.msra.mxu0 0.0
      %282 = vmatprep.subr.mxu0 0.0
      %283 = vmatpush1.msra.mxu0 0.0
      %284 = vmatprep.subr.mxu0 0.0
      %285 = vmatpush1.msra.mxu0 0.0
      %286 = vmatprep.subr.mxu0 0.0
      %287 = vmatpush1.msra.mxu0 0.0
      %288 = vmatprep.subr.mxu0 0.0
      %289 = vmatpush1.msra.mxu0 0.0
      %290 = vmatprep.subr.mxu0 0.0
      %291 = vmatpush1.msra.mxu0 0.0
      %292 = vmatprep.subr.mxu0 0.0
      %293 = vmatpush1.msra.mxu0 0.0
      %294 = vmatprep.subr.mxu0 0.0
      %295 = vmatpush1.msra.mxu0 0.0
      %296 = vmatprep.subr.mxu0 0.0
      %297 = vmatpush1.msra.mxu0 0.0
      %298 = vmatprep.subr.mxu0 0.0
      %299 = vmatpush1.msra.mxu0 0.0
      %300 = vmatprep.subr.mxu0 0.0
      %301 = vmatpush1.msra.mxu0 0.0
      %302 = vmatprep.subr.mxu0 0.0
      %303 = vmatpush1.msra.mxu0 0.0
      %304 = vmatprep.subr.mxu0 0.0
      %305 = vmatpush1.msra.mxu0 0.0
      %306 = vmatprep.subr.mxu0 0.0
      %307 = vmatpush1.msra.mxu0 0.0
      %308 = vmatprep.subr.mxu0 0.0
      %309 = vmatpush1.msra.mxu0 0.0
      %310 = vmatprep.subr.mxu0 0.0
      %311 = vmatpush1.msra.mxu0 0.0
      %312 = vmatprep.subr.mxu0 0.0
      %313 = vmatpush1.msra.mxu0 0.0
      %314 = vmatprep.subr.mxu0 0.0
      %315 = vmatpush1.msra.mxu0 0.0
      %316 = vmatprep.subr.mxu0 0.0
      %317 = vmatpush1.msra.mxu0 0.0
      %318 = vmatprep.subr.mxu0 0.0
      %319 = vmatpush1.msra.mxu0 0.0
      %320 = vmatprep.subr.mxu0 0.0
      %321 = vmatpush1.msra.mxu0 0.0
      %322 = vmatprep.subr.mxu0 0.0
      %323 = vmatpush1.msra.mxu0 0.0
      %324 = vmatprep.subr.mxu0 0.0
      %325 = vmatpush1.msra.mxu0 0.0
      %326 = vmatprep.subr.mxu0 0.0
      %327 = vmatpush1.msra.mxu0 0.0
      %328 = vmatprep.subr.mxu0 0.0
      %329 = vmatpush1.msra.mxu0 0.0
      %330 = vmatprep.subr.mxu0 0.0
      %331 = vmatpush1.msra.mxu0 0.0
      %332 = vmatprep.subr.mxu0 0.0
      %333 = vmatpush1.msra.mxu0 0.0
      %334 = vmatprep.subr.mxu0 0.0
      %335 = vmatpush1.msra.mxu0 0.0
      %336 = vmatprep.subr.mxu0 0.0
      %337 = vmatpush1.msra.mxu0 0.0
      %338 = vmatprep.mubr.f32.mxu0 0.0
      %339 = vmatmul.mubr.f32.gmra.mrb[0].mxu0 %v268
      %v340 = vpop.f32.mrb[0].mxu0
      %v341 = vadd.f32 0.0, %v340
      %v342 = vpop.f32.mrb[0].mxu0
      %343 = vdwg.mxu0
      %s344 = scalar_lea.vmem %s2, 8
      %v345 = vld [vmem:[%s344] sm:$0xff]
      %v347 = vsel %vm266, %v345, 0
      %349 = vmatprep.subr.mxu0 0.0
      %350 = vmatpush1.msra.mxu0 %v272
      %351 = vmatprep.subr.mxu0 0.0
      %352 = vmatpush1.msra.mxu0 0.0
      %353 = vmatprep.subr.mxu0 0.0
      %354 = vmatpush1.msra.mxu0 0.0
      %355 = vmatprep.subr.mxu0 0.0
      %356 = vmatpush1.msra.mxu0 0.0
      %357 = vmatprep.subr.mxu0 0.0
      %358 = vmatpush1.msra.mxu0 0.0
      %359 = vmatprep.subr.mxu0 0.0
      %360 = vmatpush1.msra.mxu0 0.0
      %361 = vmatprep.subr.mxu0 0.0
      %362 = vmatpush1.msra.mxu0 0.0
      %363 = vmatprep.subr.mxu0 0.0
      %364 = vmatpush1.msra.mxu0 0.0
      %365 = vmatprep.subr.mxu0 0.0
      %366 = vmatpush1.msra.mxu0 0.0
      %367 = vmatprep.subr.mxu0 0.0
      %368 = vmatpush1.msra.mxu0 0.0
      %369 = vmatprep.subr.mxu0 0.0
      %370 = vmatpush1.msra.mxu0 0.0
      %371 = vmatprep.subr.mxu0 0.0
      %372 = vmatpush1.msra.mxu0 0.0
      %373 = vmatprep.subr.mxu0 0.0
      %374 = vmatpush1.msra.mxu0 0.0
      %375 = vmatprep.subr.mxu0 0.0
      %376 = vmatpush1.msra.mxu0 0.0
      %377 = vmatprep.subr.mxu0 0.0
      %378 = vmatpush1.msra.mxu0 0.0
      %379 = vmatprep.subr.mxu0 0.0
      %380 = vmatpush1.msra.mxu0 0.0
      %381 = vmatprep.subr.mxu0 0.0
      %382 = vmatpush1.msra.mxu0 0.0
      %383 = vmatprep.subr.mxu0 0.0
      %384 = vmatpush1.msra.mxu0 0.0
      %385 = vmatprep.subr.mxu0 0.0
      %386 = vmatpush1.msra.mxu0 0.0
      %387 = vmatprep.subr.mxu0 0.0
      %388 = vmatpush1.msra.mxu0 0.0
      %389 = vmatprep.subr.mxu0 0.0
      %390 = vmatpush1.msra.mxu0 0.0
      %391 = vmatprep.subr.mxu0 0.0
      %392 = vmatpush1.msra.mxu0 0.0
      %393 = vmatprep.subr.mxu0 0.0
      %394 = vmatpush1.msra.mxu0 0.0
      %395 = vmatprep.subr.mxu0 0.0
      %396 = vmatpush1.msra.mxu0 0.0
      %397 = vmatprep.subr.mxu0 0.0
      %398 = vmatpush1.msra.mxu0 0.0
      %399 = vmatprep.subr.mxu0 0.0
      %400 = vmatpush1.msra.mxu0 0.0
      %401 = vmatprep.subr.mxu0 0.0
      %402 = vmatpush1.msra.mxu0 0.0
      %403 = vmatprep.subr.mxu0 0.0
      %404 = vmatpush1.msra.mxu0 0.0
      %405 = vmatprep.subr.mxu0 0.0
      %406 = vmatpush1.msra.mxu0 0.0
      %407 = vmatprep.subr.mxu0 0.0
      %408 = vmatpush1.msra.mxu0 0.0
      %409 = vmatprep.subr.mxu0 0.0
      %410 = vmatpush1.msra.mxu0 0.0
      %411 = vmatprep.subr.mxu0 0.0
      %412 = vmatpush1.msra.mxu0 0.0
      %413 = vmatprep.mubr.f32.mxu0 0.0
      %414 = vmatmul.mubr.f32.gmra.mrb[0].mxu0 %v347
      %v415 = vpop.f32.mrb[0].mxu0
      %v416 = vadd.f32 0.0, %v415
      %v417 = vpop.f32.mrb[0].mxu0
      %418 = vdwg.mxu0
      %s419 = scalar_lea.vmem %s2, 16
      %v420 = vld [vmem:[%s419] sm:$0xff]
      %v422 = vsel %vm266, %v420, 0
      %424 = vmatprep.subr.mxu0 0.0
      %425 = vmatpush1.msra.mxu0 %v272
      %426 = vmatprep.subr.mxu0 0.0
      %427 = vmatpush1.msra.mxu0 0.0
      %428 = vmatprep.subr.mxu0 0.0
      %429 = vmatpush1.msra.mxu0 0.0
      %430 = vmatprep.subr.mxu0 0.0
      %431 = vmatpush1.msra.mxu0 0.0
      %432 = vmatprep.subr.mxu0 0.0
      %433 = vmatpush1.msra.mxu0 0.0
      %434 = vmatprep.subr.mxu0 0.0
      %435 = vmatpush1.msra.mxu0 0.0
      %436 = vmatprep.subr.mxu0 0.0
      %437 = vmatpush1.msra.mxu0 0.0
      %438 = vmatprep.subr.mxu0 0.0
      %439 = vmatpush1.msra.mxu0 0.0
      %440 = vmatprep.subr.mxu0 0.0
      %441 = vmatpush1.msra.mxu0 0.0
      %442 = vmatprep.subr.mxu0 0.0
      %443 = vmatpush1.msra.mxu0 0.0
      %444 = vmatprep.subr.mxu0 0.0
      %445 = vmatpush1.msra.mxu0 0.0
      %446 = vmatprep.subr.mxu0 0.0
      %447 = vmatpush1.msra.mxu0 0.0
      %448 = vmatprep.subr.mxu0 0.0
      %449 = vmatpush1.msra.mxu0 0.0
      %450 = vmatprep.subr.mxu0 0.0
      %451 = vmatpush1.msra.mxu0 0.0
      %452 = vmatprep.subr.mxu0 0.0
      %453 = vmatpush1.msra.mxu0 0.0
      %454 = vmatprep.subr.mxu0 0.0
      %455 = vmatpush1.msra.mxu0 0.0
      %456 = vmatprep.subr.mxu0 0.0
      %457 = vmatpush1.msra.mxu0 0.0
      %458 = vmatprep.subr.mxu0 0.0
      %459 = vmatpush1.msra.mxu0 0.0
      %460 = vmatprep.subr.mxu0 0.0
      %461 = vmatpush1.msra.mxu0 0.0
      %462 = vmatprep.subr.mxu0 0.0
      %463 = vmatpush1.msra.mxu0 0.0
      %464 = vmatprep.subr.mxu0 0.0
      %465 = vmatpush1.msra.mxu0 0.0
      %466 = vmatprep.subr.mxu0 0.0
      %467 = vmatpush1.msra.mxu0 0.0
      %468 = vmatprep.subr.mxu0 0.0
      %469 = vmatpush1.msra.mxu0 0.0
      %470 = vmatprep.subr.mxu0 0.0
      %471 = vmatpush1.msra.mxu0 0.0
      %472 = vmatprep.subr.mxu0 0.0
      %473 = vmatpush1.msra.mxu0 0.0
      %474 = vmatprep.subr.mxu0 0.0
      %475 = vmatpush1.msra.mxu0 0.0
      %476 = vmatprep.subr.mxu0 0.0
      %477 = vmatpush1.msra.mxu0 0.0
      %478 = vmatprep.subr.mxu0 0.0
      %479 = vmatpush1.msra.mxu0 0.0
      %480 = vmatprep.subr.mxu0 0.0
      %481 = vmatpush1.msra.mxu0 0.0
      %482 = vmatprep.subr.mxu0 0.0
      %483 = vmatpush1.msra.mxu0 0.0
      %484 = vmatprep.subr.mxu0 0.0
      %485 = vmatpush1.msra.mxu0 0.0
      %486 = vmatprep.subr.mxu0 0.0
      %487 = vmatpush1.msra.mxu0 0.0
      %488 = vmatprep.mubr.f32.mxu0 0.0
      %489 = vmatmul.mubr.f32.gmra.mrb[0].mxu0 %v422
      %v490 = vpop.f32.mrb[0].mxu0
      %v491 = vadd.f32 0.0, %v490
      %v492 = vpop.f32.mrb[0].mxu0
      %493 = vdwg.mxu0
      %v494 = vld [vmem:[%s259] sm:$0xff]
      %v495 = vld [vmem:[%s3] sm:$0xff]
      %vm496 = vcmask 64512
      %v498 = vsel %vm496, %v495, 0
      %500 = vmatprep.subr.mxu0 0.0
      %501 = vmatpush1.msra.mxu0 %v494
      %502 = vmatprep.subr.mxu0 0.0
      %503 = vmatpush1.msra.mxu0 0.0
      %504 = vmatprep.subr.mxu0 0.0
      %505 = vmatpush1.msra.mxu0 0.0
      %506 = vmatprep.subr.mxu0 0.0
      %507 = vmatpush1.msra.mxu0 0.0
      %508 = vmatprep.subr.mxu0 0.0
      %509 = vmatpush1.msra.mxu0 0.0
      %510 = vmatprep.subr.mxu0 0.0
      %511 = vmatpush1.msra.mxu0 0.0
      %512 = vmatprep.subr.mxu0 0.0
      %513 = vmatpush1.msra.mxu0 0.0
      %514 = vmatprep.subr.mxu0 0.0
      %515 = vmatpush1.msra.mxu0 0.0
      %516 = vmatprep.subr.mxu0 0.0
      %517 = vmatpush1.msra.mxu0 0.0
      %518 = vmatprep.subr.mxu0 0.0
      %519 = vmatpush1.msra.mxu0 0.0
      %520 = vmatprep.subr.mxu0 0.0
      %521 = vmatpush1.msra.mxu0 0.0
      %522 = vmatprep.subr.mxu0 0.0
      %523 = vmatpush1.msra.mxu0 0.0
      %524 = vmatprep.subr.mxu0 0.0
      %525 = vmatpush1.msra.mxu0 0.0
      %526 = vmatprep.subr.mxu0 0.0
      %527 = vmatpush1.msra.mxu0 0.0
      %528 = vmatprep.subr.mxu0 0.0
      %529 = vmatpush1.msra.mxu0 0.0
      %530 = vmatprep.subr.mxu0 0.0
      %531 = vmatpush1.msra.mxu0 0.0
      %532 = vmatprep.subr.mxu0 0.0
      %533 = vmatpush1.msra.mxu0 0.0
      %534 = vmatprep.subr.mxu0 0.0
      %535 = vmatpush1.msra.mxu0 0.0
      %536 = vmatprep.subr.mxu0 0.0
      %537 = vmatpush1.msra.mxu0 0.0
      %538 = vmatprep.subr.mxu0 0.0
      %539 = vmatpush1.msra.mxu0 0.0
      %540 = vmatprep.subr.mxu0 0.0
      %541 = vmatpush1.msra.mxu0 0.0
      %542 = vmatprep.subr.mxu0 0.0
      %543 = vmatpush1.msra.mxu0 0.0
      %544 = vmatprep.subr.mxu0 0.0
      %545 = vmatpush1.msra.mxu0 0.0
      %546 = vmatprep.subr.mxu0 0.0
      %547 = vmatpush1.msra.mxu0 0.0
      %548 = vmatprep.subr.mxu0 0.0
      %549 = vmatpush1.msra.mxu0 0.0
      %550 = vmatprep.subr.mxu0 0.0
      %551 = vmatpush1.msra.mxu0 0.0
      %552 = vmatprep.subr.mxu0 0.0
      %553 = vmatpush1.msra.mxu0 0.0
      %554 = vmatprep.subr.mxu0 0.0
      %555 = vmatpush1.msra.mxu0 0.0
      %556 = vmatprep.subr.mxu0 0.0
      %557 = vmatpush1.msra.mxu0 0.0
      %558 = vmatprep.subr.mxu0 0.0
      %559 = vmatpush1.msra.mxu0 0.0
      %560 = vmatprep.subr.mxu0 0.0
      %561 = vmatpush1.msra.mxu0 0.0
      %562 = vmatprep.subr.mxu0 0.0
      %563 = vmatpush1.msra.mxu0 0.0
      %564 = vmatprep.mubr.f32.mxu0 0.0
      %565 = vmatmul.mubr.f32.gmra.mrb[0].mxu0 %v498
      %v566 = vpop.f32.mrb[0].mxu0
      %v567 = vadd.f32 0.0, %v566
      %v568 = vpop.f32.mrb[0].mxu0
      %569 = vdwg.mxu0
      %s570 = scalar_lea.vmem %s3, 16
      %v571 = vld [vmem:[%s570] sm:$0xff]
      %v573 = vsel %vm496, %v571, 0
      %575 = vmatprep.subr.mxu0 0.0
      %576 = vmatpush1.msra.mxu0 %v494
      %577 = vmatprep.subr.mxu0 0.0
      %578 = vmatpush1.msra.mxu0 0.0
      %579 = vmatprep.subr.mxu0 0.0
      %580 = vmatpush1.msra.mxu0 0.0
      %581 = vmatprep.subr.mxu0 0.0
      %582 = vmatpush1.msra.mxu0 0.0
      %583 = vmatprep.subr.mxu0 0.0
      %584 = vmatpush1.msra.mxu0 0.0
      %585 = vmatprep.subr.mxu0 0.0
      %586 = vmatpush1.msra.mxu0 0.0
      %587 = vmatprep.subr.mxu0 0.0
      %588 = vmatpush1.msra.mxu0 0.0
      %589 = vmatprep.subr.mxu0 0.0
      %590 = vmatpush1.msra.mxu0 0.0
      %591 = vmatprep.subr.mxu0 0.0
      %592 = vmatpush1.msra.mxu0 0.0
      %593 = vmatprep.subr.mxu0 0.0
      %594 = vmatpush1.msra.mxu0 0.0
      %595 = vmatprep.subr.mxu0 0.0
      %596 = vmatpush1.msra.mxu0 0.0
      %597 = vmatprep.subr.mxu0 0.0
      %598 = vmatpush1.msra.mxu0 0.0
      %599 = vmatprep.subr.mxu0 0.0
      %600 = vmatpush1.msra.mxu0 0.0
      %601 = vmatprep.subr.mxu0 0.0
      %602 = vmatpush1.msra.mxu0 0.0
      %603 = vmatprep.subr.mxu0 0.0
      %604 = vmatpush1.msra.mxu0 0.0
      %605 = vmatprep.subr.mxu0 0.0
      %606 = vmatpush1.msra.mxu0 0.0
      %607 = vmatprep.subr.mxu0 0.0
      %608 = vmatpush1.msra.mxu0 0.0
      %609 = vmatprep.subr.mxu0 0.0
      %610 = vmatpush1.msra.mxu0 0.0
      %611 = vmatprep.subr.mxu0 0.0
      %612 = vmatpush1.msra.mxu0 0.0
      %613 = vmatprep.subr.mxu0 0.0
      %614 = vmatpush1.msra.mxu0 0.0
      %615 = vmatprep.subr.mxu0 0.0
      %616 = vmatpush1.msra.mxu0 0.0
      %617 = vmatprep.subr.mxu0 0.0
      %618 = vmatpush1.msra.mxu0 0.0
      %619 = vmatprep.subr.mxu0 0.0
      %620 = vmatpush1.msra.mxu0 0.0
      %621 = vmatprep.subr.mxu0 0.0
      %622 = vmatpush1.msra.mxu0 0.0
      %623 = vmatprep.subr.mxu0 0.0
      %624 = vmatpush1.msra.mxu0 0.0
      %625 = vmatprep.subr.mxu0 0.0
      %626 = vmatpush1.msra.mxu0 0.0
      %627 = vmatprep.subr.mxu0 0.0
      %628 = vmatpush1.msra.mxu0 0.0
      %629 = vmatprep.subr.mxu0 0.0
      %630 = vmatpush1.msra.mxu0 0.0
      %631 = vmatprep.subr.mxu0 0.0
      %632 = vmatpush1.msra.mxu0 0.0
      %633 = vmatprep.subr.mxu0 0.0
      %634 = vmatpush1.msra.mxu0 0.0
      %635 = vmatprep.subr.mxu0 0.0
      %636 = vmatpush1.msra.mxu0 0.0
      %637 = vmatprep.subr.mxu0 0.0
      %638 = vmatpush1.msra.mxu0 0.0
      %639 = vmatprep.mubr.f32.mxu0 0.0
      %640 = vmatmul.mubr.f32.gmra.mrb[0].mxu0 %v573
      %v641 = vpop.f32.mrb[0].mxu0
      %v642 = vadd.f32 0.0, %v641
      %v643 = vpop.f32.mrb[0].mxu0
      %644 = vdwg.mxu0
      %646 = vrot.lane.b32.xlu0 %v416, 64
      %v647 = vpop.permute.xlu0 %646
      %650 = vrot.lane.b32.xlu0 %v567, 64
      %v651 = vpop.permute.xlu0 %650
      %654 = vrot.lane.b32.xlu0 %v494, 64
      %v655 = vpop.permute.xlu0 %654
      %658 = vrot.lane.b32.xlu0 %v642, 64
      %v659 = vpop.permute.xlu0 %658
      %vm661 = vcmask 523264
      %v662 = vsel %vm661, %v341, %v647
      %v663 = vsel %vm661, %v491, %v651
      %v664 = vsel %vm661, %v651, %v655
      %v665 = vsel %vm661, %v655, %v659
      %v666 = vld [vmem:[%s4] sm:$0xff]
      %v667 = vld [vmem:[%s4 + $0x8] sm:$0xff]
      %v668 = vld [vmem:[%s4 + $0x10] sm:$0xff]
      %v669 = vld [vmem:[%s4 + $0x18] sm:$0xff]
      %v670 = vld [vmem:[%s4 + $0x20] sm:$0xff]
      %v671 = vld [vmem:[%s4 + $0x28] sm:$0xff]
      %v672 = vld [vmem:[%s4 + $0x30] sm:$0xff]
      %v673 = vld [vmem:[%s4 + $0x38] sm:$0xff]
      %v674 = vld [vmem:[%s4 + $0x40] sm:$0xff]
      %v675 = vld [vmem:[%s4 + $0x48] sm:$0xff]
      %v676 = vld [vmem:[%s4 + $0x50] sm:$0xff]
      %v677 = vld [vmem:[%s4 + $0x58] sm:$0xff]
      %v678 = vld [vmem:[%s4 + $0x60] sm:$0xff]
      %v679 = vld [vmem:[%s4 + $0x68] sm:$0xff]
      %v680 = vld [vmem:[%s4 + $0x70] sm:$0xff]
      %v681 = vld [vmem:[%s4 + $0x78] sm:$0xff]
      %v682 = vld [vmem:[%s4 + $0x80] sm:$0xff]
      %v683 = vld [vmem:[%s4 + $0x88] sm:$0xff]
      %v684 = vld [vmem:[%s4 + $0x90] sm:$0xff]
      %v685 = vld [vmem:[%s4 + $0x98] sm:$0xff]
      %v686 = vld [vmem:[%s4 + $0xa0] sm:$0xff]
      %v687 = vld [vmem:[%s4 + $0xa8] sm:$0xff]
      %v688 = vld [vmem:[%s4 + $0xb0] sm:$0xff]
      %v689 = vld [vmem:[%s4 + $0xb8] sm:$0xff]
      %v690 = vld [vmem:[%s4 + $0xc0] sm:$0xff]
      %v691 = vld [vmem:[%s4 + $0xc8] sm:$0xff]
      %v692 = vld [vmem:[%s4 + $0xd0] sm:$0xff]
      %v693 = vld [vmem:[%s4 + $0xd8] sm:$0xff]
      %v694 = vld [vmem:[%s4 + $0xe0] sm:$0xff]
      %v695 = vld [vmem:[%s4 + $0xe8] sm:$0xff]
      %v696 = vld [vmem:[%s4 + $0xf0] sm:$0xff]
      %v697 = vld [vmem:[%s4 + $0xf8] sm:$0xff]
      %v698 = vld [vmem:[%s4 + $0x100] sm:$0xff]
      %v699 = vld [vmem:[%s4 + $0x108] sm:$0xff]
      %v700 = vld [vmem:[%s4 + $0x110] sm:$0xff]
      %v701 = vld [vmem:[%s4 + $0x118] sm:$0xff]
      %v702 = vld [vmem:[%s4 + $0x120] sm:$0xff]
      %v703 = vld [vmem:[%s4 + $0x128] sm:$0xff]
      %v704 = vld [vmem:[%s4 + $0x130] sm:$0xff]
      %v705 = vld [vmem:[%s4 + $0x138] sm:$0xff]
      %v706 = vld [vmem:[%s4 + $0x140] sm:$0xff]
      %v707 = vld [vmem:[%s4 + $0x148] sm:$0xff]
      %v708 = vld [vmem:[%s4 + $0x150] sm:$0xff]
      %v709 = vld [vmem:[%s4 + $0x158] sm:$0xff]
      %v710 = vld [vmem:[%s4 + $0x160] sm:$0xff]
      %v711 = vld [vmem:[%s4 + $0x168] sm:$0xff]
      %v712 = vld [vmem:[%s4 + $0x170] sm:$0xff]
      %v713 = vld [vmem:[%s4 + $0x178] sm:$0xff]
      %v714 = vld [vmem:[%s4 + $0x180] sm:$0xff]
      %v715 = vld [vmem:[%s4 + $0x188] sm:$0xff]
      %v716 = vld [vmem:[%s4 + $0x190] sm:$0xff]
      %v717 = vld [vmem:[%s4 + $0x198] sm:$0xff]
      %v718 = vld [vmem:[%s4 + $0x1a0] sm:$0xff]
      %v719 = vld [vmem:[%s4 + $0x1a8] sm:$0xff]
      %v720 = vld [vmem:[%s4 + $0x1b0] sm:$0xff]
      %v721 = vld [vmem:[%s4 + $0x1b8] sm:$0xff]
      %v722 = vld [vmem:[%s4 + $0x1c0] sm:$0xff]
      %v723 = vld [vmem:[%s4 + $0x1c8] sm:$0xff]
      %v724 = vld [vmem:[%s4 + $0x1d0] sm:$0xff]
      %v725 = vld [vmem:[%s4 + $0x1d8] sm:$0xff]
      %v726 = vld [vmem:[%s4 + $0x1e0] sm:$0xff]
      %v727 = vld [vmem:[%s4 + $0x1e8] sm:$0xff]
      %v728 = vld [vmem:[%s4 + $0x1f0] sm:$0xff]
      %v729 = vld [vmem:[%s4 + $0x1f8] sm:$0xff]
      %v730 = vld [vmem:[%s4 + $0x200] sm:$0xff]
      %v731 = vld [vmem:[%s4 + $0x208] sm:$0xff]
      %v732 = vld [vmem:[%s4 + $0x210] sm:$0xff]
      %v733 = vld [vmem:[%s4 + $0x218] sm:$0xff]
      %v734 = vld [vmem:[%s4 + $0x220] sm:$0xff]
      %v735 = vld [vmem:[%s4 + $0x228] sm:$0xff]
      %v736 = vld [vmem:[%s4 + $0x230] sm:$0xff]
      %v737 = vld [vmem:[%s4 + $0x238] sm:$0xff]
      %v738 = vsel %vm661, %v659, 0
      %740 = vmatprep.subr.mxu0 0.0
      %741 = vmatpush1.msra.mxu0 %v666
      %742 = vmatprep.subr.mxu0 0.0
      %743 = vmatpush1.msra.mxu0 %v667
      %744 = vmatprep.subr.mxu0 0.0
      %745 = vmatpush1.msra.mxu0 %v668
      %746 = vmatprep.subr.mxu0 0.0
      %747 = vmatpush1.msra.mxu0 %v669
      %748 = vmatprep.subr.mxu0 0.0
      %749 = vmatpush1.msra.mxu0 %v670
      %750 = vmatprep.subr.mxu0 0.0
      %751 = vmatpush1.msra.mxu0 %v671
      %752 = vmatprep.subr.mxu0 0.0
      %753 = vmatpush1.msra.mxu0 %v672
      %754 = vmatprep.subr.mxu0 0.0
      %755 = vmatpush1.msra.mxu0 %v673
      %756 = vmatprep.subr.mxu0 0.0
      %757 = vmatpush1.msra.mxu0 %v674
      %758 = vmatprep.subr.mxu0 0.0
      %759 = vmatpush1.msra.mxu0 %v675
      %760 = vmatprep.subr.mxu0 0.0
      %761 = vmatpush1.msra.mxu0 %v676
      %762 = vmatprep.subr.mxu0 0.0
      %763 = vmatpush1.msra.mxu0 %v677
      %764 = vmatprep.subr.mxu0 0.0
      %765 = vmatpush1.msra.mxu0 %v678
      %766 = vmatprep.subr.mxu0 0.0
      %767 = vmatpush1.msra.mxu0 %v679
      %768 = vmatprep.subr.mxu0 0.0
      %769 = vmatpush1.msra.mxu0 %v680
      %770 = vmatprep.subr.mxu0 0.0
      %771 = vmatpush1.msra.mxu0 %v681
      %772 = vmatprep.subr.mxu0 0.0
      %773 = vmatpush1.msra.mxu0 %v682
      %774 = vmatprep.subr.mxu0 0.0
      %775 = vmatpush1.msra.mxu0 %v683
      %776 = vmatprep.subr.mxu0 0.0
      %777 = vmatpush1.msra.mxu0 %v684
      %778 = vmatprep.subr.mxu0 0.0
      %779 = vmatpush1.msra.mxu0 %v685
      %780 = vmatprep.subr.mxu0 0.0
      %781 = vmatpush1.msra.mxu0 %v686
      %782 = vmatprep.subr.mxu0 0.0
      %783 = vmatpush1.msra.mxu0 %v687
      %784 = vmatprep.subr.mxu0 0.0
      %785 = vmatpush1.msra.mxu0 %v688
      %786 = vmatprep.subr.mxu0 0.0
      %787 = vmatpush1.msra.mxu0 %v689
      %788 = vmatprep.subr.mxu0 0.0
      %789 = vmatpush1.msra.mxu0 %v690
      %790 = vmatprep.subr.mxu0 0.0
      %791 = vmatpush1.msra.mxu0 %v691
      %792 = vmatprep.subr.mxu0 0.0
      %793 = vmatpush1.msra.mxu0 %v692
      %794 = vmatprep.subr.mxu0 0.0
      %795 = vmatpush1.msra.mxu0 %v693
      %796 = vmatprep.subr.mxu0 0.0
      %797 = vmatpush1.msra.mxu0 %v694
      %798 = vmatprep.subr.mxu0 0.0
      %799 = vmatpush1.msra.mxu0 %v695
      %800 = vmatprep.subr.mxu0 0.0
      %801 = vmatpush1.msra.mxu0 %v696
      %802 = vmatprep.subr.mxu0 0.0
      %803 = vmatpush1.msra.mxu0 %v697
      %804 = vmatprep.mubr.f32.mxu0 %v663
      %805 = vmatmul.mubr.f32.gmra.mrb[0].mxu0 %v662
      %v806 = vpop.f32.mrb[0].mxu0
      %v807 = vadd.f32 0.0, %v806
      %v808 = vpop.f32.mrb[0].mxu0
      %809 = vdwg.mxu0
      %810 = vmatprep.subr.mxu0 0.0
      %811 = vmatpush1.msra.mxu0 %v698
      %812 = vmatprep.subr.mxu0 0.0
      %813 = vmatpush1.msra.mxu0 %v699
      %814 = vmatprep.subr.mxu0 0.0
      %815 = vmatpush1.msra.mxu0 %v700
      %816 = vmatprep.subr.mxu0 0.0
      %817 = vmatpush1.msra.mxu0 %v701
      %818 = vmatprep.subr.mxu0 0.0
      %819 = vmatpush1.msra.mxu0 %v702
      %820 = vmatprep.subr.mxu0 0.0
      %821 = vmatpush1.msra.mxu0 %v703
      %822 = vmatprep.subr.mxu0 0.0
      %823 = vmatpush1.msra.mxu0 %v704
      %824 = vmatprep.subr.mxu0 0.0
      %825 = vmatpush1.msra.mxu0 %v705
      %826 = vmatprep.subr.mxu0 0.0
      %827 = vmatpush1.msra.mxu0 %v706
      %828 = vmatprep.subr.mxu0 0.0
      %829 = vmatpush1.msra.mxu0 %v707
      %830 = vmatprep.subr.mxu0 0.0
      %831 = vmatpush1.msra.mxu0 %v708
      %832 = vmatprep.subr.mxu0 0.0
      %833 = vmatpush1.msra.mxu0 %v709
      %834 = vmatprep.subr.mxu0 0.0
      %835 = vmatpush1.msra.mxu0 %v710
      %836 = vmatprep.subr.mxu0 0.0
      %837 = vmatpush1.msra.mxu0 %v711
      %838 = vmatprep.subr.mxu0 0.0
      %839 = vmatpush1.msra.mxu0 %v712
      %840 = vmatprep.subr.mxu0 0.0
      %841 = vmatpush1.msra.mxu0 %v713
      %842 = vmatprep.subr.mxu0 0.0
      %843 = vmatpush1.msra.mxu0 %v714
      %844 = vmatprep.subr.mxu0 0.0
      %845 = vmatpush1.msra.mxu0 %v715
      %846 = vmatprep.subr.mxu0 0.0
      %847 = vmatpush1.msra.mxu0 %v716
      %848 = vmatprep.subr.mxu0 0.0
      %849 = vmatpush1.msra.mxu0 %v717
      %850 = vmatprep.subr.mxu0 0.0
      %851 = vmatpush1.msra.mxu0 %v718
      %852 = vmatprep.subr.mxu0 0.0
      %853 = vmatpush1.msra.mxu0 %v719
      %854 = vmatprep.subr.mxu0 0.0
      %855 = vmatpush1.msra.mxu0 %v720
      %856 = vmatprep.subr.mxu0 0.0
      %857 = vmatpush1.msra.mxu0 %v721
      %858 = vmatprep.subr.mxu0 0.0
      %859 = vmatpush1.msra.mxu0 %v722
      %860 = vmatprep.subr.mxu0 0.0
      %861 = vmatpush1.msra.mxu0 %v723
      %862 = vmatprep.subr.mxu0 0.0
      %863 = vmatpush1.msra.mxu0 %v724
      %864 = vmatprep.subr.mxu0 0.0
      %865 = vmatpush1.msra.mxu0 %v725
      %866 = vmatprep.subr.mxu0 0.0
      %867 = vmatpush1.msra.mxu0 %v726
      %868 = vmatprep.subr.mxu0 0.0
      %869 = vmatpush1.msra.mxu0 %v727
      %870 = vmatprep.subr.mxu0 0.0
      %871 = vmatpush1.msra.mxu0 %v728
      %872 = vmatprep.subr.mxu0 0.0
      %873 = vmatpush1.msra.mxu0 %v729
      %874 = vmatprep.mubr.f32.mxu0 %v665
      %875 = vmatmul.mubr.f32.gmra.mrb[0].mxu0 %v664
      %v876 = vpop.f32.mrb[0].mxu0
      %v877 = vadd.f32 %v807, %v876
      %v878 = vpop.f32.mrb[0].mxu0
      %879 = vdwg.mxu0
      %880 = vmatprep.subr.mxu0 0.0
      %881 = vmatpush1.msra.mxu0 %v730
      %882 = vmatprep.subr.mxu0 0.0
      %883 = vmatpush1.msra.mxu0 %v731
      %884 = vmatprep.subr.mxu0 0.0
      %885 = vmatpush1.msra.mxu0 %v732
      %886 = vmatprep.subr.mxu0 0.0
      %887 = vmatpush1.msra.mxu0 %v733
      %888 = vmatprep.subr.mxu0 0.0
      %889 = vmatpush1.msra.mxu0 %v734
      %890 = vmatprep.subr.mxu0 0.0
      %891 = vmatpush1.msra.mxu0 %v735
      %892 = vmatprep.subr.mxu0 0.0
      %893 = vmatpush1.msra.mxu0 %v736
      %894 = vmatprep.subr.mxu0 0.0
      %895 = vmatpush1.msra.mxu0 %v737
      %896 = vmatprep.subr.mxu0 0.0
      %897 = vmatpush1.msra.mxu0 0.0
      %898 = vmatprep.subr.mxu0 0.0
      %899 = vmatpush1.msra.mxu0 0.0
      %900 = vmatprep.subr.mxu0 0.0
      %901 = vmatpush1.msra.mxu0 0.0
      %902 = vmatprep.subr.mxu0 0.0
      %903 = vmatpush1.msra.mxu0 0.0
      %904 = vmatprep.subr.mxu0 0.0
      %905 = vmatpush1.msra.mxu0 0.0
      %906 = vmatprep.subr.mxu0 0.0
      %907 = vmatpush1.msra.mxu0 0.0
      %908 = vmatprep.subr.mxu0 0.0
      %909 = vmatpush1.msra.mxu0 0.0
      %910 = vmatprep.subr.mxu0 0.0
      %911 = vmatpush1.msra.mxu0 0.0
      %912 = vmatprep.subr.mxu0 0.0
      %913 = vmatpush1.msra.mxu0 0.0
      %914 = vmatprep.subr.mxu0 0.0
      %915 = vmatpush1.msra.mxu0 0.0
      %916 = vmatprep.subr.mxu0 0.0
      %917 = vmatpush1.msra.mxu0 0.0
      %918 = vmatprep.subr.mxu0 0.0
      %919 = vmatpush1.msra.mxu0 0.0
      %920 = vmatprep.subr.mxu0 0.0
      %921 = vmatpush1.msra.mxu0 0.0
      %922 = vmatprep.subr.mxu0 0.0
      %923 = vmatpush1.msra.mxu0 0.0
      %924 = vmatprep.subr.mxu0 0.0
      %925 = vmatpush1.msra.mxu0 0.0
      %926 = vmatprep.subr.mxu0 0.0
      %927 = vmatpush1.msra.mxu0 0.0
      %928 = vmatprep.subr.mxu0 0.0
      %929 = vmatpush1.msra.mxu0 0.0
      %930 = vmatprep.subr.mxu0 0.0
      %931 = vmatpush1.msra.mxu0 0.0
      %932 = vmatprep.subr.mxu0 0.0
      %933 = vmatpush1.msra.mxu0 0.0
      %934 = vmatprep.subr.mxu0 0.0
      %935 = vmatpush1.msra.mxu0 0.0
      %936 = vmatprep.subr.mxu0 0.0
      %937 = vmatpush1.msra.mxu0 0.0
      %938 = vmatprep.subr.mxu0 0.0
      %939 = vmatpush1.msra.mxu0 0.0
      %940 = vmatprep.subr.mxu0 0.0
      %941 = vmatpush1.msra.mxu0 0.0
      %942 = vmatprep.subr.mxu0 0.0
      %943 = vmatpush1.msra.mxu0 0.0
      %944 = vmatprep.mubr.f32.mxu0 0.0
      %945 = vmatmul.mubr.f32.gmra.mrb[0].mxu0 %v738
      %v946 = vpop.f32.mrb[0].mxu0
      %v947 = vadd.f32 %v877, %v946
      %v948 = vpop.f32.mrb[0].mxu0
      %949 = vdwg.mxu0
      %v950 = vld [vmem:[%s5] sm:$0x1]
      %v951 = vlaneseq
      %v952 = vshrl.u32 %v951, 7
      %v953 = vsub.s32 0, %v952
      %v954 = vrot.slane %v950, %v953
      %v955 = vmul.f32 %v947, %v954
      %v956 = vld [vmem:[%s5 + $0x1] sm:$0x1]
      %v957 = vlaneseq
      %v958 = vshrl.u32 %v957, 7
      %v959 = vsub.s32 0, %v958
      %v960 = vrot.slane %v956, %v959
      %v961 = vadd.f32 %v955, %v960
      %v962 = vmax.f32 %v961, 0.0
      %963 = vst [vmem:[%s263] sm:$0xff] %v962
      %p964 = scmp.lt.s32.totalorder %s17, 1
      %s965 = scalar_select %p964, %s17, 1
      %s966 = smul.addr %s965, 8
      %s967 = scalar_lea.vmem %s6, %s966
      // Predicated region
      $region45: #{rsu6_forward.22} parent=43 // pred_check
        %p968 = pneg %p171
      $region46: #{rsu6_forward.22} parent=43 // pred_check_branch
        %970 = sbr.rel (%p968) target = $region48
      $region47: #{rsu6_forward.22} parent=43 // pred_region
        _
      $region48: #{rsu6_forward.22} parent=43 // pred_fallthru
        _
    $region44: #{rsu6_forward.22} parent=5 // pred_fallthru
      _
    %p971 = scmp.le.s32.totalorder 2, %s12
    // Predicated region
    $region49: #{rsu6_forward.22} parent=5 // pred_check
      %p972 = pneg %p971
    $region50: #{rsu6_forward.22} parent=5 // pred_check_branch
      %974 = sbr.rel (%p972) target = $region52
    $region51: #{rsu6_forward.22} parent=5 // pred_region
      %s975 = ssub.s32 %s12, 2
      // Predicated region
      $region53: #{rsu6_forward.22} parent=51 // pred_check
        %p976 = pneg %p177
      $region54: #{rsu6_forward.22} parent=51 // pred_check_branch
        %978 = sbr.rel (%p976) target = $region56
      $region55: #{rsu6_forward.22} parent=51 // pred_region
        %p979 = scmp.lt.s32.totalorder %s18, 1
        %s980 = scalar_select %p979, %s18, 1
        %s981 = smul.addr %s980, 8
        %s982 = scalar_lea.vmem %s6, %s981
      $region56: #{rsu6_forward.22} parent=51 // pred_fallthru
        _
    $region52: #{rsu6_forward.22} parent=5 // pred_fallthru
      _
  $region6: #{rsu6_forward.22} parent=0 // loop_footer
    %s16 = sadd.s32 1, %s12
  $region7: #{rsu6_forward.22} parent=0 // loop_footer_branch
    %11 = sbr.rel target = $region3
  $region8: #{rsu6_forward.22} parent=0 // loop_exit
    _

// kernel: rsu6_forward.23
$region0: #{rsu6_forward.23}
  #allocation0 [shape = 'u32[]', space=smem, size = 0x4, offset = 0x4, fixed_abs, tag = 'smem constant byte address 0x4 - core index']
  #allocation1 [shape = 'u32[144,128]{1,0:T(1,128)}', space=vmem, size = 0x12000, scoped, tag = 'internal scratch']
  %s0 = inlined_call_operand.vmem [shape: f32[2,8,128], index: 0, kind: input, shape index: {}]
  %s1 = inlined_call_operand.vmem [shape: f32[2,16,256], index: 1, kind: input, shape index: {}]
  %s2 = inlined_call_operand.vmem [shape: f32[3,16,8], index: 2, kind: input, shape index: {}]
  %s3 = inlined_call_operand.vmem [shape: f32[3,16,16], index: 3, kind: input, shape index: {}]
  %s4 = inlined_call_operand.vmem [shape: f32[1152,128], index: 4, kind: input, shape index: {}]
  %s5 = inlined_call_operand.vmem [shape: f32[2,128], index: 5, kind: input, shape index: {}]
  %s6 = inlined_call_operand.vmem [shape: f32[2,16,128], index: 6, kind: input, shape index: {}]
  %s7 = inlined_call_operand.vmem [shape: f32[2,16,128], index: 7, kind: output, shape index: {}]
  %s8 = sld [smem:[#allocation0]]
  $region61: #{rsu6_forward.23} parent=0
    _
  %s10 = ssub.s32 1, %s8
  %s11 = scalar_select 0, %s10, %s8
  loop: start=0, step=1, limit=4
  $region2: #{rsu6_forward.23} parent=0 // loop_pre_header
    _
  $region3: #{rsu6_forward.23} parent=0 // loop_header
    %s13 = sphi 0, %s17
    %p14 = scmp.ge.s32.totalorder %s13, 4
    %s23 = sphi 0, %s25
    %s26 = sphi 0, %s23
    %s27 = sphi 0, %s26
    %s43 = sphi 0, %s27
    %s49 = sphi 0, %s51
    %s52 = sphi 0, %s49
    %s53 = sphi 0, %s52
    %s69 = sphi 0, %s53
    %s73 = sphi 0, %s73
    %s75 = sphi 0, %s73
    %s76 = sphi 0, %s75
    %s90 = sphi 0, %s76
    %s94 = sphi 0, %s94
    %s96 = sphi 0, %s94
    %s97 = sphi 0, %s96
    %s111 = sphi 0, %s97
    %s115 = sphi 0, %s115
    %s117 = sphi 0, %s115
    %s118 = sphi 0, %s117
    %s132 = sphi 0, %s118
    %s136 = sphi 0, %s136
    %s138 = sphi 0, %s136
    %s139 = sphi 0, %s138
    %s153 = sphi 0, %s139
    %s159 = sphi 0, %s161
    %s162 = sphi 0, %s159
    %s163 = sphi 0, %s162
    %s179 = sphi 0, %s163
    %s185 = sphi 0, %s187
    %s188 = sphi 0, %s185
    %s189 = sphi 0, %s188
    %s205 = sphi 0, %s189
  $region4: #{rsu6_forward.23} parent=0 // loop_header_branch
    %16 = sbr.rel (%p14) target = $region8
  $region5: #{rsu6_forward.23} parent=0 // loop_body
    %s18 = ssub.s32 %s13, 1
    %s19 = ssub.s32 %s13, 2
    %s20 = sadd.s32 %s13, 1
    %s21 = ssub.s32 %s13, %s20
    %p22 = scmp.eq.s32.totalorder %s21, 0
    %s24 = sadd.s32 %s23, 1
    %s25 = scalar_select %p22, %s23, %s24
    %p28 = pneg %p22
    %p29 = scmp.eq.s32.totalorder %s13, 1
    %p30 = por %p28, %p29
    %p31 = scmp.ne.s32.totalorder %s23, %s26
    %p32 = scmp.eq.s32.totalorder %s13, 0
    %p33 = por %p31, %p32
    %p34 = scmp.ne.s32.totalorder %s23, %s26
    %p35 = scmp.eq.s32.totalorder %s18, 1
    %p36 = por %p34, %p35
    %p37 = scmp.ne.s32.totalorder %s26, %s27
    %p38 = scmp.eq.s32.totalorder %s18, 0
    %p39 = por %p37, %p38
    %p40 = scmp.ne.s32.totalorder %s26, %s27
    %p41 = scmp.eq.s32.totalorder %s19, 1
    %p42 = por %p40, %p41
    %p44 = scmp.ne.s32.totalorder %s27, %s43
    %p45 = scmp.eq.s32.totalorder %s19, 0
    %p46 = por %p44, %p45
    %s47 = ssub.s32 %s13, %s20
    %p48 = scmp.eq.s32.totalorder %s47, 0
    %s50 = sadd.s32 %s49, 1
    %s51 = scalar_select %p48, %s49, %s50
    %p54 = pneg %p48
    %p55 = scmp.eq.s32.totalorder %s13, 1
    %p56 = por %p54, %p55
    %p57 = scmp.ne.s32.totalorder %s49, %s52
    %p58 = scmp.eq.s32.totalorder %s13, 0
    %p59 = por %p57, %p58
    %p60 = scmp.ne.s32.totalorder %s49, %s52
    %p61 = scmp.eq.s32.totalorder %s18, 1
    %p62 = por %p60, %p61
    %p63 = scmp.ne.s32.totalorder %s52, %s53
    %p64 = scmp.eq.s32.totalorder %s18, 0
    %p65 = por %p63, %p64
    %p66 = scmp.ne.s32.totalorder %s52, %s53
    %p67 = scmp.eq.s32.totalorder %s19, 1
    %p68 = por %p66, %p67
    %p70 = scmp.ne.s32.totalorder %s53, %s69
    %p71 = scmp.eq.s32.totalorder %s19, 0
    %p72 = por %p70, %p71
    %s74 = sadd.s32 %s73, 1
    %p77 = scmp.eq.s32.totalorder %s13, 1
    %p78 = scmp.ne.s32.totalorder %s73, %s75
    %p79 = scmp.eq.s32.totalorder %s13, 0
    %p80 = por %p78, %p79
    %p81 = scmp.ne.s32.totalorder %s73, %s75
    %p82 = scmp.eq.s32.totalorder %s18, 1
    %p83 = por %p81, %p82
    %p84 = scmp.ne.s32.totalorder %s75, %s76
    %p85 = scmp.eq.s32.totalorder %s18, 0
    %p86 = por %p84, %p85
    %p87 = scmp.ne.s32.totalorder %s75, %s76
    %p88 = scmp.eq.s32.totalorder %s19, 1
    %p89 = por %p87, %p88
    %p91 = scmp.ne.s32.totalorder %s76, %s90
    %p92 = scmp.eq.s32.totalorder %s19, 0
    %p93 = por %p91, %p92
    %s95 = sadd.s32 %s94, 1
    %p98 = scmp.eq.s32.totalorder %s13, 1
    %p99 = scmp.ne.s32.totalorder %s94, %s96
    %p100 = scmp.eq.s32.totalorder %s13, 0
    %p101 = por %p99, %p100
    %p102 = scmp.ne.s32.totalorder %s94, %s96
    %p103 = scmp.eq.s32.totalorder %s18, 1
    %p104 = por %p102, %p103
    %p105 = scmp.ne.s32.totalorder %s96, %s97
    %p106 = scmp.eq.s32.totalorder %s18, 0
    %p107 = por %p105, %p106
    %p108 = scmp.ne.s32.totalorder %s96, %s97
    %p109 = scmp.eq.s32.totalorder %s19, 1
    %p110 = por %p108, %p109
    %p112 = scmp.ne.s32.totalorder %s97, %s111
    %p113 = scmp.eq.s32.totalorder %s19, 0
    %p114 = por %p112, %p113
    %s116 = sadd.s32 %s115, 1
    %p119 = scmp.eq.s32.totalorder %s13, 1
    %p120 = scmp.ne.s32.totalorder %s115, %s117
    %p121 = scmp.eq.s32.totalorder %s13, 0
    %p122 = por %p120, %p121
    %p123 = scmp.ne.s32.totalorder %s115, %s117
    %p124 = scmp.eq.s32.totalorder %s18, 1
    %p125 = por %p123, %p124
    %p126 = scmp.ne.s32.totalorder %s117, %s118
    %p127 = scmp.eq.s32.totalorder %s18, 0
    %p128 = por %p126, %p127
    %p129 = scmp.ne.s32.totalorder %s117, %s118
    %p130 = scmp.eq.s32.totalorder %s19, 1
    %p131 = por %p129, %p130
    %p133 = scmp.ne.s32.totalorder %s118, %s132
    %p134 = scmp.eq.s32.totalorder %s19, 0
    %p135 = por %p133, %p134
    %s137 = sadd.s32 %s136, 1
    %p140 = scmp.eq.s32.totalorder %s13, 1
    %p141 = scmp.ne.s32.totalorder %s136, %s138
    %p142 = scmp.eq.s32.totalorder %s13, 0
    %p143 = por %p141, %p142
    %p144 = scmp.ne.s32.totalorder %s136, %s138
    %p145 = scmp.eq.s32.totalorder %s18, 1
    %p146 = por %p144, %p145
    %p147 = scmp.ne.s32.totalorder %s138, %s139
    %p148 = scmp.eq.s32.totalorder %s18, 0
    %p149 = por %p147, %p148
    %p150 = scmp.ne.s32.totalorder %s138, %s139
    %p151 = scmp.eq.s32.totalorder %s19, 1
    %p152 = por %p150, %p151
    %p154 = scmp.ne.s32.totalorder %s139, %s153
    %p155 = scmp.eq.s32.totalorder %s19, 0
    %p156 = por %p154, %p155
    %s157 = ssub.s32 %s13, %s20
    %p158 = scmp.eq.s32.totalorder %s157, 0
    %s160 = sadd.s32 %s159, 1
    %s161 = scalar_select %p158, %s159, %s160
    %p164 = pneg %p158
    %p165 = scmp.eq.s32.totalorder %s13, 1
    %p166 = por %p164, %p165
    %p167 = scmp.ne.s32.totalorder %s159, %s162
    %p168 = scmp.eq.s32.totalorder %s13, 0
    %p169 = por %p167, %p168
    %p170 = scmp.ne.s32.totalorder %s159, %s162
    %p171 = scmp.eq.s32.totalorder %s18, 1
    %p172 = por %p170, %p171
    %p173 = scmp.ne.s32.totalorder %s162, %s163
    %p174 = scmp.eq.s32.totalorder %s18, 0
    %p175 = por %p173, %p174
    %p176 = scmp.ne.s32.totalorder %s162, %s163
    %p177 = scmp.eq.s32.totalorder %s19, 1
    %p178 = por %p176, %p177
    %p180 = scmp.ne.s32.totalorder %s163, %s179
    %p181 = scmp.eq.s32.totalorder %s19, 0
    %p182 = por %p180, %p181
    %s183 = ssub.s32 %s13, %s20
    %p184 = scmp.eq.s32.totalorder %s183, 0
    %s186 = sadd.s32 %s185, 1
    %s187 = scalar_select %p184, %s185, %s186
    %p190 = pneg %p184
    %p191 = scmp.eq.s32.totalorder %s13, 1
    %p192 = por %p190, %p191
    %p193 = scmp.ne.s32.totalorder %s185, %s188
    %p194 = scmp.eq.s32.totalorder %s13, 0
    %p195 = por %p193, %p194
    %p196 = scmp.ne.s32.totalorder %s185, %s188
    %p197 = scmp.eq.s32.totalorder %s18, 1
    %p198 = por %p196, %p197
    %p199 = scmp.ne.s32.totalorder %s188, %s189
    %p200 = scmp.eq.s32.totalorder %s18, 0
    %p201 = por %p199, %p200
    %p202 = scmp.ne.s32.totalorder %s188, %s189
    %p203 = scmp.eq.s32.totalorder %s19, 1
    %p204 = por %p202, %p203
    %p206 = scmp.ne.s32.totalorder %s189, %s205
    %p207 = scmp.eq.s32.totalorder %s19, 0
    %p208 = por %p206, %p207
    %p209 = scmp.le.s32.totalorder 1, %s13
    %p210 = scmp.lt.s32.totalorder %s13, 3
    %p211 = pnand %p209, %p210
    %p212 = pneg %p211
    // Predicated region
    $region9: #{rsu6_forward.23} parent=5 // pred_check
      _
    $region10: #{rsu6_forward.23} parent=5 // pred_check_branch
      %214 = sbr.rel (%p211) target = $region12
    $region11: #{rsu6_forward.23} parent=5 // pred_region
      %s215 = ssub.s32 %s13, 1
      // Predicated region
      $region13: #{rsu6_forward.23} parent=11 // pred_check
        %p216 = pneg %p86
      $region14: #{rsu6_forward.23} parent=11 // pred_check_branch
        %218 = sbr.rel (%p216) target = $region16
      $region15: #{rsu6_forward.23} parent=11 // pred_region
        _
      $region16: #{rsu6_forward.23} parent=11 // pred_fallthru
        _
      // Predicated region
      $region17: #{rsu6_forward.23} parent=11 // pred_check
        %p219 = pneg %p107
      $region18: #{rsu6_forward.23} parent=11 // pred_check_branch
        %221 = sbr.rel (%p219) target = $region20
      $region19: #{rsu6_forward.23} parent=11 // pred_region
        _
      $region20: #{rsu6_forward.23} parent=11 // pred_fallthru
        _
      // Predicated region
      $region21: #{rsu6_forward.23} parent=11 // pred_check
        %p222 = pneg %p128
      $region22: #{rsu6_forward.23} parent=11 // pred_check_branch
        %224 = sbr.rel (%p222) target = $region24
      $region23: #{rsu6_forward.23} parent=11 // pred_region
        _
      $region24: #{rsu6_forward.23} parent=11 // pred_fallthru
        _
      // Predicated region
      $region25: #{rsu6_forward.23} parent=11 // pred_check
        %p225 = pneg %p149
      $region26: #{rsu6_forward.23} parent=11 // pred_check_branch
        %227 = sbr.rel (%p225) target = $region28
      $region27: #{rsu6_forward.23} parent=11 // pred_region
        _
      $region28: #{rsu6_forward.23} parent=11 // pred_fallthru
        _
    $region12: #{rsu6_forward.23} parent=5 // pred_fallthru
      _
    %p228 = scmp.lt.s32.totalorder %s13, 2
    // Predicated region
    $region29: #{rsu6_forward.23} parent=5 // pred_check
      %p229 = pneg %p228
    $region30: #{rsu6_forward.23} parent=5 // pred_check_branch
      %231 = sbr.rel (%p229) target = $region32
    $region31: #{rsu6_forward.23} parent=5 // pred_region
      // Predicated region
      $region33: #{rsu6_forward.23} parent=31 // pred_check
        %p232 = pneg %p33
      $region34: #{rsu6_forward.23} parent=31 // pred_check_branch
        %234 = sbr.rel (%p232) target = $region36
      $region35: #{rsu6_forward.23} parent=31 // pred_region
        %p235 = scmp.lt.s32.totalorder %s13, 1
        %s236 = scalar_select %p235, %s13, 1
        %s237 = smul.addr %s236, 8
        %s238 = scalar_lea.vmem %s0, %s237
      $region36: #{rsu6_forward.23} parent=31 // pred_fallthru
        _
      // Predicated region
      $region37: #{rsu6_forward.23} parent=31 // pred_check
        %p239 = pneg %p59
      $region38: #{rsu6_forward.23} parent=31 // pred_check_branch
        %241 = sbr.rel (%p239) target = $region40
      $region39: #{rsu6_forward.23} parent=31 // pred_region
        %p242 = scmp.lt.s32.totalorder %s13, 1
        %s243 = scalar_select %p242, %s13, 1
        %s244 = smul.addr %s243, 4
        %s245 = smul.addr %s244, 8
        %s246 = scalar_lea.vmem %s1, %s245
      $region40: #{rsu6_forward.23} parent=31 // pred_fallthru
        _
      // Predicated region
      $region41: #{rsu6_forward.23} parent=31 // pred_check
        %p247 = pneg %p169
      $region42: #{rsu6_forward.23} parent=31 // pred_check_branch
        %249 = sbr.rel (%p247) target = $region44
      $region43: #{rsu6_forward.23} parent=31 // pred_region
        %p250 = scmp.lt.s32.totalorder %s13, 1
        %s251 = scalar_select %p250, %s13, 1
        %s252 = smul.addr %s251, 2
        %s253 = smul.addr %s252, 8
        %s254 = scalar_lea.vmem %s6, %s253
      $region44: #{rsu6_forward.23} parent=31 // pred_fallthru
        _
    $region32: #{rsu6_forward.23} parent=5 // pred_fallthru
      _
    %p255 = scmp.le.s32.totalorder 1, %s13
    %p256 = scmp.lt.s32.totalorder %s13, 3
    %p257 = pnand %p255, %p256
    %p258 = pneg %p257
    // Predicated region
    $region45: #{rsu6_forward.23} parent=5 // pred_check
      _
    $region46: #{rsu6_forward.23} parent=5 // pred_check_branch
      %260 = sbr.rel (%p257) target = $region48
    $region47: #{rsu6_forward.23} parent=5 // pred_region
      %s261 = ssub.s32 %s13, 1
      %p262 = scmp.lt.s32.totalorder %s18, 1
      %s263 = scalar_select %p262, %s18, 1
      %s264 = smul.addr %s263, 8
      %s265 = scalar_lea.vmem %s0, %s264
      %p266 = pneg %p39
      %p267 = pneg %p36
      %p268 = scmp.lt.s32.totalorder %s18, 1
      %s269 = scalar_select %p268, %s18, 1
      %s270 = smul.addr %s269, 4
      %s271 = smul.addr %s270, 8
      %s272 = scalar_lea.vmem %s1, %s271
      %p273 = pneg %p65
      %p274 = pneg %p62
      %p275 = pneg %p86
      %p276 = pneg %p83
      %p277 = pneg %p107
      %p278 = pneg %p104
      %p279 = pneg %p128
      %p280 = pneg %p125
      %p281 = pneg %p149
      %p282 = pneg %p146
      %p283 = scmp.lt.s32.totalorder %s18, 1
      %s284 = scalar_select %p283, %s18, 1
      %s285 = smul.addr %s284, 2
      %s286 = smul.addr %s285, 8
      %s287 = scalar_lea.vmem %s6, %s286
      %p288 = pneg %p175
      %p289 = pneg %p172
      %p290 = pneg %p201
      %p291 = pneg %p198
      %p292 = scmp.lt.s32.totalorder %s18, 1
      %s293 = scalar_select %p292, %s18, 1
      %s294 = smul.addr %s293, 2
      %s295 = smul.addr %s294, 8
      %s296 = scalar_lea.vmem %s7, %s295
      %p297 = scmp.lt.s32.totalorder %s18, 1
      %s298 = scalar_select %p297, %s18, 1
      %s299 = smul.addr %s298, 8
      %s300 = scalar_lea.vmem %s0, %s299
      %p301 = scmp.lt.s32.totalorder %s18, 1
      %s302 = scalar_select %p301, %s18, 1
      %s303 = smul.addr %s302, 4
      %s304 = smul.addr %s303, 8
      %s305 = scalar_lea.vmem %s1, %s304
      %p306 = scmp.lt.s32.totalorder %s18, 1
      %s307 = scalar_select %p306, %s18, 1
      %s308 = smul.addr %s307, 2
      %s309 = smul.addr %s308, 8
      %s310 = scalar_lea.vmem %s6, %s309
      %p311 = scmp.lt.s32.totalorder %s18, 1
      %s312 = scalar_select %p311, %s18, 1
      %s313 = smul.addr %s312, 2
      %s314 = smul.addr %s313, 8
      %s315 = scalar_lea.vmem %s7, %s314
      %v316 = vld [vmem:[%s300] sm:$0xff]
      %v317 = vld [vmem:[%s2] sm:$0xff]
      %v318 = vld [vmem:[%s2 + $0x8] sm:$0xff]
      %vm319 = vcmask 64512
      %v321 = vsel %vm319, %v317, 0
      %v324 = vsel %vm319, %v318, 0
      %326 = vmatprep.subr.mxu0 0.0
      %327 = vmatpush1.msra.mxu0 %v316
      %328 = vmatprep.subr.mxu0 0.0
      %329 = vmatpush1.msra.mxu0 0.0
      %330 = vmatprep.subr.mxu0 0.0
      %331 = vmatpush1.msra.mxu0 0.0
      %332 = vmatprep.subr.mxu0 0.0
      %333 = vmatpush1.msra.mxu0 0.0
      %334 = vmatprep.subr.mxu0 0.0
      %335 = vmatpush1.msra.mxu0 0.0
      %336 = vmatprep.subr.mxu0 0.0
      %337 = vmatpush1.msra.mxu0 0.0
      %338 = vmatprep.subr.mxu0 0.0
      %339 = vmatpush1.msra.mxu0 0.0
      %340 = vmatprep.subr.mxu0 0.0
      %341 = vmatpush1.msra.mxu0 0.0
      %342 = vmatprep.subr.mxu0 0.0
      %343 = vmatpush1.msra.mxu0 0.0
      %344 = vmatprep.subr.mxu0 0.0
      %345 = vmatpush1.msra.mxu0 0.0
      %346 = vmatprep.subr.mxu0 0.0
      %347 = vmatpush1.msra.mxu0 0.0
      %348 = vmatprep.subr.mxu0 0.0
      %349 = vmatpush1.msra.mxu0 0.0
      %350 = vmatprep.subr.mxu0 0.0
      %351 = vmatpush1.msra.mxu0 0.0
      %352 = vmatprep.subr.mxu0 0.0
      %353 = vmatpush1.msra.mxu0 0.0
      %354 = vmatprep.subr.mxu0 0.0
      %355 = vmatpush1.msra.mxu0 0.0
      %356 = vmatprep.subr.mxu0 0.0
      %357 = vmatpush1.msra.mxu0 0.0
      %358 = vmatprep.subr.mxu0 0.0
      %359 = vmatpush1.msra.mxu0 0.0
      %360 = vmatprep.subr.mxu0 0.0
      %361 = vmatpush1.msra.mxu0 0.0
      %362 = vmatprep.subr.mxu0 0.0
      %363 = vmatpush1.msra.mxu0 0.0
      %364 = vmatprep.subr.mxu0 0.0
      %365 = vmatpush1.msra.mxu0 0.0
      %366 = vmatprep.subr.mxu0 0.0
      %367 = vmatpush1.msra.mxu0 0.0
      %368 = vmatprep.subr.mxu0 0.0
      %369 = vmatpush1.msra.mxu0 0.0
      %370 = vmatprep.subr.mxu0 0.0
      %371 = vmatpush1.msra.mxu0 0.0
      %372 = vmatprep.subr.mxu0 0.0
      %373 = vmatpush1.msra.mxu0 0.0
      %374 = vmatprep.subr.mxu0 0.0
      %375 = vmatpush1.msra.mxu0 0.0
      %376 = vmatprep.subr.mxu0 0.0
      %377 = vmatpush1.msra.mxu0 0.0
      %378 = vmatprep.subr.mxu0 0.0
      %379 = vmatpush1.msra.mxu0 0.0
      %380 = vmatprep.subr.mxu0 0.0
      %381 = vmatpush1.msra.mxu0 0.0
      %382 = vmatprep.subr.mxu0 0.0
      %383 = vmatpush1.msra.mxu0 0.0
      %384 = vmatprep.subr.mxu0 0.0
      %385 = vmatpush1.msra.mxu0 0.0
      %386 = vmatprep.subr.mxu0 0.0
      %387 = vmatpush1.msra.mxu0 0.0
      %388 = vmatprep.subr.mxu0 0.0
      %389 = vmatpush1.msra.mxu0 0.0
      %390 = vmatprep.mubr.f32.mxu0 0.0
      %391 = vmatmul.mubr.f32.gmra.mrb[0].mxu0 %v321
      %v392 = vpop.f32.mrb[0].mxu0
      %v393 = vadd.f32 0.0, %v392
      %v394 = vpop.f32.mrb[0].mxu0
      %395 = vmatprep.mubr.f32.mxu0 0.0
      %396 = vmatmul.mubr.f32.gmra.mrb[0].mxu0 %v324
      %v397 = vpop.f32.mrb[0].mxu0
      %v398 = vadd.f32 0.0, %v397
      %v399 = vpop.f32.mrb[0].mxu0
      %400 = vdwg.mxu0
      %s401 = scalar_lea.vmem %s2, 16
      %v402 = vld [vmem:[%s401] sm:$0xff]
      %v403 = vld [vmem:[%s401 + $0x8] sm:$0xff]
      %v405 = vsel %vm319, %v402, 0
      %v408 = vsel %vm319, %v403, 0
      %410 = vmatprep.subr.mxu0 0.0
      %411 = vmatpush1.msra.mxu0 %v316
      %412 = vmatprep.subr.mxu0 0.0
      %413 = vmatpush1.msra.mxu0 0.0
      %414 = vmatprep.subr.mxu0 0.0
      %415 = vmatpush1.msra.mxu0 0.0
      %416 = vmatprep.subr.mxu0 0.0
      %417 = vmatpush1.msra.mxu0 0.0
      %418 = vmatprep.subr.mxu0 0.0
      %419 = vmatpush1.msra.mxu0 0.0
      %420 = vmatprep.subr.mxu0 0.0
      %421 = vmatpush1.msra.mxu0 0.0
      %422 = vmatprep.subr.mxu0 0.0
      %423 = vmatpush1.msra.mxu0 0.0
      %424 = vmatprep.subr.mxu0 0.0
      %425 = vmatpush1.msra.mxu0 0.0
      %426 = vmatprep.subr.mxu0 0.0
      %427 = vmatpush1.msra.mxu0 0.0
      %428 = vmatprep.subr.mxu0 0.0
      %429 = vmatpush1.msra.mxu0 0.0
      %430 = vmatprep.subr.mxu0 0.0
      %431 = vmatpush1.msra.mxu0 0.0
      %432 = vmatprep.subr.mxu0 0.0
      %433 = vmatpush1.msra.mxu0 0.0
      %434 = vmatprep.subr.mxu0 0.0
      %435 = vmatpush1.msra.mxu0 0.0
      %436 = vmatprep.subr.mxu0 0.0
      %437 = vmatpush1.msra.mxu0 0.0
      %438 = vmatprep.subr.mxu0 0.0
      %439 = vmatpush1.msra.mxu0 0.0
      %440 = vmatprep.subr.mxu0 0.0
      %441 = vmatpush1.msra.mxu0 0.0
      %442 = vmatprep.subr.mxu0 0.0
      %443 = vmatpush1.msra.mxu0 0.0
      %444 = vmatprep.subr.mxu0 0.0
      %445 = vmatpush1.msra.mxu0 0.0
      %446 = vmatprep.subr.mxu0 0.0
      %447 = vmatpush1.msra.mxu0 0.0
      %448 = vmatprep.subr.mxu0 0.0
      %449 = vmatpush1.msra.mxu0 0.0
      %450 = vmatprep.subr.mxu0 0.0
      %451 = vmatpush1.msra.mxu0 0.0
      %452 = vmatprep.subr.mxu0 0.0
      %453 = vmatpush1.msra.mxu0 0.0
      %454 = vmatprep.subr.mxu0 0.0
      %455 = vmatpush1.msra.mxu0 0.0
      %456 = vmatprep.subr.mxu0 0.0
      %457 = vmatpush1.msra.mxu0 0.0
      %458 = vmatprep.subr.mxu0 0.0
      %459 = vmatpush1.msra.mxu0 0.0
      %460 = vmatprep.subr.mxu0 0.0
      %461 = vmatpush1.msra.mxu0 0.0
      %462 = vmatprep.subr.mxu0 0.0
      %463 = vmatpush1.msra.mxu0 0.0
      %464 = vmatprep.subr.mxu0 0.0
      %465 = vmatpush1.msra.mxu0 0.0
      %466 = vmatprep.subr.mxu0 0.0
      %467 = vmatpush1.msra.mxu0 0.0
      %468 = vmatprep.subr.mxu0 0.0
      %469 = vmatpush1.msra.mxu0 0.0
      %470 = vmatprep.subr.mxu0 0.0
      %471 = vmatpush1.msra.mxu0 0.0
      %472 = vmatprep.subr.mxu0 0.0
      %473 = vmatpush1.msra.mxu0 0.0
      %474 = vmatprep.mubr.f32.mxu0 0.0
      %475 = vmatmul.mubr.f32.gmra.mrb[0].mxu0 %v405
      %v476 = vpop.f32.mrb[0].mxu0
      %v477 = vadd.f32 0.0, %v476
      %v478 = vpop.f32.mrb[0].mxu0
      %479 = vmatprep.mubr.f32.mxu0 0.0
      %480 = vmatmul.mubr.f32.gmra.mrb[0].mxu0 %v408
      %v481 = vpop.f32.mrb[0].mxu0
      %v482 = vadd.f32 0.0, %v481
      %v483 = vpop.f32.mrb[0].mxu0
      %484 = vdwg.mxu0
      %s485 = scalar_lea.vmem %s2, 32
      %v486 = vld [vmem:[%s485] sm:$0xff]
      %v487 = vld [vmem:[%s485 + $0x8] sm:$0xff]
      %v489 = vsel %vm319, %v486, 0
      %v492 = vsel %vm319, %v487, 0
      %494 = vmatprep.subr.mxu0 0.0
      %495 = vmatpush1.msra.mxu0 %v316
      %496 = vmatprep.subr.mxu0 0.0
      %497 = vmatpush1.msra.mxu0 0.0
      %498 = vmatprep.subr.mxu0 0.0
      %499 = vmatpush1.msra.mxu0 0.0
      %500 = vmatprep.subr.mxu0 0.0
      %501 = vmatpush1.msra.mxu0 0.0
      %502 = vmatprep.subr.mxu0 0.0
      %503 = vmatpush1.msra.mxu0 0.0
      %504 = vmatprep.subr.mxu0 0.0
      %505 = vmatpush1.msra.mxu0 0.0
      %506 = vmatprep.subr.mxu0 0.0
      %507 = vmatpush1.msra.mxu0 0.0
      %508 = vmatprep.subr.mxu0 0.0
      %509 = vmatpush1.msra.mxu0 0.0
      %510 = vmatprep.subr.mxu0 0.0
      %511 = vmatpush1.msra.mxu0 0.0
      %512 = vmatprep.subr.mxu0 0.0
      %513 = vmatpush1.msra.mxu0 0.0
      %514 = vmatprep.subr.mxu0 0.0
      %515 = vmatpush1.msra.mxu0 0.0
      %516 = vmatprep.subr.mxu0 0.0
      %517 = vmatpush1.msra.mxu0 0.0
      %518 = vmatprep.subr.mxu0 0.0
      %519 = vmatpush1.msra.mxu0 0.0
      %520 = vmatprep.subr.mxu0 0.0
      %521 = vmatpush1.msra.mxu0 0.0
      %522 = vmatprep.subr.mxu0 0.0
      %523 = vmatpush1.msra.mxu0 0.0
      %524 = vmatprep.subr.mxu0 0.0
      %525 = vmatpush1.msra.mxu0 0.0
      %526 = vmatprep.subr.mxu0 0.0
      %527 = vmatpush1.msra.mxu0 0.0
      %528 = vmatprep.subr.mxu0 0.0
      %529 = vmatpush1.msra.mxu0 0.0
      %530 = vmatprep.subr.mxu0 0.0
      %531 = vmatpush1.msra.mxu0 0.0
      %532 = vmatprep.subr.mxu0 0.0
      %533 = vmatpush1.msra.mxu0 0.0
      %534 = vmatprep.subr.mxu0 0.0
      %535 = vmatpush1.msra.mxu0 0.0
      %536 = vmatprep.subr.mxu0 0.0
      %537 = vmatpush1.msra.mxu0 0.0
      %538 = vmatprep.subr.mxu0 0.0
      %539 = vmatpush1.msra.mxu0 0.0
      %540 = vmatprep.subr.mxu0 0.0
      %541 = vmatpush1.msra.mxu0 0.0
      %542 = vmatprep.subr.mxu0 0.0
      %543 = vmatpush1.msra.mxu0 0.0
      %544 = vmatprep.subr.mxu0 0.0
      %545 = vmatpush1.msra.mxu0 0.0
      %546 = vmatprep.subr.mxu0 0.0
      %547 = vmatpush1.msra.mxu0 0.0
      %548 = vmatprep.subr.mxu0 0.0
      %549 = vmatpush1.msra.mxu0 0.0
      %550 = vmatprep.subr.mxu0 0.0
      %551 = vmatpush1.msra.mxu0 0.0
      %552 = vmatprep.subr.mxu0 0.0
      %553 = vmatpush1.msra.mxu0 0.0
      %554 = vmatprep.subr.mxu0 0.0
      %555 = vmatpush1.msra.mxu0 0.0
      %556 = vmatprep.subr.mxu0 0.0
      %557 = vmatpush1.msra.mxu0 0.0
      %558 = vmatprep.mubr.f32.mxu0 0.0
      %559 = vmatmul.mubr.f32.gmra.mrb[0].mxu0 %v489
      %v560 = vpop.f32.mrb[0].mxu0
      %v561 = vadd.f32 0.0, %v560
      %v562 = vpop.f32.mrb[0].mxu0
      %563 = vmatprep.mubr.f32.mxu0 0.0
      %564 = vmatmul.mubr.f32.gmra.mrb[0].mxu0 %v492
      %v565 = vpop.f32.mrb[0].mxu0
      %v566 = vadd.f32 0.0, %v565
      %v567 = vpop.f32.mrb[0].mxu0
      %568 = vdwg.mxu0
      %v569 = vld [vmem:[%s305] sm:$0xff]
      %v570 = vld [vmem:[%s305 + $0x8] sm:$0xff]
      %v571 = vld [vmem:[%s305 + $0x10] sm:$0xff]
      %v572 = vld [vmem:[%s305 + $0x18] sm:$0xff]
      %v573 = vld [vmem:[%s3] sm:$0xff]
      %v574 = vld [vmem:[%s3 + $0x8] sm:$0xff]
      %vm575 = vcmask 130048
      %v577 = vsel %vm575, %v573, 0
      %v580 = vsel %vm575, %v574, 0
      %582 = vmatprep.subr.mxu0 %v570
      %583 = vmatpush1.msra.mxu0 %v569
      %584 = vmatprep.subr.mxu0 %v572
      %585 = vmatpush1.msra.mxu0 %v571
      %586 = vmatprep.subr.mxu0 0.0
      %587 = vmatpush1.msra.mxu0 0.0
      %588 = vmatprep.subr.mxu0 0.0
      %589 = vmatpush1.msra.mxu0 0.0
      %590 = vmatprep.subr.mxu0 0.0
      %591 = vmatpush1.msra.mxu0 0.0
      %592 = vmatprep.subr.mxu0 0.0
      %593 = vmatpush1.msra.mxu0 0.0
      %594 = vmatprep.subr.mxu0 0.0
      %595 = vmatpush1.msra.mxu0 0.0
      %596 = vmatprep.subr.mxu0 0.0
      %597 = vmatpush1.msra.mxu0 0.0
      %598 = vmatprep.subr.mxu0 0.0
      %599 = vmatpush1.msra.mxu0 0.0
      %600 = vmatprep.subr.mxu0 0.0
      %601 = vmatpush1.msra.mxu0 0.0
      %602 = vmatprep.subr.mxu0 0.0
      %603 = vmatpush1.msra.mxu0 0.0
      %604 = vmatprep.subr.mxu0 0.0
      %605 = vmatpush1.msra.mxu0 0.0
      %606 = vmatprep.subr.mxu0 0.0
      %607 = vmatpush1.msra.mxu0 0.0
      %608 = vmatprep.subr.mxu0 0.0
      %609 = vmatpush1.msra.mxu0 0.0
      %610 = vmatprep.subr.mxu0 0.0
      %611 = vmatpush1.msra.mxu0 0.0
      %612 = vmatprep.subr.mxu0 0.0
      %613 = vmatpush1.msra.mxu0 0.0
      %614 = vmatprep.subr.mxu0 0.0
      %615 = vmatpush1.msra.mxu0 0.0
      %616 = vmatprep.subr.mxu0 0.0
      %617 = vmatpush1.msra.mxu0 0.0
      %618 = vmatprep.subr.mxu0 0.0
      %619 = vmatpush1.msra.mxu0 0.0
      %620 = vmatprep.subr.mxu0 0.0
      %621 = vmatpush1.msra.mxu0 0.0
      %622 = vmatprep.subr.mxu0 0.0
      %623 = vmatpush1.msra.mxu0 0.0
      %624 = vmatprep.subr.mxu0 0.0
      %625 = vmatpush1.msra.mxu0 0.0
      %626 = vmatprep.subr.mxu0 0.0
      %627 = vmatpush1.msra.mxu0 0.0
      %628 = vmatprep.subr.mxu0 0.0
      %629 = vmatpush1.msra.mxu0 0.0
      %630 = vmatprep.subr.mxu0 0.0
      %631 = vmatpush1.msra.mxu0 0.0
      %632 = vmatprep.subr.mxu0 0.0
      %633 = vmatpush1.msra.mxu0 0.0
      %634 = vmatprep.subr.mxu0 0.0
      %635 = vmatpush1.msra.mxu0 0.0
      %636 = vmatprep.subr.mxu0 0.0
      %637 = vmatpush1.msra.mxu0 0.0
      %638 = vmatprep.subr.mxu0 0.0
      %639 = vmatpush1.msra.mxu0 0.0
      %640 = vmatprep.subr.mxu0 0.0
      %641 = vmatpush1.msra.mxu0 0.0
      %642 = vmatprep.subr.mxu0 0.0
      %643 = vmatpush1.msra.mxu0 0.0
      %644 = vmatprep.subr.mxu0 0.0
      %645 = vmatpush1.msra.mxu0 0.0
      %646 = vmatprep.mubr.f32.mxu0 0.0
      %647 = vmatmul.mubr.f32.gmra.mrb[0].mxu0 %v577
      %v648 = vpop.f32.mrb[0].mxu0
      %v649 = vadd.f32 0.0, %v648
      %v650 = vpop.f32.mrb[0].mxu0
      %v651 = vadd.f32 0.0, %v650
      %652 = vmatprep.mubr.f32.mxu0 0.0
      %653 = vmatmul.mubr.f32.gmra.mrb[0].mxu0 %v580
      %v654 = vpop.f32.mrb[0].mxu0
      %v655 = vadd.f32 0.0, %v654
      %v656 = vpop.f32.mrb[0].mxu0
      %v657 = vadd.f32 0.0, %v656
      %658 = vdwg.mxu0
      %s659 = scalar_lea.vmem %s3, 32
      %v660 = vld [vmem:[%s659] sm:$0xff]
      %v661 = vld [vmem:[%s659 + $0x8] sm:$0xff]
      %v663 = vsel %vm575, %v660, 0
      %v666 = vsel %vm575, %v661, 0
      %668 = vmatprep.subr.mxu0 %v570
      %669 = vmatpush1.msra.mxu0 %v569
      %670 = vmatprep.subr.mxu0 %v572
      %671 = vmatpush1.msra.mxu0 %v571
      %672 = vmatprep.subr.mxu0 0.0
      %673 = vmatpush1.msra.mxu0 0.0
      %674 = vmatprep.subr.mxu0 0.0
      %675 = vmatpush1.msra.mxu0 0.0
      %676 = vmatprep.subr.mxu0 0.0
      %677 = vmatpush1.msra.mxu0 0.0
      %678 = vmatprep.subr.mxu0 0.0
      %679 = vmatpush1.msra.mxu0 0.0
      %680 = vmatprep.subr.mxu0 0.0
      %681 = vmatpush1.msra.mxu0 0.0
      %682 = vmatprep.subr.mxu0 0.0
      %683 = vmatpush1.msra.mxu0 0.0
      %684 = vmatprep.subr.mxu0 0.0
      %685 = vmatpush1.msra.mxu0 0.0
      %686 = vmatprep.subr.mxu0 0.0
      %687 = vmatpush1.msra.mxu0 0.0
      %688 = vmatprep.subr.mxu0 0.0
      %689 = vmatpush1.msra.mxu0 0.0
      %690 = vmatprep.subr.mxu0 0.0
      %691 = vmatpush1.msra.mxu0 0.0
      %692 = vmatprep.subr.mxu0 0.0
      %693 = vmatpush1.msra.mxu0 0.0
      %694 = vmatprep.subr.mxu0 0.0
      %695 = vmatpush1.msra.mxu0 0.0
      %696 = vmatprep.subr.mxu0 0.0
      %697 = vmatpush1.msra.mxu0 0.0
      %698 = vmatprep.subr.mxu0 0.0
      %699 = vmatpush1.msra.mxu0 0.0
      %700 = vmatprep.subr.mxu0 0.0
      %701 = vmatpush1.msra.mxu0 0.0
      %702 = vmatprep.subr.mxu0 0.0
      %703 = vmatpush1.msra.mxu0 0.0
      %704 = vmatprep.subr.mxu0 0.0
      %705 = vmatpush1.msra.mxu0 0.0
      %706 = vmatprep.subr.mxu0 0.0
      %707 = vmatpush1.msra.mxu0 0.0
      %708 = vmatprep.subr.mxu0 0.0
      %709 = vmatpush1.msra.mxu0 0.0
      %710 = vmatprep.subr.mxu0 0.0
      %711 = vmatpush1.msra.mxu0 0.0
      %712 = vmatprep.subr.mxu0 0.0
      %713 = vmatpush1.msra.mxu0 0.0
      %714 = vmatprep.subr.mxu0 0.0
      %715 = vmatpush1.msra.mxu0 0.0
      %716 = vmatprep.subr.mxu0 0.0
      %717 = vmatpush1.msra.mxu0 0.0
      %718 = vmatprep.subr.mxu0 0.0
      %719 = vmatpush1.msra.mxu0 0.0
      %720 = vmatprep.subr.mxu0 0.0
      %721 = vmatpush1.msra.mxu0 0.0
      %722 = vmatprep.subr.mxu0 0.0
      %723 = vmatpush1.msra.mxu0 0.0
      %724 = vmatprep.subr.mxu0 0.0
      %725 = vmatpush1.msra.mxu0 0.0
      %726 = vmatprep.subr.mxu0 0.0
      %727 = vmatpush1.msra.mxu0 0.0
      %728 = vmatprep.subr.mxu0 0.0
      %729 = vmatpush1.msra.mxu0 0.0
      %730 = vmatprep.subr.mxu0 0.0
      %731 = vmatpush1.msra.mxu0 0.0
      %732 = vmatprep.mubr.f32.mxu0 0.0
      %733 = vmatmul.mubr.f32.gmra.mrb[0].mxu0 %v663
      %v734 = vpop.f32.mrb[0].mxu0
      %v735 = vadd.f32 0.0, %v734
      %v736 = vpop.f32.mrb[0].mxu0
      %v737 = vadd.f32 0.0, %v736
      %738 = vmatprep.mubr.f32.mxu0 0.0
      %739 = vmatmul.mubr.f32.gmra.mrb[0].mxu0 %v666
      %v740 = vpop.f32.mrb[0].mxu0
      %v741 = vadd.f32 0.0, %v740
      %v742 = vpop.f32.mrb[0].mxu0
      %v743 = vadd.f32 0.0, %v742
      %744 = vdwg.mxu0
      %v745 = vld [vmem:[%s4] sm:$0xff]
      %v746 = vld [vmem:[%s4 + $0x8] sm:$0xff]
      %v747 = vld [vmem:[%s4 + $0x10] sm:$0xff]
      %v748 = vld [vmem:[%s4 + $0x18] sm:$0xff]
      %v749 = vld [vmem:[%s4 + $0x20] sm:$0xff]
      %v750 = vld [vmem:[%s4 + $0x28] sm:$0xff]
      %v751 = vld [vmem:[%s4 + $0x30] sm:$0xff]
      %v752 = vld [vmem:[%s4 + $0x38] sm:$0xff]
      %v753 = vld [vmem:[%s4 + $0x40] sm:$0xff]
      %v754 = vld [vmem:[%s4 + $0x48] sm:$0xff]
      %v755 = vld [vmem:[%s4 + $0x50] sm:$0xff]
      %v756 = vld [vmem:[%s4 + $0x58] sm:$0xff]
      %v757 = vld [vmem:[%s4 + $0x60] sm:$0xff]
      %v758 = vld [vmem:[%s4 + $0x68] sm:$0xff]
      %v759 = vld [vmem:[%s4 + $0x70] sm:$0xff]
      %v760 = vld [vmem:[%s4 + $0x78] sm:$0xff]
      %v761 = vld [vmem:[%s4 + $0x80] sm:$0xff]
      %v762 = vld [vmem:[%s4 + $0x88] sm:$0xff]
      %v763 = vld [vmem:[%s4 + $0x90] sm:$0xff]
      %v764 = vld [vmem:[%s4 + $0x98] sm:$0xff]
      %v765 = vld [vmem:[%s4 + $0xa0] sm:$0xff]
      %v766 = vld [vmem:[%s4 + $0xa8] sm:$0xff]
      %v767 = vld [vmem:[%s4 + $0xb0] sm:$0xff]
      %v768 = vld [vmem:[%s4 + $0xb8] sm:$0xff]
      %v769 = vld [vmem:[%s4 + $0xc0] sm:$0xff]
      %v770 = vld [vmem:[%s4 + $0xc8] sm:$0xff]
      %v771 = vld [vmem:[%s4 + $0xd0] sm:$0xff]
      %v772 = vld [vmem:[%s4 + $0xd8] sm:$0xff]
      %v773 = vld [vmem:[%s4 + $0xe0] sm:$0xff]
      %v774 = vld [vmem:[%s4 + $0xe8] sm:$0xff]
      %v775 = vld [vmem:[%s4 + $0xf0] sm:$0xff]
      %v776 = vld [vmem:[%s4 + $0xf8] sm:$0xff]
      %v777 = vld [vmem:[%s4 + $0x100] sm:$0xff]
      %v778 = vld [vmem:[%s4 + $0x108] sm:$0xff]
      %v779 = vld [vmem:[%s4 + $0x110] sm:$0xff]
      %v780 = vld [vmem:[%s4 + $0x118] sm:$0xff]
      %v781 = vld [vmem:[%s4 + $0x120] sm:$0xff]
      %v782 = vld [vmem:[%s4 + $0x128] sm:$0xff]
      %v783 = vld [vmem:[%s4 + $0x130] sm:$0xff]
      %v784 = vld [vmem:[%s4 + $0x138] sm:$0xff]
      %v785 = vld [vmem:[%s4 + $0x140] sm:$0xff]
      %v786 = vld [vmem:[%s4 + $0x148] sm:$0xff]
      %v787 = vld [vmem:[%s4 + $0x150] sm:$0xff]
      %v788 = vld [vmem:[%s4 + $0x158] sm:$0xff]
      %v789 = vld [vmem:[%s4 + $0x160] sm:$0xff]
      %v790 = vld [vmem:[%s4 + $0x168] sm:$0xff]
      %v791 = vld [vmem:[%s4 + $0x170] sm:$0xff]
      %v792 = vld [vmem:[%s4 + $0x178] sm:$0xff]
      %v793 = vld [vmem:[%s4 + $0x180] sm:$0xff]
      %v794 = vld [vmem:[%s4 + $0x188] sm:$0xff]
      %v795 = vld [vmem:[%s4 + $0x190] sm:$0xff]
      %v796 = vld [vmem:[%s4 + $0x198] sm:$0xff]
      %v797 = vld [vmem:[%s4 + $0x1a0] sm:$0xff]
      %v798 = vld [vmem:[%s4 + $0x1a8] sm:$0xff]
      %v799 = vld [vmem:[%s4 + $0x1b0] sm:$0xff]
      %v800 = vld [vmem:[%s4 + $0x1b8] sm:$0xff]
      %v801 = vld [vmem:[%s4 + $0x1c0] sm:$0xff]
      %v802 = vld [vmem:[%s4 + $0x1c8] sm:$0xff]
      %v803 = vld [vmem:[%s4 + $0x1d0] sm:$0xff]
      %v804 = vld [vmem:[%s4 + $0x1d8] sm:$0xff]
      %v805 = vld [vmem:[%s4 + $0x1e0] sm:$0xff]
      %v806 = vld [vmem:[%s4 + $0x1e8] sm:$0xff]
      %v807 = vld [vmem:[%s4 + $0x1f0] sm:$0xff]
      %v808 = vld [vmem:[%s4 + $0x1f8] sm:$0xff]
      %v809 = vld [vmem:[%s4 + $0x200] sm:$0xff]
      %v810 = vld [vmem:[%s4 + $0x208] sm:$0xff]
      %v811 = vld [vmem:[%s4 + $0x210] sm:$0xff]
      %v812 = vld [vmem:[%s4 + $0x218] sm:$0xff]
      %v813 = vld [vmem:[%s4 + $0x220] sm:$0xff]
      %v814 = vld [vmem:[%s4 + $0x228] sm:$0xff]
      %v815 = vld [vmem:[%s4 + $0x230] sm:$0xff]
      %v816 = vld [vmem:[%s4 + $0x238] sm:$0xff]
      %v817 = vld [vmem:[%s4 + $0x240] sm:$0xff]
      %v818 = vld [vmem:[%s4 + $0x248] sm:$0xff]
      %v819 = vld [vmem:[%s4 + $0x250] sm:$0xff]
      %v820 = vld [vmem:[%s4 + $0x258] sm:$0xff]
      %v821 = vld [vmem:[%s4 + $0x260] sm:$0xff]
      %v822 = vld [vmem:[%s4 + $0x268] sm:$0xff]
      %v823 = vld [vmem:[%s4 + $0x270] sm:$0xff]
      %v824 = vld [vmem:[%s4 + $0x278] sm:$0xff]
      %v825 = vld [vmem:[%s4 + $0x280] sm:$0xff]
      %v826 = vld [vmem:[%s4 + $0x288] sm:$0xff]
      %v827 = vld [vmem:[%s4 + $0x290] sm:$0xff]
      %v828 = vld [vmem:[%s4 + $0x298] sm:$0xff]
      %v829 = vld [vmem:[%s4 + $0x2a0] sm:$0xff]
      %v830 = vld [vmem:[%s4 + $0x2a8] sm:$0xff]
      %v831 = vld [vmem:[%s4 + $0x2b0] sm:$0xff]
      %v832 = vld [vmem:[%s4 + $0x2b8] sm:$0xff]
      %v833 = vld [vmem:[%s4 + $0x2c0] sm:$0xff]
      %v834 = vld [vmem:[%s4 + $0x2c8] sm:$0xff]
      %v835 = vld [vmem:[%s4 + $0x2d0] sm:$0xff]
      %v836 = vld [vmem:[%s4 + $0x2d8] sm:$0xff]
      %v837 = vld [vmem:[%s4 + $0x2e0] sm:$0xff]
      %v838 = vld [vmem:[%s4 + $0x2e8] sm:$0xff]
      %v839 = vld [vmem:[%s4 + $0x2f0] sm:$0xff]
      %v840 = vld [vmem:[%s4 + $0x2f8] sm:$0xff]
      %v841 = vld [vmem:[%s4 + $0x300] sm:$0xff]
      %v842 = vld [vmem:[%s4 + $0x308] sm:$0xff]
      %v843 = vld [vmem:[%s4 + $0x310] sm:$0xff]
      %v844 = vld [vmem:[%s4 + $0x318] sm:$0xff]
      %v845 = vld [vmem:[%s4 + $0x320] sm:$0xff]
      %v846 = vld [vmem:[%s4 + $0x328] sm:$0xff]
      %v847 = vld [vmem:[%s4 + $0x330] sm:$0xff]
      %v848 = vld [vmem:[%s4 + $0x338] sm:$0xff]
      %v849 = vld [vmem:[%s4 + $0x340] sm:$0xff]
      %v850 = vld [vmem:[%s4 + $0x348] sm:$0xff]
      %v851 = vld [vmem:[%s4 + $0x350] sm:$0xff]
      %v852 = vld [vmem:[%s4 + $0x358] sm:$0xff]
      %v853 = vld [vmem:[%s4 + $0x360] sm:$0xff]
      %v854 = vld [vmem:[%s4 + $0x368] sm:$0xff]
      %v855 = vld [vmem:[%s4 + $0x370] sm:$0xff]
      %v856 = vld [vmem:[%s4 + $0x378] sm:$0xff]
      %v857 = vld [vmem:[%s4 + $0x380] sm:$0xff]
      %v858 = vld [vmem:[%s4 + $0x388] sm:$0xff]
      %v859 = vld [vmem:[%s4 + $0x390] sm:$0xff]
      %v860 = vld [vmem:[%s4 + $0x398] sm:$0xff]
      %v861 = vld [vmem:[%s4 + $0x3a0] sm:$0xff]
      %v862 = vld [vmem:[%s4 + $0x3a8] sm:$0xff]
      %v863 = vld [vmem:[%s4 + $0x3b0] sm:$0xff]
      %v864 = vld [vmem:[%s4 + $0x3b8] sm:$0xff]
      %v865 = vld [vmem:[%s4 + $0x3c0] sm:$0xff]
      %v866 = vld [vmem:[%s4 + $0x3c8] sm:$0xff]
      %v867 = vld [vmem:[%s4 + $0x3d0] sm:$0xff]
      %v868 = vld [vmem:[%s4 + $0x3d8] sm:$0xff]
      %v869 = vld [vmem:[%s4 + $0x3e0] sm:$0xff]
      %v870 = vld [vmem:[%s4 + $0x3e8] sm:$0xff]
      %v871 = vld [vmem:[%s4 + $0x3f0] sm:$0xff]
      %v872 = vld [vmem:[%s4 + $0x3f8] sm:$0xff]
      %v873 = vld [vmem:[%s4 + $0x400] sm:$0xff]
      %v874 = vld [vmem:[%s4 + $0x408] sm:$0xff]
      %v875 = vld [vmem:[%s4 + $0x410] sm:$0xff]
      %v876 = vld [vmem:[%s4 + $0x418] sm:$0xff]
      %v877 = vld [vmem:[%s4 + $0x420] sm:$0xff]
      %v878 = vld [vmem:[%s4 + $0x428] sm:$0xff]
      %v879 = vld [vmem:[%s4 + $0x430] sm:$0xff]
      %v880 = vld [vmem:[%s4 + $0x438] sm:$0xff]
      %v881 = vld [vmem:[%s4 + $0x440] sm:$0xff]
      %v882 = vld [vmem:[%s4 + $0x448] sm:$0xff]
      %v883 = vld [vmem:[%s4 + $0x450] sm:$0xff]
      %v884 = vld [vmem:[%s4 + $0x458] sm:$0xff]
      %v885 = vld [vmem:[%s4 + $0x460] sm:$0xff]
      %v886 = vld [vmem:[%s4 + $0x468] sm:$0xff]
      %v887 = vld [vmem:[%s4 + $0x470] sm:$0xff]
      %v888 = vld [vmem:[%s4 + $0x478] sm:$0xff]
      %889 = vmatprep.subr.mxu0 0.0
      %890 = vmatpush1.msra.mxu0 %v745
      %891 = vmatprep.subr.mxu0 0.0
      %892 = vmatpush1.msra.mxu0 %v746
      %893 = vmatprep.subr.mxu0 0.0
      %894 = vmatpush1.msra.mxu0 %v747
      %895 = vmatprep.subr.mxu0 0.0
      %896 = vmatpush1.msra.mxu0 %v748
      %897 = vmatprep.subr.mxu0 0.0
      %898 = vmatpush1.msra.mxu0 %v749
      %899 = vmatprep.subr.mxu0 0.0
      %900 = vmatpush1.msra.mxu0 %v750
      %901 = vmatprep.subr.mxu0 0.0
      %902 = vmatpush1.msra.mxu0 %v751
      %903 = vmatprep.subr.mxu0 0.0
      %904 = vmatpush1.msra.mxu0 %v752
      %905 = vmatprep.subr.mxu0 0.0
      %906 = vmatpush1.msra.mxu0 %v753
      %907 = vmatprep.subr.mxu0 0.0
      %908 = vmatpush1.msra.mxu0 %v754
      %909 = vmatprep.subr.mxu0 0.0
      %910 = vmatpush1.msra.mxu0 %v755
      %911 = vmatprep.subr.mxu0 0.0
      %912 = vmatpush1.msra.mxu0 %v756
      %913 = vmatprep.subr.mxu0 0.0
      %914 = vmatpush1.msra.mxu0 %v757
      %915 = vmatprep.subr.mxu0 0.0
      %916 = vmatpush1.msra.mxu0 %v758
      %917 = vmatprep.subr.mxu0 0.0
      %918 = vmatpush1.msra.mxu0 %v759
      %919 = vmatprep.subr.mxu0 0.0
      %920 = vmatpush1.msra.mxu0 %v760
      %921 = vmatprep.subr.mxu0 0.0
      %922 = vmatpush1.msra.mxu0 %v761
      %923 = vmatprep.subr.mxu0 0.0
      %924 = vmatpush1.msra.mxu0 %v762
      %925 = vmatprep.subr.mxu0 0.0
      %926 = vmatpush1.msra.mxu0 %v763
      %927 = vmatprep.subr.mxu0 0.0
      %928 = vmatpush1.msra.mxu0 %v764
      %929 = vmatprep.subr.mxu0 0.0
      %930 = vmatpush1.msra.mxu0 %v765
      %931 = vmatprep.subr.mxu0 0.0
      %932 = vmatpush1.msra.mxu0 %v766
      %933 = vmatprep.subr.mxu0 0.0
      %934 = vmatpush1.msra.mxu0 %v767
      %935 = vmatprep.subr.mxu0 0.0
      %936 = vmatpush1.msra.mxu0 %v768
      %937 = vmatprep.subr.mxu0 0.0
      %938 = vmatpush1.msra.mxu0 %v769
      %939 = vmatprep.subr.mxu0 0.0
      %940 = vmatpush1.msra.mxu0 %v770
      %941 = vmatprep.subr.mxu0 0.0
      %942 = vmatpush1.msra.mxu0 %v771
      %943 = vmatprep.subr.mxu0 0.0
      %944 = vmatpush1.msra.mxu0 %v772
      %945 = vmatprep.subr.mxu0 0.0
      %946 = vmatpush1.msra.mxu0 %v773
      %947 = vmatprep.subr.mxu0 0.0
      %948 = vmatpush1.msra.mxu0 %v774
      %949 = vmatprep.subr.mxu0 0.0
      %950 = vmatpush1.msra.mxu0 %v775
      %951 = vmatprep.subr.mxu0 0.0
      %952 = vmatpush1.msra.mxu0 %v776
      %953 = vmatprep.mubr.f32.mxu0 %v477
      %954 = vmatmul.mubr.f32.gmra.mrb[0].mxu0 %v393
      %v955 = vpop.f32.mrb[0].mxu0
      %v956 = vadd.f32 0.0, %v955
      %v957 = vpop.f32.mrb[0].mxu0
      %958 = vmatprep.mubr.f32.mxu0 %v482
      %959 = vmatmul.mubr.f32.gmra.mrb[0].mxu0 %v398
      %v960 = vpop.f32.mrb[0].mxu0
      %v961 = vadd.f32 0.0, %v960
      %v962 = vpop.f32.mrb[0].mxu0
      %963 = vdwg.mxu0
      %964 = vmatprep.subr.mxu0 0.0
      %965 = vmatpush1.msra.mxu0 %v777
      %966 = vmatprep.subr.mxu0 0.0
      %967 = vmatpush1.msra.mxu0 %v778
      %968 = vmatprep.subr.mxu0 0.0
      %969 = vmatpush1.msra.mxu0 %v779
      %970 = vmatprep.subr.mxu0 0.0
      %971 = vmatpush1.msra.mxu0 %v780
      %972 = vmatprep.subr.mxu0 0.0
      %973 = vmatpush1.msra.mxu0 %v781
      %974 = vmatprep.subr.mxu0 0.0
      %975 = vmatpush1.msra.mxu0 %v782
      %976 = vmatprep.subr.mxu0 0.0
      %977 = vmatpush1.msra.mxu0 %v783
      %978 = vmatprep.subr.mxu0 0.0
      %979 = vmatpush1.msra.mxu0 %v784
      %980 = vmatprep.subr.mxu0 0.0
      %981 = vmatpush1.msra.mxu0 %v785
      %982 = vmatprep.subr.mxu0 0.0
      %983 = vmatpush1.msra.mxu0 %v786
      %984 = vmatprep.subr.mxu0 0.0
      %985 = vmatpush1.msra.mxu0 %v787
      %986 = vmatprep.subr.mxu0 0.0
      %987 = vmatpush1.msra.mxu0 %v788
      %988 = vmatprep.subr.mxu0 0.0
      %989 = vmatpush1.msra.mxu0 %v789
      %990 = vmatprep.subr.mxu0 0.0
      %991 = vmatpush1.msra.mxu0 %v790
      %992 = vmatprep.subr.mxu0 0.0
      %993 = vmatpush1.msra.mxu0 %v791
      %994 = vmatprep.subr.mxu0 0.0
      %995 = vmatpush1.msra.mxu0 %v792
      %996 = vmatprep.subr.mxu0 0.0
      %997 = vmatpush1.msra.mxu0 %v793
      %998 = vmatprep.subr.mxu0 0.0
      %999 = vmatpush1.msra.mxu0 %v794
      %1000 = vmatprep.subr.mxu0 0.0
      %1001 = vmatpush1.msra.mxu0 %v795
      %1002 = vmatprep.subr.mxu0 0.0
      %1003 = vmatpush1.msra.mxu0 %v796
      %1004 = vmatprep.subr.mxu0 0.0
      %1005 = vmatpush1.msra.mxu0 %v797
      %1006 = vmatprep.subr.mxu0 0.0
      %1007 = vmatpush1.msra.mxu0 %v798
      %1008 = vmatprep.subr.mxu0 0.0
      %1009 = vmatpush1.msra.mxu0 %v799
      %1010 = vmatprep.subr.mxu0 0.0
      %1011 = vmatpush1.msra.mxu0 %v800
      %1012 = vmatprep.subr.mxu0 0.0
      %1013 = vmatpush1.msra.mxu0 %v801
      %1014 = vmatprep.subr.mxu0 0.0
      %1015 = vmatpush1.msra.mxu0 %v802
      %1016 = vmatprep.subr.mxu0 0.0
      %1017 = vmatpush1.msra.mxu0 %v803
      %1018 = vmatprep.subr.mxu0 0.0
      %1019 = vmatpush1.msra.mxu0 %v804
      %1020 = vmatprep.subr.mxu0 0.0
      %1021 = vmatpush1.msra.mxu0 %v805
      %1022 = vmatprep.subr.mxu0 0.0
      %1023 = vmatpush1.msra.mxu0 %v806
      %1024 = vmatprep.subr.mxu0 0.0
      %1025 = vmatpush1.msra.mxu0 %v807
      %1026 = vmatprep.subr.mxu0 0.0
      %1027 = vmatpush1.msra.mxu0 %v808
      %1028 = vmatprep.mubr.f32.mxu0 %v649
      %1029 = vmatmul.mubr.f32.gmra.mrb[0].mxu0 %v561
      %v1030 = vpop.f32.mrb[0].mxu0
      %v1031 = vadd.f32 %v956, %v1030
      %v1032 = vpop.f32.mrb[0].mxu0
      %1033 = vmatprep.mubr.f32.mxu0 %v655
      %1034 = vmatmul.mubr.f32.gmra.mrb[0].mxu0 %v566
      %v1035 = vpop.f32.mrb[0].mxu0
      %v1036 = vadd.f32 %v961, %v1035
      %v1037 = vpop.f32.mrb[0].mxu0
      %1038 = vdwg.mxu0
      %1039 = vmatprep.subr.mxu0 0.0
      %1040 = vmatpush1.msra.mxu0 %v809
      %1041 = vmatprep.subr.mxu0 0.0
      %1042 = vmatpush1.msra.mxu0 %v810
      %1043 = vmatprep.subr.mxu0 0.0
      %1044 = vmatpush1.msra.mxu0 %v811
      %1045 = vmatprep.subr.mxu0 0.0
      %1046 = vmatpush1.msra.mxu0 %v812
      %1047 = vmatprep.subr.mxu0 0.0
      %1048 = vmatpush1.msra.mxu0 %v813
      %1049 = vmatprep.subr.mxu0 0.0
      %1050 = vmatpush1.msra.mxu0 %v814
      %1051 = vmatprep.subr.mxu0 0.0
      %1052 = vmatpush1.msra.mxu0 %v815
      %1053 = vmatprep.subr.mxu0 0.0
      %1054 = vmatpush1.msra.mxu0 %v816
      %1055 = vmatprep.subr.mxu0 0.0
      %1056 = vmatpush1.msra.mxu0 %v817
      %1057 = vmatprep.subr.mxu0 0.0
      %1058 = vmatpush1.msra.mxu0 %v818
      %1059 = vmatprep.subr.mxu0 0.0
      %1060 = vmatpush1.msra.mxu0 %v819
      %1061 = vmatprep.subr.mxu0 0.0
      %1062 = vmatpush1.msra.mxu0 %v820
      %1063 = vmatprep.subr.mxu0 0.0
      %1064 = vmatpush1.msra.mxu0 %v821
      %1065 = vmatprep.subr.mxu0 0.0
      %1066 = vmatpush1.msra.mxu0 %v822
      %1067 = vmatprep.subr.mxu0 0.0
      %1068 = vmatpush1.msra.mxu0 %v823
      %1069 = vmatprep.subr.mxu0 0.0
      %1070 = vmatpush1.msra.mxu0 %v824
      %1071 = vmatprep.subr.mxu0 0.0
      %1072 = vmatpush1.msra.mxu0 %v825
      %1073 = vmatprep.subr.mxu0 0.0
      %1074 = vmatpush1.msra.mxu0 %v826
      %1075 = vmatprep.subr.mxu0 0.0
      %1076 = vmatpush1.msra.mxu0 %v827
      %1077 = vmatprep.subr.mxu0 0.0
      %1078 = vmatpush1.msra.mxu0 %v828
      %1079 = vmatprep.subr.mxu0 0.0
      %1080 = vmatpush1.msra.mxu0 %v829
      %1081 = vmatprep.subr.mxu0 0.0
      %1082 = vmatpush1.msra.mxu0 %v830
      %1083 = vmatprep.subr.mxu0 0.0
      %1084 = vmatpush1.msra.mxu0 %v831
      %1085 = vmatprep.subr.mxu0 0.0
      %1086 = vmatpush1.msra.mxu0 %v832
      %1087 = vmatprep.subr.mxu0 0.0
      %1088 = vmatpush1.msra.mxu0 %v833
      %1089 = vmatprep.subr.mxu0 0.0
      %1090 = vmatpush1.msra.mxu0 %v834
      %1091 = vmatprep.subr.mxu0 0.0
      %1092 = vmatpush1.msra.mxu0 %v835
      %1093 = vmatprep.subr.mxu0 0.0
      %1094 = vmatpush1.msra.mxu0 %v836
      %1095 = vmatprep.subr.mxu0 0.0
      %1096 = vmatpush1.msra.mxu0 %v837
      %1097 = vmatprep.subr.mxu0 0.0
      %1098 = vmatpush1.msra.mxu0 %v838
      %1099 = vmatprep.subr.mxu0 0.0
      %1100 = vmatpush1.msra.mxu0 %v839
      %1101 = vmatprep.subr.mxu0 0.0
      %1102 = vmatpush1.msra.mxu0 %v840
      %1103 = vmatprep.mubr.f32.mxu0 %v569
      %1104 = vmatmul.mubr.f32.gmra.mrb[0].mxu0 %v651
      %v1105 = vpop.f32.mrb[0].mxu0
      %v1106 = vadd.f32 %v1031, %v1105
      %v1107 = vpop.f32.mrb[0].mxu0
      %1108 = vmatprep.mubr.f32.mxu0 %v571
      %1109 = vmatmul.mubr.f32.gmra.mrb[0].mxu0 %v657
      %v1110 = vpop.f32.mrb[0].mxu0
      %v1111 = vadd.f32 %v1036, %v1110
      %v1112 = vpop.f32.mrb[0].mxu0
      %1113 = vdwg.mxu0
      %1114 = vmatprep.subr.mxu0 0.0
      %1115 = vmatpush1.msra.mxu0 %v841
      %1116 = vmatprep.subr.mxu0 0.0
      %1117 = vmatpush1.msra.mxu0 %v842
      %1118 = vmatprep.subr.mxu0 0.0
      %1119 = vmatpush1.msra.mxu0 %v843
      %1120 = vmatprep.subr.mxu0 0.0
      %1121 = vmatpush1.msra.mxu0 %v844
      %1122 = vmatprep.subr.mxu0 0.0
      %1123 = vmatpush1.msra.mxu0 %v845
      %1124 = vmatprep.subr.mxu0 0.0
      %1125 = vmatpush1.msra.mxu0 %v846
      %1126 = vmatprep.subr.mxu0 0.0
      %1127 = vmatpush1.msra.mxu0 %v847
      %1128 = vmatprep.subr.mxu0 0.0
      %1129 = vmatpush1.msra.mxu0 %v848
      %1130 = vmatprep.subr.mxu0 0.0
      %1131 = vmatpush1.msra.mxu0 %v849
      %1132 = vmatprep.subr.mxu0 0.0
      %1133 = vmatpush1.msra.mxu0 %v850
      %1134 = vmatprep.subr.mxu0 0.0
      %1135 = vmatpush1.msra.mxu0 %v851
      %1136 = vmatprep.subr.mxu0 0.0
      %1137 = vmatpush1.msra.mxu0 %v852
      %1138 = vmatprep.subr.mxu0 0.0
      %1139 = vmatpush1.msra.mxu0 %v853
      %1140 = vmatprep.subr.mxu0 0.0
      %1141 = vmatpush1.msra.mxu0 %v854
      %1142 = vmatprep.subr.mxu0 0.0
      %1143 = vmatpush1.msra.mxu0 %v855
      %1144 = vmatprep.subr.mxu0 0.0
      %1145 = vmatpush1.msra.mxu0 %v856
      %1146 = vmatprep.subr.mxu0 0.0
      %1147 = vmatpush1.msra.mxu0 %v857
      %1148 = vmatprep.subr.mxu0 0.0
      %1149 = vmatpush1.msra.mxu0 %v858
      %1150 = vmatprep.subr.mxu0 0.0
      %1151 = vmatpush1.msra.mxu0 %v859
      %1152 = vmatprep.subr.mxu0 0.0
      %1153 = vmatpush1.msra.mxu0 %v860
      %1154 = vmatprep.subr.mxu0 0.0
      %1155 = vmatpush1.msra.mxu0 %v861
      %1156 = vmatprep.subr.mxu0 0.0
      %1157 = vmatpush1.msra.mxu0 %v862
      %1158 = vmatprep.subr.mxu0 0.0
      %1159 = vmatpush1.msra.mxu0 %v863
      %1160 = vmatprep.subr.mxu0 0.0
      %1161 = vmatpush1.msra.mxu0 %v864
      %1162 = vmatprep.subr.mxu0 0.0
      %1163 = vmatpush1.msra.mxu0 %v865
      %1164 = vmatprep.subr.mxu0 0.0
      %1165 = vmatpush1.msra.mxu0 %v866
      %1166 = vmatprep.subr.mxu0 0.0
      %1167 = vmatpush1.msra.mxu0 %v867
      %1168 = vmatprep.subr.mxu0 0.0
      %1169 = vmatpush1.msra.mxu0 %v868
      %1170 = vmatprep.subr.mxu0 0.0
      %1171 = vmatpush1.msra.mxu0 %v869
      %1172 = vmatprep.subr.mxu0 0.0
      %1173 = vmatpush1.msra.mxu0 %v870
      %1174 = vmatprep.subr.mxu0 0.0
      %1175 = vmatpush1.msra.mxu0 %v871
      %1176 = vmatprep.subr.mxu0 0.0
      %1177 = vmatpush1.msra.mxu0 %v872
      %1178 = vmatprep.mubr.f32.mxu0 %v735
      %1179 = vmatmul.mubr.f32.gmra.mrb[0].mxu0 %v570
      %v1180 = vpop.f32.mrb[0].mxu0
      %v1181 = vadd.f32 %v1106, %v1180
      %v1182 = vpop.f32.mrb[0].mxu0
      %1183 = vmatprep.mubr.f32.mxu0 %v741
      %1184 = vmatmul.mubr.f32.gmra.mrb[0].mxu0 %v572
      %v1185 = vpop.f32.mrb[0].mxu0
      %v1186 = vadd.f32 %v1111, %v1185
      %v1187 = vpop.f32.mrb[0].mxu0
      %1188 = vdwg.mxu0
      %1189 = vmatprep.subr.mxu0 0.0
      %1190 = vmatpush1.msra.mxu0 %v873
      %1191 = vmatprep.subr.mxu0 0.0
      %1192 = vmatpush1.msra.mxu0 %v874
      %1193 = vmatprep.subr.mxu0 0.0
      %1194 = vmatpush1.msra.mxu0 %v875
      %1195 = vmatprep.subr.mxu0 0.0
      %1196 = vmatpush1.msra.mxu0 %v876
      %1197 = vmatprep.subr.mxu0 0.0
      %1198 = vmatpush1.msra.mxu0 %v877
      %1199 = vmatprep.subr.mxu0 0.0
      %1200 = vmatpush1.msra.mxu0 %v878
      %1201 = vmatprep.subr.mxu0 0.0
      %1202 = vmatpush1.msra.mxu0 %v879
      %1203 = vmatprep.subr.mxu0 0.0
      %1204 = vmatpush1.msra.mxu0 %v880
      %1205 = vmatprep.subr.mxu0 0.0
      %1206 = vmatpush1.msra.mxu0 %v881
      %1207 = vmatprep.subr.mxu0 0.0
      %1208 = vmatpush1.msra.mxu0 %v882
      %1209 = vmatprep.subr.mxu0 0.0
      %1210 = vmatpush1.msra.mxu0 %v883
      %1211 = vmatprep.subr.mxu0 0.0
      %1212 = vmatpush1.msra.mxu0 %v884
      %1213 = vmatprep.subr.mxu0 0.0
      %1214 = vmatpush1.msra.mxu0 %v885
      %1215 = vmatprep.subr.mxu0 0.0
      %1216 = vmatpush1.msra.mxu0 %v886
      %1217 = vmatprep.subr.mxu0 0.0
      %1218 = vmatpush1.msra.mxu0 %v887
      %1219 = vmatprep.subr.mxu0 0.0
      %1220 = vmatpush1.msra.mxu0 %v888
      %1221 = vmatprep.subr.mxu0 0.0
      %1222 = vmatpush1.msra.mxu0 0.0
      %1223 = vmatprep.subr.mxu0 0.0
      %1224 = vmatpush1.msra.mxu0 0.0
      %1225 = vmatprep.subr.mxu0 0.0
      %1226 = vmatpush1.msra.mxu0 0.0
      %1227 = vmatprep.subr.mxu0 0.0
      %1228 = vmatpush1.msra.mxu0 0.0
      %1229 = vmatprep.subr.mxu0 0.0
      %1230 = vmatpush1.msra.mxu0 0.0
      %1231 = vmatprep.subr.mxu0 0.0
      %1232 = vmatpush1.msra.mxu0 0.0
      %1233 = vmatprep.subr.mxu0 0.0
      %1234 = vmatpush1.msra.mxu0 0.0
      %1235 = vmatprep.subr.mxu0 0.0
      %1236 = vmatpush1.msra.mxu0 0.0
      %1237 = vmatprep.subr.mxu0 0.0
      %1238 = vmatpush1.msra.mxu0 0.0
      %1239 = vmatprep.subr.mxu0 0.0
      %1240 = vmatpush1.msra.mxu0 0.0
      %1241 = vmatprep.subr.mxu0 0.0
      %1242 = vmatpush1.msra.mxu0 0.0
      %1243 = vmatprep.subr.mxu0 0.0
      %1244 = vmatpush1.msra.mxu0 0.0
      %1245 = vmatprep.subr.mxu0 0.0
      %1246 = vmatpush1.msra.mxu0 0.0
      %1247 = vmatprep.subr.mxu0 0.0
      %1248 = vmatpush1.msra.mxu0 0.0
      %1249 = vmatprep.subr.mxu0 0.0
      %1250 = vmatpush1.msra.mxu0 0.0
      %1251 = vmatprep.subr.mxu0 0.0
      %1252 = vmatpush1.msra.mxu0 0.0
      %1253 = vmatprep.mubr.f32.mxu0 0.0
      %1254 = vmatmul.mubr.f32.gmra.mrb[0].mxu0 %v737
      %v1255 = vpop.f32.mrb[0].mxu0
      %v1256 = vadd.f32 %v1181, %v1255
      %v1257 = vpop.f32.mrb[0].mxu0
      %1258 = vmatprep.mubr.f32.mxu0 0.0
      %1259 = vmatmul.mubr.f32.gmra.mrb[0].mxu0 %v743
      %v1260 = vpop.f32.mrb[0].mxu0
      %v1261 = vadd.f32 %v1186, %v1260
      %v1262 = vpop.f32.mrb[0].mxu0
      %1263 = vdwg.mxu0
      %v1264 = vld [vmem:[%s5] sm:$0x1]
      %v1265 = vlaneseq
      %v1266 = vshrl.u32 %v1265, 7
      %v1267 = vsub.s32 0, %v1266
      %v1268 = vrot.slane %v1264, %v1267
      %v1269 = vmul.f32 %v1256, %v1268
      %v1270 = vmul.f32 %v1261, %v1268
      %v1271 = vld [vmem:[%s5 + $0x1] sm:$0x1]
      %v1272 = vlaneseq
      %v1273 = vshrl.u32 %v1272, 7
      %v1274 = vsub.s32 0, %v1273
      %v1275 = vrot.slane %v1271, %v1274
      %v1276 = vadd.f32 %v1269, %v1275
      %v1277 = vadd.f32 %v1270, %v1275
      %v1278 = vmax.f32 %v1276, 0.0
      %v1279 = vmax.f32 %v1277, 0.0
      %v1280 = vld [vmem:[%s310] sm:$0xff]
      %v1281 = vld [vmem:[%s310 + $0x8] sm:$0xff]
      %v1282 = vadd.f32 %v1278, %v1280
      %v1283 = vadd.f32 %v1279, %v1281
      %1284 = vst [vmem:[%s315] sm:$0xff] %v1282
      %1285 = vst [vmem:[%s315 + $0x8] sm:$0xff] %v1283
      %p1286 = scmp.lt.s32.totalorder %s18, 1
      %s1287 = scalar_select %p1286, %s18, 1
      %s1288 = smul.addr %s1287, 2
      %s1289 = smul.addr %s1288, 8
      %s1290 = scalar_lea.vmem %s7, %s1289
      // Predicated region
      $region49: #{rsu6_forward.23} parent=47 // pred_check
        %p1291 = pneg %p198
      $region50: #{rsu6_forward.23} parent=47 // pred_check_branch
        %1293 = sbr.rel (%p1291) target = $region52
      $region51: #{rsu6_forward.23} parent=47 // pred_region
        _
      $region52: #{rsu6_forward.23} parent=47 // pred_fallthru
        _
    $region48: #{rsu6_forward.23} parent=5 // pred_fallthru
      _
    %p1294 = scmp.le.s32.totalorder 2, %s13
    // Predicated region
    $region53: #{rsu6_forward.23} parent=5 // pred_check
      %p1295 = pneg %p1294
    $region54: #{rsu6_forward.23} parent=5 // pred_check_branch
      %1297 = sbr.rel (%p1295) target = $region56
    $region55: #{rsu6_forward.23} parent=5 // pred_region
      %s1298 = ssub.s32 %s13, 2
      // Predicated region
      $region57: #{rsu6_forward.23} parent=55 // pred_check
        %p1299 = pneg %p204
      $region58: #{rsu6_forward.23} parent=55 // pred_check_branch
        %1301 = sbr.rel (%p1299) target = $region60
      $region59: #{rsu6_forward.23} parent=55 // pred_region
        %p1302 = scmp.lt.s32.totalorder %s19, 1
        %s1303 = scalar_select %p1302, %s19, 1
        %s1304 = smul.addr %s1303, 2
        %s1305 = smul.addr %s1304, 8
        %s1306 = scalar_lea.vmem %s7, %s1305
      $region60: #{rsu6_forward.23} parent=55 // pred_fallthru
        _
    $region56: #{rsu6_forward.23} parent=5 // pred_fallthru
      _
  $region6: #{rsu6_forward.23} parent=0 // loop_footer
    %s17 = sadd.s32 1, %s13
  $region7: #{rsu6_forward.23} parent=0 // loop_footer_branch
    %12 = sbr.rel target = $region3
  $region8: #{rsu6_forward.23} parent=0 // loop_exit
    _

</llo_original>
